<compile_context>
chip_gen: v7x
topology: tpu7x:2x2x1
jax: 0.10.0
libtpu: 0.0.40
codegen_flags: <defaults>
</compile_context>

<pallas_src>
import functools
import math

import jax
import jax.numpy as jnp
from jax.experimental import pallas as pl
from jax.experimental.pallas import tpu as pltpu


@functools.lru_cache(maxsize=None)
def _vmem_limit():
    """Half of physical VMEM: ~64 MiB on v5e/v6e (128 MiB), ~32 MiB on v7x."""
    try:
        cap = int(pltpu.get_tpu_info().vmem_capacity_bytes)
    except Exception:
        cap = 64 * 1024 * 1024
    return max(32 * 1024 * 1024, min(cap // 2, 96 * 1024 * 1024))


def _tile(dim, pref, align):
    """Largest block size <= pref that is a multiple of `align` and divides
    `dim`; falls back to the full dim (always a legal Pallas block shape)."""
    if dim <= pref:
        return dim
    t = (pref // align) * align
    while t >= align:
        if dim % t == 0:
            return t
        t -= align
    return dim


def _bf16(x):
    return x if x.dtype == jnp.bfloat16 else x.astype(jnp.bfloat16)


# ----------------------------------------------------------------------------
# Pallas kernels
# ----------------------------------------------------------------------------
def _linear_kernel(x_ref, w_ref, *rest, activation, has_bias, has_residual):
    """Tiled matmul: acc += x @ w over the K grid axis; bias/act/residual
    applied and stored (bf16) on the last K step."""
    rest = list(rest)
    b_ref = rest.pop(0) if has_bias else None
    res_ref = rest.pop(0) if has_residual else None
    o_ref, acc_ref = rest
    k = pl.program_id(2)

    @pl.when(k == 0)
    def _():
        acc_ref[...] = jnp.zeros_like(acc_ref)

    acc_ref[...] += jnp.dot(x_ref[...], w_ref[...],
                            preferred_element_type=jnp.float32)

    @pl.when(k == pl.num_programs(2) - 1)
    def _():
        y = acc_ref[...]
        if has_bias:
            y = y + b_ref[...]
        if activation == "quick_gelu":             # CLIP's QuickGELU
            y = y * jax.nn.sigmoid(1.702 * y)
        if has_residual:
            y = y + res_ref[...].astype(jnp.float32)
        o_ref[...] = y.astype(o_ref.dtype)


def pallas_linear(x, w, b=None, activation=None, residual=None,
                  out_dtype=jnp.bfloat16):
    """x: (M, K) bf16; w: (K, N) bf16 (pre-cast); b: (N,) f32.  f32 acc."""
    M, K = x.shape
    Kw, N = w.shape
    assert K == Kw
    tm = _tile(M, 512, 16)          # 16-aligned for bf16 sublane packing
    tn = _tile(N, 512, 128)
    tk = _tile(K, 512, 128)
    has_bias = b is not None
    has_res = residual is not None

    in_specs = [pl.BlockSpec((tm, tk), lambda i, j, k: (i, k)),
                pl.BlockSpec((tk, tn), lambda i, j, k: (k, j))]
    args = [_bf16(x), _bf16(w)]
    if has_bias:
        in_specs.append(pl.BlockSpec((1, tn), lambda i, j, k: (0, j)))
        args.append(b.reshape(1, N).astype(jnp.float32))
    if has_res:
        in_specs.append(pl.BlockSpec((tm, tn), lambda i, j, k: (i, j)))
        args.append(_bf16(residual))

    return pl.pallas_call(
        functools.partial(_linear_kernel, activation=activation,
                          has_bias=has_bias, has_residual=has_res),
        out_shape=jax.ShapeDtypeStruct((M, N), out_dtype),
        grid=(M // tm, N // tn, K // tk),
        in_specs=in_specs,
        out_specs=pl.BlockSpec((tm, tn), lambda i, j, k: (i, j)),
        scratch_shapes=[pltpu.VMEM((tm, tn), jnp.float32)],
        compiler_params=pltpu.CompilerParams(
            dimension_semantics=("parallel", "parallel", "arbitrary"),
            vmem_limit_bytes=_vmem_limit()),
    )(*args)


def _ln_linear_kernel(x_ref, g_ref, b_ref, w_ref, *rest,
                      activation, eps, has_bias):
    """Fused LayerNorm (f32 stats) + matmul (bf16 MXU) + bias + QuickGELU.
    The normalised, bf16-cast activations are cached in VMEM scratch so LN is
    computed once per row tile (not once per (i, j) tile)."""
    rest = list(rest)
    bias_ref = rest.pop(0) if has_bias else None
    o_ref, h_ref = rest
    j = pl.program_id(1)

    @pl.when(j == 0)
    def _():
        x = x_ref[...].astype(jnp.float32)
        mean = jnp.mean(x, axis=-1, keepdims=True)
        xc = x - mean
        var = jnp.mean(xc * xc, axis=-1, keepdims=True)
        h = (xc * jax.lax.rsqrt(var + eps)) * g_ref[...] + b_ref[...]
        h_ref[...] = h.astype(jnp.bfloat16)

    y = jnp.dot(h_ref[...], w_ref[...], preferred_element_type=jnp.float32)
    if has_bias:
        y = y + bias_ref[...]
    if activation == "quick_gelu":
        y = y * jax.nn.sigmoid(1.702 * y)
    o_ref[...] = y.astype(o_ref.dtype)


def pallas_ln_linear(x, gamma, beta, w, b=None, activation=None,
                     out_dtype=jnp.bfloat16, eps=1e-5):
    """LayerNorm(x) @ w + b.  Full-K blocks (LN needs whole rows), tiled M/N."""
    M, K = x.shape
    Kw, N = w.shape
    assert K == Kw
    tm = _tile(M, 256, 16)
    tn = _tile(N, 512, 128)
    has_bias = b is not None

    in_specs = [
        pl.BlockSpec((tm, K), lambda i, j: (i, 0)),
        pl.BlockSpec((1, K), lambda i, j: (0, 0)),
        pl.BlockSpec((1, K), lambda i, j: (0, 0)),
        pl.BlockSpec((K, tn), lambda i, j: (0, j)),
    ]
    args = [_bf16(x),
            gamma.reshape(1, K).astype(jnp.float32),
            beta.reshape(1, K).astype(jnp.float32),
            _bf16(w)]
    if has_bias:
        in_specs.append(pl.BlockSpec((1, tn), lambda i, j: (0, j)))
        args.append(b.reshape(1, N).astype(jnp.float32))

    return pl.pallas_call(
        functools.partial(_ln_linear_kernel, activation=activation, eps=eps,
                          has_bias=has_bias),
        out_shape=jax.ShapeDtypeStruct((M, N), out_dtype),
        grid=(M // tm, N // tn),
        in_specs=in_specs,
        out_specs=pl.BlockSpec((tm, tn), lambda i, j: (i, j)),
        scratch_shapes=[pltpu.VMEM((tm, K), jnp.bfloat16)],
        compiler_params=pltpu.CompilerParams(
            dimension_semantics=("parallel", "arbitrary"),
            vmem_limit_bytes=_vmem_limit()),
    )(*args)


def _add_ln_kernel(x_ref, a_ref, g_ref, b_ref, o_ref, *, eps):
    """Fused (x + positional_embedding) followed by LayerNorm (ln_pre)."""
    x = x_ref[0].astype(jnp.float32) + a_ref[...].astype(jnp.float32)
    mean = jnp.mean(x, axis=-1, keepdims=True)
    xc = x - mean
    var = jnp.mean(xc * xc, axis=-1, keepdims=True)
    y = (xc * jax.lax.rsqrt(var + eps)) * g_ref[...] + b_ref[...]
    o_ref[0] = y.astype(o_ref.dtype)


def pallas_add_layernorm(x, add, gamma, beta, eps=1e-5, out_dtype=jnp.bfloat16):
    """x: (B, S, D); add: (S, D) broadcast over B; returns LN(x + add)."""
    B, S, D = x.shape
    return pl.pallas_call(
        functools.partial(_add_ln_kernel, eps=eps),
        out_shape=jax.ShapeDtypeStruct((B, S, D), out_dtype),
        grid=(B,),
        in_specs=[
            pl.BlockSpec((1, S, D), lambda b: (b, 0, 0)),
            pl.BlockSpec((S, D), lambda b: (0, 0)),
            pl.BlockSpec((1, D), lambda b: (0, 0)),
            pl.BlockSpec((1, D), lambda b: (0, 0)),
        ],
        out_specs=pl.BlockSpec((1, S, D), lambda b: (b, 0, 0)),
        compiler_params=pltpu.CompilerParams(
            dimension_semantics=("parallel",),
            vmem_limit_bytes=_vmem_limit()),
    )(x, add.astype(jnp.float32),
      gamma.reshape(1, D).astype(jnp.float32),
      beta.reshape(1, D).astype(jnp.float32))


def _attention_kernel(q_ref, k_ref, v_ref, o_ref, m_ref, l_ref, acc_ref, *,
                      scale, causal, tkv):
    """One (batch*head) per outer grid step; online softmax over KV tiles.
    All loads/stores are full lane-dense (S, Dh) / (tkv, Dh) blocks."""
    kv = pl.program_id(1)

    @pl.when(kv == 0)
    def _():
        m_ref[...] = jnp.full(m_ref.shape, -1e30, jnp.float32)
        l_ref[...] = jnp.zeros_like(l_ref)
        acc_ref[...] = jnp.zeros_like(acc_ref)

    q = (q_ref[0].astype(jnp.float32) * scale).astype(jnp.bfloat16)   # (S, Dh)
    s = jax.lax.dot_general(q, k_ref[0], (((1,), (1,)), ((), ())),
                            preferred_element_type=jnp.float32)       # (S, tkv)
    if causal:
        row = jax.lax.broadcasted_iota(jnp.int32, s.shape, 0)
        col = jax.lax.broadcasted_iota(jnp.int32, s.shape, 1) + kv * tkv
        s = jnp.where(col > row, -1e30, s)

    m_prev = m_ref[...]
    m_new = jnp.maximum(m_prev, jnp.max(s, axis=-1, keepdims=True))
    alpha = jnp.exp(m_prev - m_new)
    p = jnp.exp(s - m_new)
    l_ref[...] = alpha * l_ref[...] + jnp.sum(p, axis=-1, keepdims=True)
    acc_ref[...] = alpha * acc_ref[...] + jnp.dot(
        p.astype(jnp.bfloat16), v_ref[0], preferred_element_type=jnp.float32)
    m_ref[...] = m_new

    @pl.when(kv == pl.num_programs(1) - 1)
    def _():
        o_ref[0] = (acc_ref[...] * pl.reciprocal(l_ref[...], approx=True)
                    ).astype(o_ref.dtype)


def pallas_attention(q, k, v, scale, causal):
    """q, k, v: (B*H, S, Dh) bf16; returns (B*H, S, Dh) bf16."""
    BH, S, Dh = q.shape
    tkv = _tile(S, 512, 128)           # falls back to full S for ragged lengths
    return pl.pallas_call(
        functools.partial(_attention_kernel, scale=scale, causal=causal,
                          tkv=tkv),
        out_shape=jax.ShapeDtypeStruct((BH, S, Dh), jnp.bfloat16),
        grid=(BH, S // tkv),
        in_specs=[
            pl.BlockSpec((1, S, Dh), lambda bh, kv: (bh, 0, 0)),
            pl.BlockSpec((1, tkv, Dh), lambda bh, kv: (bh, kv, 0)),
            pl.BlockSpec((1, tkv, Dh), lambda bh, kv: (bh, kv, 0)),
        ],
        out_specs=pl.BlockSpec((1, S, Dh), lambda bh, kv: (bh, 0, 0)),
        scratch_shapes=[pltpu.VMEM((S, 1), jnp.float32),
                        pltpu.VMEM((S, 1), jnp.float32),
                        pltpu.VMEM((S, Dh), jnp.float32)],
        compiler_params=pltpu.CompilerParams(
            dimension_semantics=("parallel", "arbitrary"),
            vmem_limit_bytes=_vmem_limit()),
    )(q, k, v)


def _logits_kernel(img_ref, txt_ref, ls_ref, o_ref):
    img = img_ref[...].astype(jnp.float32)
    txt = txt_ref[...].astype(jnp.float32)
    img = img * jax.lax.rsqrt(jnp.sum(img * img, axis=-1, keepdims=True) + 1e-12)
    txt = txt * jax.lax.rsqrt(jnp.sum(txt * txt, axis=-1, keepdims=True) + 1e-12)
    scale = jnp.exp(ls_ref[0])
    # contraction over the feature dim on both sides -> no in-kernel transpose
    logits = jax.lax.dot_general(img, txt, (((1,), (1,)), ((), ())),
                                 preferred_element_type=jnp.float32)
    o_ref[...] = (scale * logits).astype(o_ref.dtype)


def pallas_clip_logits(image_features, text_features, logit_scale):
    B, D = image_features.shape
    T, _ = text_features.shape
    return pl.pallas_call(
        _logits_kernel,
        out_shape=jax.ShapeDtypeStruct((B, T), jnp.float32),
        grid=(1,),
        in_specs=[
            pl.BlockSpec((B, D), lambda i: (0, 0)),
            pl.BlockSpec((T, D), lambda i: (0, 0)),
            pl.BlockSpec(memory_space=pltpu.MemorySpace.SMEM),
        ],
        out_specs=pl.BlockSpec((B, T), lambda i: (0, 0)),
        compiler_params=pltpu.CompilerParams(vmem_limit_bytes=_vmem_limit()),
    )(image_features.astype(jnp.float32), text_features.astype(jnp.float32),
      logit_scale.reshape(1).astype(jnp.float32))


# ----------------------------------------------------------------------------
# Model building blocks (glue around the kernels)
# ----------------------------------------------------------------------------
def residual_attention_block(x, p, n_heads, causal):
    """CLIP ResidualAttentionBlock: x + MHA(LN1(x)); x + MLP(LN2(x)).
    LN fused into QKV / fc projections; residuals fused into out/MLP proj."""
    B, S, D = x.shape
    Dh = D // n_heads
    scale = 1.0 / math.sqrt(Dh)
    x2 = x.reshape(B * S, D)                                        # bf16 stream

    # attention branch
    qkv = pallas_ln_linear(x2, p["ln1_g"], p["ln1_b"], p["in_proj_w"],
                           p["in_proj_b"])                          # (B*S, 3D) bf16
    qkv = qkv.reshape(B, S, 3, n_heads, Dh).transpose(2, 0, 3, 1, 4)
    q = qkv[0].reshape(B * n_heads, S, Dh)
    k = qkv[1].reshape(B * n_heads, S, Dh)
    v = qkv[2].reshape(B * n_heads, S, Dh)
    attn = pallas_attention(q, k, v, scale, causal)                 # (B*H, S, Dh)
    attn = attn.reshape(B, n_heads, S, Dh).transpose(0, 2, 1, 3).reshape(B * S, D)
    x2 = pallas_linear(attn, p["out_proj_w"], p["out_proj_b"], residual=x2)

    # MLP branch (QuickGELU)
    h = pallas_ln_linear(x2, p["ln2_g"], p["ln2_b"], p["fc_w"], p["fc_b"],
                         activation="quick_gelu")
    x2 = pallas_linear(h, p["proj_w"], p["proj_b"], residual=x2)
    return x2.reshape(B, S, D)


def image_encoder(image, p, cfg):
    """CLIP VisionTransformer on NCHW input."""
    B, C, H, W = image.shape
    P = cfg["patch"]
    gh, gw = H // P, W // P
    width = cfg["vision_width"]

    # Conv2d(C, width, P, stride=P, bias=False) == patch-flatten + matmul
    # TODO(synk): the patch gather is a JAX-side reshape/transpose; a strided
    # DMA gather inside the matmul kernel would remove this HBM copy.
    patches = image.reshape(B, C, gh, P, gw, P).transpose(0, 2, 4, 1, 3, 5)
    patches = patches.reshape(B * gh * gw, C * P * P)
    x = pallas_linear(patches, p["conv1_w_mat"])                    # no bias
    x = x.reshape(B, gh * gw, width)

    cls = jnp.broadcast_to(
        p["class_embedding"].reshape(1, 1, width).astype(jnp.bfloat16),
        (B, 1, width))
    x = jnp.concatenate([cls, x], axis=1)                           # (B, 1+np, width)
    # fused (x + positional_embedding) -> ln_pre
    x = pallas_add_layernorm(x, p["positional_embedding"],
                             p["ln_pre_g"], p["ln_pre_b"])

    for blk in p["blocks"]:
        x = residual_attention_block(x, blk, cfg["vision_heads"], causal=False)

    # fused ln_post + visual projection (no bias) on the CLS token
    return pallas_ln_linear(x[:, 0, :], p["ln_post_g"], p["ln_post_b"],
                            p["proj"], out_dtype=jnp.float32)       # (B, embed_dim)


def prompt_learner_forward(p, cfg):
    """Mirror PromptLearner.forward (generic, non-CSC context)."""
    n_dm, n_cls = cfg["n_dm"], cfg["n_cls"]
    n_ctx, n_dmx, D = cfg["n_ctx"], cfg["n_dmx"], cfg["ctx_dim"]
    ctx = jnp.broadcast_to(p["ctx"][None, None], (n_dm, n_cls, n_ctx, D))
    dmx = jnp.broadcast_to(p["domain_vectors"][:, None], (n_dm, n_cls, n_dmx, D))
    ctxdmx = jnp.concatenate([ctx, dmx], axis=2).reshape(
        n_dm * n_cls, n_ctx + n_dmx, D)
    prompts = jnp.concatenate([p["token_prefix"], ctxdmx, p["token_suffix"]],
                              axis=1)
    prompts = jnp.concatenate([prompts, p["naive_embedding"]], axis=0)
    return prompts                                                  # (n_dm*n_cls + n_cls, L, D)


def text_encoder(prompts, tokenized_prompts, p, cfg):
    T, L, D = prompts.shape
    # positional add stays in XLA: folding it into ln1 would also have to touch
    # the residual path; text activations are tiny relative to the vision tower.
    x = (prompts + p["positional_embedding"][None]).astype(jnp.bfloat16)
    for blk in p["blocks"]:
        x = residual_attention_block(x, blk, cfg["text_heads"], causal=True)
    # LayerNorm is per-token, so gathering the EOT token first and then fusing
    # ln_final with the text projection is exact.
    eot = jnp.argmax(tokenized_prompts, axis=-1)                    # EOT position
    x_eot = x[jnp.arange(T), eot]                                   # (T, D)
    return pallas_ln_linear(x_eot, p["ln_final_g"], p["ln_final_b"],
                            p["text_projection"], out_dtype=jnp.float32)


def custom_clip_forward(image, params, cfg):
    image_features = image_encoder(image, params["visual"], cfg)
    prompts = prompt_learner_forward(params["prompt_learner"], cfg)
    text_features = text_encoder(prompts, params["tokenized_prompts"],
                                 params["text"], cfg)
    return pallas_clip_logits(image_features, text_features,
                              params["logit_scale"])


# ----------------------------------------------------------------------------
# Deterministic parameter construction (matmul weights pre-cast to bf16 once)
# ----------------------------------------------------------------------------
def _normal(key, shape, std=0.02):
    return std * jax.random.normal(key, shape, dtype=jnp.float32)


def _make_block(key, D):
    # Weights stored (in_features, out_features) = torch W.T, pre-cast to bf16.
    ks = jax.random.split(key, 4)
    return {
        "ln1_g": jnp.ones((D,), jnp.float32), "ln1_b": jnp.zeros((D,), jnp.float32),
        "in_proj_w": _normal(ks[0], (D, 3 * D)).astype(jnp.bfloat16),
        "in_proj_b": jnp.zeros((3 * D,), jnp.float32),
        "out_proj_w": _normal(ks[1], (D, D)).astype(jnp.bfloat16),
        "out_proj_b": jnp.zeros((D,), jnp.float32),
        "ln2_g": jnp.ones((D,), jnp.float32), "ln2_b": jnp.zeros((D,), jnp.float32),
        "fc_w": _normal(ks[2], (D, 4 * D)).astype(jnp.bfloat16),
        "fc_b": jnp.zeros((4 * D,), jnp.float32),
        "proj_w": _normal(ks[3], (4 * D, D)).astype(jnp.bfloat16),
        "proj_b": jnp.zeros((D,), jnp.float32),
    }


def init_params(key, cfg):
    k = jax.random.split(key, 20)
    Wv, Dt, E = cfg["vision_width"], cfg["ctx_dim"], cfg["embed_dim"]
    P, C = cfg["patch"], 3
    num_patches = (cfg["image_size"] // P) ** 2
    L = cfg["context_length"]
    n_dm, n_cls, n = cfg["n_dm"], cfg["n_cls"], cfg["n_ctx"] + cfg["n_dmx"]

    conv1_w = _normal(k[0], (Wv, C, P, P))                          # torch layout
    visual = {
        "conv1_w_mat": conv1_w.reshape(Wv, C * P * P).T.astype(jnp.bfloat16),
        "class_embedding": _normal(k[1], (Wv,)),
        "positional_embedding": _normal(k[2], (num_patches + 1, Wv)),
        "ln_pre_g": jnp.ones((Wv,), jnp.float32), "ln_pre_b": jnp.zeros((Wv,), jnp.float32),
        "blocks": [_make_block(kk, Wv)
                   for kk in jax.random.split(k[3], cfg["vision_layers"])],
        "ln_post_g": jnp.ones((Wv,), jnp.float32), "ln_post_b": jnp.zeros((Wv,), jnp.float32),
        "proj": _normal(k[4], (Wv, E)).astype(jnp.bfloat16),
    }

    text = {
        "positional_embedding": _normal(k[5], (L, Dt)),
        "blocks": [_make_block(kk, Dt)
                   for kk in jax.random.split(k[6], cfg["text_layers"])],
        "ln_final_g": jnp.ones((Dt,), jnp.float32), "ln_final_b": jnp.zeros((Dt,), jnp.float32),
        "text_projection": _normal(k[7], (Dt, E)).astype(jnp.bfloat16),
    }

    prompt_learner = {
        "ctx": _normal(k[8], (cfg["n_ctx"], Dt)),                         # generic (non-CSC)
        "domain_vectors": _normal(k[9], (n_dm, cfg["n_dmx"], Dt)),
        "token_prefix": _normal(k[10], (n_dm * n_cls, 1, Dt)),            # SOS embeddings
        "token_suffix": _normal(k[11], (n_dm * n_cls, L - 1 - n, Dt)),    # class + EOS embeddings
        "naive_embedding": _normal(k[12], (n_cls, L, Dt)),                # "a photo of a <cls>."
    }

    # synthetic tokenized prompts: argmax(dim=-1) must land on the EOT slot
    T = n_dm * n_cls + n_cls
    toks = jax.random.randint(k[13], (T, L), 1, 1000, dtype=jnp.int32)
    toks = toks.at[:, 0].set(49406)                                        # SOT
    eot_pos = 5 + (jnp.arange(T) % (L - 6))
    toks = toks.at[jnp.arange(T), eot_pos].set(49407)                      # EOT (max token id)

    return {
        "visual": visual,
        "text": text,
        "prompt_learner": prompt_learner,
        "tokenized_prompts": toks,
        "logit_scale": jnp.array(math.log(1.0 / 0.07), jnp.float32),
    }


# ----------------------------------------------------------------------------
if __name__ == "__main__":
    cfg = {
        "image_size": 16, "patch": 8,
        "vision_width": 32, "vision_layers": 1, "vision_heads": 2,
        "ctx_dim": 32, "context_length": 16, "text_layers": 1, "text_heads": 2,
        "embed_dim": 16,
        "n_cls": 3, "n_dm": 2, "n_ctx": 2, "n_dmx": 2,
    }

    key = jax.random.PRNGKey(0)
    k_param, k_img = jax.random.split(key)
    params = init_params(k_param, cfg)

    image = jax.random.normal(k_img, (2, 3, cfg["image_size"], cfg["image_size"]),
                              dtype=jnp.float32)     # NCHW, as in PyTorch

    fwd = jax.jit(lambda img, prm: custom_clip_forward(img, prm, cfg))
    logits = fwd(image, params)
    jax.block_until_ready(logits)

    n_prompts = cfg["n_dm"] * cfg["n_cls"] + cfg["n_cls"]
    assert logits.shape == (2, n_prompts), logits.shape
    assert bool(jnp.all(jnp.isfinite(logits)))
    print("KERNEL_OK")
</pallas_src>

<mosaic_0001>
module attributes {stable_mosaic.version = 11 : i64} {
  func.func @_ln_linear_kernel(%arg0: i32, %arg1: i32, %arg2: memref<144x32xbf16, #tpu.memory_space<vmem>>, %arg3: memref<1x32xf32, #tpu.memory_space<vmem>>, %arg4: memref<1x32xf32, #tpu.memory_space<vmem>>, %arg5: memref<32x96xbf16, #tpu.memory_space<vmem>>, %arg6: memref<1x96xf32, #tpu.memory_space<vmem>>, %arg7: memref<144x96xbf16, #tpu.memory_space<vmem>>, %arg8: memref<144x32xbf16, #tpu.memory_space<vmem>>) attributes {dimension_semantics = [#tpu.dimension_semantics<parallel>, #tpu.dimension_semantics<arbitrary>], iteration_bounds = array<i64: 1, 1>, scalar_prefetch = 0 : i64, scratch_operands = 1 : i64, tpu.core_type = #tpu.core_type<tc>, window_params = [{transform_indices = @transform_0, window_bounds = array<i64: 144, 32>}, {pipeline_mode = #tpu.pipeline_mode<synchronous>, transform_indices = @transform_1, window_bounds = array<i64: 1, 32>}, {pipeline_mode = #tpu.pipeline_mode<synchronous>, transform_indices = @transform_2, window_bounds = array<i64: 1, 32>}, {transform_indices = @transform_3, window_bounds = array<i64: 32, 96>}, {transform_indices = @transform_4, window_bounds = array<i64: 1, 96>}, {transform_indices = @transform_5, window_bounds = array<i64: 144, 96>}]} {
    %c0_i32 = arith.constant 0 : i32
    %0 = arith.cmpi eq, %arg1, %c0_i32 : i32
    %1 = arith.extui %0 : i1 to i32
    %c0_i32_0 = arith.constant 0 : i32
    %2 = arith.cmpi ne, %1, %c0_i32_0 : i32
    scf.if %2 {
      %c0_8 = arith.constant 0 : index
      %c0_9 = arith.constant 0 : index
      %11 = vector.load %arg2[%c0_8, %c0_9] : memref<144x32xbf16, #tpu.memory_space<vmem>>, vector<144x32xbf16>
      %12 = arith.extf %11 : vector<144x32xbf16> to vector<144x32xf32>
      %cst_10 = arith.constant dense<0.000000e+00> : vector<144xf32>
      %13 = vector.multi_reduction <add>, %12, %cst_10 [1] : vector<144x32xf32> to vector<144xf32>
      %14 = vector.shape_cast %13 : vector<144xf32> to vector<144x1xf32>
      %cst_11 = arith.constant 3.200000e+01 : f32
      %15 = vector.broadcast %cst_11 : f32 to vector<144x1xf32>
      %16 = arith.divf %14, %15 : vector<144x1xf32>
      %17 = vector.broadcast %16 : vector<144x1xf32> to vector<144x32xf32>
      %18 = arith.subf %12, %17 : vector<144x32xf32>
      %19 = arith.mulf %18, %18 : vector<144x32xf32>
      %cst_12 = arith.constant dense<0.000000e+00> : vector<144xf32>
      %20 = vector.multi_reduction <add>, %19, %cst_12 [1] : vector<144x32xf32> to vector<144xf32>
      %21 = vector.shape_cast %20 : vector<144xf32> to vector<144x1xf32>
      %cst_13 = arith.constant 3.200000e+01 : f32
      %22 = vector.broadcast %cst_13 : f32 to vector<144x1xf32>
      %23 = arith.divf %21, %22 : vector<144x1xf32>
      %cst_14 = arith.constant 9.99999974E-6 : f32
      %24 = vector.broadcast %cst_14 : f32 to vector<144x1xf32>
      %25 = arith.addf %23, %24 : vector<144x1xf32>
      %26 = math.rsqrt %25 : vector<144x1xf32>
      %27 = vector.broadcast %26 : vector<144x1xf32> to vector<144x32xf32>
      %28 = arith.mulf %18, %27 : vector<144x32xf32>
      %c0_15 = arith.constant 0 : index
      %c0_16 = arith.constant 0 : index
      %29 = vector.load %arg3[%c0_15, %c0_16] : memref<1x32xf32, #tpu.memory_space<vmem>>, vector<1x32xf32>
      %30 = vector.broadcast %29 : vector<1x32xf32> to vector<144x32xf32>
      %31 = arith.mulf %28, %30 : vector<144x32xf32>
      %c0_17 = arith.constant 0 : index
      %c0_18 = arith.constant 0 : index
      %32 = vector.load %arg4[%c0_17, %c0_18] : memref<1x32xf32, #tpu.memory_space<vmem>>, vector<1x32xf32>
      %33 = vector.broadcast %32 : vector<1x32xf32> to vector<144x32xf32>
      %34 = arith.addf %31, %33 : vector<144x32xf32>
      %35 = arith.truncf %34 : vector<144x32xf32> to vector<144x32xbf16>
      %c0_19 = arith.constant 0 : index
      %c0_20 = arith.constant 0 : index
      %36 = vector.load %arg8[%c0_19, %c0_20] : memref<144x32xbf16, #tpu.memory_space<vmem>>, vector<144x32xbf16>
      tpu.vector_store %arg8[%c0_19, %c0_20], %35 {strides = array<i32>} : memref<144x32xbf16, #tpu.memory_space<vmem>>, vector<144x32xbf16>,
    } else {
    }
    %c0 = arith.constant 0 : index
    %c0_1 = arith.constant 0 : index
    %3 = vector.load %arg8[%c0, %c0_1] : memref<144x32xbf16, #tpu.memory_space<vmem>>, vector<144x32xbf16>
    %c0_2 = arith.constant 0 : index
    %c0_3 = arith.constant 0 : index
    %4 = vector.load %arg5[%c0_2, %c0_3] : memref<32x96xbf16, #tpu.memory_space<vmem>>, vector<32x96xbf16>
    %cst = arith.constant dense<0.000000e+00> : vector<144x96xf32>
    %5 = tpu.matmul %3, %4, %cst {dimension_numbers = #tpu.dot_dimension_numbers<[1], [0], [0], [1], [0, 0, 1, 1], [], []>} : vector<144x32xbf16>, vector<32x96xbf16>, vector<144x96xf32> -> vector<144x96xf32>
    %c0_4 = arith.constant 0 : index
    %c0_5 = arith.constant 0 : index
    %6 = vector.load %arg6[%c0_4, %c0_5] : memref<1x96xf32, #tpu.memory_space<vmem>>, vector<1x96xf32>
    %7 = vector.broadcast %6 : vector<1x96xf32> to vector<144x96xf32>
    %8 = arith.addf %5, %7 : vector<144x96xf32>
    %9 = arith.truncf %8 : vector<144x96xf32> to vector<144x96xbf16>
    %c0_6 = arith.constant 0 : index
    %c0_7 = arith.constant 0 : index
    %10 = vector.load %arg7[%c0_6, %c0_7] : memref<144x96xbf16, #tpu.memory_space<vmem>>, vector<144x96xbf16>
    tpu.vector_store %arg7[%c0_6, %c0_7], %9 {strides = array<i32>} : memref<144x96xbf16, #tpu.memory_space<vmem>>, vector<144x96xbf16>,
    return
  }
  func.func @transform_0(%arg0: i32, %arg1: i32) -> (i32, i32) {
    %c0_i32 = arith.constant 0 : i32
    %c0_i32_0 = arith.constant 0 : i32
    return %arg0, %c0_i32 : i32, i32
  }
  func.func @transform_1(%arg0: i32, %arg1: i32) -> (i32, i32) {
    %c0_i32 = arith.constant 0 : i32
    %c0_i32_0 = arith.constant 0 : i32
    %c0_i32_1 = arith.constant 0 : i32
    return %c0_i32, %c0_i32_0 : i32, i32
  }
  func.func @transform_2(%arg0: i32, %arg1: i32) -> (i32, i32) {
    %c0_i32 = arith.constant 0 : i32
    %c0_i32_0 = arith.constant 0 : i32
    %c0_i32_1 = arith.constant 0 : i32
    return %c0_i32, %c0_i32_0 : i32, i32
  }
  func.func @transform_3(%arg0: i32, %arg1: i32) -> (i32, i32) {
    %c0_i32 = arith.constant 0 : i32
    %c0_i32_0 = arith.constant 0 : i32
    return %c0_i32, %arg1 : i32, i32
  }
  func.func @transform_4(%arg0: i32, %arg1: i32) -> (i32, i32) {
    %c0_i32 = arith.constant 0 : i32
    %c0_i32_0 = arith.constant 0 : i32
    return %c0_i32, %arg1 : i32, i32
  }
  func.func @transform_5(%arg0: i32, %arg1: i32) -> (i32, i32) {
    %c0_i32 = arith.constant 0 : i32
    return %arg0, %arg1 : i32, i32
  }
}

module attributes {stable_mosaic.version = 11 : i64} {
  func.func @_attention_kernel(%arg0: i32, %arg1: i32, %arg2: memref<1x16x16xbf16, #tpu.memory_space<vmem>>, %arg3: memref<1x16x16xbf16, #tpu.memory_space<vmem>>, %arg4: memref<1x16x16xbf16, #tpu.memory_space<vmem>>, %arg5: memref<1x16x16xbf16, #tpu.memory_space<vmem>>, %arg6: memref<16x1xf32, #tpu.memory_space<vmem>>, %arg7: memref<16x1xf32, #tpu.memory_space<vmem>>, %arg8: memref<16x16xf32, #tpu.memory_space<vmem>>) attributes {dimension_semantics = [#tpu.dimension_semantics<parallel>, #tpu.dimension_semantics<arbitrary>], iteration_bounds = array<i64: 18, 1>, scalar_prefetch = 0 : i64, scratch_operands = 3 : i64, tpu.core_type = #tpu.core_type<tc>, window_params = [{transform_indices = @transform_0, window_bounds = array<i64: 1, 16, 16>}, {transform_indices = @transform_1, window_bounds = array<i64: 1, 16, 16>}, {transform_indices = @transform_2, window_bounds = array<i64: 1, 16, 16>}, {transform_indices = @transform_3, window_bounds = array<i64: 1, 16, 16>}]} {
    %c0_i32 = arith.constant 0 : i32
    %0 = arith.cmpi eq, %arg1, %c0_i32 : i32
    %1 = arith.extui %0 : i1 to i32
    %c0_i32_0 = arith.constant 0 : i32
    %2 = arith.cmpi ne, %1, %c0_i32_0 : i32
    scf.if %2 {
      %cst_28 = arith.constant -1.000000e+30 : f32
      %48 = vector.broadcast %cst_28 : f32 to vector<16x1xf32>
      %c0_29 = arith.constant 0 : index
      %c0_30 = arith.constant 0 : index
      %49 = vector.load %arg6[%c0_29, %c0_30] : memref<16x1xf32, #tpu.memory_space<vmem>>, vector<16x1xf32>
      tpu.vector_store %arg6[%c0_29, %c0_30], %48 {strides = array<i32>} : memref<16x1xf32, #tpu.memory_space<vmem>>, vector<16x1xf32>,
      %cst_31 = arith.constant 0.000000e+00 : f32
      %50 = vector.broadcast %cst_31 : f32 to vector<16x1xf32>
      %c0_32 = arith.constant 0 : index
      %c0_33 = arith.constant 0 : index
      %51 = vector.load %arg7[%c0_32, %c0_33] : memref<16x1xf32, #tpu.memory_space<vmem>>, vector<16x1xf32>
      tpu.vector_store %arg7[%c0_32, %c0_33], %50 {strides = array<i32>} : memref<16x1xf32, #tpu.memory_space<vmem>>, vector<16x1xf32>,
      %cst_34 = arith.constant 0.000000e+00 : f32
      %52 = vector.broadcast %cst_34 : f32 to vector<16x16xf32>
      %c0_35 = arith.constant 0 : index
      %c0_36 = arith.constant 0 : index
      %53 = vector.load %arg8[%c0_35, %c0_36] : memref<16x16xf32, #tpu.memory_space<vmem>>, vector<16x16xf32>
      tpu.vector_store %arg8[%c0_35, %c0_36], %52 {strides = array<i32>} : memref<16x16xf32, #tpu.memory_space<vmem>>, vector<16x16xf32>,
    } else {
    }
    %c0 = arith.constant 0 : index
    %c0_1 = arith.constant 0 : index
    %c0_2 = arith.constant 0 : index
    %3 = vector.load %arg2[%c0, %c0_1, %c0_2] : memref<1x16x16xbf16, #tpu.memory_space<vmem>>, vector<1x16x16xbf16>
    %4 = vector.shape_cast %3 : vector<1x16x16xbf16> to vector<16x16xbf16>
    %5 = arith.extf %4 : vector<16x16xbf16> to vector<16x16xf32>
    %cst = arith.constant 2.500000e-01 : f32
    %6 = vector.broadcast %cst : f32 to vector<16x16xf32>
    %7 = arith.mulf %5, %6 : vector<16x16xf32>
    %8 = arith.truncf %7 : vector<16x16xf32> to vector<16x16xbf16>
    %c0_3 = arith.constant 0 : index
    %c0_4 = arith.constant 0 : index
    %c0_5 = arith.constant 0 : index
    %9 = vector.load %arg3[%c0_3, %c0_4, %c0_5] : memref<1x16x16xbf16, #tpu.memory_space<vmem>>, vector<1x16x16xbf16>
    %10 = vector.shape_cast %9 : vector<1x16x16xbf16> to vector<16x16xbf16>
    %cst_6 = arith.constant dense<0.000000e+00> : vector<16x16xf32>
    %11 = tpu.matmul %8, %10, %cst_6 {dimension_numbers = #tpu.dot_dimension_numbers<[1], [1], [0], [0], [0, 0, 1, 0], [], []>} : vector<16x16xbf16>, vector<16x16xbf16>, vector<16x16xf32> -> vector<16x16xf32>
    %12 = tpu.iota {dimensions = array<i32: 0>} : vector<16x16xi32>
    %13 = tpu.iota {dimensions = array<i32: 1>} : vector<16x16xi32>
    %c16_i32 = arith.constant 16 : i32
    %14 = arith.muli %arg1, %c16_i32 : i32
    %15 = vector.broadcast %14 : i32 to vector<16x16xi32>
    %16 = arith.addi %13, %15 : vector<16x16xi32>
    %17 = arith.cmpi sgt, %16, %12 : vector<16x16xi32>
    %cst_7 = arith.constant -1.000000e+30 : f32
    %18 = vector.broadcast %cst_7 : f32 to vector<16x16xf32>
    %19 = arith.select %17, %18, %11 : vector<16x16xi1>, vector<16x16xf32>
    %c0_8 = arith.constant 0 : index
    %c0_9 = arith.constant 0 : index
    %20 = vector.load %arg6[%c0_8, %c0_9] : memref<16x1xf32, #tpu.memory_space<vmem>>, vector<16x1xf32>
    %cst_10 = arith.constant dense<0xFF800000> : vector<16xf32>
    %21 = vector.multi_reduction <maximumf>, %19, %cst_10 [1] : vector<16x16xf32> to vector<16xf32>
    %22 = vector.shape_cast %21 : vector<16xf32> to vector<16x1xf32>
    %23 = arith.maximumf %20, %22 : vector<16x1xf32>
    %24 = arith.subf %20, %23 : vector<16x1xf32>
    %25 = math.exp %24 : vector<16x1xf32>
    %26 = vector.broadcast %23 : vector<16x1xf32> to vector<16x16xf32>
    %27 = arith.subf %19, %26 : vector<16x16xf32>
    %28 = math.exp %27 : vector<16x16xf32>
    %c0_11 = arith.constant 0 : index
    %c0_12 = arith.constant 0 : index
    %29 = vector.load %arg7[%c0_11, %c0_12] : memref<16x1xf32, #tpu.memory_space<vmem>>, vector<16x1xf32>
    %30 = arith.mulf %25, %29 : vector<16x1xf32>
    %cst_13 = arith.constant dense<0.000000e+00> : vector<16xf32>
    %31 = vector.multi_reduction <add>, %28, %cst_13 [1] : vector<16x16xf32> to vector<16xf32>
    %32 = vector.shape_cast %31 : vector<16xf32> to vector<16x1xf32>
    %33 = arith.addf %30, %32 : vector<16x1xf32>
    %c0_14 = arith.constant 0 : index
    %c0_15 = arith.constant 0 : index
    %34 = vector.load %arg7[%c0_14, %c0_15] : memref<16x1xf32, #tpu.memory_space<vmem>>, vector<16x1xf32>
    tpu.vector_store %arg7[%c0_14, %c0_15], %33 {strides = array<i32>} : memref<16x1xf32, #tpu.memory_space<vmem>>, vector<16x1xf32>,
    %c0_16 = arith.constant 0 : index
    %c0_17 = arith.constant 0 : index
    %35 = vector.load %arg8[%c0_16, %c0_17] : memref<16x16xf32, #tpu.memory_space<vmem>>, vector<16x16xf32>
    %36 = vector.broadcast %25 : vector<16x1xf32> to vector<16x16xf32>
    %37 = arith.mulf %36, %35 : vector<16x16xf32>
    %38 = arith.truncf %28 : vector<16x16xf32> to vector<16x16xbf16>
    %c0_18 = arith.constant 0 : index
    %c0_19 = arith.constant 0 : index
    %c0_20 = arith.constant 0 : index
    %39 = vector.load %arg4[%c0_18, %c0_19, %c0_20] : memref<1x16x16xbf16, #tpu.memory_space<vmem>>, vector<1x16x16xbf16>
    %40 = vector.shape_cast %39 : vector<1x16x16xbf16> to vector<16x16xbf16>
    %cst_21 = arith.constant dense<0.000000e+00> : vector<16x16xf32>
    %41 = tpu.matmul %38, %40, %cst_21 {dimension_numbers = #tpu.dot_dimension_numbers<[1], [0], [0], [1], [0, 0, 1, 1], [], []>} : vector<16x16xbf16>, vector<16x16xbf16>, vector<16x16xf32> -> vector<16x16xf32>
    %42 = arith.addf %37, %41 : vector<16x16xf32>
    %c0_22 = arith.constant 0 : index
    %c0_23 = arith.constant 0 : index
    %43 = vector.load %arg8[%c0_22, %c0_23] : memref<16x16xf32, #tpu.memory_space<vmem>>, vector<16x16xf32>
    tpu.vector_store %arg8[%c0_22, %c0_23], %42 {strides = array<i32>} : memref<16x16xf32, #tpu.memory_space<vmem>>, vector<16x16xf32>,
    %c0_24 = arith.constant 0 : index
    %c0_25 = arith.constant 0 : index
    %44 = vector.load %arg6[%c0_24, %c0_25] : memref<16x1xf32, #tpu.memory_space<vmem>>, vector<16x1xf32>
    tpu.vector_store %arg6[%c0_24, %c0_25], %23 {strides = array<i32>} : memref<16x1xf32, #tpu.memory_space<vmem>>, vector<16x1xf32>,
    %c0_i32_26 = arith.constant 0 : i32
    %45 = arith.cmpi eq, %arg1, %c0_i32_26 : i32
    %46 = arith.extui %45 : i1 to i32
    %c0_i32_27 = arith.constant 0 : i32
    %47 = arith.cmpi ne, %46, %c0_i32_27 : i32
    scf.if %47 {
      %c0_28 = arith.constant 0 : index
      %c0_29 = arith.constant 0 : index
      %48 = vector.load %arg8[%c0_28, %c0_29] : memref<16x16xf32, #tpu.memory_space<vmem>>, vector<16x16xf32>
      %c0_30 = arith.constant 0 : index
      %c0_31 = arith.constant 0 : index
      %49 = vector.load %arg7[%c0_30, %c0_31] : memref<16x1xf32, #tpu.memory_space<vmem>>, vector<16x1xf32>
      %50 = tpu.reciprocal %49 {approx = true} : vector<16x1xf32> -> vector<16x1xf32>
      %51 = vector.broadcast %50 : vector<16x1xf32> to vector<16x16xf32>
      %52 = arith.mulf %48, %51 : vector<16x16xf32>
      %53 = arith.truncf %52 : vector<16x16xf32> to vector<16x16xbf16>
      %c0_32 = arith.constant 0 : index
      %c0_33 = arith.constant 0 : index
      %c0_34 = arith.constant 0 : index
      %54 = vector.load %arg5[%c0_32, %c0_33, %c0_34] : memref<1x16x16xbf16, #tpu.memory_space<vmem>>, vector<1x16x16xbf16>
      %55 = vector.shape_cast %54 : vector<1x16x16xbf16> to vector<16x16xbf16>
      %56 = vector.shape_cast %53 : vector<16x16xbf16> to vector<1x16x16xbf16>
      tpu.vector_store %arg5[%c0_32, %c0_33, %c0_34], %56 {strides = array<i32>} : memref<1x16x16xbf16, #tpu.memory_space<vmem>>, vector<1x16x16xbf16>,
    } else {
    }
    return
  }
  func.func @transform_0(%arg0: i32, %arg1: i32) -> (i32, i32, i32) {
    %c0_i32 = arith.constant 0 : i32
    %c0_i32_0 = arith.constant 0 : i32
    %c0_i32_1 = arith.constant 0 : i32
    return %arg0, %c0_i32, %c0_i32_0 : i32, i32, i32
  }
  func.func @transform_1(%arg0: i32, %arg1: i32) -> (i32, i32, i32) {
    %c0_i32 = arith.constant 0 : i32
    %c0_i32_0 = arith.constant 0 : i32
    return %arg0, %arg1, %c0_i32 : i32, i32, i32
  }
  func.func @transform_2(%arg0: i32, %arg1: i32) -> (i32, i32, i32) {
    %c0_i32 = arith.constant 0 : i32
    %c0_i32_0 = arith.constant 0 : i32
    return %arg0, %arg1, %c0_i32 : i32, i32, i32
  }
  func.func @transform_3(%arg0: i32, %arg1: i32) -> (i32, i32, i32) {
    %c0_i32 = arith.constant 0 : i32
    %c0_i32_0 = arith.constant 0 : i32
    %c0_i32_1 = arith.constant 0 : i32
    return %arg0, %c0_i32, %c0_i32_0 : i32, i32, i32
  }
}

module attributes {stable_mosaic.version = 11 : i64} {
  func.func @_linear_kernel(%arg0: i32, %arg1: i32, %arg2: i32, %arg3: memref<144x32xbf16, #tpu.memory_space<vmem>>, %arg4: memref<32x32xbf16, #tpu.memory_space<vmem>>, %arg5: memref<1x32xf32, #tpu.memory_space<vmem>>, %arg6: memref<144x32xbf16, #tpu.memory_space<vmem>>, %arg7: memref<144x32xbf16, #tpu.memory_space<vmem>>, %arg8: memref<144x32xf32, #tpu.memory_space<vmem>>) attributes {dimension_semantics = [#tpu.dimension_semantics<parallel>, #tpu.dimension_semantics<parallel>, #tpu.dimension_semantics<arbitrary>], iteration_bounds = array<i64: 1, 1, 1>, scalar_prefetch = 0 : i64, scratch_operands = 1 : i64, tpu.core_type = #tpu.core_type<tc>, window_params = [{transform_indices = @transform_0, window_bounds = array<i64: 144, 32>}, {transform_indices = @transform_1, window_bounds = array<i64: 32, 32>}, {transform_indices = @transform_2, window_bounds = array<i64: 1, 32>}, {transform_indices = @transform_3, window_bounds = array<i64: 144, 32>}, {transform_indices = @transform_4, window_bounds = array<i64: 144, 32>}]} {
    %c0_i32 = arith.constant 0 : i32
    %0 = arith.cmpi eq, %arg2, %c0_i32 : i32
    %1 = arith.extui %0 : i1 to i32
    %c0_i32_0 = arith.constant 0 : i32
    %2 = arith.cmpi ne, %1, %c0_i32_0 : i32
    scf.if %2 {
      %cst_10 = arith.constant 0.000000e+00 : f32
      %12 = vector.broadcast %cst_10 : f32 to vector<144x32xf32>
      %c0_11 = arith.constant 0 : index
      %c0_12 = arith.constant 0 : index
      %13 = vector.load %arg8[%c0_11, %c0_12] : memref<144x32xf32, #tpu.memory_space<vmem>>, vector<144x32xf32>
      tpu.vector_store %arg8[%c0_11, %c0_12], %12 {strides = array<i32>} : memref<144x32xf32, #tpu.memory_space<vmem>>, vector<144x32xf32>,
    } else {
    }
    %c0 = arith.constant 0 : index
    %c0_1 = arith.constant 0 : index
    %3 = vector.load %arg8[%c0, %c0_1] : memref<144x32xf32, #tpu.memory_space<vmem>>, vector<144x32xf32>
    %c0_2 = arith.constant 0 : index
    %c0_3 = arith.constant 0 : index
    %4 = vector.load %arg3[%c0_2, %c0_3] : memref<144x32xbf16, #tpu.memory_space<vmem>>, vector<144x32xbf16>
    %c0_4 = arith.constant 0 : index
    %c0_5 = arith.constant 0 : index
    %5 = vector.load %arg4[%c0_4, %c0_5] : memref<32x32xbf16, #tpu.memory_space<vmem>>, vector<32x32xbf16>
    %cst = arith.constant dense<0.000000e+00> : vector<144x32xf32>
    %6 = tpu.matmul %4, %5, %cst {dimension_numbers = #tpu.dot_dimension_numbers<[1], [0], [0], [1], [0, 0, 1, 1], [], []>} : vector<144x32xbf16>, vector<32x32xbf16>, vector<144x32xf32> -> vector<144x32xf32>
    %7 = arith.addf %3, %6 : vector<144x32xf32>
    %c0_6 = arith.constant 0 : index
    %c0_7 = arith.constant 0 : index
    %8 = vector.load %arg8[%c0_6, %c0_7] : memref<144x32xf32, #tpu.memory_space<vmem>>, vector<144x32xf32>
    tpu.vector_store %arg8[%c0_6, %c0_7], %7 {strides = array<i32>} : memref<144x32xf32, #tpu.memory_space<vmem>>, vector<144x32xf32>,
    %c0_i32_8 = arith.constant 0 : i32
    %9 = arith.cmpi eq, %arg2, %c0_i32_8 : i32
    %10 = arith.extui %9 : i1 to i32
    %c0_i32_9 = arith.constant 0 : i32
    %11 = arith.cmpi ne, %10, %c0_i32_9 : i32
    scf.if %11 {
      %c0_10 = arith.constant 0 : index
      %c0_11 = arith.constant 0 : index
      %12 = vector.load %arg8[%c0_10, %c0_11] : memref<144x32xf32, #tpu.memory_space<vmem>>, vector<144x32xf32>
      %c0_12 = arith.constant 0 : index
      %c0_13 = arith.constant 0 : index
      %13 = vector.load %arg5[%c0_12, %c0_13] : memref<1x32xf32, #tpu.memory_space<vmem>>, vector<1x32xf32>
      %14 = vector.broadcast %13 : vector<1x32xf32> to vector<144x32xf32>
      %15 = arith.addf %12, %14 : vector<144x32xf32>
      %c0_14 = arith.constant 0 : index
      %c0_15 = arith.constant 0 : index
      %16 = vector.load %arg6[%c0_14, %c0_15] : memref<144x32xbf16, #tpu.memory_space<vmem>>, vector<144x32xbf16>
      %17 = arith.extf %16 : vector<144x32xbf16> to vector<144x32xf32>
      %18 = arith.addf %15, %17 : vector<144x32xf32>
      %19 = arith.truncf %18 : vector<144x32xf32> to vector<144x32xbf16>
      %c0_16 = arith.constant 0 : index
      %c0_17 = arith.constant 0 : index
      %20 = vector.load %arg7[%c0_16, %c0_17] : memref<144x32xbf16, #tpu.memory_space<vmem>>, vector<144x32xbf16>
      tpu.vector_store %arg7[%c0_16, %c0_17], %19 {strides = array<i32>} : memref<144x32xbf16, #tpu.memory_space<vmem>>, vector<144x32xbf16>,
    } else {
    }
    return
  }
  func.func @transform_0(%arg0: i32, %arg1: i32, %arg2: i32) -> (i32, i32) {
    %c0_i32 = arith.constant 0 : i32
    return %arg0, %arg2 : i32, i32
  }
  func.func @transform_1(%arg0: i32, %arg1: i32, %arg2: i32) -> (i32, i32) {
    %c0_i32 = arith.constant 0 : i32
    return %arg2, %arg1 : i32, i32
  }
  func.func @transform_2(%arg0: i32, %arg1: i32, %arg2: i32) -> (i32, i32) {
    %c0_i32 = arith.constant 0 : i32
    %c0_i32_0 = arith.constant 0 : i32
    return %c0_i32, %arg1 : i32, i32
  }
  func.func @transform_3(%arg0: i32, %arg1: i32, %arg2: i32) -> (i32, i32) {
    %c0_i32 = arith.constant 0 : i32
    return %arg0, %arg1 : i32, i32
  }
  func.func @transform_4(%arg0: i32, %arg1: i32, %arg2: i32) -> (i32, i32) {
    %c0_i32 = arith.constant 0 : i32
    return %arg0, %arg1 : i32, i32
  }
}

module attributes {stable_mosaic.version = 11 : i64} {
  func.func @_ln_linear_kernel(%arg0: i32, %arg1: i32, %arg2: memref<144x32xbf16, #tpu.memory_space<vmem>>, %arg3: memref<1x32xf32, #tpu.memory_space<vmem>>, %arg4: memref<1x32xf32, #tpu.memory_space<vmem>>, %arg5: memref<32x128xbf16, #tpu.memory_space<vmem>>, %arg6: memref<1x128xf32, #tpu.memory_space<vmem>>, %arg7: memref<144x128xbf16, #tpu.memory_space<vmem>>, %arg8: memref<144x32xbf16, #tpu.memory_space<vmem>>) attributes {dimension_semantics = [#tpu.dimension_semantics<parallel>, #tpu.dimension_semantics<arbitrary>], iteration_bounds = array<i64: 1, 1>, scalar_prefetch = 0 : i64, scratch_operands = 1 : i64, tpu.core_type = #tpu.core_type<tc>, window_params = [{transform_indices = @transform_0, window_bounds = array<i64: 144, 32>}, {pipeline_mode = #tpu.pipeline_mode<synchronous>, transform_indices = @transform_1, window_bounds = array<i64: 1, 32>}, {pipeline_mode = #tpu.pipeline_mode<synchronous>, transform_indices = @transform_2, window_bounds = array<i64: 1, 32>}, {transform_indices = @transform_3, window_bounds = array<i64: 32, 128>}, {transform_indices = @transform_4, window_bounds = array<i64: 1, 128>}, {transform_indices = @transform_5, window_bounds = array<i64: 144, 128>}]} {
    %c0_i32 = arith.constant 0 : i32
    %0 = arith.cmpi eq, %arg1, %c0_i32 : i32
    %1 = arith.extui %0 : i1 to i32
    %c0_i32_0 = arith.constant 0 : i32
    %2 = arith.cmpi ne, %1, %c0_i32_0 : i32
    scf.if %2 {
      %c0_10 = arith.constant 0 : index
      %c0_11 = arith.constant 0 : index
      %19 = vector.load %arg2[%c0_10, %c0_11] : memref<144x32xbf16, #tpu.memory_space<vmem>>, vector<144x32xbf16>
      %20 = arith.extf %19 : vector<144x32xbf16> to vector<144x32xf32>
      %cst_12 = arith.constant dense<0.000000e+00> : vector<144xf32>
      %21 = vector.multi_reduction <add>, %20, %cst_12 [1] : vector<144x32xf32> to vector<144xf32>
      %22 = vector.shape_cast %21 : vector<144xf32> to vector<144x1xf32>
      %cst_13 = arith.constant 3.200000e+01 : f32
      %23 = vector.broadcast %cst_13 : f32 to vector<144x1xf32>
      %24 = arith.divf %22, %23 : vector<144x1xf32>
      %25 = vector.broadcast %24 : vector<144x1xf32> to vector<144x32xf32>
      %26 = arith.subf %20, %25 : vector<144x32xf32>
      %27 = arith.mulf %26, %26 : vector<144x32xf32>
      %cst_14 = arith.constant dense<0.000000e+00> : vector<144xf32>
      %28 = vector.multi_reduction <add>, %27, %cst_14 [1] : vector<144x32xf32> to vector<144xf32>
      %29 = vector.shape_cast %28 : vector<144xf32> to vector<144x1xf32>
      %cst_15 = arith.constant 3.200000e+01 : f32
      %30 = vector.broadcast %cst_15 : f32 to vector<144x1xf32>
      %31 = arith.divf %29, %30 : vector<144x1xf32>
      %cst_16 = arith.constant 9.99999974E-6 : f32
      %32 = vector.broadcast %cst_16 : f32 to vector<144x1xf32>
      %33 = arith.addf %31, %32 : vector<144x1xf32>
      %34 = math.rsqrt %33 : vector<144x1xf32>
      %35 = vector.broadcast %34 : vector<144x1xf32> to vector<144x32xf32>
      %36 = arith.mulf %26, %35 : vector<144x32xf32>
      %c0_17 = arith.constant 0 : index
      %c0_18 = arith.constant 0 : index
      %37 = vector.load %arg3[%c0_17, %c0_18] : memref<1x32xf32, #tpu.memory_space<vmem>>, vector<1x32xf32>
      %38 = vector.broadcast %37 : vector<1x32xf32> to vector<144x32xf32>
      %39 = arith.mulf %36, %38 : vector<144x32xf32>
      %c0_19 = arith.constant 0 : index
      %c0_20 = arith.constant 0 : index
      %40 = vector.load %arg4[%c0_19, %c0_20] : memref<1x32xf32, #tpu.memory_space<vmem>>, vector<1x32xf32>
      %41 = vector.broadcast %40 : vector<1x32xf32> to vector<144x32xf32>
      %42 = arith.addf %39, %41 : vector<144x32xf32>
      %43 = arith.truncf %42 : vector<144x32xf32> to vector<144x32xbf16>
      %c0_21 = arith.constant 0 : index
      %c0_22 = arith.constant 0 : index
      %44 = vector.load %arg8[%c0_21, %c0_22] : memref<144x32xbf16, #tpu.memory_space<vmem>>, vector<144x32xbf16>
      tpu.vector_store %arg8[%c0_21, %c0_22], %43 {strides = array<i32>} : memref<144x32xbf16, #tpu.memory_space<vmem>>, vector<144x32xbf16>,
    } else {
    }
    %c0 = arith.constant 0 : index
    %c0_1 = arith.constant 0 : index
    %3 = vector.load %arg8[%c0, %c0_1] : memref<144x32xbf16, #tpu.memory_space<vmem>>, vector<144x32xbf16>
    %c0_2 = arith.constant 0 : index
    %c0_3 = arith.constant 0 : index
    %4 = vector.load %arg5[%c0_2, %c0_3] : memref<32x128xbf16, #tpu.memory_space<vmem>>, vector<32x128xbf16>
    %cst = arith.constant dense<0.000000e+00> : vector<144x128xf32>
    %5 = tpu.matmul %3, %4, %cst {dimension_numbers = #tpu.dot_dimension_numbers<[1], [0], [0], [1], [0, 0, 1, 1], [], []>} : vector<144x32xbf16>, vector<32x128xbf16>, vector<144x128xf32> -> vector<144x128xf32>
    %c0_4 = arith.constant 0 : index
    %c0_5 = arith.constant 0 : index
    %6 = vector.load %arg6[%c0_4, %c0_5] : memref<1x128xf32, #tpu.memory_space<vmem>>, vector<1x128xf32>
    %7 = vector.broadcast %6 : vector<1x128xf32> to vector<144x128xf32>
    %8 = arith.addf %5, %7 : vector<144x128xf32>
    %cst_6 = arith.constant 1.702000e+00 : f32
    %9 = vector.broadcast %cst_6 : f32 to vector<144x128xf32>
    %10 = arith.mulf %9, %8 : vector<144x128xf32>
    %11 = arith.negf %10 : vector<144x128xf32>
    %12 = math.exp %11 : vector<144x128xf32>
    %cst_7 = arith.constant 1.000000e+00 : f32
    %13 = vector.broadcast %cst_7 : f32 to vector<144x128xf32>
    %14 = arith.addf %13, %12 : vector<144x128xf32>
    %15 = arith.divf %13, %14 : vector<144x128xf32>
    %16 = arith.mulf %8, %15 : vector<144x128xf32>
    %17 = arith.truncf %16 : vector<144x128xf32> to vector<144x128xbf16>
    %c0_8 = arith.constant 0 : index
    %c0_9 = arith.constant 0 : index
    %18 = vector.load %arg7[%c0_8, %c0_9] : memref<144x128xbf16, #tpu.memory_space<vmem>>, vector<144x128xbf16>
    tpu.vector_store %arg7[%c0_8, %c0_9], %17 {strides = array<i32>} : memref<144x128xbf16, #tpu.memory_space<vmem>>, vector<144x128xbf16>,
    return
  }
  func.func @transform_0(%arg0: i32, %arg1: i32) -> (i32, i32) {
    %c0_i32 = arith.constant 0 : i32
    %c0_i32_0 = arith.constant 0 : i32
    return %arg0, %c0_i32 : i32, i32
  }
  func.func @transform_1(%arg0: i32, %arg1: i32) -> (i32, i32) {
    %c0_i32 = arith.constant 0 : i32
    %c0_i32_0 = arith.constant 0 : i32
    %c0_i32_1 = arith.constant 0 : i32
    return %c0_i32, %c0_i32_0 : i32, i32
  }
  func.func @transform_2(%arg0: i32, %arg1: i32) -> (i32, i32) {
    %c0_i32 = arith.constant 0 : i32
    %c0_i32_0 = arith.constant 0 : i32
    %c0_i32_1 = arith.constant 0 : i32
    return %c0_i32, %c0_i32_0 : i32, i32
  }
  func.func @transform_3(%arg0: i32, %arg1: i32) -> (i32, i32) {
    %c0_i32 = arith.constant 0 : i32
    %c0_i32_0 = arith.constant 0 : i32
    return %c0_i32, %arg1 : i32, i32
  }
  func.func @transform_4(%arg0: i32, %arg1: i32) -> (i32, i32) {
    %c0_i32 = arith.constant 0 : i32
    %c0_i32_0 = arith.constant 0 : i32
    return %c0_i32, %arg1 : i32, i32
  }
  func.func @transform_5(%arg0: i32, %arg1: i32) -> (i32, i32) {
    %c0_i32 = arith.constant 0 : i32
    return %arg0, %arg1 : i32, i32
  }
}

module attributes {stable_mosaic.version = 11 : i64} {
  func.func @_linear_kernel(%arg0: i32, %arg1: i32, %arg2: i32, %arg3: memref<144x128xbf16, #tpu.memory_space<vmem>>, %arg4: memref<128x32xbf16, #tpu.memory_space<vmem>>, %arg5: memref<1x32xf32, #tpu.memory_space<vmem>>, %arg6: memref<144x32xbf16, #tpu.memory_space<vmem>>, %arg7: memref<144x32xbf16, #tpu.memory_space<vmem>>, %arg8: memref<144x32xf32, #tpu.memory_space<vmem>>) attributes {dimension_semantics = [#tpu.dimension_semantics<parallel>, #tpu.dimension_semantics<parallel>, #tpu.dimension_semantics<arbitrary>], iteration_bounds = array<i64: 1, 1, 1>, scalar_prefetch = 0 : i64, scratch_operands = 1 : i64, tpu.core_type = #tpu.core_type<tc>, window_params = [{transform_indices = @transform_0, window_bounds = array<i64: 144, 128>}, {transform_indices = @transform_1, window_bounds = array<i64: 128, 32>}, {transform_indices = @transform_2, window_bounds = array<i64: 1, 32>}, {transform_indices = @transform_3, window_bounds = array<i64: 144, 32>}, {transform_indices = @transform_4, window_bounds = array<i64: 144, 32>}]} {
    %c0_i32 = arith.constant 0 : i32
    %0 = arith.cmpi eq, %arg2, %c0_i32 : i32
    %1 = arith.extui %0 : i1 to i32
    %c0_i32_0 = arith.constant 0 : i32
    %2 = arith.cmpi ne, %1, %c0_i32_0 : i32
    scf.if %2 {
      %cst_10 = arith.constant 0.000000e+00 : f32
      %12 = vector.broadcast %cst_10 : f32 to vector<144x32xf32>
      %c0_11 = arith.constant 0 : index
      %c0_12 = arith.constant 0 : index
      %13 = vector.load %arg8[%c0_11, %c0_12] : memref<144x32xf32, #tpu.memory_space<vmem>>, vector<144x32xf32>
      tpu.vector_store %arg8[%c0_11, %c0_12], %12 {strides = array<i32>} : memref<144x32xf32, #tpu.memory_space<vmem>>, vector<144x32xf32>,
    } else {
    }
    %c0 = arith.constant 0 : index
    %c0_1 = arith.constant 0 : index
    %3 = vector.load %arg8[%c0, %c0_1] : memref<144x32xf32, #tpu.memory_space<vmem>>, vector<144x32xf32>
    %c0_2 = arith.constant 0 : index
    %c0_3 = arith.constant 0 : index
    %4 = vector.load %arg3[%c0_2, %c0_3] : memref<144x128xbf16, #tpu.memory_space<vmem>>, vector<144x128xbf16>
    %c0_4 = arith.constant 0 : index
    %c0_5 = arith.constant 0 : index
    %5 = vector.load %arg4[%c0_4, %c0_5] : memref<128x32xbf16, #tpu.memory_space<vmem>>, vector<128x32xbf16>
    %cst = arith.constant dense<0.000000e+00> : vector<144x32xf32>
    %6 = tpu.matmul %4, %5, %cst {dimension_numbers = #tpu.dot_dimension_numbers<[1], [0], [0], [1], [0, 0, 1, 1], [], []>} : vector<144x128xbf16>, vector<128x32xbf16>, vector<144x32xf32> -> vector<144x32xf32>
    %7 = arith.addf %3, %6 : vector<144x32xf32>
    %c0_6 = arith.constant 0 : index
    %c0_7 = arith.constant 0 : index
    %8 = vector.load %arg8[%c0_6, %c0_7] : memref<144x32xf32, #tpu.memory_space<vmem>>, vector<144x32xf32>
    tpu.vector_store %arg8[%c0_6, %c0_7], %7 {strides = array<i32>} : memref<144x32xf32, #tpu.memory_space<vmem>>, vector<144x32xf32>,
    %c0_i32_8 = arith.constant 0 : i32
    %9 = arith.cmpi eq, %arg2, %c0_i32_8 : i32
    %10 = arith.extui %9 : i1 to i32
    %c0_i32_9 = arith.constant 0 : i32
    %11 = arith.cmpi ne, %10, %c0_i32_9 : i32
    scf.if %11 {
      %c0_10 = arith.constant 0 : index
      %c0_11 = arith.constant 0 : index
      %12 = vector.load %arg8[%c0_10, %c0_11] : memref<144x32xf32, #tpu.memory_space<vmem>>, vector<144x32xf32>
      %c0_12 = arith.constant 0 : index
      %c0_13 = arith.constant 0 : index
      %13 = vector.load %arg5[%c0_12, %c0_13] : memref<1x32xf32, #tpu.memory_space<vmem>>, vector<1x32xf32>
      %14 = vector.broadcast %13 : vector<1x32xf32> to vector<144x32xf32>
      %15 = arith.addf %12, %14 : vector<144x32xf32>
      %c0_14 = arith.constant 0 : index
      %c0_15 = arith.constant 0 : index
      %16 = vector.load %arg6[%c0_14, %c0_15] : memref<144x32xbf16, #tpu.memory_space<vmem>>, vector<144x32xbf16>
      %17 = arith.extf %16 : vector<144x32xbf16> to vector<144x32xf32>
      %18 = arith.addf %15, %17 : vector<144x32xf32>
      %19 = arith.truncf %18 : vector<144x32xf32> to vector<144x32xbf16>
      %c0_16 = arith.constant 0 : index
      %c0_17 = arith.constant 0 : index
      %20 = vector.load %arg7[%c0_16, %c0_17] : memref<144x32xbf16, #tpu.memory_space<vmem>>, vector<144x32xbf16>
      tpu.vector_store %arg7[%c0_16, %c0_17], %19 {strides = array<i32>} : memref<144x32xbf16, #tpu.memory_space<vmem>>, vector<144x32xbf16>,
    } else {
    }
    return
  }
  func.func @transform_0(%arg0: i32, %arg1: i32, %arg2: i32) -> (i32, i32) {
    %c0_i32 = arith.constant 0 : i32
    return %arg0, %arg2 : i32, i32
  }
  func.func @transform_1(%arg0: i32, %arg1: i32, %arg2: i32) -> (i32, i32) {
    %c0_i32 = arith.constant 0 : i32
    return %arg2, %arg1 : i32, i32
  }
  func.func @transform_2(%arg0: i32, %arg1: i32, %arg2: i32) -> (i32, i32) {
    %c0_i32 = arith.constant 0 : i32
    %c0_i32_0 = arith.constant 0 : i32
    return %c0_i32, %arg1 : i32, i32
  }
  func.func @transform_3(%arg0: i32, %arg1: i32, %arg2: i32) -> (i32, i32) {
    %c0_i32 = arith.constant 0 : i32
    return %arg0, %arg1 : i32, i32
  }
  func.func @transform_4(%arg0: i32, %arg1: i32, %arg2: i32) -> (i32, i32) {
    %c0_i32 = arith.constant 0 : i32
    return %arg0, %arg1 : i32, i32
  }
}

module attributes {stable_mosaic.version = 11 : i64} {
  func.func @_ln_linear_kernel(%arg0: i32, %arg1: i32, %arg2: memref<9x32xbf16, #tpu.memory_space<vmem>>, %arg3: memref<1x32xf32, #tpu.memory_space<vmem>>, %arg4: memref<1x32xf32, #tpu.memory_space<vmem>>, %arg5: memref<32x16xbf16, #tpu.memory_space<vmem>>, %arg6: memref<9x16xf32, #tpu.memory_space<vmem>>, %arg7: memref<9x32xbf16, #tpu.memory_space<vmem>>) attributes {dimension_semantics = [#tpu.dimension_semantics<parallel>, #tpu.dimension_semantics<arbitrary>], iteration_bounds = array<i64: 1, 1>, scalar_prefetch = 0 : i64, scratch_operands = 1 : i64, tpu.core_type = #tpu.core_type<tc>, window_params = [{transform_indices = @transform_0, window_bounds = array<i64: 9, 32>}, {pipeline_mode = #tpu.pipeline_mode<synchronous>, transform_indices = @transform_1, window_bounds = array<i64: 1, 32>}, {pipeline_mode = #tpu.pipeline_mode<synchronous>, transform_indices = @transform_2, window_bounds = array<i64: 1, 32>}, {transform_indices = @transform_3, window_bounds = array<i64: 32, 16>}, {transform_indices = @transform_4, window_bounds = array<i64: 9, 16>}]} {
    %c0_i32 = arith.constant 0 : i32
    %0 = arith.cmpi eq, %arg1, %c0_i32 : i32
    %1 = arith.extui %0 : i1 to i32
    %c0_i32_0 = arith.constant 0 : i32
    %2 = arith.cmpi ne, %1, %c0_i32_0 : i32
    scf.if %2 {
      %c0_6 = arith.constant 0 : index
      %c0_7 = arith.constant 0 : index
      %7 = vector.load %arg2[%c0_6, %c0_7] : memref<9x32xbf16, #tpu.memory_space<vmem>>, vector<9x32xbf16>
      %8 = arith.extf %7 : vector<9x32xbf16> to vector<9x32xf32>
      %cst_8 = arith.constant dense<0.000000e+00> : vector<9xf32>
      %9 = vector.multi_reduction <add>, %8, %cst_8 [1] : vector<9x32xf32> to vector<9xf32>
      %10 = vector.shape_cast %9 : vector<9xf32> to vector<9x1xf32>
      %cst_9 = arith.constant 3.200000e+01 : f32
      %11 = vector.broadcast %cst_9 : f32 to vector<9x1xf32>
      %12 = arith.divf %10, %11 : vector<9x1xf32>
      %13 = vector.broadcast %12 : vector<9x1xf32> to vector<9x32xf32>
      %14 = arith.subf %8, %13 : vector<9x32xf32>
      %15 = arith.mulf %14, %14 : vector<9x32xf32>
      %cst_10 = arith.constant dense<0.000000e+00> : vector<9xf32>
      %16 = vector.multi_reduction <add>, %15, %cst_10 [1] : vector<9x32xf32> to vector<9xf32>
      %17 = vector.shape_cast %16 : vector<9xf32> to vector<9x1xf32>
      %cst_11 = arith.constant 3.200000e+01 : f32
      %18 = vector.broadcast %cst_11 : f32 to vector<9x1xf32>
      %19 = arith.divf %17, %18 : vector<9x1xf32>
      %cst_12 = arith.constant 9.99999974E-6 : f32
      %20 = vector.broadcast %cst_12 : f32 to vector<9x1xf32>
      %21 = arith.addf %19, %20 : vector<9x1xf32>
      %22 = math.rsqrt %21 : vector<9x1xf32>
      %23 = vector.broadcast %22 : vector<9x1xf32> to vector<9x32xf32>
      %24 = arith.mulf %14, %23 : vector<9x32xf32>
      %c0_13 = arith.constant 0 : index
      %c0_14 = arith.constant 0 : index
      %25 = vector.load %arg3[%c0_13, %c0_14] : memref<1x32xf32, #tpu.memory_space<vmem>>, vector<1x32xf32>
      %26 = vector.broadcast %25 : vector<1x32xf32> to vector<9x32xf32>
      %27 = arith.mulf %24, %26 : vector<9x32xf32>
      %c0_15 = arith.constant 0 : index
      %c0_16 = arith.constant 0 : index
      %28 = vector.load %arg4[%c0_15, %c0_16] : memref<1x32xf32, #tpu.memory_space<vmem>>, vector<1x32xf32>
      %29 = vector.broadcast %28 : vector<1x32xf32> to vector<9x32xf32>
      %30 = arith.addf %27, %29 : vector<9x32xf32>
      %31 = arith.truncf %30 : vector<9x32xf32> to vector<9x32xbf16>
      %c0_17 = arith.constant 0 : index
      %c0_18 = arith.constant 0 : index
      %32 = vector.load %arg7[%c0_17, %c0_18] : memref<9x32xbf16, #tpu.memory_space<vmem>>, vector<9x32xbf16>
      tpu.vector_store %arg7[%c0_17, %c0_18], %31 {strides = array<i32>} : memref<9x32xbf16, #tpu.memory_space<vmem>>, vector<9x32xbf16>,
    } else {
    }
    %c0 = arith.constant 0 : index
    %c0_1 = arith.constant 0 : index
    %3 = vector.load %arg7[%c0, %c0_1] : memref<9x32xbf16, #tpu.memory_space<vmem>>, vector<9x32xbf16>
    %c0_2 = arith.constant 0 : index
    %c0_3 = arith.constant 0 : index
    %4 = vector.load %arg5[%c0_2, %c0_3] : memref<32x16xbf16, #tpu.memory_space<vmem>>, vector<32x16xbf16>
    %cst = arith.constant dense<0.000000e+00> : vector<9x16xf32>
    %5 = tpu.matmul %3, %4, %cst {dimension_numbers = #tpu.dot_dimension_numbers<[1], [0], [0], [1], [0, 0, 1, 1], [], []>} : vector<9x32xbf16>, vector<32x16xbf16>, vector<9x16xf32> -> vector<9x16xf32>
    %c0_4 = arith.constant 0 : index
    %c0_5 = arith.constant 0 : index
    %6 = vector.load %arg6[%c0_4, %c0_5] : memref<9x16xf32, #tpu.memory_space<vmem>>, vector<9x16xf32>
    tpu.vector_store %arg6[%c0_4, %c0_5], %5 {strides = array<i32>} : memref<9x16xf32, #tpu.memory_space<vmem>>, vector<9x16xf32>,
    return
  }
  func.func @transform_0(%arg0: i32, %arg1: i32) -> (i32, i32) {
    %c0_i32 = arith.constant 0 : i32
    %c0_i32_0 = arith.constant 0 : i32
    return %arg0, %c0_i32 : i32, i32
  }
  func.func @transform_1(%arg0: i32, %arg1: i32) -> (i32, i32) {
    %c0_i32 = arith.constant 0 : i32
    %c0_i32_0 = arith.constant 0 : i32
    %c0_i32_1 = arith.constant 0 : i32
    return %c0_i32, %c0_i32_0 : i32, i32
  }
  func.func @transform_2(%arg0: i32, %arg1: i32) -> (i32, i32) {
    %c0_i32 = arith.constant 0 : i32
    %c0_i32_0 = arith.constant 0 : i32
    %c0_i32_1 = arith.constant 0 : i32
    return %c0_i32, %c0_i32_0 : i32, i32
  }
  func.func @transform_3(%arg0: i32, %arg1: i32) -> (i32, i32) {
    %c0_i32 = arith.constant 0 : i32
    %c0_i32_0 = arith.constant 0 : i32
    return %c0_i32, %arg1 : i32, i32
  }
  func.func @transform_4(%arg0: i32, %arg1: i32) -> (i32, i32) {
    %c0_i32 = arith.constant 0 : i32
    return %arg0, %arg1 : i32, i32
  }
}

module attributes {stable_mosaic.version = 11 : i64} {
  func.func @_linear_kernel(%arg0: i32, %arg1: i32, %arg2: i32, %arg3: memref<8x192xbf16, #tpu.memory_space<vmem>>, %arg4: memref<192x32xbf16, #tpu.memory_space<vmem>>, %arg5: memref<8x32xbf16, #tpu.memory_space<vmem>>, %arg6: memref<8x32xf32, #tpu.memory_space<vmem>>) attributes {dimension_semantics = [#tpu.dimension_semantics<parallel>, #tpu.dimension_semantics<parallel>, #tpu.dimension_semantics<arbitrary>], iteration_bounds = array<i64: 1, 1, 1>, scalar_prefetch = 0 : i64, scratch_operands = 1 : i64, tpu.core_type = #tpu.core_type<tc>, window_params = [{transform_indices = @transform_0, window_bounds = array<i64: 8, 192>}, {transform_indices = @transform_1, window_bounds = array<i64: 192, 32>}, {transform_indices = @transform_2, window_bounds = array<i64: 8, 32>}]} {
    %c0_i32 = arith.constant 0 : i32
    %0 = arith.cmpi eq, %arg2, %c0_i32 : i32
    %1 = arith.extui %0 : i1 to i32
    %c0_i32_0 = arith.constant 0 : i32
    %2 = arith.cmpi ne, %1, %c0_i32_0 : i32
    scf.if %2 {
      %cst_10 = arith.constant 0.000000e+00 : f32
      %12 = vector.broadcast %cst_10 : f32 to vector<8x32xf32>
      %c0_11 = arith.constant 0 : index
      %c0_12 = arith.constant 0 : index
      %13 = vector.load %arg6[%c0_11, %c0_12] : memref<8x32xf32, #tpu.memory_space<vmem>>, vector<8x32xf32>
      tpu.vector_store %arg6[%c0_11, %c0_12], %12 {strides = array<i32>} : memref<8x32xf32, #tpu.memory_space<vmem>>, vector<8x32xf32>,
    } else {
    }
    %c0 = arith.constant 0 : index
    %c0_1 = arith.constant 0 : index
    %3 = vector.load %arg6[%c0, %c0_1] : memref<8x32xf32, #tpu.memory_space<vmem>>, vector<8x32xf32>
    %c0_2 = arith.constant 0 : index
    %c0_3 = arith.constant 0 : index
    %4 = vector.load %arg3[%c0_2, %c0_3] : memref<8x192xbf16, #tpu.memory_space<vmem>>, vector<8x192xbf16>
    %c0_4 = arith.constant 0 : index
    %c0_5 = arith.constant 0 : index
    %5 = vector.load %arg4[%c0_4, %c0_5] : memref<192x32xbf16, #tpu.memory_space<vmem>>, vector<192x32xbf16>
    %cst = arith.constant dense<0.000000e+00> : vector<8x32xf32>
    %6 = tpu.matmul %4, %5, %cst {dimension_numbers = #tpu.dot_dimension_numbers<[1], [0], [0], [1], [0, 0, 1, 1], [], []>} : vector<8x192xbf16>, vector<192x32xbf16>, vector<8x32xf32> -> vector<8x32xf32>
    %7 = arith.addf %3, %6 : vector<8x32xf32>
    %c0_6 = arith.constant 0 : index
    %c0_7 = arith.constant 0 : index
    %8 = vector.load %arg6[%c0_6, %c0_7] : memref<8x32xf32, #tpu.memory_space<vmem>>, vector<8x32xf32>
    tpu.vector_store %arg6[%c0_6, %c0_7], %7 {strides = array<i32>} : memref<8x32xf32, #tpu.memory_space<vmem>>, vector<8x32xf32>,
    %c0_i32_8 = arith.constant 0 : i32
    %9 = arith.cmpi eq, %arg2, %c0_i32_8 : i32
    %10 = arith.extui %9 : i1 to i32
    %c0_i32_9 = arith.constant 0 : i32
    %11 = arith.cmpi ne, %10, %c0_i32_9 : i32
    scf.if %11 {
      %c0_10 = arith.constant 0 : index
      %c0_11 = arith.constant 0 : index
      %12 = vector.load %arg6[%c0_10, %c0_11] : memref<8x32xf32, #tpu.memory_space<vmem>>, vector<8x32xf32>
      %13 = arith.truncf %12 : vector<8x32xf32> to vector<8x32xbf16>
      %c0_12 = arith.constant 0 : index
      %c0_13 = arith.constant 0 : index
      %14 = vector.load %arg5[%c0_12, %c0_13] : memref<8x32xbf16, #tpu.memory_space<vmem>>, vector<8x32xbf16>
      tpu.vector_store %arg5[%c0_12, %c0_13], %13 {strides = array<i32>} : memref<8x32xbf16, #tpu.memory_space<vmem>>, vector<8x32xbf16>,
    } else {
    }
    return
  }
  func.func @transform_0(%arg0: i32, %arg1: i32, %arg2: i32) -> (i32, i32) {
    %c0_i32 = arith.constant 0 : i32
    return %arg0, %arg2 : i32, i32
  }
  func.func @transform_1(%arg0: i32, %arg1: i32, %arg2: i32) -> (i32, i32) {
    %c0_i32 = arith.constant 0 : i32
    return %arg2, %arg1 : i32, i32
  }
  func.func @transform_2(%arg0: i32, %arg1: i32, %arg2: i32) -> (i32, i32) {
    %c0_i32 = arith.constant 0 : i32
    return %arg0, %arg1 : i32, i32
  }
}

module attributes {stable_mosaic.version = 11 : i64} {
  func.func @_add_ln_kernel(%arg0: i32, %arg1: memref<1x5x32xbf16, #tpu.memory_space<vmem>>, %arg2: memref<5x32xf32, #tpu.memory_space<vmem>>, %arg3: memref<1x32xf32, #tpu.memory_space<vmem>>, %arg4: memref<1x32xf32, #tpu.memory_space<vmem>>, %arg5: memref<1x5x32xbf16, #tpu.memory_space<vmem>>) attributes {dimension_semantics = [#tpu.dimension_semantics<parallel>], iteration_bounds = array<i64: 2>, scalar_prefetch = 0 : i64, scratch_operands = 0 : i64, tpu.core_type = #tpu.core_type<tc>, window_params = [{transform_indices = @transform_0, window_bounds = array<i64: 1, 5, 32>}, {pipeline_mode = #tpu.pipeline_mode<synchronous>, transform_indices = @transform_1, window_bounds = array<i64: 5, 32>}, {pipeline_mode = #tpu.pipeline_mode<synchronous>, transform_indices = @transform_2, window_bounds = array<i64: 1, 32>}, {pipeline_mode = #tpu.pipeline_mode<synchronous>, transform_indices = @transform_3, window_bounds = array<i64: 1, 32>}, {transform_indices = @transform_4, window_bounds = array<i64: 1, 5, 32>}]} {
    %c0 = arith.constant 0 : index
    %c0_0 = arith.constant 0 : index
    %c0_1 = arith.constant 0 : index
    %0 = vector.load %arg1[%c0, %c0_0, %c0_1] : memref<1x5x32xbf16, #tpu.memory_space<vmem>>, vector<1x5x32xbf16>
    %1 = vector.shape_cast %0 : vector<1x5x32xbf16> to vector<5x32xbf16>
    %2 = arith.extf %1 : vector<5x32xbf16> to vector<5x32xf32>
    %c0_2 = arith.constant 0 : index
    %c0_3 = arith.constant 0 : index
    %3 = vector.load %arg2[%c0_2, %c0_3] : memref<5x32xf32, #tpu.memory_space<vmem>>, vector<5x32xf32>
    %4 = arith.addf %2, %3 : vector<5x32xf32>
    %cst = arith.constant dense<0.000000e+00> : vector<5xf32>
    %5 = vector.multi_reduction <add>, %4, %cst [1] : vector<5x32xf32> to vector<5xf32>
    %6 = vector.shape_cast %5 : vector<5xf32> to vector<5x1xf32>
    %cst_4 = arith.constant 3.200000e+01 : f32
    %7 = vector.broadcast %cst_4 : f32 to vector<5x1xf32>
    %8 = arith.divf %6, %7 : vector<5x1xf32>
    %9 = vector.broadcast %8 : vector<5x1xf32> to vector<5x32xf32>
    %10 = arith.subf %4, %9 : vector<5x32xf32>
    %11 = arith.mulf %10, %10 : vector<5x32xf32>
    %cst_5 = arith.constant dense<0.000000e+00> : vector<5xf32>
    %12 = vector.multi_reduction <add>, %11, %cst_5 [1] : vector<5x32xf32> to vector<5xf32>
    %13 = vector.shape_cast %12 : vector<5xf32> to vector<5x1xf32>
    %cst_6 = arith.constant 3.200000e+01 : f32
    %14 = vector.broadcast %cst_6 : f32 to vector<5x1xf32>
    %15 = arith.divf %13, %14 : vector<5x1xf32>
    %cst_7 = arith.constant 9.99999974E-6 : f32
    %16 = vector.broadcast %cst_7 : f32 to vector<5x1xf32>
    %17 = arith.addf %15, %16 : vector<5x1xf32>
    %18 = math.rsqrt %17 : vector<5x1xf32>
    %19 = vector.broadcast %18 : vector<5x1xf32> to vector<5x32xf32>
    %20 = arith.mulf %10, %19 : vector<5x32xf32>
    %c0_8 = arith.constant 0 : index
    %c0_9 = arith.constant 0 : index
    %21 = vector.load %arg3[%c0_8, %c0_9] : memref<1x32xf32, #tpu.memory_space<vmem>>, vector<1x32xf32>
    %22 = vector.broadcast %21 : vector<1x32xf32> to vector<5x32xf32>
    %23 = arith.mulf %20, %22 : vector<5x32xf32>
    %c0_10 = arith.constant 0 : index
    %c0_11 = arith.constant 0 : index
    %24 = vector.load %arg4[%c0_10, %c0_11] : memref<1x32xf32, #tpu.memory_space<vmem>>, vector<1x32xf32>
    %25 = vector.broadcast %24 : vector<1x32xf32> to vector<5x32xf32>
    %26 = arith.addf %23, %25 : vector<5x32xf32>
    %27 = arith.truncf %26 : vector<5x32xf32> to vector<5x32xbf16>
    %c0_12 = arith.constant 0 : index
    %c0_13 = arith.constant 0 : index
    %c0_14 = arith.constant 0 : index
    %28 = vector.load %arg5[%c0_12, %c0_13, %c0_14] : memref<1x5x32xbf16, #tpu.memory_space<vmem>>, vector<1x5x32xbf16>
    %29 = vector.shape_cast %28 : vector<1x5x32xbf16> to vector<5x32xbf16>
    %30 = vector.shape_cast %27 : vector<5x32xbf16> to vector<1x5x32xbf16>
    tpu.vector_store %arg5[%c0_12, %c0_13, %c0_14], %30 {strides = array<i32>} : memref<1x5x32xbf16, #tpu.memory_space<vmem>>, vector<1x5x32xbf16>,
    return
  }
  func.func @transform_0(%arg0: i32) -> (i32, i32, i32) {
    %c0_i32 = arith.constant 0 : i32
    %c0_i32_0 = arith.constant 0 : i32
    %c0_i32_1 = arith.constant 0 : i32
    return %arg0, %c0_i32, %c0_i32_0 : i32, i32, i32
  }
  func.func @transform_1(%arg0: i32) -> (i32, i32) {
    %c0_i32 = arith.constant 0 : i32
    %c0_i32_0 = arith.constant 0 : i32
    %c0_i32_1 = arith.constant 0 : i32
    return %c0_i32, %c0_i32_0 : i32, i32
  }
  func.func @transform_2(%arg0: i32) -> (i32, i32) {
    %c0_i32 = arith.constant 0 : i32
    %c0_i32_0 = arith.constant 0 : i32
    %c0_i32_1 = arith.constant 0 : i32
    return %c0_i32, %c0_i32_0 : i32, i32
  }
  func.func @transform_3(%arg0: i32) -> (i32, i32) {
    %c0_i32 = arith.constant 0 : i32
    %c0_i32_0 = arith.constant 0 : i32
    %c0_i32_1 = arith.constant 0 : i32
    return %c0_i32, %c0_i32_0 : i32, i32
  }
  func.func @transform_4(%arg0: i32) -> (i32, i32, i32) {
    %c0_i32 = arith.constant 0 : i32
    %c0_i32_0 = arith.constant 0 : i32
    %c0_i32_1 = arith.constant 0 : i32
    return %arg0, %c0_i32, %c0_i32_0 : i32, i32, i32
  }
}

module attributes {stable_mosaic.version = 11 : i64} {
  func.func @_ln_linear_kernel(%arg0: i32, %arg1: i32, %arg2: memref<10x32xbf16, #tpu.memory_space<vmem>>, %arg3: memref<1x32xf32, #tpu.memory_space<vmem>>, %arg4: memref<1x32xf32, #tpu.memory_space<vmem>>, %arg5: memref<32x96xbf16, #tpu.memory_space<vmem>>, %arg6: memref<1x96xf32, #tpu.memory_space<vmem>>, %arg7: memref<10x96xbf16, #tpu.memory_space<vmem>>, %arg8: memref<10x32xbf16, #tpu.memory_space<vmem>>) attributes {dimension_semantics = [#tpu.dimension_semantics<parallel>, #tpu.dimension_semantics<arbitrary>], iteration_bounds = array<i64: 1, 1>, scalar_prefetch = 0 : i64, scratch_operands = 1 : i64, tpu.core_type = #tpu.core_type<tc>, window_params = [{transform_indices = @transform_0, window_bounds = array<i64: 10, 32>}, {pipeline_mode = #tpu.pipeline_mode<synchronous>, transform_indices = @transform_1, window_bounds = array<i64: 1, 32>}, {pipeline_mode = #tpu.pipeline_mode<synchronous>, transform_indices = @transform_2, window_bounds = array<i64: 1, 32>}, {transform_indices = @transform_3, window_bounds = array<i64: 32, 96>}, {transform_indices = @transform_4, window_bounds = array<i64: 1, 96>}, {transform_indices = @transform_5, window_bounds = array<i64: 10, 96>}]} {
    %c0_i32 = arith.constant 0 : i32
    %0 = arith.cmpi eq, %arg1, %c0_i32 : i32
    %1 = arith.extui %0 : i1 to i32
    %c0_i32_0 = arith.constant 0 : i32
    %2 = arith.cmpi ne, %1, %c0_i32_0 : i32
    scf.if %2 {
      %c0_8 = arith.constant 0 : index
      %c0_9 = arith.constant 0 : index
      %11 = vector.load %arg2[%c0_8, %c0_9] : memref<10x32xbf16, #tpu.memory_space<vmem>>, vector<10x32xbf16>
      %12 = arith.extf %11 : vector<10x32xbf16> to vector<10x32xf32>
      %cst_10 = arith.constant dense<0.000000e+00> : vector<10xf32>
      %13 = vector.multi_reduction <add>, %12, %cst_10 [1] : vector<10x32xf32> to vector<10xf32>
      %14 = vector.shape_cast %13 : vector<10xf32> to vector<10x1xf32>
      %cst_11 = arith.constant 3.200000e+01 : f32
      %15 = vector.broadcast %cst_11 : f32 to vector<10x1xf32>
      %16 = arith.divf %14, %15 : vector<10x1xf32>
      %17 = vector.broadcast %16 : vector<10x1xf32> to vector<10x32xf32>
      %18 = arith.subf %12, %17 : vector<10x32xf32>
      %19 = arith.mulf %18, %18 : vector<10x32xf32>
      %cst_12 = arith.constant dense<0.000000e+00> : vector<10xf32>
      %20 = vector.multi_reduction <add>, %19, %cst_12 [1] : vector<10x32xf32> to vector<10xf32>
      %21 = vector.shape_cast %20 : vector<10xf32> to vector<10x1xf32>
      %cst_13 = arith.constant 3.200000e+01 : f32
      %22 = vector.broadcast %cst_13 : f32 to vector<10x1xf32>
      %23 = arith.divf %21, %22 : vector<10x1xf32>
      %cst_14 = arith.constant 9.99999974E-6 : f32
      %24 = vector.broadcast %cst_14 : f32 to vector<10x1xf32>
      %25 = arith.addf %23, %24 : vector<10x1xf32>
      %26 = math.rsqrt %25 : vector<10x1xf32>
      %27 = vector.broadcast %26 : vector<10x1xf32> to vector<10x32xf32>
      %28 = arith.mulf %18, %27 : vector<10x32xf32>
      %c0_15 = arith.constant 0 : index
      %c0_16 = arith.constant 0 : index
      %29 = vector.load %arg3[%c0_15, %c0_16] : memref<1x32xf32, #tpu.memory_space<vmem>>, vector<1x32xf32>
      %30 = vector.broadcast %29 : vector<1x32xf32> to vector<10x32xf32>
      %31 = arith.mulf %28, %30 : vector<10x32xf32>
      %c0_17 = arith.constant 0 : index
      %c0_18 = arith.constant 0 : index
      %32 = vector.load %arg4[%c0_17, %c0_18] : memref<1x32xf32, #tpu.memory_space<vmem>>, vector<1x32xf32>
      %33 = vector.broadcast %32 : vector<1x32xf32> to vector<10x32xf32>
      %34 = arith.addf %31, %33 : vector<10x32xf32>
      %35 = arith.truncf %34 : vector<10x32xf32> to vector<10x32xbf16>
      %c0_19 = arith.constant 0 : index
      %c0_20 = arith.constant 0 : index
      %36 = vector.load %arg8[%c0_19, %c0_20] : memref<10x32xbf16, #tpu.memory_space<vmem>>, vector<10x32xbf16>
      tpu.vector_store %arg8[%c0_19, %c0_20], %35 {strides = array<i32>} : memref<10x32xbf16, #tpu.memory_space<vmem>>, vector<10x32xbf16>,
    } else {
    }
    %c0 = arith.constant 0 : index
    %c0_1 = arith.constant 0 : index
    %3 = vector.load %arg8[%c0, %c0_1] : memref<10x32xbf16, #tpu.memory_space<vmem>>, vector<10x32xbf16>
    %c0_2 = arith.constant 0 : index
    %c0_3 = arith.constant 0 : index
    %4 = vector.load %arg5[%c0_2, %c0_3] : memref<32x96xbf16, #tpu.memory_space<vmem>>, vector<32x96xbf16>
    %cst = arith.constant dense<0.000000e+00> : vector<10x96xf32>
    %5 = tpu.matmul %3, %4, %cst {dimension_numbers = #tpu.dot_dimension_numbers<[1], [0], [0], [1], [0, 0, 1, 1], [], []>} : vector<10x32xbf16>, vector<32x96xbf16>, vector<10x96xf32> -> vector<10x96xf32>
    %c0_4 = arith.constant 0 : index
    %c0_5 = arith.constant 0 : index
    %6 = vector.load %arg6[%c0_4, %c0_5] : memref<1x96xf32, #tpu.memory_space<vmem>>, vector<1x96xf32>
    %7 = vector.broadcast %6 : vector<1x96xf32> to vector<10x96xf32>
    %8 = arith.addf %5, %7 : vector<10x96xf32>
    %9 = arith.truncf %8 : vector<10x96xf32> to vector<10x96xbf16>
    %c0_6 = arith.constant 0 : index
    %c0_7 = arith.constant 0 : index
    %10 = vector.load %arg7[%c0_6, %c0_7] : memref<10x96xbf16, #tpu.memory_space<vmem>>, vector<10x96xbf16>
    tpu.vector_store %arg7[%c0_6, %c0_7], %9 {strides = array<i32>} : memref<10x96xbf16, #tpu.memory_space<vmem>>, vector<10x96xbf16>,
    return
  }
  func.func @transform_0(%arg0: i32, %arg1: i32) -> (i32, i32) {
    %c0_i32 = arith.constant 0 : i32
    %c0_i32_0 = arith.constant 0 : i32
    return %arg0, %c0_i32 : i32, i32
  }
  func.func @transform_1(%arg0: i32, %arg1: i32) -> (i32, i32) {
    %c0_i32 = arith.constant 0 : i32
    %c0_i32_0 = arith.constant 0 : i32
    %c0_i32_1 = arith.constant 0 : i32
    return %c0_i32, %c0_i32_0 : i32, i32
  }
  func.func @transform_2(%arg0: i32, %arg1: i32) -> (i32, i32) {
    %c0_i32 = arith.constant 0 : i32
    %c0_i32_0 = arith.constant 0 : i32
    %c0_i32_1 = arith.constant 0 : i32
    return %c0_i32, %c0_i32_0 : i32, i32
  }
  func.func @transform_3(%arg0: i32, %arg1: i32) -> (i32, i32) {
    %c0_i32 = arith.constant 0 : i32
    %c0_i32_0 = arith.constant 0 : i32
    return %c0_i32, %arg1 : i32, i32
  }
  func.func @transform_4(%arg0: i32, %arg1: i32) -> (i32, i32) {
    %c0_i32 = arith.constant 0 : i32
    %c0_i32_0 = arith.constant 0 : i32
    return %c0_i32, %arg1 : i32, i32
  }
  func.func @transform_5(%arg0: i32, %arg1: i32) -> (i32, i32) {
    %c0_i32 = arith.constant 0 : i32
    return %arg0, %arg1 : i32, i32
  }
}

module attributes {stable_mosaic.version = 11 : i64} {
  func.func @_attention_kernel(%arg0: i32, %arg1: i32, %arg2: memref<1x5x16xbf16, #tpu.memory_space<vmem>>, %arg3: memref<1x5x16xbf16, #tpu.memory_space<vmem>>, %arg4: memref<1x5x16xbf16, #tpu.memory_space<vmem>>, %arg5: memref<1x5x16xbf16, #tpu.memory_space<vmem>>, %arg6: memref<5x1xf32, #tpu.memory_space<vmem>>, %arg7: memref<5x1xf32, #tpu.memory_space<vmem>>, %arg8: memref<5x16xf32, #tpu.memory_space<vmem>>) attributes {dimension_semantics = [#tpu.dimension_semantics<parallel>, #tpu.dimension_semantics<arbitrary>], iteration_bounds = array<i64: 4, 1>, scalar_prefetch = 0 : i64, scratch_operands = 3 : i64, tpu.core_type = #tpu.core_type<tc>, window_params = [{transform_indices = @transform_0, window_bounds = array<i64: 1, 5, 16>}, {transform_indices = @transform_1, window_bounds = array<i64: 1, 5, 16>}, {transform_indices = @transform_2, window_bounds = array<i64: 1, 5, 16>}, {transform_indices = @transform_3, window_bounds = array<i64: 1, 5, 16>}]} {
    %c0_i32 = arith.constant 0 : i32
    %0 = arith.cmpi eq, %arg1, %c0_i32 : i32
    %1 = arith.extui %0 : i1 to i32
    %c0_i32_0 = arith.constant 0 : i32
    %2 = arith.cmpi ne, %1, %c0_i32_0 : i32
    scf.if %2 {
      %cst_27 = arith.constant -1.000000e+30 : f32
      %40 = vector.broadcast %cst_27 : f32 to vector<5x1xf32>
      %c0_28 = arith.constant 0 : index
      %c0_29 = arith.constant 0 : index
      %41 = vector.load %arg6[%c0_28, %c0_29] : memref<5x1xf32, #tpu.memory_space<vmem>>, vector<5x1xf32>
      tpu.vector_store %arg6[%c0_28, %c0_29], %40 {strides = array<i32>} : memref<5x1xf32, #tpu.memory_space<vmem>>, vector<5x1xf32>,
      %cst_30 = arith.constant 0.000000e+00 : f32
      %42 = vector.broadcast %cst_30 : f32 to vector<5x1xf32>
      %c0_31 = arith.constant 0 : index
      %c0_32 = arith.constant 0 : index
      %43 = vector.load %arg7[%c0_31, %c0_32] : memref<5x1xf32, #tpu.memory_space<vmem>>, vector<5x1xf32>
      tpu.vector_store %arg7[%c0_31, %c0_32], %42 {strides = array<i32>} : memref<5x1xf32, #tpu.memory_space<vmem>>, vector<5x1xf32>,
      %cst_33 = arith.constant 0.000000e+00 : f32
      %44 = vector.broadcast %cst_33 : f32 to vector<5x16xf32>
      %c0_34 = arith.constant 0 : index
      %c0_35 = arith.constant 0 : index
      %45 = vector.load %arg8[%c0_34, %c0_35] : memref<5x16xf32, #tpu.memory_space<vmem>>, vector<5x16xf32>
      tpu.vector_store %arg8[%c0_34, %c0_35], %44 {strides = array<i32>} : memref<5x16xf32, #tpu.memory_space<vmem>>, vector<5x16xf32>,
    } else {
    }
    %c0 = arith.constant 0 : index
    %c0_1 = arith.constant 0 : index
    %c0_2 = arith.constant 0 : index
    %3 = vector.load %arg2[%c0, %c0_1, %c0_2] : memref<1x5x16xbf16, #tpu.memory_space<vmem>>, vector<1x5x16xbf16>
    %4 = vector.shape_cast %3 : vector<1x5x16xbf16> to vector<5x16xbf16>
    %5 = arith.extf %4 : vector<5x16xbf16> to vector<5x16xf32>
    %cst = arith.constant 2.500000e-01 : f32
    %6 = vector.broadcast %cst : f32 to vector<5x16xf32>
    %7 = arith.mulf %5, %6 : vector<5x16xf32>
    %8 = arith.truncf %7 : vector<5x16xf32> to vector<5x16xbf16>
    %c0_3 = arith.constant 0 : index
    %c0_4 = arith.constant 0 : index
    %c0_5 = arith.constant 0 : index
    %9 = vector.load %arg3[%c0_3, %c0_4, %c0_5] : memref<1x5x16xbf16, #tpu.memory_space<vmem>>, vector<1x5x16xbf16>
    %10 = vector.shape_cast %9 : vector<1x5x16xbf16> to vector<5x16xbf16>
    %cst_6 = arith.constant dense<0.000000e+00> : vector<5x5xf32>
    %11 = tpu.matmul %8, %10, %cst_6 {dimension_numbers = #tpu.dot_dimension_numbers<[1], [1], [0], [0], [0, 0, 1, 0], [], []>} : vector<5x16xbf16>, vector<5x16xbf16>, vector<5x5xf32> -> vector<5x5xf32>
    %c0_7 = arith.constant 0 : index
    %c0_8 = arith.constant 0 : index
    %12 = vector.load %arg6[%c0_7, %c0_8] : memref<5x1xf32, #tpu.memory_space<vmem>>, vector<5x1xf32>
    %cst_9 = arith.constant dense<0xFF800000> : vector<5xf32>
    %13 = vector.multi_reduction <maximumf>, %11, %cst_9 [1] : vector<5x5xf32> to vector<5xf32>
    %14 = vector.shape_cast %13 : vector<5xf32> to vector<5x1xf32>
    %15 = arith.maximumf %12, %14 : vector<5x1xf32>
    %16 = arith.subf %12, %15 : vector<5x1xf32>
    %17 = math.exp %16 : vector<5x1xf32>
    %18 = vector.broadcast %15 : vector<5x1xf32> to vector<5x5xf32>
    %19 = arith.subf %11, %18 : vector<5x5xf32>
    %20 = math.exp %19 : vector<5x5xf32>
    %c0_10 = arith.constant 0 : index
    %c0_11 = arith.constant 0 : index
    %21 = vector.load %arg7[%c0_10, %c0_11] : memref<5x1xf32, #tpu.memory_space<vmem>>, vector<5x1xf32>
    %22 = arith.mulf %17, %21 : vector<5x1xf32>
    %cst_12 = arith.constant dense<0.000000e+00> : vector<5xf32>
    %23 = vector.multi_reduction <add>, %20, %cst_12 [1] : vector<5x5xf32> to vector<5xf32>
    %24 = vector.shape_cast %23 : vector<5xf32> to vector<5x1xf32>
    %25 = arith.addf %22, %24 : vector<5x1xf32>
    %c0_13 = arith.constant 0 : index
    %c0_14 = arith.constant 0 : index
    %26 = vector.load %arg7[%c0_13, %c0_14] : memref<5x1xf32, #tpu.memory_space<vmem>>, vector<5x1xf32>
    tpu.vector_store %arg7[%c0_13, %c0_14], %25 {strides = array<i32>} : memref<5x1xf32, #tpu.memory_space<vmem>>, vector<5x1xf32>,
    %c0_15 = arith.constant 0 : index
    %c0_16 = arith.constant 0 : index
    %27 = vector.load %arg8[%c0_15, %c0_16] : memref<5x16xf32, #tpu.memory_space<vmem>>, vector<5x16xf32>
    %28 = vector.broadcast %17 : vector<5x1xf32> to vector<5x16xf32>
    %29 = arith.mulf %28, %27 : vector<5x16xf32>
    %30 = arith.truncf %20 : vector<5x5xf32> to vector<5x5xbf16>
    %c0_17 = arith.constant 0 : index
    %c0_18 = arith.constant 0 : index
    %c0_19 = arith.constant 0 : index
    %31 = vector.load %arg4[%c0_17, %c0_18, %c0_19] : memref<1x5x16xbf16, #tpu.memory_space<vmem>>, vector<1x5x16xbf16>
    %32 = vector.shape_cast %31 : vector<1x5x16xbf16> to vector<5x16xbf16>
    %cst_20 = arith.constant dense<0.000000e+00> : vector<5x16xf32>
    %33 = tpu.matmul %30, %32, %cst_20 {dimension_numbers = #tpu.dot_dimension_numbers<[1], [0], [0], [1], [0, 0, 1, 1], [], []>} : vector<5x5xbf16>, vector<5x16xbf16>, vector<5x16xf32> -> vector<5x16xf32>
    %34 = arith.addf %29, %33 : vector<5x16xf32>
    %c0_21 = arith.constant 0 : index
    %c0_22 = arith.constant 0 : index
    %35 = vector.load %arg8[%c0_21, %c0_22] : memref<5x16xf32, #tpu.memory_space<vmem>>, vector<5x16xf32>
    tpu.vector_store %arg8[%c0_21, %c0_22], %34 {strides = array<i32>} : memref<5x16xf32, #tpu.memory_space<vmem>>, vector<5x16xf32>,
    %c0_23 = arith.constant 0 : index
    %c0_24 = arith.constant 0 : index
    %36 = vector.load %arg6[%c0_23, %c0_24] : memref<5x1xf32, #tpu.memory_space<vmem>>, vector<5x1xf32>
    tpu.vector_store %arg6[%c0_23, %c0_24], %15 {strides = array<i32>} : memref<5x1xf32, #tpu.memory_space<vmem>>, vector<5x1xf32>,
    %c0_i32_25 = arith.constant 0 : i32
    %37 = arith.cmpi eq, %arg1, %c0_i32_25 : i32
    %38 = arith.extui %37 : i1 to i32
    %c0_i32_26 = arith.constant 0 : i32
    %39 = arith.cmpi ne, %38, %c0_i32_26 : i32
    scf.if %39 {
      %c0_27 = arith.constant 0 : index
      %c0_28 = arith.constant 0 : index
      %40 = vector.load %arg8[%c0_27, %c0_28] : memref<5x16xf32, #tpu.memory_space<vmem>>, vector<5x16xf32>
      %c0_29 = arith.constant 0 : index
      %c0_30 = arith.constant 0 : index
      %41 = vector.load %arg7[%c0_29, %c0_30] : memref<5x1xf32, #tpu.memory_space<vmem>>, vector<5x1xf32>
      %42 = tpu.reciprocal %41 {approx = true} : vector<5x1xf32> -> vector<5x1xf32>
      %43 = vector.broadcast %42 : vector<5x1xf32> to vector<5x16xf32>
      %44 = arith.mulf %40, %43 : vector<5x16xf32>
      %45 = arith.truncf %44 : vector<5x16xf32> to vector<5x16xbf16>
      %c0_31 = arith.constant 0 : index
      %c0_32 = arith.constant 0 : index
      %c0_33 = arith.constant 0 : index
      %46 = vector.load %arg5[%c0_31, %c0_32, %c0_33] : memref<1x5x16xbf16, #tpu.memory_space<vmem>>, vector<1x5x16xbf16>
      %47 = vector.shape_cast %46 : vector<1x5x16xbf16> to vector<5x16xbf16>
      %48 = vector.shape_cast %45 : vector<5x16xbf16> to vector<1x5x16xbf16>
      tpu.vector_store %arg5[%c0_31, %c0_32, %c0_33], %48 {strides = array<i32>} : memref<1x5x16xbf16, #tpu.memory_space<vmem>>, vector<1x5x16xbf16>,
    } else {
    }
    return
  }
  func.func @transform_0(%arg0: i32, %arg1: i32) -> (i32, i32, i32) {
    %c0_i32 = arith.constant 0 : i32
    %c0_i32_0 = arith.constant 0 : i32
    %c0_i32_1 = arith.constant 0 : i32
    return %arg0, %c0_i32, %c0_i32_0 : i32, i32, i32
  }
  func.func @transform_1(%arg0: i32, %arg1: i32) -> (i32, i32, i32) {
    %c0_i32 = arith.constant 0 : i32
    %c0_i32_0 = arith.constant 0 : i32
    return %arg0, %arg1, %c0_i32 : i32, i32, i32
  }
  func.func @transform_2(%arg0: i32, %arg1: i32) -> (i32, i32, i32) {
    %c0_i32 = arith.constant 0 : i32
    %c0_i32_0 = arith.constant 0 : i32
    return %arg0, %arg1, %c0_i32 : i32, i32, i32
  }
  func.func @transform_3(%arg0: i32, %arg1: i32) -> (i32, i32, i32) {
    %c0_i32 = arith.constant 0 : i32
    %c0_i32_0 = arith.constant 0 : i32
    %c0_i32_1 = arith.constant 0 : i32
    return %arg0, %c0_i32, %c0_i32_0 : i32, i32, i32
  }
}

module attributes {stable_mosaic.version = 11 : i64} {
  func.func @_linear_kernel(%arg0: i32, %arg1: i32, %arg2: i32, %arg3: memref<10x32xbf16, #tpu.memory_space<vmem>>, %arg4: memref<32x32xbf16, #tpu.memory_space<vmem>>, %arg5: memref<1x32xf32, #tpu.memory_space<vmem>>, %arg6: memref<10x32xbf16, #tpu.memory_space<vmem>>, %arg7: memref<10x32xbf16, #tpu.memory_space<vmem>>, %arg8: memref<10x32xf32, #tpu.memory_space<vmem>>) attributes {dimension_semantics = [#tpu.dimension_semantics<parallel>, #tpu.dimension_semantics<parallel>, #tpu.dimension_semantics<arbitrary>], iteration_bounds = array<i64: 1, 1, 1>, scalar_prefetch = 0 : i64, scratch_operands = 1 : i64, tpu.core_type = #tpu.core_type<tc>, window_params = [{transform_indices = @transform_0, window_bounds = array<i64: 10, 32>}, {transform_indices = @transform_1, window_bounds = array<i64: 32, 32>}, {transform_indices = @transform_2, window_bounds = array<i64: 1, 32>}, {transform_indices = @transform_3, window_bounds = array<i64: 10, 32>}, {transform_indices = @transform_4, window_bounds = array<i64: 10, 32>}]} {
    %c0_i32 = arith.constant 0 : i32
    %0 = arith.cmpi eq, %arg2, %c0_i32 : i32
    %1 = arith.extui %0 : i1 to i32
    %c0_i32_0 = arith.constant 0 : i32
    %2 = arith.cmpi ne, %1, %c0_i32_0 : i32
    scf.if %2 {
      %cst_10 = arith.constant 0.000000e+00 : f32
      %12 = vector.broadcast %cst_10 : f32 to vector<10x32xf32>
      %c0_11 = arith.constant 0 : index
      %c0_12 = arith.constant 0 : index
      %13 = vector.load %arg8[%c0_11, %c0_12] : memref<10x32xf32, #tpu.memory_space<vmem>>, vector<10x32xf32>
      tpu.vector_store %arg8[%c0_11, %c0_12], %12 {strides = array<i32>} : memref<10x32xf32, #tpu.memory_space<vmem>>, vector<10x32xf32>,
    } else {
    }
    %c0 = arith.constant 0 : index
    %c0_1 = arith.constant 0 : index
    %3 = vector.load %arg8[%c0, %c0_1] : memref<10x32xf32, #tpu.memory_space<vmem>>, vector<10x32xf32>
    %c0_2 = arith.constant 0 : index
    %c0_3 = arith.constant 0 : index
    %4 = vector.load %arg3[%c0_2, %c0_3] : memref<10x32xbf16, #tpu.memory_space<vmem>>, vector<10x32xbf16>
    %c0_4 = arith.constant 0 : index
    %c0_5 = arith.constant 0 : index
    %5 = vector.load %arg4[%c0_4, %c0_5] : memref<32x32xbf16, #tpu.memory_space<vmem>>, vector<32x32xbf16>
    %cst = arith.constant dense<0.000000e+00> : vector<10x32xf32>
    %6 = tpu.matmul %4, %5, %cst {dimension_numbers = #tpu.dot_dimension_numbers<[1], [0], [0], [1], [0, 0, 1, 1], [], []>} : vector<10x32xbf16>, vector<32x32xbf16>, vector<10x32xf32> -> vector<10x32xf32>
    %7 = arith.addf %3, %6 : vector<10x32xf32>
    %c0_6 = arith.constant 0 : index
    %c0_7 = arith.constant 0 : index
    %8 = vector.load %arg8[%c0_6, %c0_7] : memref<10x32xf32, #tpu.memory_space<vmem>>, vector<10x32xf32>
    tpu.vector_store %arg8[%c0_6, %c0_7], %7 {strides = array<i32>} : memref<10x32xf32, #tpu.memory_space<vmem>>, vector<10x32xf32>,
    %c0_i32_8 = arith.constant 0 : i32
    %9 = arith.cmpi eq, %arg2, %c0_i32_8 : i32
    %10 = arith.extui %9 : i1 to i32
    %c0_i32_9 = arith.constant 0 : i32
    %11 = arith.cmpi ne, %10, %c0_i32_9 : i32
    scf.if %11 {
      %c0_10 = arith.constant 0 : index
      %c0_11 = arith.constant 0 : index
      %12 = vector.load %arg8[%c0_10, %c0_11] : memref<10x32xf32, #tpu.memory_space<vmem>>, vector<10x32xf32>
      %c0_12 = arith.constant 0 : index
      %c0_13 = arith.constant 0 : index
      %13 = vector.load %arg5[%c0_12, %c0_13] : memref<1x32xf32, #tpu.memory_space<vmem>>, vector<1x32xf32>
      %14 = vector.broadcast %13 : vector<1x32xf32> to vector<10x32xf32>
      %15 = arith.addf %12, %14 : vector<10x32xf32>
      %c0_14 = arith.constant 0 : index
      %c0_15 = arith.constant 0 : index
      %16 = vector.load %arg6[%c0_14, %c0_15] : memref<10x32xbf16, #tpu.memory_space<vmem>>, vector<10x32xbf16>
      %17 = arith.extf %16 : vector<10x32xbf16> to vector<10x32xf32>
      %18 = arith.addf %15, %17 : vector<10x32xf32>
      %19 = arith.truncf %18 : vector<10x32xf32> to vector<10x32xbf16>
      %c0_16 = arith.constant 0 : index
      %c0_17 = arith.constant 0 : index
      %20 = vector.load %arg7[%c0_16, %c0_17] : memref<10x32xbf16, #tpu.memory_space<vmem>>, vector<10x32xbf16>
      tpu.vector_store %arg7[%c0_16, %c0_17], %19 {strides = array<i32>} : memref<10x32xbf16, #tpu.memory_space<vmem>>, vector<10x32xbf16>,
    } else {
    }
    return
  }
  func.func @transform_0(%arg0: i32, %arg1: i32, %arg2: i32) -> (i32, i32) {
    %c0_i32 = arith.constant 0 : i32
    return %arg0, %arg2 : i32, i32
  }
  func.func @transform_1(%arg0: i32, %arg1: i32, %arg2: i32) -> (i32, i32) {
    %c0_i32 = arith.constant 0 : i32
    return %arg2, %arg1 : i32, i32
  }
  func.func @transform_2(%arg0: i32, %arg1: i32, %arg2: i32) -> (i32, i32) {
    %c0_i32 = arith.constant 0 : i32
    %c0_i32_0 = arith.constant 0 : i32
    return %c0_i32, %arg1 : i32, i32
  }
  func.func @transform_3(%arg0: i32, %arg1: i32, %arg2: i32) -> (i32, i32) {
    %c0_i32 = arith.constant 0 : i32
    return %arg0, %arg1 : i32, i32
  }
  func.func @transform_4(%arg0: i32, %arg1: i32, %arg2: i32) -> (i32, i32) {
    %c0_i32 = arith.constant 0 : i32
    return %arg0, %arg1 : i32, i32
  }
}

module attributes {stable_mosaic.version = 11 : i64} {
  func.func @_ln_linear_kernel(%arg0: i32, %arg1: i32, %arg2: memref<10x32xbf16, #tpu.memory_space<vmem>>, %arg3: memref<1x32xf32, #tpu.memory_space<vmem>>, %arg4: memref<1x32xf32, #tpu.memory_space<vmem>>, %arg5: memref<32x128xbf16, #tpu.memory_space<vmem>>, %arg6: memref<1x128xf32, #tpu.memory_space<vmem>>, %arg7: memref<10x128xbf16, #tpu.memory_space<vmem>>, %arg8: memref<10x32xbf16, #tpu.memory_space<vmem>>) attributes {dimension_semantics = [#tpu.dimension_semantics<parallel>, #tpu.dimension_semantics<arbitrary>], iteration_bounds = array<i64: 1, 1>, scalar_prefetch = 0 : i64, scratch_operands = 1 : i64, tpu.core_type = #tpu.core_type<tc>, window_params = [{transform_indices = @transform_0, window_bounds = array<i64: 10, 32>}, {pipeline_mode = #tpu.pipeline_mode<synchronous>, transform_indices = @transform_1, window_bounds = array<i64: 1, 32>}, {pipeline_mode = #tpu.pipeline_mode<synchronous>, transform_indices = @transform_2, window_bounds = array<i64: 1, 32>}, {transform_indices = @transform_3, window_bounds = array<i64: 32, 128>}, {transform_indices = @transform_4, window_bounds = array<i64: 1, 128>}, {transform_indices = @transform_5, window_bounds = array<i64: 10, 128>}]} {
    %c0_i32 = arith.constant 0 : i32
    %0 = arith.cmpi eq, %arg1, %c0_i32 : i32
    %1 = arith.extui %0 : i1 to i32
    %c0_i32_0 = arith.constant 0 : i32
    %2 = arith.cmpi ne, %1, %c0_i32_0 : i32
    scf.if %2 {
      %c0_10 = arith.constant 0 : index
      %c0_11 = arith.constant 0 : index
      %19 = vector.load %arg2[%c0_10, %c0_11] : memref<10x32xbf16, #tpu.memory_space<vmem>>, vector<10x32xbf16>
      %20 = arith.extf %19 : vector<10x32xbf16> to vector<10x32xf32>
      %cst_12 = arith.constant dense<0.000000e+00> : vector<10xf32>
      %21 = vector.multi_reduction <add>, %20, %cst_12 [1] : vector<10x32xf32> to vector<10xf32>
      %22 = vector.shape_cast %21 : vector<10xf32> to vector<10x1xf32>
      %cst_13 = arith.constant 3.200000e+01 : f32
      %23 = vector.broadcast %cst_13 : f32 to vector<10x1xf32>
      %24 = arith.divf %22, %23 : vector<10x1xf32>
      %25 = vector.broadcast %24 : vector<10x1xf32> to vector<10x32xf32>
      %26 = arith.subf %20, %25 : vector<10x32xf32>
      %27 = arith.mulf %26, %26 : vector<10x32xf32>
      %cst_14 = arith.constant dense<0.000000e+00> : vector<10xf32>
      %28 = vector.multi_reduction <add>, %27, %cst_14 [1] : vector<10x32xf32> to vector<10xf32>
      %29 = vector.shape_cast %28 : vector<10xf32> to vector<10x1xf32>
      %cst_15 = arith.constant 3.200000e+01 : f32
      %30 = vector.broadcast %cst_15 : f32 to vector<10x1xf32>
      %31 = arith.divf %29, %30 : vector<10x1xf32>
      %cst_16 = arith.constant 9.99999974E-6 : f32
      %32 = vector.broadcast %cst_16 : f32 to vector<10x1xf32>
      %33 = arith.addf %31, %32 : vector<10x1xf32>
      %34 = math.rsqrt %33 : vector<10x1xf32>
      %35 = vector.broadcast %34 : vector<10x1xf32> to vector<10x32xf32>
      %36 = arith.mulf %26, %35 : vector<10x32xf32>
      %c0_17 = arith.constant 0 : index
      %c0_18 = arith.constant 0 : index
      %37 = vector.load %arg3[%c0_17, %c0_18] : memref<1x32xf32, #tpu.memory_space<vmem>>, vector<1x32xf32>
      %38 = vector.broadcast %37 : vector<1x32xf32> to vector<10x32xf32>
      %39 = arith.mulf %36, %38 : vector<10x32xf32>
      %c0_19 = arith.constant 0 : index
      %c0_20 = arith.constant 0 : index
      %40 = vector.load %arg4[%c0_19, %c0_20] : memref<1x32xf32, #tpu.memory_space<vmem>>, vector<1x32xf32>
      %41 = vector.broadcast %40 : vector<1x32xf32> to vector<10x32xf32>
      %42 = arith.addf %39, %41 : vector<10x32xf32>
      %43 = arith.truncf %42 : vector<10x32xf32> to vector<10x32xbf16>
      %c0_21 = arith.constant 0 : index
      %c0_22 = arith.constant 0 : index
      %44 = vector.load %arg8[%c0_21, %c0_22] : memref<10x32xbf16, #tpu.memory_space<vmem>>, vector<10x32xbf16>
      tpu.vector_store %arg8[%c0_21, %c0_22], %43 {strides = array<i32>} : memref<10x32xbf16, #tpu.memory_space<vmem>>, vector<10x32xbf16>,
    } else {
    }
    %c0 = arith.constant 0 : index
    %c0_1 = arith.constant 0 : index
    %3 = vector.load %arg8[%c0, %c0_1] : memref<10x32xbf16, #tpu.memory_space<vmem>>, vector<10x32xbf16>
    %c0_2 = arith.constant 0 : index
    %c0_3 = arith.constant 0 : index
    %4 = vector.load %arg5[%c0_2, %c0_3] : memref<32x128xbf16, #tpu.memory_space<vmem>>, vector<32x128xbf16>
    %cst = arith.constant dense<0.000000e+00> : vector<10x128xf32>
    %5 = tpu.matmul %3, %4, %cst {dimension_numbers = #tpu.dot_dimension_numbers<[1], [0], [0], [1], [0, 0, 1, 1], [], []>} : vector<10x32xbf16>, vector<32x128xbf16>, vector<10x128xf32> -> vector<10x128xf32>
    %c0_4 = arith.constant 0 : index
    %c0_5 = arith.constant 0 : index
    %6 = vector.load %arg6[%c0_4, %c0_5] : memref<1x128xf32, #tpu.memory_space<vmem>>, vector<1x128xf32>
    %7 = vector.broadcast %6 : vector<1x128xf32> to vector<10x128xf32>
    %8 = arith.addf %5, %7 : vector<10x128xf32>
    %cst_6 = arith.constant 1.702000e+00 : f32
    %9 = vector.broadcast %cst_6 : f32 to vector<10x128xf32>
    %10 = arith.mulf %9, %8 : vector<10x128xf32>
    %11 = arith.negf %10 : vector<10x128xf32>
    %12 = math.exp %11 : vector<10x128xf32>
    %cst_7 = arith.constant 1.000000e+00 : f32
    %13 = vector.broadcast %cst_7 : f32 to vector<10x128xf32>
    %14 = arith.addf %13, %12 : vector<10x128xf32>
    %15 = arith.divf %13, %14 : vector<10x128xf32>
    %16 = arith.mulf %8, %15 : vector<10x128xf32>
    %17 = arith.truncf %16 : vector<10x128xf32> to vector<10x128xbf16>
    %c0_8 = arith.constant 0 : index
    %c0_9 = arith.constant 0 : index
    %18 = vector.load %arg7[%c0_8, %c0_9] : memref<10x128xbf16, #tpu.memory_space<vmem>>, vector<10x128xbf16>
    tpu.vector_store %arg7[%c0_8, %c0_9], %17 {strides = array<i32>} : memref<10x128xbf16, #tpu.memory_space<vmem>>, vector<10x128xbf16>,
    return
  }
  func.func @transform_0(%arg0: i32, %arg1: i32) -> (i32, i32) {
    %c0_i32 = arith.constant 0 : i32
    %c0_i32_0 = arith.constant 0 : i32
    return %arg0, %c0_i32 : i32, i32
  }
  func.func @transform_1(%arg0: i32, %arg1: i32) -> (i32, i32) {
    %c0_i32 = arith.constant 0 : i32
    %c0_i32_0 = arith.constant 0 : i32
    %c0_i32_1 = arith.constant 0 : i32
    return %c0_i32, %c0_i32_0 : i32, i32
  }
  func.func @transform_2(%arg0: i32, %arg1: i32) -> (i32, i32) {
    %c0_i32 = arith.constant 0 : i32
    %c0_i32_0 = arith.constant 0 : i32
    %c0_i32_1 = arith.constant 0 : i32
    return %c0_i32, %c0_i32_0 : i32, i32
  }
  func.func @transform_3(%arg0: i32, %arg1: i32) -> (i32, i32) {
    %c0_i32 = arith.constant 0 : i32
    %c0_i32_0 = arith.constant 0 : i32
    return %c0_i32, %arg1 : i32, i32
  }
  func.func @transform_4(%arg0: i32, %arg1: i32) -> (i32, i32) {
    %c0_i32 = arith.constant 0 : i32
    %c0_i32_0 = arith.constant 0 : i32
    return %c0_i32, %arg1 : i32, i32
  }
  func.func @transform_5(%arg0: i32, %arg1: i32) -> (i32, i32) {
    %c0_i32 = arith.constant 0 : i32
    return %arg0, %arg1 : i32, i32
  }
}

module attributes {stable_mosaic.version = 11 : i64} {
  func.func @_linear_kernel(%arg0: i32, %arg1: i32, %arg2: i32, %arg3: memref<10x128xbf16, #tpu.memory_space<vmem>>, %arg4: memref<128x32xbf16, #tpu.memory_space<vmem>>, %arg5: memref<1x32xf32, #tpu.memory_space<vmem>>, %arg6: memref<10x32xbf16, #tpu.memory_space<vmem>>, %arg7: memref<10x32xbf16, #tpu.memory_space<vmem>>, %arg8: memref<10x32xf32, #tpu.memory_space<vmem>>) attributes {dimension_semantics = [#tpu.dimension_semantics<parallel>, #tpu.dimension_semantics<parallel>, #tpu.dimension_semantics<arbitrary>], iteration_bounds = array<i64: 1, 1, 1>, scalar_prefetch = 0 : i64, scratch_operands = 1 : i64, tpu.core_type = #tpu.core_type<tc>, window_params = [{transform_indices = @transform_0, window_bounds = array<i64: 10, 128>}, {transform_indices = @transform_1, window_bounds = array<i64: 128, 32>}, {transform_indices = @transform_2, window_bounds = array<i64: 1, 32>}, {transform_indices = @transform_3, window_bounds = array<i64: 10, 32>}, {transform_indices = @transform_4, window_bounds = array<i64: 10, 32>}]} {
    %c0_i32 = arith.constant 0 : i32
    %0 = arith.cmpi eq, %arg2, %c0_i32 : i32
    %1 = arith.extui %0 : i1 to i32
    %c0_i32_0 = arith.constant 0 : i32
    %2 = arith.cmpi ne, %1, %c0_i32_0 : i32
    scf.if %2 {
      %cst_10 = arith.constant 0.000000e+00 : f32
      %12 = vector.broadcast %cst_10 : f32 to vector<10x32xf32>
      %c0_11 = arith.constant 0 : index
      %c0_12 = arith.constant 0 : index
      %13 = vector.load %arg8[%c0_11, %c0_12] : memref<10x32xf32, #tpu.memory_space<vmem>>, vector<10x32xf32>
      tpu.vector_store %arg8[%c0_11, %c0_12], %12 {strides = array<i32>} : memref<10x32xf32, #tpu.memory_space<vmem>>, vector<10x32xf32>,
    } else {
    }
    %c0 = arith.constant 0 : index
    %c0_1 = arith.constant 0 : index
    %3 = vector.load %arg8[%c0, %c0_1] : memref<10x32xf32, #tpu.memory_space<vmem>>, vector<10x32xf32>
    %c0_2 = arith.constant 0 : index
    %c0_3 = arith.constant 0 : index
    %4 = vector.load %arg3[%c0_2, %c0_3] : memref<10x128xbf16, #tpu.memory_space<vmem>>, vector<10x128xbf16>
    %c0_4 = arith.constant 0 : index
    %c0_5 = arith.constant 0 : index
    %5 = vector.load %arg4[%c0_4, %c0_5] : memref<128x32xbf16, #tpu.memory_space<vmem>>, vector<128x32xbf16>
    %cst = arith.constant dense<0.000000e+00> : vector<10x32xf32>
    %6 = tpu.matmul %4, %5, %cst {dimension_numbers = #tpu.dot_dimension_numbers<[1], [0], [0], [1], [0, 0, 1, 1], [], []>} : vector<10x128xbf16>, vector<128x32xbf16>, vector<10x32xf32> -> vector<10x32xf32>
    %7 = arith.addf %3, %6 : vector<10x32xf32>
    %c0_6 = arith.constant 0 : index
    %c0_7 = arith.constant 0 : index
    %8 = vector.load %arg8[%c0_6, %c0_7] : memref<10x32xf32, #tpu.memory_space<vmem>>, vector<10x32xf32>
    tpu.vector_store %arg8[%c0_6, %c0_7], %7 {strides = array<i32>} : memref<10x32xf32, #tpu.memory_space<vmem>>, vector<10x32xf32>,
    %c0_i32_8 = arith.constant 0 : i32
    %9 = arith.cmpi eq, %arg2, %c0_i32_8 : i32
    %10 = arith.extui %9 : i1 to i32
    %c0_i32_9 = arith.constant 0 : i32
    %11 = arith.cmpi ne, %10, %c0_i32_9 : i32
    scf.if %11 {
      %c0_10 = arith.constant 0 : index
      %c0_11 = arith.constant 0 : index
      %12 = vector.load %arg8[%c0_10, %c0_11] : memref<10x32xf32, #tpu.memory_space<vmem>>, vector<10x32xf32>
      %c0_12 = arith.constant 0 : index
      %c0_13 = arith.constant 0 : index
      %13 = vector.load %arg5[%c0_12, %c0_13] : memref<1x32xf32, #tpu.memory_space<vmem>>, vector<1x32xf32>
      %14 = vector.broadcast %13 : vector<1x32xf32> to vector<10x32xf32>
      %15 = arith.addf %12, %14 : vector<10x32xf32>
      %c0_14 = arith.constant 0 : index
      %c0_15 = arith.constant 0 : index
      %16 = vector.load %arg6[%c0_14, %c0_15] : memref<10x32xbf16, #tpu.memory_space<vmem>>, vector<10x32xbf16>
      %17 = arith.extf %16 : vector<10x32xbf16> to vector<10x32xf32>
      %18 = arith.addf %15, %17 : vector<10x32xf32>
      %19 = arith.truncf %18 : vector<10x32xf32> to vector<10x32xbf16>
      %c0_16 = arith.constant 0 : index
      %c0_17 = arith.constant 0 : index
      %20 = vector.load %arg7[%c0_16, %c0_17] : memref<10x32xbf16, #tpu.memory_space<vmem>>, vector<10x32xbf16>
      tpu.vector_store %arg7[%c0_16, %c0_17], %19 {strides = array<i32>} : memref<10x32xbf16, #tpu.memory_space<vmem>>, vector<10x32xbf16>,
    } else {
    }
    return
  }
  func.func @transform_0(%arg0: i32, %arg1: i32, %arg2: i32) -> (i32, i32) {
    %c0_i32 = arith.constant 0 : i32
    return %arg0, %arg2 : i32, i32
  }
  func.func @transform_1(%arg0: i32, %arg1: i32, %arg2: i32) -> (i32, i32) {
    %c0_i32 = arith.constant 0 : i32
    return %arg2, %arg1 : i32, i32
  }
  func.func @transform_2(%arg0: i32, %arg1: i32, %arg2: i32) -> (i32, i32) {
    %c0_i32 = arith.constant 0 : i32
    %c0_i32_0 = arith.constant 0 : i32
    return %c0_i32, %arg1 : i32, i32
  }
  func.func @transform_3(%arg0: i32, %arg1: i32, %arg2: i32) -> (i32, i32) {
    %c0_i32 = arith.constant 0 : i32
    return %arg0, %arg1 : i32, i32
  }
  func.func @transform_4(%arg0: i32, %arg1: i32, %arg2: i32) -> (i32, i32) {
    %c0_i32 = arith.constant 0 : i32
    return %arg0, %arg1 : i32, i32
  }
}

module attributes {stable_mosaic.version = 11 : i64} {
  func.func @_ln_linear_kernel(%arg0: i32, %arg1: i32, %arg2: memref<2x32xbf16, #tpu.memory_space<vmem>>, %arg3: memref<1x32xf32, #tpu.memory_space<vmem>>, %arg4: memref<1x32xf32, #tpu.memory_space<vmem>>, %arg5: memref<32x16xbf16, #tpu.memory_space<vmem>>, %arg6: memref<2x16xf32, #tpu.memory_space<vmem>>, %arg7: memref<2x32xbf16, #tpu.memory_space<vmem>>) attributes {dimension_semantics = [#tpu.dimension_semantics<parallel>, #tpu.dimension_semantics<arbitrary>], iteration_bounds = array<i64: 1, 1>, scalar_prefetch = 0 : i64, scratch_operands = 1 : i64, tpu.core_type = #tpu.core_type<tc>, window_params = [{transform_indices = @transform_0, window_bounds = array<i64: 2, 32>}, {pipeline_mode = #tpu.pipeline_mode<synchronous>, transform_indices = @transform_1, window_bounds = array<i64: 1, 32>}, {pipeline_mode = #tpu.pipeline_mode<synchronous>, transform_indices = @transform_2, window_bounds = array<i64: 1, 32>}, {transform_indices = @transform_3, window_bounds = array<i64: 32, 16>}, {transform_indices = @transform_4, window_bounds = array<i64: 2, 16>}]} {
    %c0_i32 = arith.constant 0 : i32
    %0 = arith.cmpi eq, %arg1, %c0_i32 : i32
    %1 = arith.extui %0 : i1 to i32
    %c0_i32_0 = arith.constant 0 : i32
    %2 = arith.cmpi ne, %1, %c0_i32_0 : i32
    scf.if %2 {
      %c0_6 = arith.constant 0 : index
      %c0_7 = arith.constant 0 : index
      %7 = vector.load %arg2[%c0_6, %c0_7] : memref<2x32xbf16, #tpu.memory_space<vmem>>, vector<2x32xbf16>
      %8 = arith.extf %7 : vector<2x32xbf16> to vector<2x32xf32>
      %cst_8 = arith.constant dense<0.000000e+00> : vector<2xf32>
      %9 = vector.multi_reduction <add>, %8, %cst_8 [1] : vector<2x32xf32> to vector<2xf32>
      %10 = vector.shape_cast %9 : vector<2xf32> to vector<2x1xf32>
      %cst_9 = arith.constant 3.200000e+01 : f32
      %11 = vector.broadcast %cst_9 : f32 to vector<2x1xf32>
      %12 = arith.divf %10, %11 : vector<2x1xf32>
      %13 = vector.broadcast %12 : vector<2x1xf32> to vector<2x32xf32>
      %14 = arith.subf %8, %13 : vector<2x32xf32>
      %15 = arith.mulf %14, %14 : vector<2x32xf32>
      %cst_10 = arith.constant dense<0.000000e+00> : vector<2xf32>
      %16 = vector.multi_reduction <add>, %15, %cst_10 [1] : vector<2x32xf32> to vector<2xf32>
      %17 = vector.shape_cast %16 : vector<2xf32> to vector<2x1xf32>
      %cst_11 = arith.constant 3.200000e+01 : f32
      %18 = vector.broadcast %cst_11 : f32 to vector<2x1xf32>
      %19 = arith.divf %17, %18 : vector<2x1xf32>
      %cst_12 = arith.constant 9.99999974E-6 : f32
      %20 = vector.broadcast %cst_12 : f32 to vector<2x1xf32>
      %21 = arith.addf %19, %20 : vector<2x1xf32>
      %22 = math.rsqrt %21 : vector<2x1xf32>
      %23 = vector.broadcast %22 : vector<2x1xf32> to vector<2x32xf32>
      %24 = arith.mulf %14, %23 : vector<2x32xf32>
      %c0_13 = arith.constant 0 : index
      %c0_14 = arith.constant 0 : index
      %25 = vector.load %arg3[%c0_13, %c0_14] : memref<1x32xf32, #tpu.memory_space<vmem>>, vector<1x32xf32>
      %26 = vector.broadcast %25 : vector<1x32xf32> to vector<2x32xf32>
      %27 = arith.mulf %24, %26 : vector<2x32xf32>
      %c0_15 = arith.constant 0 : index
      %c0_16 = arith.constant 0 : index
      %28 = vector.load %arg4[%c0_15, %c0_16] : memref<1x32xf32, #tpu.memory_space<vmem>>, vector<1x32xf32>
      %29 = vector.broadcast %28 : vector<1x32xf32> to vector<2x32xf32>
      %30 = arith.addf %27, %29 : vector<2x32xf32>
      %31 = arith.truncf %30 : vector<2x32xf32> to vector<2x32xbf16>
      %c0_17 = arith.constant 0 : index
      %c0_18 = arith.constant 0 : index
      %32 = vector.load %arg7[%c0_17, %c0_18] : memref<2x32xbf16, #tpu.memory_space<vmem>>, vector<2x32xbf16>
      tpu.vector_store %arg7[%c0_17, %c0_18], %31 {strides = array<i32>} : memref<2x32xbf16, #tpu.memory_space<vmem>>, vector<2x32xbf16>,
    } else {
    }
    %c0 = arith.constant 0 : index
    %c0_1 = arith.constant 0 : index
    %3 = vector.load %arg7[%c0, %c0_1] : memref<2x32xbf16, #tpu.memory_space<vmem>>, vector<2x32xbf16>
    %c0_2 = arith.constant 0 : index
    %c0_3 = arith.constant 0 : index
    %4 = vector.load %arg5[%c0_2, %c0_3] : memref<32x16xbf16, #tpu.memory_space<vmem>>, vector<32x16xbf16>
    %cst = arith.constant dense<0.000000e+00> : vector<2x16xf32>
    %5 = tpu.matmul %3, %4, %cst {dimension_numbers = #tpu.dot_dimension_numbers<[1], [0], [0], [1], [0, 0, 1, 1], [], []>} : vector<2x32xbf16>, vector<32x16xbf16>, vector<2x16xf32> -> vector<2x16xf32>
    %c0_4 = arith.constant 0 : index
    %c0_5 = arith.constant 0 : index
    %6 = vector.load %arg6[%c0_4, %c0_5] : memref<2x16xf32, #tpu.memory_space<vmem>>, vector<2x16xf32>
    tpu.vector_store %arg6[%c0_4, %c0_5], %5 {strides = array<i32>} : memref<2x16xf32, #tpu.memory_space<vmem>>, vector<2x16xf32>,
    return
  }
  func.func @transform_0(%arg0: i32, %arg1: i32) -> (i32, i32) {
    %c0_i32 = arith.constant 0 : i32
    %c0_i32_0 = arith.constant 0 : i32
    return %arg0, %c0_i32 : i32, i32
  }
  func.func @transform_1(%arg0: i32, %arg1: i32) -> (i32, i32) {
    %c0_i32 = arith.constant 0 : i32
    %c0_i32_0 = arith.constant 0 : i32
    %c0_i32_1 = arith.constant 0 : i32
    return %c0_i32, %c0_i32_0 : i32, i32
  }
  func.func @transform_2(%arg0: i32, %arg1: i32) -> (i32, i32) {
    %c0_i32 = arith.constant 0 : i32
    %c0_i32_0 = arith.constant 0 : i32
    %c0_i32_1 = arith.constant 0 : i32
    return %c0_i32, %c0_i32_0 : i32, i32
  }
  func.func @transform_3(%arg0: i32, %arg1: i32) -> (i32, i32) {
    %c0_i32 = arith.constant 0 : i32
    %c0_i32_0 = arith.constant 0 : i32
    return %c0_i32, %arg1 : i32, i32
  }
  func.func @transform_4(%arg0: i32, %arg1: i32) -> (i32, i32) {
    %c0_i32 = arith.constant 0 : i32
    return %arg0, %arg1 : i32, i32
  }
}

module attributes {stable_mosaic.version = 11 : i64} {
  func.func @_logits_kernel(%arg0: i32, %arg1: memref<2x16xf32, #tpu.memory_space<vmem>>, %arg2: memref<9x16xf32, #tpu.memory_space<vmem>>, %arg3: memref<1xf32, #tpu.memory_space<smem>>, %arg4: memref<2x9xf32, #tpu.memory_space<vmem>>) attributes {dimension_semantics = [#tpu.dimension_semantics<arbitrary>], iteration_bounds = array<i64: 1>, scalar_prefetch = 0 : i64, scratch_operands = 0 : i64, tpu.core_type = #tpu.core_type<tc>, window_params = [{pipeline_mode = #tpu.pipeline_mode<synchronous>, transform_indices = @transform_0, window_bounds = array<i64: 2, 16>}, {pipeline_mode = #tpu.pipeline_mode<synchronous>, transform_indices = @transform_1, window_bounds = array<i64: 9, 16>}, {transform_indices = @transform_2, window_bounds = array<i64: 1>}, {pipeline_mode = #tpu.pipeline_mode<synchronous>, transform_indices = @transform_3, window_bounds = array<i64: 2, 9>}]} {
    %c0 = arith.constant 0 : index
    %c0_0 = arith.constant 0 : index
    %0 = vector.load %arg1[%c0, %c0_0] : memref<2x16xf32, #tpu.memory_space<vmem>>, vector<2x16xf32>
    %c0_1 = arith.constant 0 : index
    %c0_2 = arith.constant 0 : index
    %1 = vector.load %arg2[%c0_1, %c0_2] : memref<9x16xf32, #tpu.memory_space<vmem>>, vector<9x16xf32>
    %2 = arith.mulf %0, %0 : vector<2x16xf32>
    %cst = arith.constant dense<0.000000e+00> : vector<2xf32>
    %3 = vector.multi_reduction <add>, %2, %cst [1] : vector<2x16xf32> to vector<2xf32>
    %4 = vector.shape_cast %3 : vector<2xf32> to vector<2x1xf32>
    %cst_3 = arith.constant 9.99999996E-13 : f32
    %5 = vector.broadcast %cst_3 : f32 to vector<2x1xf32>
    %6 = arith.addf %4, %5 : vector<2x1xf32>
    %7 = math.rsqrt %6 : vector<2x1xf32>
    %8 = vector.broadcast %7 : vector<2x1xf32> to vector<2x16xf32>
    %9 = arith.mulf %0, %8 : vector<2x16xf32>
    %10 = arith.mulf %1, %1 : vector<9x16xf32>
    %cst_4 = arith.constant dense<0.000000e+00> : vector<9xf32>
    %11 = vector.multi_reduction <add>, %10, %cst_4 [1] : vector<9x16xf32> to vector<9xf32>
    %12 = vector.shape_cast %11 : vector<9xf32> to vector<9x1xf32>
    %cst_5 = arith.constant 9.99999996E-13 : f32
    %13 = vector.broadcast %cst_5 : f32 to vector<9x1xf32>
    %14 = arith.addf %12, %13 : vector<9x1xf32>
    %15 = math.rsqrt %14 : vector<9x1xf32>
    %16 = vector.broadcast %15 : vector<9x1xf32> to vector<9x16xf32>
    %17 = arith.mulf %1, %16 : vector<9x16xf32>
    %c0_6 = arith.constant 0 : index
    %18 = memref.load %arg3[%c0_6] : memref<1xf32, #tpu.memory_space<smem>>
    %19 = math.exp %18 : f32
    %cst_7 = arith.constant dense<0.000000e+00> : vector<2x9xf32>
    %20 = tpu.matmul %9, %17, %cst_7 {dimension_numbers = #tpu.dot_dimension_numbers<[1], [1], [0], [0], [0, 0, 1, 0], [], []>} : vector<2x16xf32>, vector<9x16xf32>, vector<2x9xf32> -> vector<2x9xf32>
    %21 = vector.broadcast %19 : f32 to vector<2x9xf32>
    %22 = arith.mulf %21, %20 : vector<2x9xf32>
    %c0_8 = arith.constant 0 : index
    %c0_9 = arith.constant 0 : index
    %23 = vector.load %arg4[%c0_8, %c0_9] : memref<2x9xf32, #tpu.memory_space<vmem>>, vector<2x9xf32>
    tpu.vector_store %arg4[%c0_8, %c0_9], %22 {strides = array<i32>} : memref<2x9xf32, #tpu.memory_space<vmem>>, vector<2x9xf32>,
    return
  }
  func.func @transform_0(%arg0: i32) -> (i32, i32) {
    %c0_i32 = arith.constant 0 : i32
    %c0_i32_0 = arith.constant 0 : i32
    %c0_i32_1 = arith.constant 0 : i32
    return %c0_i32, %c0_i32_0 : i32, i32
  }
  func.func @transform_1(%arg0: i32) -> (i32, i32) {
    %c0_i32 = arith.constant 0 : i32
    %c0_i32_0 = arith.constant 0 : i32
    %c0_i32_1 = arith.constant 0 : i32
    return %c0_i32, %c0_i32_0 : i32, i32
  }
  func.func @transform_2(%arg0: i32) -> i32 {
    %c0_i32 = arith.constant 0 : i32
    %c0_i32_0 = arith.constant 0 : i32
    return %c0_i32 : i32
  }
  func.func @transform_3(%arg0: i32) -> (i32, i32) {
    %c0_i32 = arith.constant 0 : i32
    %c0_i32_0 = arith.constant 0 : i32
    %c0_i32_1 = arith.constant 0 : i32
    return %c0_i32, %c0_i32_0 : i32, i32
  }
}

</mosaic_0001>

<llo_original>
// kernel: _lambda_.24
$region0: #{_lambda_.24}
  #allocation0 [shape = 'u32[]', space=smem, size = 0x4, offset = 0x4, fixed_abs, tag = 'smem constant byte address 0x4 - core index']
  #allocation1 [shape = 'u32[144,128]{1,0:T(1,128)}', space=vmem, size = 0x12000, scoped, tag = 'internal scratch']
  #allocation2 [shape = 'f32[16,1]{1,0:T(8,128)}', space=vmem, size = 0x2000, scoped, tag = 'scratch operand']
  #allocation3 [shape = 'f32[16,1]{1,0:T(8,128)}', space=vmem, size = 0x2000, scoped, tag = 'scratch operand']
  #allocation4 [shape = 'f32[16,16]{1,0:T(8,128)}', space=vmem, size = 0x2000, scoped, tag = 'scratch operand']
  %s0 = inlined_call_operand.vmem [shape: bf16[18,16,16], index: 0, kind: input, shape index: {}]
  %s1 = inlined_call_operand.vmem [shape: bf16[18,16,16], index: 1, kind: input, shape index: {}]
  %s2 = inlined_call_operand.vmem [shape: bf16[18,16,16], index: 2, kind: input, shape index: {}]
  %s3 = inlined_call_operand.vmem [shape: bf16[18,16,16], index: 3, kind: output, shape index: {}]
  %s4 = sld [smem:[#allocation0]]
  $region53: #{_lambda_.24} parent=0
    _
  %s6 = ssub.s32 1, %s4
  %s7 = scalar_select 0, %s6, %s4
  loop: start=0, step=1, limit=20
  $region2: #{_lambda_.24} parent=0 // loop_pre_header
    _
  $region3: #{_lambda_.24} parent=0 // loop_header
    %s9 = sphi 0, %s13
    %p10 = scmp.ge.s32.totalorder %s9, 20
    %s16 = sphi 0, %s28
    %s17 = sphi 0, %s24
    %s18 = sphi 0, %s16
    %s19 = sphi 0, %s17
    %s20 = sphi 0, %s18
    %s21 = sphi 0, %s19
    %s31 = sphi 0, %s33
    %s34 = sphi 0, %s31
    %s35 = sphi 0, %s34
    %s51 = sphi 0, %s35
    %s59 = sphi 0, %s61
    %s62 = sphi 0, %s59
    %s63 = sphi 0, %s62
    %s79 = sphi 0, %s63
    %s87 = sphi 0, %s89
    %s90 = sphi 0, %s87
    %s91 = sphi 0, %s90
    %s107 = sphi 0, %s91
    %s113 = sphi 0, %s115
    %s116 = sphi 0, %s113
    %s117 = sphi 0, %s116
    %s133 = sphi 0, %s117
  $region4: #{_lambda_.24} parent=0 // loop_header_branch
    %12 = sbr.rel (%p10) target = $region8
  $region5: #{_lambda_.24} parent=0 // loop_body
    %s14 = ssub.s32 %s9, 1
    %s15 = ssub.s32 %s9, 2
    %s22 = sadd.s32 1, %s17
    %p23 = scmp.ge.s32.totalorder %s22, 1
    %s24 = scalar_select %p23, 0, %s22
    %s25 = sadd.s32 1, %s16
    %s26 = scalar_select %p23, %s25, %s16
    %p27 = scmp.ge.s32.totalorder %s26, 18
    %s28 = scalar_select %p27, 0, %s26
    %s29 = ssub.s32 %s16, %s28
    %p30 = scmp.eq.s32.totalorder %s29, 0
    %s32 = sadd.s32 %s31, 1
    %s33 = scalar_select %p30, %s31, %s32
    %p36 = pneg %p30
    %p37 = scmp.eq.s32.totalorder %s9, 17
    %p38 = por %p36, %p37
    %p39 = scmp.ne.s32.totalorder %s31, %s34
    %p40 = scmp.eq.s32.totalorder %s9, 0
    %p41 = por %p39, %p40
    %p42 = scmp.ne.s32.totalorder %s31, %s34
    %p43 = scmp.eq.s32.totalorder %s14, 17
    %p44 = por %p42, %p43
    %p45 = scmp.ne.s32.totalorder %s34, %s35
    %p46 = scmp.eq.s32.totalorder %s14, 0
    %p47 = por %p45, %p46
    %p48 = scmp.ne.s32.totalorder %s34, %s35
    %p49 = scmp.eq.s32.totalorder %s15, 17
    %p50 = por %p48, %p49
    %p52 = scmp.ne.s32.totalorder %s35, %s51
    %p53 = scmp.eq.s32.totalorder %s15, 0
    %p54 = por %p52, %p53
    %s55 = ssub.s32 %s16, %s28
    %s56 = ssub.s32 %s17, %s24
    %s57 = sor.u32 %s55, %s56
    %p58 = scmp.eq.s32.totalorder %s57, 0
    %s60 = sadd.s32 %s59, 1
    %s61 = scalar_select %p58, %s59, %s60
    %p64 = pneg %p58
    %p65 = scmp.eq.s32.totalorder %s9, 17
    %p66 = por %p64, %p65
    %p67 = scmp.ne.s32.totalorder %s59, %s62
    %p68 = scmp.eq.s32.totalorder %s9, 0
    %p69 = por %p67, %p68
    %p70 = scmp.ne.s32.totalorder %s59, %s62
    %p71 = scmp.eq.s32.totalorder %s14, 17
    %p72 = por %p70, %p71
    %p73 = scmp.ne.s32.totalorder %s62, %s63
    %p74 = scmp.eq.s32.totalorder %s14, 0
    %p75 = por %p73, %p74
    %p76 = scmp.ne.s32.totalorder %s62, %s63
    %p77 = scmp.eq.s32.totalorder %s15, 17
    %p78 = por %p76, %p77
    %p80 = scmp.ne.s32.totalorder %s63, %s79
    %p81 = scmp.eq.s32.totalorder %s15, 0
    %p82 = por %p80, %p81
    %s83 = ssub.s32 %s16, %s28
    %s84 = ssub.s32 %s17, %s24
    %s85 = sor.u32 %s83, %s84
    %p86 = scmp.eq.s32.totalorder %s85, 0
    %s88 = sadd.s32 %s87, 1
    %s89 = scalar_select %p86, %s87, %s88
    %p92 = pneg %p86
    %p93 = scmp.eq.s32.totalorder %s9, 17
    %p94 = por %p92, %p93
    %p95 = scmp.ne.s32.totalorder %s87, %s90
    %p96 = scmp.eq.s32.totalorder %s9, 0
    %p97 = por %p95, %p96
    %p98 = scmp.ne.s32.totalorder %s87, %s90
    %p99 = scmp.eq.s32.totalorder %s14, 17
    %p100 = por %p98, %p99
    %p101 = scmp.ne.s32.totalorder %s90, %s91
    %p102 = scmp.eq.s32.totalorder %s14, 0
    %p103 = por %p101, %p102
    %p104 = scmp.ne.s32.totalorder %s90, %s91
    %p105 = scmp.eq.s32.totalorder %s15, 17
    %p106 = por %p104, %p105
    %p108 = scmp.ne.s32.totalorder %s91, %s107
    %p109 = scmp.eq.s32.totalorder %s15, 0
    %p110 = por %p108, %p109
    %s111 = ssub.s32 %s16, %s28
    %p112 = scmp.eq.s32.totalorder %s111, 0
    %s114 = sadd.s32 %s113, 1
    %s115 = scalar_select %p112, %s113, %s114
    %p118 = pneg %p112
    %p119 = scmp.eq.s32.totalorder %s9, 17
    %p120 = por %p118, %p119
    %p121 = scmp.ne.s32.totalorder %s113, %s116
    %p122 = scmp.eq.s32.totalorder %s9, 0
    %p123 = por %p121, %p122
    %p124 = scmp.ne.s32.totalorder %s113, %s116
    %p125 = scmp.eq.s32.totalorder %s14, 17
    %p126 = por %p124, %p125
    %p127 = scmp.ne.s32.totalorder %s116, %s117
    %p128 = scmp.eq.s32.totalorder %s14, 0
    %p129 = por %p127, %p128
    %p130 = scmp.ne.s32.totalorder %s116, %s117
    %p131 = scmp.eq.s32.totalorder %s15, 17
    %p132 = por %p130, %p131
    %p134 = scmp.ne.s32.totalorder %s117, %s133
    %p135 = scmp.eq.s32.totalorder %s15, 0
    %p136 = por %p134, %p135
    %p137 = scmp.le.s32.totalorder 1, %s9
    %p138 = scmp.lt.s32.totalorder %s9, 19
    %p139 = pnand %p137, %p138
    %p140 = pneg %p139
    // Predicated region
    $region9: #{_lambda_.24} parent=5 // pred_check
      _
    $region10: #{_lambda_.24} parent=5 // pred_check_branch
      %142 = sbr.rel (%p139) target = $region12
    $region11: #{_lambda_.24} parent=5 // pred_region
      %s143 = ssub.s32 %s9, 1
    $region12: #{_lambda_.24} parent=5 // pred_fallthru
      _
    %p144 = scmp.lt.s32.totalorder %s9, 18
    // Predicated region
    $region13: #{_lambda_.24} parent=5 // pred_check
      %p145 = pneg %p144
    $region14: #{_lambda_.24} parent=5 // pred_check_branch
      %147 = sbr.rel (%p145) target = $region16
    $region15: #{_lambda_.24} parent=5 // pred_region
      // Predicated region
      $region17: #{_lambda_.24} parent=15 // pred_check
        %p148 = pneg %p41
      $region18: #{_lambda_.24} parent=15 // pred_check_branch
        %150 = sbr.rel (%p148) target = $region20
      $region19: #{_lambda_.24} parent=15 // pred_region
        %p151 = scmp.lt.s32.totalorder %s16, 17
        %s152 = scalar_select %p151, %s16, 17
        %s153 = smul.addr %s152, 2
        %s154 = smul.addr %s153, 4
        %s155 = scalar_lea.vmem %s0, %s154
      $region20: #{_lambda_.24} parent=15 // pred_fallthru
        _
      // Predicated region
      $region21: #{_lambda_.24} parent=15 // pred_check
        %p156 = pneg %p69
      $region22: #{_lambda_.24} parent=15 // pred_check_branch
        %158 = sbr.rel (%p156) target = $region24
      $region23: #{_lambda_.24} parent=15 // pred_region
        %s159 = smul.u32 2, %s17
        %p160 = scmp.lt.s32.totalorder %s16, 17
        %s161 = scalar_select %p160, %s16, 17
        %p162 = scmp.lt.s32.totalorder %s159, 1
        %s163 = scalar_select %p162, %s159, 1
        %s164 = smul.addr %s161, 2
        %s165 = sadd.s32 %s163, %s164
        %s166 = smul.addr %s165, 4
        %s167 = scalar_lea.vmem %s1, %s166
        %s168 = smul.u32 2, %s17
      $region24: #{_lambda_.24} parent=15 // pred_fallthru
        _
      // Predicated region
      $region25: #{_lambda_.24} parent=15 // pred_check
        %p169 = pneg %p97
      $region26: #{_lambda_.24} parent=15 // pred_check_branch
        %171 = sbr.rel (%p169) target = $region28
      $region27: #{_lambda_.24} parent=15 // pred_region
        %s172 = smul.u32 2, %s17
        %p173 = scmp.lt.s32.totalorder %s16, 17
        %s174 = scalar_select %p173, %s16, 17
        %p175 = scmp.lt.s32.totalorder %s172, 1
        %s176 = scalar_select %p175, %s172, 1
        %s177 = smul.addr %s174, 2
        %s178 = sadd.s32 %s176, %s177
        %s179 = smul.addr %s178, 4
        %s180 = scalar_lea.vmem %s2, %s179
        %s181 = smul.u32 2, %s17
      $region28: #{_lambda_.24} parent=15 // pred_fallthru
        _
    $region16: #{_lambda_.24} parent=5 // pred_fallthru
      _
    %p182 = scmp.le.s32.totalorder 1, %s9
    %p183 = scmp.lt.s32.totalorder %s9, 19
    %p184 = pnand %p182, %p183
    %p185 = pneg %p184
    // Predicated region
    $region29: #{_lambda_.24} parent=5 // pred_check
      _
    $region30: #{_lambda_.24} parent=5 // pred_check_branch
      %187 = sbr.rel (%p184) target = $region32
    $region31: #{_lambda_.24} parent=5 // pred_region
      %s188 = ssub.s32 %s9, 1
      %p189 = scmp.lt.s32.totalorder %s18, 17
      %s190 = scalar_select %p189, %s18, 17
      %s191 = smul.addr %s190, 2
      %s192 = smul.addr %s191, 4
      %s193 = scalar_lea.vmem %s0, %s192
      %p194 = pneg %p47
      %p195 = pneg %p44
      %s196 = smul.u32 2, %s19
      %p197 = scmp.lt.s32.totalorder %s18, 17
      %s198 = scalar_select %p197, %s18, 17
      %p199 = scmp.lt.s32.totalorder %s196, 1
      %s200 = scalar_select %p199, %s196, 1
      %s201 = smul.addr %s198, 2
      %s202 = sadd.s32 %s200, %s201
      %s203 = smul.addr %s202, 4
      %s204 = scalar_lea.vmem %s1, %s203
      %p205 = pneg %p75
      %p206 = pneg %p72
      %s207 = smul.u32 2, %s19
      %p208 = scmp.lt.s32.totalorder %s18, 17
      %s209 = scalar_select %p208, %s18, 17
      %p210 = scmp.lt.s32.totalorder %s207, 1
      %s211 = scalar_select %p210, %s207, 1
      %s212 = smul.addr %s209, 2
      %s213 = sadd.s32 %s211, %s212
      %s214 = smul.addr %s213, 4
      %s215 = scalar_lea.vmem %s2, %s214
      %p216 = pneg %p103
      %p217 = pneg %p100
      %p218 = pneg %p129
      %p219 = pneg %p126
      %p220 = scmp.lt.s32.totalorder %s18, 17
      %s221 = scalar_select %p220, %s18, 17
      %s222 = smul.addr %s221, 2
      %s223 = smul.addr %s222, 4
      %s224 = scalar_lea.vmem %s3, %s223
      %p225 = scmp.lt.s32.totalorder %s18, 17
      %s226 = scalar_select %p225, %s18, 17
      %s227 = smul.addr %s226, 2
      %s228 = smul.addr %s227, 4
      %s229 = scalar_lea.vmem %s0, %s228
      %s230 = smul.u32 2, %s19
      %p231 = scmp.lt.s32.totalorder %s18, 17
      %s232 = scalar_select %p231, %s18, 17
      %p233 = scmp.lt.s32.totalorder %s230, 1
      %s234 = scalar_select %p233, %s230, 1
      %s235 = smul.addr %s232, 2
      %s236 = sadd.s32 %s234, %s235
      %s237 = smul.addr %s236, 4
      %s238 = scalar_lea.vmem %s1, %s237
      %s239 = smul.u32 2, %s19
      %s240 = smul.u32 2, %s19
      %p241 = scmp.lt.s32.totalorder %s18, 17
      %s242 = scalar_select %p241, %s18, 17
      %p243 = scmp.lt.s32.totalorder %s240, 1
      %s244 = scalar_select %p243, %s240, 1
      %s245 = smul.addr %s242, 2
      %s246 = sadd.s32 %s244, %s245
      %s247 = smul.addr %s246, 4
      %s248 = scalar_lea.vmem %s2, %s247
      %s249 = smul.u32 2, %s19
      %p250 = scmp.lt.s32.totalorder %s18, 17
      %s251 = scalar_select %p250, %s18, 17
      %s252 = smul.addr %s251, 2
      %s253 = smul.addr %s252, 4
      %s254 = scalar_lea.vmem %s3, %s253
      %p256 = scmp.eq.s32.totalorder %s19, 0
      // Predicated region
      $region33: #{_lambda_.24} parent=31 // pred_check
        %p257 = pneg %p256
      $region34: #{_lambda_.24} parent=31 // pred_check_branch
        %259 = sbr.rel (%p257) target = $region36
      $region35: #{_lambda_.24} parent=31 // pred_region
        %vm260 = vcmask 7168
        %261 = vst.msk [vmem:[#allocation2] sm:$0xff] %vm260, -1e+30
        %262 = vst.msk [vmem:[#allocation2 + $0x8] sm:$0xff] %vm260, -1e+30
        %263 = vst.msk [vmem:[#allocation3] sm:$0xff] %vm260, 0.0
        %264 = vst.msk [vmem:[#allocation3 + $0x8] sm:$0xff] %vm260, 0.0
        %vm265 = vcmask 130048
        %266 = vst.msk [vmem:[#allocation4] sm:$0xff] %vm265, 0.0
        %267 = vst.msk [vmem:[#allocation4 + $0x8] sm:$0xff] %vm265, 0.0
      $region36: #{_lambda_.24} parent=31 // pred_fallthru
        _
      %v268 = vld [vmem:[%s229] sm:$0xf]
      %v269 = vld [vmem:[%s229 + $0x4] sm:$0xf]
      %v270 = vunpack.c.l.bf16 %v268
      %v271 = vunpack.c.l.bf16 %v269
      %v272 = vmul.f32 %v270, 0.25
      %v273 = vmul.f32 %v271, 0.25
      %v274 = vpack.c.bf16 %v273, %v272
      %v275 = vld [vmem:[%s238] sm:$0xf]
      %v276 = vld [vmem:[%s238 + $0x4] sm:$0xf]
      %v279 = vunpack.c.l.b16 %v275
      %v280 = vunpack.c.l.b16 %v276
      %v281 = vpack.c.b16 %v280, %v279
      %vm282 = vcmask 130048
      %v284 = vsel %vm282, %v274, 0
      %v287 = vsel %vm282, %v281, 0
      %289 = vmatprep.subr.bf16.mxu0 0
      %290 = vmatpush1.bf16.xpose.msra.mxu0 %v287
      %291 = vmatprep.subr.bf16.mxu0 0
      %292 = vmatpush1.bf16.xpose.msra.mxu0 0
      %293 = vmatprep.subr.bf16.mxu0 0
      %294 = vmatpush1.bf16.xpose.msra.mxu0 0
      %295 = vmatprep.subr.bf16.mxu0 0
      %296 = vmatpush1.bf16.xpose.msra.mxu0 0
      %297 = vmatprep.subr.bf16.mxu0 0
      %298 = vmatpush1.bf16.xpose.msra.mxu0 0
      %299 = vmatprep.subr.bf16.mxu0 0
      %300 = vmatpush1.bf16.xpose.msra.mxu0 0
      %301 = vmatprep.subr.bf16.mxu0 0
      %302 = vmatpush1.bf16.xpose.msra.mxu0 0
      %303 = vmatprep.subr.bf16.mxu0 0
      %304 = vmatpush1.bf16.xpose.msra.mxu0 0
      %305 = vmatprep.subr.bf16.mxu0 0
      %306 = vmatpush1.bf16.xpose.msra.mxu0 0
      %307 = vmatprep.subr.bf16.mxu0 0
      %308 = vmatpush1.bf16.xpose.msra.mxu0 0
      %309 = vmatprep.subr.bf16.mxu0 0
      %310 = vmatpush1.bf16.xpose.msra.mxu0 0
      %311 = vmatprep.subr.bf16.mxu0 0
      %312 = vmatpush1.bf16.xpose.msra.mxu0 0
      %313 = vmatprep.subr.bf16.mxu0 0
      %314 = vmatpush1.bf16.xpose.msra.mxu0 0
      %315 = vmatprep.subr.bf16.mxu0 0
      %316 = vmatpush1.bf16.xpose.msra.mxu0 0
      %317 = vmatprep.subr.bf16.mxu0 0
      %318 = vmatpush1.bf16.xpose.msra.mxu0 0
      %319 = vmatprep.subr.bf16.mxu0 0
      %320 = vmatpush1.bf16.xpose.msra.mxu0 0
      %321 = vmatprep.mubr.bf16.mxu0 0
      %322 = vmatmul.mubr.bf16.gmra.mrb[0].mxu0 %v284
      %v323 = vpop.f32.mrb[0].mxu0
      %v324 = vadd.f32 0.0, %v323
      %v325 = vpop.f32.mrb[0].mxu0
      %v326 = vpop.f32.mrb[0].mxu0
      %v327 = vadd.f32 0.0, %v326
      %v328 = vpop.f32.mrb[0].mxu0
      %329 = vdwg.mxu0
      %v330 = vlaneseq
      %v331 = vshrl.u32 %v330, 7
      %v332 = vadd.s32 %v331, 8
      %v333 = vlaneseq
      %v334 = vand.u32 %v333, 127
      %s335 = smul.u32 %s19, 16
      %v336 = vstv %s335
      %v337 = vadd.s32 %v334, %v336
      %vm338 = vcmp.gt.s32.totalorder %v337, %v331
      %vm339 = vcmp.gt.s32.totalorder %v337, %v332
      %v340 = vsel %vm338, -1e+30, %v324
      %v341 = vsel %vm339, -1e+30, %v327
      %v342 = vld [vmem:[#allocation2] sm:$0xff]
      %v343 = vld [vmem:[#allocation2 + $0x8] sm:$0xff]
      %v344 = vsel %vm282, %v340, -inf
      %345 = vmax.xlane.f32.xlu0 %v344
      %v346 = vpop.xlane.xlu0 %345
      %v347 = vsel %vm282, %v341, -inf
      %348 = vmax.xlane.f32.xlu0 %v347
      %v349 = vpop.xlane.xlu0 %348
      %v350 = vmax.f32 %v342, %v346
      %v351 = vmax.f32 %v343, %v349
      %v352 = vsub.f32 %v342, %v350
      %v353 = vsub.f32 %v343, %v351
      %v354 = vmul.f32 %v352, 1.442695
      %v355 = vpow.pop %v354
      %v356 = vmul.f32 %v353, 1.442695
      %v357 = vpow.pop %v356
      %359 = vset.pattern.permute.xlu0 0
      %360 = vperm.xlu0 %359, %v350
      %v361 = vpop.permute.xlu0 %360
      %364 = vset.pattern.permute.xlu0 0
      %365 = vperm.xlu0 %364, %v351
      %v366 = vpop.permute.xlu0 %365
      %v368 = vsub.f32 %v340, %v361
      %v369 = vsub.f32 %v341, %v366
      %v370 = vmul.f32 %v368, 1.442695
      %v371 = vpow.pop %v370
      %v372 = vmul.f32 %v369, 1.442695
      %v373 = vpow.pop %v372
      %v374 = vld [vmem:[#allocation3] sm:$0xff]
      %v375 = vld [vmem:[#allocation3 + $0x8] sm:$0xff]
      %v376 = vmul.f32 %v355, %v374
      %v377 = vmul.f32 %v357, %v375
      %v378 = vsel %vm282, %v371, 0.0
      %379 = vadd.xlane.f32.xlu0 %v378
      %v380 = vpop.xlane.xlu0 %379
      %v381 = vsel %vm282, %v373, 0.0
      %382 = vadd.xlane.f32.xlu0 %v381
      %v383 = vpop.xlane.xlu0 %382
      %v384 = vadd.f32 %v376, %v380
      %v385 = vadd.f32 %v377, %v383
      %vm386 = vcmask 7168
      %387 = vst.msk [vmem:[#allocation3] sm:$0xff] %vm386, %v384
      %388 = vst.msk [vmem:[#allocation3 + $0x8] sm:$0xff] %vm386, %v385
      %v389 = vld [vmem:[#allocation4] sm:$0xff]
      %v390 = vld [vmem:[#allocation4 + $0x8] sm:$0xff]
      %392 = vset.pattern.permute.xlu0 0
      %393 = vperm.xlu0 %392, %v355
      %v394 = vpop.permute.xlu0 %393
      %397 = vset.pattern.permute.xlu0 0
      %398 = vperm.xlu0 %397, %v357
      %v399 = vpop.permute.xlu0 %398
      %v401 = vmul.f32 %v394, %v389
      %v402 = vmul.f32 %v399, %v390
      %v403 = vpack.c.bf16 %v373, %v371
      %v404 = vld [vmem:[%s248] sm:$0xf]
      %v405 = vld [vmem:[%s248 + $0x4] sm:$0xf]
      %v408 = vunpack.c.l.b16 %v404
      %v409 = vunpack.c.l.b16 %v405
      %v410 = vpack.c.b16 %v409, %v408
      %v413 = vsel %vm282, %v403, 0
      %415 = vmatprep.subr.bf16.mxu0 0
      %416 = vmatpush1.bf16.msra.mxu0 %v410
      %417 = vmatprep.subr.bf16.mxu0 0
      %418 = vmatpush1.bf16.msra.mxu0 0
      %419 = vmatprep.subr.bf16.mxu0 0
      %420 = vmatpush1.bf16.msra.mxu0 0
      %421 = vmatprep.subr.bf16.mxu0 0
      %422 = vmatpush1.bf16.msra.mxu0 0
      %423 = vmatprep.subr.bf16.mxu0 0
      %424 = vmatpush1.bf16.msra.mxu0 0
      %425 = vmatprep.subr.bf16.mxu0 0
      %426 = vmatpush1.bf16.msra.mxu0 0
      %427 = vmatprep.subr.bf16.mxu0 0
      %428 = vmatpush1.bf16.msra.mxu0 0
      %429 = vmatprep.subr.bf16.mxu0 0
      %430 = vmatpush1.bf16.msra.mxu0 0
      %431 = vmatprep.subr.bf16.mxu0 0
      %432 = vmatpush1.bf16.msra.mxu0 0
      %433 = vmatprep.subr.bf16.mxu0 0
      %434 = vmatpush1.bf16.msra.mxu0 0
      %435 = vmatprep.subr.bf16.mxu0 0
      %436 = vmatpush1.bf16.msra.mxu0 0
      %437 = vmatprep.subr.bf16.mxu0 0
      %438 = vmatpush1.bf16.msra.mxu0 0
      %439 = vmatprep.subr.bf16.mxu0 0
      %440 = vmatpush1.bf16.msra.mxu0 0
      %441 = vmatprep.subr.bf16.mxu0 0
      %442 = vmatpush1.bf16.msra.mxu0 0
      %443 = vmatprep.subr.bf16.mxu0 0
      %444 = vmatpush1.bf16.msra.mxu0 0
      %445 = vmatprep.subr.bf16.mxu0 0
      %446 = vmatpush1.bf16.msra.mxu0 0
      %447 = vmatprep.mubr.bf16.mxu0 0
      %448 = vmatmul.mubr.bf16.gmra.mrb[0].mxu0 %v413
      %v449 = vpop.f32.mrb[0].mxu0
      %v450 = vadd.f32 0.0, %v449
      %v451 = vpop.f32.mrb[0].mxu0
      %v452 = vpop.f32.mrb[0].mxu0
      %v453 = vadd.f32 0.0, %v452
      %v454 = vpop.f32.mrb[0].mxu0
      %455 = vdwg.mxu0
      %v456 = vadd.f32 %v401, %v450
      %v457 = vadd.f32 %v402, %v453
      %458 = vst.msk [vmem:[#allocation4] sm:$0xff] %vm282, %v456
      %459 = vst.msk [vmem:[#allocation4 + $0x8] sm:$0xff] %vm282, %v457
      %460 = vst.msk [vmem:[#allocation2] sm:$0xff] %vm386, %v350
      %461 = vst.msk [vmem:[#allocation2 + $0x8] sm:$0xff] %vm386, %v351
      // Predicated region
      $region37: #{_lambda_.24} parent=31 // pred_check
        %p462 = pneg %p256
      $region38: #{_lambda_.24} parent=31 // pred_check_branch
        %464 = sbr.rel (%p462) target = $region40
      $region39: #{_lambda_.24} parent=31 // pred_region
        %v465 = vld [vmem:[#allocation4] sm:$0xff]
        %v466 = vld [vmem:[#allocation4 + $0x8] sm:$0xff]
        %v467 = vld [vmem:[#allocation3] sm:$0xff]
        %v468 = vld [vmem:[#allocation3 + $0x8] sm:$0xff]
        %v469 = vrcp.pop %v467
        %v470 = vrcp.pop %v468
        %472 = vset.pattern.permute.xlu0 0
        %473 = vperm.xlu0 %472, %v469
        %v474 = vpop.permute.xlu0 %473
        %477 = vset.pattern.permute.xlu0 0
        %478 = vperm.xlu0 %477, %v470
        %v479 = vpop.permute.xlu0 %478
        %v481 = vmul.f32 %v465, %v474
        %v482 = vmul.f32 %v466, %v479
        %v483 = vpack.c.bf16 %v482, %v481
        %v485 = vunpack.c.l.b16 %v483
        %v486 = vunpack.c.h.b16 %v483
        %v487 = vpack.c.b16 %v485, %v485
        %v488 = vpack.c.b16 %v486, %v486
        %vm491 = vcmask 125952
        %492 = vst.msk [vmem:[%s254] sm:$0xf] %vm491, %v487
        %493 = vst.msk [vmem:[%s254 + $0x4] sm:$0xf] %vm491, %v488
      $region40: #{_lambda_.24} parent=31 // pred_fallthru
        _
      %p494 = scmp.lt.s32.totalorder %s18, 17
      %s495 = scalar_select %p494, %s18, 17
      %s496 = smul.addr %s495, 2
      %s497 = smul.addr %s496, 4
      %s498 = scalar_lea.vmem %s3, %s497
      // Predicated region
      $region41: #{_lambda_.24} parent=31 // pred_check
        %p499 = pneg %p126
      $region42: #{_lambda_.24} parent=31 // pred_check_branch
        %501 = sbr.rel (%p499) target = $region44
      $region43: #{_lambda_.24} parent=31 // pred_region
        _
      $region44: #{_lambda_.24} parent=31 // pred_fallthru
        _
    $region32: #{_lambda_.24} parent=5 // pred_fallthru
      _
    %p502 = scmp.le.s32.totalorder 2, %s9
    // Predicated region
    $region45: #{_lambda_.24} parent=5 // pred_check
      %p503 = pneg %p502
    $region46: #{_lambda_.24} parent=5 // pred_check_branch
      %505 = sbr.rel (%p503) target = $region48
    $region47: #{_lambda_.24} parent=5 // pred_region
      %s506 = ssub.s32 %s9, 2
      // Predicated region
      $region49: #{_lambda_.24} parent=47 // pred_check
        %p507 = pneg %p132
      $region50: #{_lambda_.24} parent=47 // pred_check_branch
        %509 = sbr.rel (%p507) target = $region52
      $region51: #{_lambda_.24} parent=47 // pred_region
        %p510 = scmp.lt.s32.totalorder %s20, 17
        %s511 = scalar_select %p510, %s20, 17
        %s512 = smul.addr %s511, 2
        %s513 = smul.addr %s512, 4
        %s514 = scalar_lea.vmem %s3, %s513
      $region52: #{_lambda_.24} parent=47 // pred_fallthru
        _
    $region48: #{_lambda_.24} parent=5 // pred_fallthru
      _
  $region6: #{_lambda_.24} parent=0 // loop_footer
    %s13 = sadd.s32 1, %s9
  $region7: #{_lambda_.24} parent=0 // loop_footer_branch
    %8 = sbr.rel target = $region3
  $region8: #{_lambda_.24} parent=0 // loop_exit
    _

// kernel: _lambda_.23
$region0: #{_lambda_.23}
  #allocation0 [shape = 'u32[]', space=smem, size = 0x4, offset = 0x4, fixed_abs, tag = 'smem constant byte address 0x4 - core index']
  #allocation1 [shape = 'u32[144,128]{1,0:T(1,128)}', space=vmem, size = 0x12000, scoped, tag = 'internal scratch']
  #allocation2 [shape = 'bf16[144,32]{1,0:T(16,128)(2,1)}', space=vmem, size = 0x9000, scoped, tag = 'scratch operand']
  %s0 = inlined_call_operand.vmem [shape: bf16[144,32], index: 0, kind: input, shape index: {}]
  %s1 = inlined_call_operand.vmem [shape: f32[1,32], index: 1, kind: input, shape index: {}]
  %s2 = inlined_call_operand.vmem [shape: f32[1,32], index: 2, kind: input, shape index: {}]
  %s3 = inlined_call_operand.vmem [shape: bf16[32,96], index: 3, kind: input, shape index: {}]
  %s4 = inlined_call_operand.vmem [shape: f32[1,96], index: 4, kind: input, shape index: {}]
  %s5 = inlined_call_operand.vmem [shape: bf16[144,96], index: 5, kind: output, shape index: {}]
  %s6 = sld [smem:[#allocation0]]
  $region34: #{_lambda_.23} parent=0
    _
  %s8 = ssub.s32 1, %s6
  %s9 = scalar_select 0, %s8, %s6
  // Predicated region
  $region2: #{_lambda_.23} parent=0 // pred_check
    _
  $region3: #{_lambda_.23} parent=0 // pred_check_branch
    %11 = sbr.rel (0) target = $region5
  $region4: #{_lambda_.23} parent=0 // pred_region
    _
  $region5: #{_lambda_.23} parent=0 // pred_fallthru
    _
  // Predicated region
  $region6: #{_lambda_.23} parent=0 // pred_check
    _
  $region7: #{_lambda_.23} parent=0 // pred_check_branch
    %13 = sbr.rel (0) target = $region9
  $region8: #{_lambda_.23} parent=0 // pred_region
    _
  $region9: #{_lambda_.23} parent=0 // pred_fallthru
    _
  // Predicated region
  $region10: #{_lambda_.23} parent=0 // pred_check
    _
  $region11: #{_lambda_.23} parent=0 // pred_check_branch
    %15 = sbr.rel (0) target = $region13
  $region12: #{_lambda_.23} parent=0 // pred_region
    _
  $region13: #{_lambda_.23} parent=0 // pred_fallthru
    _
  // Predicated region
  $region14: #{_lambda_.23} parent=0 // pred_check
    _
  $region15: #{_lambda_.23} parent=0 // pred_check_branch
    %17 = sbr.rel (0) target = $region17
  $region16: #{_lambda_.23} parent=0 // pred_region
    _
  $region17: #{_lambda_.23} parent=0 // pred_fallthru
    _
  // Predicated region
  $region18: #{_lambda_.23} parent=0 // pred_check
    _
  $region19: #{_lambda_.23} parent=0 // pred_check_branch
    %19 = sbr.rel (0) target = $region21
  $region20: #{_lambda_.23} parent=0 // pred_region
    _
  $region21: #{_lambda_.23} parent=0 // pred_fallthru
    _
  %p21 = scmp.eq.s32.totalorder 0, 0
  // Predicated region
  $region22: #{_lambda_.23} parent=0 // pred_check
    %p22 = pneg %p21
  $region23: #{_lambda_.23} parent=0 // pred_check_branch
    %24 = sbr.rel (%p22) target = $region25
  $region24: #{_lambda_.23} parent=0 // pred_region
    %v25 = vld [vmem:[%s0] sm:$0xf]
    %v26 = vld [vmem:[%s0 + $0x4] sm:$0xf]
    %v27 = vld [vmem:[%s0 + $0x8] sm:$0xf]
    %v28 = vld [vmem:[%s0 + $0xc] sm:$0xf]
    %v29 = vld [vmem:[%s0 + $0x10] sm:$0xf]
    %v30 = vld [vmem:[%s0 + $0x14] sm:$0xf]
    %v31 = vld [vmem:[%s0 + $0x18] sm:$0xf]
    %v32 = vld [vmem:[%s0 + $0x1c] sm:$0xf]
    %v33 = vld [vmem:[%s0 + $0x20] sm:$0xf]
    %v34 = vld [vmem:[%s0 + $0x24] sm:$0xf]
    %v35 = vld [vmem:[%s0 + $0x28] sm:$0xf]
    %v36 = vld [vmem:[%s0 + $0x2c] sm:$0xf]
    %v37 = vld [vmem:[%s0 + $0x30] sm:$0xf]
    %v38 = vld [vmem:[%s0 + $0x34] sm:$0xf]
    %v39 = vld [vmem:[%s0 + $0x38] sm:$0xf]
    %v40 = vld [vmem:[%s0 + $0x3c] sm:$0xf]
    %v41 = vld [vmem:[%s0 + $0x40] sm:$0xf]
    %v42 = vld [vmem:[%s0 + $0x44] sm:$0xf]
    %v43 = vunpack.c.l.bf16 %v25
    %v44 = vunpack.c.l.bf16 %v26
    %v45 = vunpack.c.l.bf16 %v27
    %v46 = vunpack.c.l.bf16 %v28
    %v47 = vunpack.c.l.bf16 %v29
    %v48 = vunpack.c.l.bf16 %v30
    %v49 = vunpack.c.l.bf16 %v31
    %v50 = vunpack.c.l.bf16 %v32
    %v51 = vunpack.c.l.bf16 %v33
    %v52 = vunpack.c.l.bf16 %v34
    %v53 = vunpack.c.l.bf16 %v35
    %v54 = vunpack.c.l.bf16 %v36
    %v55 = vunpack.c.l.bf16 %v37
    %v56 = vunpack.c.l.bf16 %v38
    %v57 = vunpack.c.l.bf16 %v39
    %v58 = vunpack.c.l.bf16 %v40
    %v59 = vunpack.c.l.bf16 %v41
    %v60 = vunpack.c.l.bf16 %v42
    %vm61 = vcmask 261120
    %v62 = vsel %vm61, %v43, 0.0
    %63 = vadd.xlane.f32.xlu0 %v62
    %v64 = vpop.xlane.xlu0 %63
    %v65 = vsel %vm61, %v44, 0.0
    %66 = vadd.xlane.f32.xlu0 %v65
    %v67 = vpop.xlane.xlu0 %66
    %v68 = vsel %vm61, %v45, 0.0
    %69 = vadd.xlane.f32.xlu0 %v68
    %v70 = vpop.xlane.xlu0 %69
    %v71 = vsel %vm61, %v46, 0.0
    %72 = vadd.xlane.f32.xlu0 %v71
    %v73 = vpop.xlane.xlu0 %72
    %v74 = vsel %vm61, %v47, 0.0
    %75 = vadd.xlane.f32.xlu0 %v74
    %v76 = vpop.xlane.xlu0 %75
    %v77 = vsel %vm61, %v48, 0.0
    %78 = vadd.xlane.f32.xlu0 %v77
    %v79 = vpop.xlane.xlu0 %78
    %v80 = vsel %vm61, %v49, 0.0
    %81 = vadd.xlane.f32.xlu0 %v80
    %v82 = vpop.xlane.xlu0 %81
    %v83 = vsel %vm61, %v50, 0.0
    %84 = vadd.xlane.f32.xlu0 %v83
    %v85 = vpop.xlane.xlu0 %84
    %v86 = vsel %vm61, %v51, 0.0
    %87 = vadd.xlane.f32.xlu0 %v86
    %v88 = vpop.xlane.xlu0 %87
    %v89 = vsel %vm61, %v52, 0.0
    %90 = vadd.xlane.f32.xlu0 %v89
    %v91 = vpop.xlane.xlu0 %90
    %v92 = vsel %vm61, %v53, 0.0
    %93 = vadd.xlane.f32.xlu0 %v92
    %v94 = vpop.xlane.xlu0 %93
    %v95 = vsel %vm61, %v54, 0.0
    %96 = vadd.xlane.f32.xlu0 %v95
    %v97 = vpop.xlane.xlu0 %96
    %v98 = vsel %vm61, %v55, 0.0
    %99 = vadd.xlane.f32.xlu0 %v98
    %v100 = vpop.xlane.xlu0 %99
    %v101 = vsel %vm61, %v56, 0.0
    %102 = vadd.xlane.f32.xlu0 %v101
    %v103 = vpop.xlane.xlu0 %102
    %v104 = vsel %vm61, %v57, 0.0
    %105 = vadd.xlane.f32.xlu0 %v104
    %v106 = vpop.xlane.xlu0 %105
    %v107 = vsel %vm61, %v58, 0.0
    %108 = vadd.xlane.f32.xlu0 %v107
    %v109 = vpop.xlane.xlu0 %108
    %v110 = vsel %vm61, %v59, 0.0
    %111 = vadd.xlane.f32.xlu0 %v110
    %v112 = vpop.xlane.xlu0 %111
    %v113 = vsel %vm61, %v60, 0.0
    %114 = vadd.xlane.f32.xlu0 %v113
    %v115 = vpop.xlane.xlu0 %114
    %v116 = vrcp.pop 32.0
    %v117 = vmul.f32 %v64, %v116
    %v118 = vmul.f32 %v67, %v116
    %v119 = vmul.f32 %v70, %v116
    %v120 = vmul.f32 %v73, %v116
    %v121 = vmul.f32 %v76, %v116
    %v122 = vmul.f32 %v79, %v116
    %v123 = vmul.f32 %v82, %v116
    %v124 = vmul.f32 %v85, %v116
    %v125 = vmul.f32 %v88, %v116
    %v126 = vmul.f32 %v91, %v116
    %v127 = vmul.f32 %v94, %v116
    %v128 = vmul.f32 %v97, %v116
    %v129 = vmul.f32 %v100, %v116
    %v130 = vmul.f32 %v103, %v116
    %v131 = vmul.f32 %v106, %v116
    %v132 = vmul.f32 %v109, %v116
    %v133 = vmul.f32 %v112, %v116
    %v134 = vmul.f32 %v115, %v116
    %v135 = vsub.f32 %v43, %v117
    %v136 = vsub.f32 %v44, %v118
    %v137 = vsub.f32 %v45, %v119
    %v138 = vsub.f32 %v46, %v120
    %v139 = vsub.f32 %v47, %v121
    %v140 = vsub.f32 %v48, %v122
    %v141 = vsub.f32 %v49, %v123
    %v142 = vsub.f32 %v50, %v124
    %v143 = vsub.f32 %v51, %v125
    %v144 = vsub.f32 %v52, %v126
    %v145 = vsub.f32 %v53, %v127
    %v146 = vsub.f32 %v54, %v128
    %v147 = vsub.f32 %v55, %v129
    %v148 = vsub.f32 %v56, %v130
    %v149 = vsub.f32 %v57, %v131
    %v150 = vsub.f32 %v58, %v132
    %v151 = vsub.f32 %v59, %v133
    %v152 = vsub.f32 %v60, %v134
    %v153 = vmul.f32 %v135, %v135
    %v154 = vmul.f32 %v136, %v136
    %v155 = vmul.f32 %v137, %v137
    %v156 = vmul.f32 %v138, %v138
    %v157 = vmul.f32 %v139, %v139
    %v158 = vmul.f32 %v140, %v140
    %v159 = vmul.f32 %v141, %v141
    %v160 = vmul.f32 %v142, %v142
    %v161 = vmul.f32 %v143, %v143
    %v162 = vmul.f32 %v144, %v144
    %v163 = vmul.f32 %v145, %v145
    %v164 = vmul.f32 %v146, %v146
    %v165 = vmul.f32 %v147, %v147
    %v166 = vmul.f32 %v148, %v148
    %v167 = vmul.f32 %v149, %v149
    %v168 = vmul.f32 %v150, %v150
    %v169 = vmul.f32 %v151, %v151
    %v170 = vmul.f32 %v152, %v152
    %v171 = vsel %vm61, %v153, 0.0
    %172 = vadd.xlane.f32.xlu0 %v171
    %v173 = vpop.xlane.xlu0 %172
    %v174 = vsel %vm61, %v154, 0.0
    %175 = vadd.xlane.f32.xlu0 %v174
    %v176 = vpop.xlane.xlu0 %175
    %v177 = vsel %vm61, %v155, 0.0
    %178 = vadd.xlane.f32.xlu0 %v177
    %v179 = vpop.xlane.xlu0 %178
    %v180 = vsel %vm61, %v156, 0.0
    %181 = vadd.xlane.f32.xlu0 %v180
    %v182 = vpop.xlane.xlu0 %181
    %v183 = vsel %vm61, %v157, 0.0
    %184 = vadd.xlane.f32.xlu0 %v183
    %v185 = vpop.xlane.xlu0 %184
    %v186 = vsel %vm61, %v158, 0.0
    %187 = vadd.xlane.f32.xlu0 %v186
    %v188 = vpop.xlane.xlu0 %187
    %v189 = vsel %vm61, %v159, 0.0
    %190 = vadd.xlane.f32.xlu0 %v189
    %v191 = vpop.xlane.xlu0 %190
    %v192 = vsel %vm61, %v160, 0.0
    %193 = vadd.xlane.f32.xlu0 %v192
    %v194 = vpop.xlane.xlu0 %193
    %v195 = vsel %vm61, %v161, 0.0
    %196 = vadd.xlane.f32.xlu0 %v195
    %v197 = vpop.xlane.xlu0 %196
    %v198 = vsel %vm61, %v162, 0.0
    %199 = vadd.xlane.f32.xlu0 %v198
    %v200 = vpop.xlane.xlu0 %199
    %v201 = vsel %vm61, %v163, 0.0
    %202 = vadd.xlane.f32.xlu0 %v201
    %v203 = vpop.xlane.xlu0 %202
    %v204 = vsel %vm61, %v164, 0.0
    %205 = vadd.xlane.f32.xlu0 %v204
    %v206 = vpop.xlane.xlu0 %205
    %v207 = vsel %vm61, %v165, 0.0
    %208 = vadd.xlane.f32.xlu0 %v207
    %v209 = vpop.xlane.xlu0 %208
    %v210 = vsel %vm61, %v166, 0.0
    %211 = vadd.xlane.f32.xlu0 %v210
    %v212 = vpop.xlane.xlu0 %211
    %v213 = vsel %vm61, %v167, 0.0
    %214 = vadd.xlane.f32.xlu0 %v213
    %v215 = vpop.xlane.xlu0 %214
    %v216 = vsel %vm61, %v168, 0.0
    %217 = vadd.xlane.f32.xlu0 %v216
    %v218 = vpop.xlane.xlu0 %217
    %v219 = vsel %vm61, %v169, 0.0
    %220 = vadd.xlane.f32.xlu0 %v219
    %v221 = vpop.xlane.xlu0 %220
    %v222 = vsel %vm61, %v170, 0.0
    %223 = vadd.xlane.f32.xlu0 %v222
    %v224 = vpop.xlane.xlu0 %223
    %v225 = vmul.f32 %v173, %v116
    %v226 = vmul.f32 %v176, %v116
    %v227 = vmul.f32 %v179, %v116
    %v228 = vmul.f32 %v182, %v116
    %v229 = vmul.f32 %v185, %v116
    %v230 = vmul.f32 %v188, %v116
    %v231 = vmul.f32 %v191, %v116
    %v232 = vmul.f32 %v194, %v116
    %v233 = vmul.f32 %v197, %v116
    %v234 = vmul.f32 %v200, %v116
    %v235 = vmul.f32 %v203, %v116
    %v236 = vmul.f32 %v206, %v116
    %v237 = vmul.f32 %v209, %v116
    %v238 = vmul.f32 %v212, %v116
    %v239 = vmul.f32 %v215, %v116
    %v240 = vmul.f32 %v218, %v116
    %v241 = vmul.f32 %v221, %v116
    %v242 = vmul.f32 %v224, %v116
    %v243 = vadd.f32 %v225, 1e-05
    %v244 = vadd.f32 %v226, 1e-05
    %v245 = vadd.f32 %v227, 1e-05
    %v246 = vadd.f32 %v228, 1e-05
    %v247 = vadd.f32 %v229, 1e-05
    %v248 = vadd.f32 %v230, 1e-05
    %v249 = vadd.f32 %v231, 1e-05
    %v250 = vadd.f32 %v232, 1e-05
    %v251 = vadd.f32 %v233, 1e-05
    %v252 = vadd.f32 %v234, 1e-05
    %v253 = vadd.f32 %v235, 1e-05
    %v254 = vadd.f32 %v236, 1e-05
    %v255 = vadd.f32 %v237, 1e-05
    %v256 = vadd.f32 %v238, 1e-05
    %v257 = vadd.f32 %v239, 1e-05
    %v258 = vadd.f32 %v240, 1e-05
    %v259 = vadd.f32 %v241, 1e-05
    %v260 = vadd.f32 %v242, 1e-05
    %v261 = vrsqrt.pop %v243
    %v262 = vrsqrt.pop %v244
    %v263 = vrsqrt.pop %v245
    %v264 = vrsqrt.pop %v246
    %v265 = vrsqrt.pop %v247
    %v266 = vrsqrt.pop %v248
    %v267 = vrsqrt.pop %v249
    %v268 = vrsqrt.pop %v250
    %v269 = vrsqrt.pop %v251
    %v270 = vrsqrt.pop %v252
    %v271 = vrsqrt.pop %v253
    %v272 = vrsqrt.pop %v254
    %v273 = vrsqrt.pop %v255
    %v274 = vrsqrt.pop %v256
    %v275 = vrsqrt.pop %v257
    %v276 = vrsqrt.pop %v258
    %v277 = vrsqrt.pop %v259
    %v278 = vrsqrt.pop %v260
    %v279 = vmul.f32 %v135, %v261
    %v280 = vmul.f32 %v136, %v262
    %v281 = vmul.f32 %v137, %v263
    %v282 = vmul.f32 %v138, %v264
    %v283 = vmul.f32 %v139, %v265
    %v284 = vmul.f32 %v140, %v266
    %v285 = vmul.f32 %v141, %v267
    %v286 = vmul.f32 %v142, %v268
    %v287 = vmul.f32 %v143, %v269
    %v288 = vmul.f32 %v144, %v270
    %v289 = vmul.f32 %v145, %v271
    %v290 = vmul.f32 %v146, %v272
    %v291 = vmul.f32 %v147, %v273
    %v292 = vmul.f32 %v148, %v274
    %v293 = vmul.f32 %v149, %v275
    %v294 = vmul.f32 %v150, %v276
    %v295 = vmul.f32 %v151, %v277
    %v296 = vmul.f32 %v152, %v278
    %v297 = vld [vmem:[%s1] sm:$0x1]
    %v299 = vlaneseq
    %v300 = vshrl.u32 %v299, 7
    %v301 = vsub.s32 0, %v300
    %v302 = vrot.slane %v297, %v301
    %v304 = vmul.f32 %v279, %v302
    %v305 = vmul.f32 %v280, %v302
    %v306 = vmul.f32 %v281, %v302
    %v307 = vmul.f32 %v282, %v302
    %v308 = vmul.f32 %v283, %v302
    %v309 = vmul.f32 %v284, %v302
    %v310 = vmul.f32 %v285, %v302
    %v311 = vmul.f32 %v286, %v302
    %v312 = vmul.f32 %v287, %v302
    %v313 = vmul.f32 %v288, %v302
    %v314 = vmul.f32 %v289, %v302
    %v315 = vmul.f32 %v290, %v302
    %v316 = vmul.f32 %v291, %v302
    %v317 = vmul.f32 %v292, %v302
    %v318 = vmul.f32 %v293, %v302
    %v319 = vmul.f32 %v294, %v302
    %v320 = vmul.f32 %v295, %v302
    %v321 = vmul.f32 %v296, %v302
    %v322 = vld [vmem:[%s2] sm:$0x1]
    %v324 = vlaneseq
    %v325 = vshrl.u32 %v324, 7
    %v326 = vsub.s32 0, %v325
    %v327 = vrot.slane %v322, %v326
    %v329 = vadd.f32 %v304, %v327
    %v330 = vadd.f32 %v305, %v327
    %v331 = vadd.f32 %v306, %v327
    %v332 = vadd.f32 %v307, %v327
    %v333 = vadd.f32 %v308, %v327
    %v334 = vadd.f32 %v309, %v327
    %v335 = vadd.f32 %v310, %v327
    %v336 = vadd.f32 %v311, %v327
    %v337 = vadd.f32 %v312, %v327
    %v338 = vadd.f32 %v313, %v327
    %v339 = vadd.f32 %v314, %v327
    %v340 = vadd.f32 %v315, %v327
    %v341 = vadd.f32 %v316, %v327
    %v342 = vadd.f32 %v317, %v327
    %v343 = vadd.f32 %v318, %v327
    %v344 = vadd.f32 %v319, %v327
    %v345 = vadd.f32 %v320, %v327
    %v346 = vadd.f32 %v321, %v327
    %v347 = vpack.c.bf16 %v330, %v329
    %v348 = vpack.c.bf16 %v332, %v331
    %v349 = vpack.c.bf16 %v334, %v333
    %v350 = vpack.c.bf16 %v336, %v335
    %v351 = vpack.c.bf16 %v338, %v337
    %v352 = vpack.c.bf16 %v340, %v339
    %v353 = vpack.c.bf16 %v342, %v341
    %v354 = vpack.c.bf16 %v344, %v343
    %v355 = vpack.c.bf16 %v346, %v345
    %356 = vst.msk [vmem:[#allocation2] sm:$0xff] %vm61, %v347
    %357 = vst.msk [vmem:[#allocation2 + $0x8] sm:$0xff] %vm61, %v348
    %358 = vst.msk [vmem:[#allocation2 + $0x10] sm:$0xff] %vm61, %v349
    %359 = vst.msk [vmem:[#allocation2 + $0x18] sm:$0xff] %vm61, %v350
    %360 = vst.msk [vmem:[#allocation2 + $0x20] sm:$0xff] %vm61, %v351
    %361 = vst.msk [vmem:[#allocation2 + $0x28] sm:$0xff] %vm61, %v352
    %362 = vst.msk [vmem:[#allocation2 + $0x30] sm:$0xff] %vm61, %v353
    %363 = vst.msk [vmem:[#allocation2 + $0x38] sm:$0xff] %vm61, %v354
    %364 = vst.msk [vmem:[#allocation2 + $0x40] sm:$0xff] %vm61, %v355
  $region25: #{_lambda_.23} parent=0 // pred_fallthru
    _
  %v365 = vld [vmem:[#allocation2] sm:$0xff]
  %v366 = vld [vmem:[#allocation2 + $0x8] sm:$0xff]
  %v367 = vld [vmem:[#allocation2 + $0x10] sm:$0xff]
  %v368 = vld [vmem:[#allocation2 + $0x18] sm:$0xff]
  %v369 = vld [vmem:[#allocation2 + $0x20] sm:$0xff]
  %v370 = vld [vmem:[#allocation2 + $0x28] sm:$0xff]
  %v371 = vld [vmem:[#allocation2 + $0x30] sm:$0xff]
  %v372 = vld [vmem:[#allocation2 + $0x38] sm:$0xff]
  %v373 = vld [vmem:[#allocation2 + $0x40] sm:$0xff]
  %v374 = vld [vmem:[%s3] sm:$0xf]
  %v375 = vld [vmem:[%s3 + $0x4] sm:$0xf]
  %v376 = vld [vmem:[%s3 + $0x8] sm:$0xf]
  %v377 = vld [vmem:[%s3 + $0xc] sm:$0xf]
  %v378 = vld [vmem:[%s4] sm:$0x1]
  %v380 = vlaneseq
  %v381 = vshrl.u32 %v380, 7
  %v382 = vsub.s32 0, %v381
  %v383 = vrot.slane %v378, %v382
  %v389 = vunpack.c.l.b16 %v374
  %v390 = vunpack.c.l.b16 %v375
  %v391 = vunpack.c.l.b16 %v376
  %v392 = vunpack.c.l.b16 %v377
  %v393 = vpack.c.b16 %v390, %v389
  %v394 = vpack.c.b16 %v392, %v391
  %vm397 = vcmask 261120
  %v399 = vsel %vm397, %v365, 0
  %v402 = vsel %vm397, %v366, 0
  %v405 = vsel %vm397, %v367, 0
  %v408 = vsel %vm397, %v368, 0
  %v411 = vsel %vm397, %v369, 0
  %v414 = vsel %vm397, %v370, 0
  %v417 = vsel %vm397, %v371, 0
  %v420 = vsel %vm397, %v372, 0
  %v423 = vsel %vm397, %v373, 0
  %425 = vmatprep.subr.bf16.mxu0 0
  %426 = vmatpush1.bf16.msra.mxu0 %v393
  %427 = vmatprep.subr.bf16.mxu0 0
  %428 = vmatpush1.bf16.msra.mxu0 %v394
  %429 = vmatprep.subr.bf16.mxu0 0
  %430 = vmatpush1.bf16.msra.mxu0 0
  %431 = vmatprep.subr.bf16.mxu0 0
  %432 = vmatpush1.bf16.msra.mxu0 0
  %433 = vmatprep.subr.bf16.mxu0 0
  %434 = vmatpush1.bf16.msra.mxu0 0
  %435 = vmatprep.subr.bf16.mxu0 0
  %436 = vmatpush1.bf16.msra.mxu0 0
  %437 = vmatprep.subr.bf16.mxu0 0
  %438 = vmatpush1.bf16.msra.mxu0 0
  %439 = vmatprep.subr.bf16.mxu0 0
  %440 = vmatpush1.bf16.msra.mxu0 0
  %441 = vmatprep.subr.bf16.mxu0 0
  %442 = vmatpush1.bf16.msra.mxu0 0
  %443 = vmatprep.subr.bf16.mxu0 0
  %444 = vmatpush1.bf16.msra.mxu0 0
  %445 = vmatprep.subr.bf16.mxu0 0
  %446 = vmatpush1.bf16.msra.mxu0 0
  %447 = vmatprep.subr.bf16.mxu0 0
  %448 = vmatpush1.bf16.msra.mxu0 0
  %449 = vmatprep.subr.bf16.mxu0 0
  %450 = vmatpush1.bf16.msra.mxu0 0
  %451 = vmatprep.subr.bf16.mxu0 0
  %452 = vmatpush1.bf16.msra.mxu0 0
  %453 = vmatprep.subr.bf16.mxu0 0
  %454 = vmatpush1.bf16.msra.mxu0 0
  %455 = vmatprep.subr.bf16.mxu0 0
  %456 = vmatpush1.bf16.msra.mxu0 0
  %457 = vmatprep.mubr.bf16.mxu0 0
  %458 = vmatmul.mubr.bf16.gmra.mrb[0].mxu0 %v399
  %v459 = vpop.f32.mrb[0].mxu0
  %v460 = vadd.f32 %v383, %v459
  %v461 = vpop.f32.mrb[0].mxu0
  %v462 = vpop.f32.mrb[0].mxu0
  %v463 = vadd.f32 %v383, %v462
  %v464 = vpop.f32.mrb[0].mxu0
  %465 = vmatprep.mubr.bf16.mxu0 0
  %466 = vmatmul.mubr.bf16.gmra.mrb[0].mxu0 %v402
  %v467 = vpop.f32.mrb[0].mxu0
  %v468 = vadd.f32 %v383, %v467
  %v469 = vpop.f32.mrb[0].mxu0
  %v470 = vpop.f32.mrb[0].mxu0
  %v471 = vadd.f32 %v383, %v470
  %v472 = vpop.f32.mrb[0].mxu0
  %473 = vmatprep.mubr.bf16.mxu0 0
  %474 = vmatmul.mubr.bf16.gmra.mrb[0].mxu0 %v405
  %v475 = vpop.f32.mrb[0].mxu0
  %v476 = vadd.f32 %v383, %v475
  %v477 = vpop.f32.mrb[0].mxu0
  %v478 = vpop.f32.mrb[0].mxu0
  %v479 = vadd.f32 %v383, %v478
  %v480 = vpop.f32.mrb[0].mxu0
  %481 = vmatprep.mubr.bf16.mxu0 0
  %482 = vmatmul.mubr.bf16.gmra.mrb[0].mxu0 %v408
  %v483 = vpop.f32.mrb[0].mxu0
  %v484 = vadd.f32 %v383, %v483
  %v485 = vpop.f32.mrb[0].mxu0
  %v486 = vpop.f32.mrb[0].mxu0
  %v487 = vadd.f32 %v383, %v486
  %v488 = vpop.f32.mrb[0].mxu0
  %489 = vmatprep.mubr.bf16.mxu0 0
  %490 = vmatmul.mubr.bf16.gmra.mrb[0].mxu0 %v411
  %v491 = vpop.f32.mrb[0].mxu0
  %v492 = vadd.f32 %v383, %v491
  %v493 = vpop.f32.mrb[0].mxu0
  %v494 = vpop.f32.mrb[0].mxu0
  %v495 = vadd.f32 %v383, %v494
  %v496 = vpop.f32.mrb[0].mxu0
  %497 = vmatprep.mubr.bf16.mxu0 0
  %498 = vmatmul.mubr.bf16.gmra.mrb[0].mxu0 %v414
  %v499 = vpop.f32.mrb[0].mxu0
  %v500 = vadd.f32 %v383, %v499
  %v501 = vpop.f32.mrb[0].mxu0
  %v502 = vpop.f32.mrb[0].mxu0
  %v503 = vadd.f32 %v383, %v502
  %v504 = vpop.f32.mrb[0].mxu0
  %505 = vmatprep.mubr.bf16.mxu0 0
  %506 = vmatmul.mubr.bf16.gmra.mrb[0].mxu0 %v417
  %v507 = vpop.f32.mrb[0].mxu0
  %v508 = vadd.f32 %v383, %v507
  %v509 = vpop.f32.mrb[0].mxu0
  %v510 = vpop.f32.mrb[0].mxu0
  %v511 = vadd.f32 %v383, %v510
  %v512 = vpop.f32.mrb[0].mxu0
  %513 = vmatprep.mubr.bf16.mxu0 0
  %514 = vmatmul.mubr.bf16.gmra.mrb[0].mxu0 %v420
  %v515 = vpop.f32.mrb[0].mxu0
  %v516 = vadd.f32 %v383, %v515
  %v517 = vpop.f32.mrb[0].mxu0
  %v518 = vpop.f32.mrb[0].mxu0
  %v519 = vadd.f32 %v383, %v518
  %v520 = vpop.f32.mrb[0].mxu0
  %521 = vmatprep.mubr.bf16.mxu0 0
  %522 = vmatmul.mubr.bf16.gmra.mrb[0].mxu0 %v423
  %v523 = vpop.f32.mrb[0].mxu0
  %v524 = vadd.f32 %v383, %v523
  %v525 = vpop.f32.mrb[0].mxu0
  %v526 = vpop.f32.mrb[0].mxu0
  %v527 = vadd.f32 %v383, %v526
  %v528 = vpop.f32.mrb[0].mxu0
  %529 = vdwg.mxu0
  %v530 = vpack.c.bf16 %v463, %v460
  %v531 = vpack.c.bf16 %v471, %v468
  %v532 = vpack.c.bf16 %v479, %v476
  %v533 = vpack.c.bf16 %v487, %v484
  %v534 = vpack.c.bf16 %v495, %v492
  %v535 = vpack.c.bf16 %v503, %v500
  %v536 = vpack.c.bf16 %v511, %v508
  %v537 = vpack.c.bf16 %v519, %v516
  %v538 = vpack.c.bf16 %v527, %v524
  %v548 = vunpack.c.l.b16 %v530
  %v549 = vunpack.c.h.b16 %v530
  %v550 = vunpack.c.l.b16 %v531
  %v551 = vunpack.c.h.b16 %v531
  %v552 = vunpack.c.l.b16 %v532
  %v553 = vunpack.c.h.b16 %v532
  %v554 = vunpack.c.l.b16 %v533
  %v555 = vunpack.c.h.b16 %v533
  %v556 = vunpack.c.l.b16 %v534
  %v557 = vunpack.c.h.b16 %v534
  %v558 = vunpack.c.l.b16 %v535
  %v559 = vunpack.c.h.b16 %v535
  %v560 = vunpack.c.l.b16 %v536
  %v561 = vunpack.c.h.b16 %v536
  %v562 = vunpack.c.l.b16 %v537
  %v563 = vunpack.c.h.b16 %v537
  %v564 = vunpack.c.l.b16 %v538
  %v565 = vunpack.c.h.b16 %v538
  %v566 = vpack.c.b16 %v548, %v548
  %v567 = vpack.c.b16 %v549, %v549
  %v568 = vpack.c.b16 %v550, %v550
  %v569 = vpack.c.b16 %v551, %v551
  %v570 = vpack.c.b16 %v552, %v552
  %v571 = vpack.c.b16 %v553, %v553
  %v572 = vpack.c.b16 %v554, %v554
  %v573 = vpack.c.b16 %v555, %v555
  %v574 = vpack.c.b16 %v556, %v556
  %v575 = vpack.c.b16 %v557, %v557
  %v576 = vpack.c.b16 %v558, %v558
  %v577 = vpack.c.b16 %v559, %v559
  %v578 = vpack.c.b16 %v560, %v560
  %v579 = vpack.c.b16 %v561, %v561
  %v580 = vpack.c.b16 %v562, %v562
  %v581 = vpack.c.b16 %v563, %v563
  %v582 = vpack.c.b16 %v564, %v564
  %v583 = vpack.c.b16 %v565, %v565
  %vm602 = vcmask 781312
  %603 = vst.msk [vmem:[%s5] sm:$0xf] %vm602, %v566
  %604 = vst.msk [vmem:[%s5 + $0x4] sm:$0xf] %vm602, %v567
  %605 = vst.msk [vmem:[%s5 + $0x8] sm:$0xf] %vm602, %v568
  %606 = vst.msk [vmem:[%s5 + $0xc] sm:$0xf] %vm602, %v569
  %607 = vst.msk [vmem:[%s5 + $0x10] sm:$0xf] %vm602, %v570
  %608 = vst.msk [vmem:[%s5 + $0x14] sm:$0xf] %vm602, %v571
  %609 = vst.msk [vmem:[%s5 + $0x18] sm:$0xf] %vm602, %v572
  %610 = vst.msk [vmem:[%s5 + $0x1c] sm:$0xf] %vm602, %v573
  %611 = vst.msk [vmem:[%s5 + $0x20] sm:$0xf] %vm602, %v574
  %612 = vst.msk [vmem:[%s5 + $0x24] sm:$0xf] %vm602, %v575
  %613 = vst.msk [vmem:[%s5 + $0x28] sm:$0xf] %vm602, %v576
  %614 = vst.msk [vmem:[%s5 + $0x2c] sm:$0xf] %vm602, %v577
  %615 = vst.msk [vmem:[%s5 + $0x30] sm:$0xf] %vm602, %v578
  %616 = vst.msk [vmem:[%s5 + $0x34] sm:$0xf] %vm602, %v579
  %617 = vst.msk [vmem:[%s5 + $0x38] sm:$0xf] %vm602, %v580
  %618 = vst.msk [vmem:[%s5 + $0x3c] sm:$0xf] %vm602, %v581
  %619 = vst.msk [vmem:[%s5 + $0x40] sm:$0xf] %vm602, %v582
  %620 = vst.msk [vmem:[%s5 + $0x44] sm:$0xf] %vm602, %v583
  // Predicated region
  $region26: #{_lambda_.23} parent=0 // pred_check
    _
  $region27: #{_lambda_.23} parent=0 // pred_check_branch
    %622 = sbr.rel (0) target = $region29
  $region28: #{_lambda_.23} parent=0 // pred_region
    _
  $region29: #{_lambda_.23} parent=0 // pred_fallthru
    _
  // Predicated region
  $region30: #{_lambda_.23} parent=0 // pred_check
    _
  $region31: #{_lambda_.23} parent=0 // pred_check_branch
    %624 = sbr.rel (0) target = $region33
  $region32: #{_lambda_.23} parent=0 // pred_region
    _
  $region33: #{_lambda_.23} parent=0 // pred_fallthru
    _

// kernel: _lambda_.25
$region0: #{_lambda_.25}
  #allocation0 [shape = 'u32[]', space=smem, size = 0x4, offset = 0x4, fixed_abs, tag = 'smem constant byte address 0x4 - core index']
  #allocation1 [shape = 'u32[144,128]{1,0:T(1,128)}', space=vmem, size = 0x12000, scoped, tag = 'internal scratch']
  #allocation2 [shape = 'f32[144,32]{1,0:T(8,128)}', space=vmem, size = 0x12000, scoped, tag = 'scratch operand']
  %s0 = inlined_call_operand.vmem [shape: bf16[144,32], index: 0, kind: input, shape index: {}]
  %s1 = inlined_call_operand.vmem [shape: bf16[32,32], index: 1, kind: input, shape index: {}]
  %s2 = inlined_call_operand.vmem [shape: f32[1,32], index: 2, kind: input, shape index: {}]
  %s3 = inlined_call_operand.vmem [shape: bf16[144,32], index: 3, kind: input, shape index: {}]
  %s4 = inlined_call_operand.vmem [shape: bf16[144,32], index: 4, kind: output, shape index: {}]
  %s5 = sld [smem:[#allocation0]]
  $region34: #{_lambda_.25} parent=0
    _
  %s7 = ssub.s32 1, %s5
  %s8 = scalar_select 0, %s7, %s5
  // Predicated region
  $region2: #{_lambda_.25} parent=0 // pred_check
    _
  $region3: #{_lambda_.25} parent=0 // pred_check_branch
    %10 = sbr.rel (0) target = $region5
  $region4: #{_lambda_.25} parent=0 // pred_region
    _
  $region5: #{_lambda_.25} parent=0 // pred_fallthru
    _
  // Predicated region
  $region6: #{_lambda_.25} parent=0 // pred_check
    _
  $region7: #{_lambda_.25} parent=0 // pred_check_branch
    %12 = sbr.rel (0) target = $region9
  $region8: #{_lambda_.25} parent=0 // pred_region
    _
  $region9: #{_lambda_.25} parent=0 // pred_fallthru
    _
  // Predicated region
  $region10: #{_lambda_.25} parent=0 // pred_check
    _
  $region11: #{_lambda_.25} parent=0 // pred_check_branch
    %14 = sbr.rel (0) target = $region13
  $region12: #{_lambda_.25} parent=0 // pred_region
    _
  $region13: #{_lambda_.25} parent=0 // pred_fallthru
    _
  // Predicated region
  $region14: #{_lambda_.25} parent=0 // pred_check
    _
  $region15: #{_lambda_.25} parent=0 // pred_check_branch
    %16 = sbr.rel (0) target = $region17
  $region16: #{_lambda_.25} parent=0 // pred_region
    _
  $region17: #{_lambda_.25} parent=0 // pred_fallthru
    _
  %p18 = scmp.eq.s32.totalorder 0, 0
  // Predicated region
  $region18: #{_lambda_.25} parent=0 // pred_check
    %p19 = pneg %p18
  $region19: #{_lambda_.25} parent=0 // pred_check_branch
    %21 = sbr.rel (%p19) target = $region21
  $region20: #{_lambda_.25} parent=0 // pred_region
    %vm22 = vcmask 261120
    %23 = vst.msk [vmem:[#allocation2] sm:$0xff] %vm22, 0.0
    %24 = vst.msk [vmem:[#allocation2 + $0x8] sm:$0xff] %vm22, 0.0
    %25 = vst.msk [vmem:[#allocation2 + $0x10] sm:$0xff] %vm22, 0.0
    %26 = vst.msk [vmem:[#allocation2 + $0x18] sm:$0xff] %vm22, 0.0
    %27 = vst.msk [vmem:[#allocation2 + $0x20] sm:$0xff] %vm22, 0.0
    %28 = vst.msk [vmem:[#allocation2 + $0x28] sm:$0xff] %vm22, 0.0
    %29 = vst.msk [vmem:[#allocation2 + $0x30] sm:$0xff] %vm22, 0.0
    %30 = vst.msk [vmem:[#allocation2 + $0x38] sm:$0xff] %vm22, 0.0
    %31 = vst.msk [vmem:[#allocation2 + $0x40] sm:$0xff] %vm22, 0.0
    %32 = vst.msk [vmem:[#allocation2 + $0x48] sm:$0xff] %vm22, 0.0
    %33 = vst.msk [vmem:[#allocation2 + $0x50] sm:$0xff] %vm22, 0.0
    %34 = vst.msk [vmem:[#allocation2 + $0x58] sm:$0xff] %vm22, 0.0
    %35 = vst.msk [vmem:[#allocation2 + $0x60] sm:$0xff] %vm22, 0.0
    %36 = vst.msk [vmem:[#allocation2 + $0x68] sm:$0xff] %vm22, 0.0
    %37 = vst.msk [vmem:[#allocation2 + $0x70] sm:$0xff] %vm22, 0.0
    %38 = vst.msk [vmem:[#allocation2 + $0x78] sm:$0xff] %vm22, 0.0
    %39 = vst.msk [vmem:[#allocation2 + $0x80] sm:$0xff] %vm22, 0.0
    %40 = vst.msk [vmem:[#allocation2 + $0x88] sm:$0xff] %vm22, 0.0
  $region21: #{_lambda_.25} parent=0 // pred_fallthru
    _
  %v41 = vld [vmem:[#allocation2] sm:$0xff]
  %v42 = vld [vmem:[#allocation2 + $0x8] sm:$0xff]
  %v43 = vld [vmem:[#allocation2 + $0x10] sm:$0xff]
  %v44 = vld [vmem:[#allocation2 + $0x18] sm:$0xff]
  %v45 = vld [vmem:[#allocation2 + $0x20] sm:$0xff]
  %v46 = vld [vmem:[#allocation2 + $0x28] sm:$0xff]
  %v47 = vld [vmem:[#allocation2 + $0x30] sm:$0xff]
  %v48 = vld [vmem:[#allocation2 + $0x38] sm:$0xff]
  %v49 = vld [vmem:[#allocation2 + $0x40] sm:$0xff]
  %v50 = vld [vmem:[#allocation2 + $0x48] sm:$0xff]
  %v51 = vld [vmem:[#allocation2 + $0x50] sm:$0xff]
  %v52 = vld [vmem:[#allocation2 + $0x58] sm:$0xff]
  %v53 = vld [vmem:[#allocation2 + $0x60] sm:$0xff]
  %v54 = vld [vmem:[#allocation2 + $0x68] sm:$0xff]
  %v55 = vld [vmem:[#allocation2 + $0x70] sm:$0xff]
  %v56 = vld [vmem:[#allocation2 + $0x78] sm:$0xff]
  %v57 = vld [vmem:[#allocation2 + $0x80] sm:$0xff]
  %v58 = vld [vmem:[#allocation2 + $0x88] sm:$0xff]
  %v59 = vld [vmem:[%s0] sm:$0xf]
  %v60 = vld [vmem:[%s0 + $0x4] sm:$0xf]
  %v61 = vld [vmem:[%s0 + $0x8] sm:$0xf]
  %v62 = vld [vmem:[%s0 + $0xc] sm:$0xf]
  %v63 = vld [vmem:[%s0 + $0x10] sm:$0xf]
  %v64 = vld [vmem:[%s0 + $0x14] sm:$0xf]
  %v65 = vld [vmem:[%s0 + $0x18] sm:$0xf]
  %v66 = vld [vmem:[%s0 + $0x1c] sm:$0xf]
  %v67 = vld [vmem:[%s0 + $0x20] sm:$0xf]
  %v68 = vld [vmem:[%s0 + $0x24] sm:$0xf]
  %v69 = vld [vmem:[%s0 + $0x28] sm:$0xf]
  %v70 = vld [vmem:[%s0 + $0x2c] sm:$0xf]
  %v71 = vld [vmem:[%s0 + $0x30] sm:$0xf]
  %v72 = vld [vmem:[%s0 + $0x34] sm:$0xf]
  %v73 = vld [vmem:[%s0 + $0x38] sm:$0xf]
  %v74 = vld [vmem:[%s0 + $0x3c] sm:$0xf]
  %v75 = vld [vmem:[%s0 + $0x40] sm:$0xf]
  %v76 = vld [vmem:[%s0 + $0x44] sm:$0xf]
  %v77 = vld [vmem:[%s1] sm:$0xf]
  %v78 = vld [vmem:[%s1 + $0x4] sm:$0xf]
  %v79 = vld [vmem:[%s1 + $0x8] sm:$0xf]
  %v80 = vld [vmem:[%s1 + $0xc] sm:$0xf]
  %v99 = vunpack.c.l.b16 %v59
  %v100 = vunpack.c.l.b16 %v60
  %v101 = vunpack.c.l.b16 %v61
  %v102 = vunpack.c.l.b16 %v62
  %v103 = vunpack.c.l.b16 %v63
  %v104 = vunpack.c.l.b16 %v64
  %v105 = vunpack.c.l.b16 %v65
  %v106 = vunpack.c.l.b16 %v66
  %v107 = vunpack.c.l.b16 %v67
  %v108 = vunpack.c.l.b16 %v68
  %v109 = vunpack.c.l.b16 %v69
  %v110 = vunpack.c.l.b16 %v70
  %v111 = vunpack.c.l.b16 %v71
  %v112 = vunpack.c.l.b16 %v72
  %v113 = vunpack.c.l.b16 %v73
  %v114 = vunpack.c.l.b16 %v74
  %v115 = vunpack.c.l.b16 %v75
  %v116 = vunpack.c.l.b16 %v76
  %v117 = vpack.c.b16 %v100, %v99
  %v118 = vpack.c.b16 %v102, %v101
  %v119 = vpack.c.b16 %v104, %v103
  %v120 = vpack.c.b16 %v106, %v105
  %v121 = vpack.c.b16 %v108, %v107
  %v122 = vpack.c.b16 %v110, %v109
  %v123 = vpack.c.b16 %v112, %v111
  %v124 = vpack.c.b16 %v114, %v113
  %v125 = vpack.c.b16 %v116, %v115
  %v130 = vunpack.c.l.b16 %v77
  %v131 = vunpack.c.l.b16 %v78
  %v132 = vunpack.c.l.b16 %v79
  %v133 = vunpack.c.l.b16 %v80
  %v134 = vpack.c.b16 %v131, %v130
  %v135 = vpack.c.b16 %v133, %v132
  %vm138 = vcmask 261120
  %v140 = vsel %vm138, %v117, 0
  %v143 = vsel %vm138, %v118, 0
  %v146 = vsel %vm138, %v119, 0
  %v149 = vsel %vm138, %v120, 0
  %v152 = vsel %vm138, %v121, 0
  %v155 = vsel %vm138, %v122, 0
  %v158 = vsel %vm138, %v123, 0
  %v161 = vsel %vm138, %v124, 0
  %v164 = vsel %vm138, %v125, 0
  %166 = vmatprep.subr.bf16.mxu0 0
  %167 = vmatpush1.bf16.msra.mxu0 %v134
  %168 = vmatprep.subr.bf16.mxu0 0
  %169 = vmatpush1.bf16.msra.mxu0 %v135
  %170 = vmatprep.subr.bf16.mxu0 0
  %171 = vmatpush1.bf16.msra.mxu0 0
  %172 = vmatprep.subr.bf16.mxu0 0
  %173 = vmatpush1.bf16.msra.mxu0 0
  %174 = vmatprep.subr.bf16.mxu0 0
  %175 = vmatpush1.bf16.msra.mxu0 0
  %176 = vmatprep.subr.bf16.mxu0 0
  %177 = vmatpush1.bf16.msra.mxu0 0
  %178 = vmatprep.subr.bf16.mxu0 0
  %179 = vmatpush1.bf16.msra.mxu0 0
  %180 = vmatprep.subr.bf16.mxu0 0
  %181 = vmatpush1.bf16.msra.mxu0 0
  %182 = vmatprep.subr.bf16.mxu0 0
  %183 = vmatpush1.bf16.msra.mxu0 0
  %184 = vmatprep.subr.bf16.mxu0 0
  %185 = vmatpush1.bf16.msra.mxu0 0
  %186 = vmatprep.subr.bf16.mxu0 0
  %187 = vmatpush1.bf16.msra.mxu0 0
  %188 = vmatprep.subr.bf16.mxu0 0
  %189 = vmatpush1.bf16.msra.mxu0 0
  %190 = vmatprep.subr.bf16.mxu0 0
  %191 = vmatpush1.bf16.msra.mxu0 0
  %192 = vmatprep.subr.bf16.mxu0 0
  %193 = vmatpush1.bf16.msra.mxu0 0
  %194 = vmatprep.subr.bf16.mxu0 0
  %195 = vmatpush1.bf16.msra.mxu0 0
  %196 = vmatprep.subr.bf16.mxu0 0
  %197 = vmatpush1.bf16.msra.mxu0 0
  %198 = vmatprep.mubr.bf16.mxu0 0
  %199 = vmatmul.mubr.bf16.gmra.mrb[0].mxu0 %v140
  %v200 = vpop.f32.mrb[0].mxu0
  %v201 = vadd.f32 0.0, %v200
  %v202 = vpop.f32.mrb[0].mxu0
  %v203 = vpop.f32.mrb[0].mxu0
  %v204 = vadd.f32 0.0, %v203
  %v205 = vpop.f32.mrb[0].mxu0
  %206 = vmatprep.mubr.bf16.mxu0 0
  %207 = vmatmul.mubr.bf16.gmra.mrb[0].mxu0 %v143
  %v208 = vpop.f32.mrb[0].mxu0
  %v209 = vadd.f32 0.0, %v208
  %v210 = vpop.f32.mrb[0].mxu0
  %v211 = vpop.f32.mrb[0].mxu0
  %v212 = vadd.f32 0.0, %v211
  %v213 = vpop.f32.mrb[0].mxu0
  %214 = vmatprep.mubr.bf16.mxu0 0
  %215 = vmatmul.mubr.bf16.gmra.mrb[0].mxu0 %v146
  %v216 = vpop.f32.mrb[0].mxu0
  %v217 = vadd.f32 0.0, %v216
  %v218 = vpop.f32.mrb[0].mxu0
  %v219 = vpop.f32.mrb[0].mxu0
  %v220 = vadd.f32 0.0, %v219
  %v221 = vpop.f32.mrb[0].mxu0
  %222 = vmatprep.mubr.bf16.mxu0 0
  %223 = vmatmul.mubr.bf16.gmra.mrb[0].mxu0 %v149
  %v224 = vpop.f32.mrb[0].mxu0
  %v225 = vadd.f32 0.0, %v224
  %v226 = vpop.f32.mrb[0].mxu0
  %v227 = vpop.f32.mrb[0].mxu0
  %v228 = vadd.f32 0.0, %v227
  %v229 = vpop.f32.mrb[0].mxu0
  %230 = vmatprep.mubr.bf16.mxu0 0
  %231 = vmatmul.mubr.bf16.gmra.mrb[0].mxu0 %v152
  %v232 = vpop.f32.mrb[0].mxu0
  %v233 = vadd.f32 0.0, %v232
  %v234 = vpop.f32.mrb[0].mxu0
  %v235 = vpop.f32.mrb[0].mxu0
  %v236 = vadd.f32 0.0, %v235
  %v237 = vpop.f32.mrb[0].mxu0
  %238 = vmatprep.mubr.bf16.mxu0 0
  %239 = vmatmul.mubr.bf16.gmra.mrb[0].mxu0 %v155
  %v240 = vpop.f32.mrb[0].mxu0
  %v241 = vadd.f32 0.0, %v240
  %v242 = vpop.f32.mrb[0].mxu0
  %v243 = vpop.f32.mrb[0].mxu0
  %v244 = vadd.f32 0.0, %v243
  %v245 = vpop.f32.mrb[0].mxu0
  %246 = vmatprep.mubr.bf16.mxu0 0
  %247 = vmatmul.mubr.bf16.gmra.mrb[0].mxu0 %v158
  %v248 = vpop.f32.mrb[0].mxu0
  %v249 = vadd.f32 0.0, %v248
  %v250 = vpop.f32.mrb[0].mxu0
  %v251 = vpop.f32.mrb[0].mxu0
  %v252 = vadd.f32 0.0, %v251
  %v253 = vpop.f32.mrb[0].mxu0
  %254 = vmatprep.mubr.bf16.mxu0 0
  %255 = vmatmul.mubr.bf16.gmra.mrb[0].mxu0 %v161
  %v256 = vpop.f32.mrb[0].mxu0
  %v257 = vadd.f32 0.0, %v256
  %v258 = vpop.f32.mrb[0].mxu0
  %v259 = vpop.f32.mrb[0].mxu0
  %v260 = vadd.f32 0.0, %v259
  %v261 = vpop.f32.mrb[0].mxu0
  %262 = vmatprep.mubr.bf16.mxu0 0
  %263 = vmatmul.mubr.bf16.gmra.mrb[0].mxu0 %v164
  %v264 = vpop.f32.mrb[0].mxu0
  %v265 = vadd.f32 0.0, %v264
  %v266 = vpop.f32.mrb[0].mxu0
  %v267 = vpop.f32.mrb[0].mxu0
  %v268 = vadd.f32 0.0, %v267
  %v269 = vpop.f32.mrb[0].mxu0
  %270 = vdwg.mxu0
  %v271 = vadd.f32 %v41, %v201
  %v272 = vadd.f32 %v42, %v204
  %v273 = vadd.f32 %v43, %v209
  %v274 = vadd.f32 %v44, %v212
  %v275 = vadd.f32 %v45, %v217
  %v276 = vadd.f32 %v46, %v220
  %v277 = vadd.f32 %v47, %v225
  %v278 = vadd.f32 %v48, %v228
  %v279 = vadd.f32 %v49, %v233
  %v280 = vadd.f32 %v50, %v236
  %v281 = vadd.f32 %v51, %v241
  %v282 = vadd.f32 %v52, %v244
  %v283 = vadd.f32 %v53, %v249
  %v284 = vadd.f32 %v54, %v252
  %v285 = vadd.f32 %v55, %v257
  %v286 = vadd.f32 %v56, %v260
  %v287 = vadd.f32 %v57, %v265
  %v288 = vadd.f32 %v58, %v268
  %289 = vst.msk [vmem:[#allocation2] sm:$0xff] %vm138, %v271
  %290 = vst.msk [vmem:[#allocation2 + $0x8] sm:$0xff] %vm138, %v272
  %291 = vst.msk [vmem:[#allocation2 + $0x10] sm:$0xff] %vm138, %v273
  %292 = vst.msk [vmem:[#allocation2 + $0x18] sm:$0xff] %vm138, %v274
  %293 = vst.msk [vmem:[#allocation2 + $0x20] sm:$0xff] %vm138, %v275
  %294 = vst.msk [vmem:[#allocation2 + $0x28] sm:$0xff] %vm138, %v276
  %295 = vst.msk [vmem:[#allocation2 + $0x30] sm:$0xff] %vm138, %v277
  %296 = vst.msk [vmem:[#allocation2 + $0x38] sm:$0xff] %vm138, %v278
  %297 = vst.msk [vmem:[#allocation2 + $0x40] sm:$0xff] %vm138, %v279
  %298 = vst.msk [vmem:[#allocation2 + $0x48] sm:$0xff] %vm138, %v280
  %299 = vst.msk [vmem:[#allocation2 + $0x50] sm:$0xff] %vm138, %v281
  %300 = vst.msk [vmem:[#allocation2 + $0x58] sm:$0xff] %vm138, %v282
  %301 = vst.msk [vmem:[#allocation2 + $0x60] sm:$0xff] %vm138, %v283
  %302 = vst.msk [vmem:[#allocation2 + $0x68] sm:$0xff] %vm138, %v284
  %303 = vst.msk [vmem:[#allocation2 + $0x70] sm:$0xff] %vm138, %v285
  %304 = vst.msk [vmem:[#allocation2 + $0x78] sm:$0xff] %vm138, %v286
  %305 = vst.msk [vmem:[#allocation2 + $0x80] sm:$0xff] %vm138, %v287
  %306 = vst.msk [vmem:[#allocation2 + $0x88] sm:$0xff] %vm138, %v288
  // Predicated region
  $region22: #{_lambda_.25} parent=0 // pred_check
    %p307 = pneg %p18
  $region23: #{_lambda_.25} parent=0 // pred_check_branch
    %309 = sbr.rel (%p307) target = $region25
  $region24: #{_lambda_.25} parent=0 // pred_region
    %v310 = vld [vmem:[#allocation2] sm:$0xff]
    %v311 = vld [vmem:[#allocation2 + $0x8] sm:$0xff]
    %v312 = vld [vmem:[#allocation2 + $0x10] sm:$0xff]
    %v313 = vld [vmem:[#allocation2 + $0x18] sm:$0xff]
    %v314 = vld [vmem:[#allocation2 + $0x20] sm:$0xff]
    %v315 = vld [vmem:[#allocation2 + $0x28] sm:$0xff]
    %v316 = vld [vmem:[#allocation2 + $0x30] sm:$0xff]
    %v317 = vld [vmem:[#allocation2 + $0x38] sm:$0xff]
    %v318 = vld [vmem:[#allocation2 + $0x40] sm:$0xff]
    %v319 = vld [vmem:[#allocation2 + $0x48] sm:$0xff]
    %v320 = vld [vmem:[#allocation2 + $0x50] sm:$0xff]
    %v321 = vld [vmem:[#allocation2 + $0x58] sm:$0xff]
    %v322 = vld [vmem:[#allocation2 + $0x60] sm:$0xff]
    %v323 = vld [vmem:[#allocation2 + $0x68] sm:$0xff]
    %v324 = vld [vmem:[#allocation2 + $0x70] sm:$0xff]
    %v325 = vld [vmem:[#allocation2 + $0x78] sm:$0xff]
    %v326 = vld [vmem:[#allocation2 + $0x80] sm:$0xff]
    %v327 = vld [vmem:[#allocation2 + $0x88] sm:$0xff]
    %v328 = vld [vmem:[%s2] sm:$0x1]
    %v330 = vlaneseq
    %v331 = vshrl.u32 %v330, 7
    %v332 = vsub.s32 0, %v331
    %v333 = vrot.slane %v328, %v332
    %v335 = vadd.f32 %v310, %v333
    %v336 = vadd.f32 %v311, %v333
    %v337 = vadd.f32 %v312, %v333
    %v338 = vadd.f32 %v313, %v333
    %v339 = vadd.f32 %v314, %v333
    %v340 = vadd.f32 %v315, %v333
    %v341 = vadd.f32 %v316, %v333
    %v342 = vadd.f32 %v317, %v333
    %v343 = vadd.f32 %v318, %v333
    %v344 = vadd.f32 %v319, %v333
    %v345 = vadd.f32 %v320, %v333
    %v346 = vadd.f32 %v321, %v333
    %v347 = vadd.f32 %v322, %v333
    %v348 = vadd.f32 %v323, %v333
    %v349 = vadd.f32 %v324, %v333
    %v350 = vadd.f32 %v325, %v333
    %v351 = vadd.f32 %v326, %v333
    %v352 = vadd.f32 %v327, %v333
    %v353 = vld [vmem:[%s3] sm:$0xf]
    %v354 = vld [vmem:[%s3 + $0x4] sm:$0xf]
    %v355 = vld [vmem:[%s3 + $0x8] sm:$0xf]
    %v356 = vld [vmem:[%s3 + $0xc] sm:$0xf]
    %v357 = vld [vmem:[%s3 + $0x10] sm:$0xf]
    %v358 = vld [vmem:[%s3 + $0x14] sm:$0xf]
    %v359 = vld [vmem:[%s3 + $0x18] sm:$0xf]
    %v360 = vld [vmem:[%s3 + $0x1c] sm:$0xf]
    %v361 = vld [vmem:[%s3 + $0x20] sm:$0xf]
    %v362 = vld [vmem:[%s3 + $0x24] sm:$0xf]
    %v363 = vld [vmem:[%s3 + $0x28] sm:$0xf]
    %v364 = vld [vmem:[%s3 + $0x2c] sm:$0xf]
    %v365 = vld [vmem:[%s3 + $0x30] sm:$0xf]
    %v366 = vld [vmem:[%s3 + $0x34] sm:$0xf]
    %v367 = vld [vmem:[%s3 + $0x38] sm:$0xf]
    %v368 = vld [vmem:[%s3 + $0x3c] sm:$0xf]
    %v369 = vld [vmem:[%s3 + $0x40] sm:$0xf]
    %v370 = vld [vmem:[%s3 + $0x44] sm:$0xf]
    %v371 = vunpack.c.l.bf16 %v353
    %v372 = vunpack.c.l.bf16 %v354
    %v373 = vunpack.c.l.bf16 %v355
    %v374 = vunpack.c.l.bf16 %v356
    %v375 = vunpack.c.l.bf16 %v357
    %v376 = vunpack.c.l.bf16 %v358
    %v377 = vunpack.c.l.bf16 %v359
    %v378 = vunpack.c.l.bf16 %v360
    %v379 = vunpack.c.l.bf16 %v361
    %v380 = vunpack.c.l.bf16 %v362
    %v381 = vunpack.c.l.bf16 %v363
    %v382 = vunpack.c.l.bf16 %v364
    %v383 = vunpack.c.l.bf16 %v365
    %v384 = vunpack.c.l.bf16 %v366
    %v385 = vunpack.c.l.bf16 %v367
    %v386 = vunpack.c.l.bf16 %v368
    %v387 = vunpack.c.l.bf16 %v369
    %v388 = vunpack.c.l.bf16 %v370
    %v389 = vadd.f32 %v335, %v371
    %v390 = vadd.f32 %v336, %v372
    %v391 = vadd.f32 %v337, %v373
    %v392 = vadd.f32 %v338, %v374
    %v393 = vadd.f32 %v339, %v375
    %v394 = vadd.f32 %v340, %v376
    %v395 = vadd.f32 %v341, %v377
    %v396 = vadd.f32 %v342, %v378
    %v397 = vadd.f32 %v343, %v379
    %v398 = vadd.f32 %v344, %v380
    %v399 = vadd.f32 %v345, %v381
    %v400 = vadd.f32 %v346, %v382
    %v401 = vadd.f32 %v347, %v383
    %v402 = vadd.f32 %v348, %v384
    %v403 = vadd.f32 %v349, %v385
    %v404 = vadd.f32 %v350, %v386
    %v405 = vadd.f32 %v351, %v387
    %v406 = vadd.f32 %v352, %v388
    %v407 = vpack.c.bf16 %v390, %v389
    %v408 = vpack.c.bf16 %v392, %v391
    %v409 = vpack.c.bf16 %v394, %v393
    %v410 = vpack.c.bf16 %v396, %v395
    %v411 = vpack.c.bf16 %v398, %v397
    %v412 = vpack.c.bf16 %v400, %v399
    %v413 = vpack.c.bf16 %v402, %v401
    %v414 = vpack.c.bf16 %v404, %v403
    %v415 = vpack.c.bf16 %v406, %v405
    %v425 = vunpack.c.l.b16 %v407
    %v426 = vunpack.c.h.b16 %v407
    %v427 = vunpack.c.l.b16 %v408
    %v428 = vunpack.c.h.b16 %v408
    %v429 = vunpack.c.l.b16 %v409
    %v430 = vunpack.c.h.b16 %v409
    %v431 = vunpack.c.l.b16 %v410
    %v432 = vunpack.c.h.b16 %v410
    %v433 = vunpack.c.l.b16 %v411
    %v434 = vunpack.c.h.b16 %v411
    %v435 = vunpack.c.l.b16 %v412
    %v436 = vunpack.c.h.b16 %v412
    %v437 = vunpack.c.l.b16 %v413
    %v438 = vunpack.c.h.b16 %v413
    %v439 = vunpack.c.l.b16 %v414
    %v440 = vunpack.c.h.b16 %v414
    %v441 = vunpack.c.l.b16 %v415
    %v442 = vunpack.c.h.b16 %v415
    %v443 = vpack.c.b16 %v425, %v425
    %v444 = vpack.c.b16 %v426, %v426
    %v445 = vpack.c.b16 %v427, %v427
    %v446 = vpack.c.b16 %v428, %v428
    %v447 = vpack.c.b16 %v429, %v429
    %v448 = vpack.c.b16 %v430, %v430
    %v449 = vpack.c.b16 %v431, %v431
    %v450 = vpack.c.b16 %v432, %v432
    %v451 = vpack.c.b16 %v433, %v433
    %v452 = vpack.c.b16 %v434, %v434
    %v453 = vpack.c.b16 %v435, %v435
    %v454 = vpack.c.b16 %v436, %v436
    %v455 = vpack.c.b16 %v437, %v437
    %v456 = vpack.c.b16 %v438, %v438
    %v457 = vpack.c.b16 %v439, %v439
    %v458 = vpack.c.b16 %v440, %v440
    %v459 = vpack.c.b16 %v441, %v441
    %v460 = vpack.c.b16 %v442, %v442
    %vm479 = vcmask 257024
    %480 = vst.msk [vmem:[%s4] sm:$0xf] %vm479, %v443
    %481 = vst.msk [vmem:[%s4 + $0x4] sm:$0xf] %vm479, %v444
    %482 = vst.msk [vmem:[%s4 + $0x8] sm:$0xf] %vm479, %v445
    %483 = vst.msk [vmem:[%s4 + $0xc] sm:$0xf] %vm479, %v446
    %484 = vst.msk [vmem:[%s4 + $0x10] sm:$0xf] %vm479, %v447
    %485 = vst.msk [vmem:[%s4 + $0x14] sm:$0xf] %vm479, %v448
    %486 = vst.msk [vmem:[%s4 + $0x18] sm:$0xf] %vm479, %v449
    %487 = vst.msk [vmem:[%s4 + $0x1c] sm:$0xf] %vm479, %v450
    %488 = vst.msk [vmem:[%s4 + $0x20] sm:$0xf] %vm479, %v451
    %489 = vst.msk [vmem:[%s4 + $0x24] sm:$0xf] %vm479, %v452
    %490 = vst.msk [vmem:[%s4 + $0x28] sm:$0xf] %vm479, %v453
    %491 = vst.msk [vmem:[%s4 + $0x2c] sm:$0xf] %vm479, %v454
    %492 = vst.msk [vmem:[%s4 + $0x30] sm:$0xf] %vm479, %v455
    %493 = vst.msk [vmem:[%s4 + $0x34] sm:$0xf] %vm479, %v456
    %494 = vst.msk [vmem:[%s4 + $0x38] sm:$0xf] %vm479, %v457
    %495 = vst.msk [vmem:[%s4 + $0x3c] sm:$0xf] %vm479, %v458
    %496 = vst.msk [vmem:[%s4 + $0x40] sm:$0xf] %vm479, %v459
    %497 = vst.msk [vmem:[%s4 + $0x44] sm:$0xf] %vm479, %v460
  $region25: #{_lambda_.25} parent=0 // pred_fallthru
    _
  // Predicated region
  $region26: #{_lambda_.25} parent=0 // pred_check
    _
  $region27: #{_lambda_.25} parent=0 // pred_check_branch
    %499 = sbr.rel (0) target = $region29
  $region28: #{_lambda_.25} parent=0 // pred_region
    _
  $region29: #{_lambda_.25} parent=0 // pred_fallthru
    _
  // Predicated region
  $region30: #{_lambda_.25} parent=0 // pred_check
    _
  $region31: #{_lambda_.25} parent=0 // pred_check_branch
    %501 = sbr.rel (0) target = $region33
  $region32: #{_lambda_.25} parent=0 // pred_region
    _
  $region33: #{_lambda_.25} parent=0 // pred_fallthru
    _

// kernel: _lambda_.26
$region0: #{_lambda_.26}
  #allocation0 [shape = 'u32[]', space=smem, size = 0x4, offset = 0x4, fixed_abs, tag = 'smem constant byte address 0x4 - core index']
  #allocation1 [shape = 'u32[144,128]{1,0:T(1,128)}', space=vmem, size = 0x12000, scoped, tag = 'internal scratch']
  #allocation2 [shape = 'bf16[144,32]{1,0:T(16,128)(2,1)}', space=vmem, size = 0x9000, scoped, tag = 'scratch operand']
  %s0 = inlined_call_operand.vmem [shape: bf16[144,32], index: 0, kind: input, shape index: {}]
  %s1 = inlined_call_operand.vmem [shape: f32[1,32], index: 1, kind: input, shape index: {}]
  %s2 = inlined_call_operand.vmem [shape: f32[1,32], index: 2, kind: input, shape index: {}]
  %s3 = inlined_call_operand.vmem [shape: bf16[32,128], index: 3, kind: input, shape index: {}]
  %s4 = inlined_call_operand.vmem [shape: f32[1,128], index: 4, kind: input, shape index: {}]
  %s5 = inlined_call_operand.vmem [shape: bf16[144,128], index: 5, kind: output, shape index: {}]
  %s6 = sld [smem:[#allocation0]]
  $region34: #{_lambda_.26} parent=0
    _
  %s8 = ssub.s32 1, %s6
  %s9 = scalar_select 0, %s8, %s6
  // Predicated region
  $region2: #{_lambda_.26} parent=0 // pred_check
    _
  $region3: #{_lambda_.26} parent=0 // pred_check_branch
    %11 = sbr.rel (0) target = $region5
  $region4: #{_lambda_.26} parent=0 // pred_region
    _
  $region5: #{_lambda_.26} parent=0 // pred_fallthru
    _
  // Predicated region
  $region6: #{_lambda_.26} parent=0 // pred_check
    _
  $region7: #{_lambda_.26} parent=0 // pred_check_branch
    %13 = sbr.rel (0) target = $region9
  $region8: #{_lambda_.26} parent=0 // pred_region
    _
  $region9: #{_lambda_.26} parent=0 // pred_fallthru
    _
  // Predicated region
  $region10: #{_lambda_.26} parent=0 // pred_check
    _
  $region11: #{_lambda_.26} parent=0 // pred_check_branch
    %15 = sbr.rel (0) target = $region13
  $region12: #{_lambda_.26} parent=0 // pred_region
    _
  $region13: #{_lambda_.26} parent=0 // pred_fallthru
    _
  // Predicated region
  $region14: #{_lambda_.26} parent=0 // pred_check
    _
  $region15: #{_lambda_.26} parent=0 // pred_check_branch
    %17 = sbr.rel (0) target = $region17
  $region16: #{_lambda_.26} parent=0 // pred_region
    _
  $region17: #{_lambda_.26} parent=0 // pred_fallthru
    _
  // Predicated region
  $region18: #{_lambda_.26} parent=0 // pred_check
    _
  $region19: #{_lambda_.26} parent=0 // pred_check_branch
    %19 = sbr.rel (0) target = $region21
  $region20: #{_lambda_.26} parent=0 // pred_region
    _
  $region21: #{_lambda_.26} parent=0 // pred_fallthru
    _
  %p21 = scmp.eq.s32.totalorder 0, 0
  // Predicated region
  $region22: #{_lambda_.26} parent=0 // pred_check
    %p22 = pneg %p21
  $region23: #{_lambda_.26} parent=0 // pred_check_branch
    %24 = sbr.rel (%p22) target = $region25
  $region24: #{_lambda_.26} parent=0 // pred_region
    %v25 = vld [vmem:[%s0] sm:$0xf]
    %v26 = vld [vmem:[%s0 + $0x4] sm:$0xf]
    %v27 = vld [vmem:[%s0 + $0x8] sm:$0xf]
    %v28 = vld [vmem:[%s0 + $0xc] sm:$0xf]
    %v29 = vld [vmem:[%s0 + $0x10] sm:$0xf]
    %v30 = vld [vmem:[%s0 + $0x14] sm:$0xf]
    %v31 = vld [vmem:[%s0 + $0x18] sm:$0xf]
    %v32 = vld [vmem:[%s0 + $0x1c] sm:$0xf]
    %v33 = vld [vmem:[%s0 + $0x20] sm:$0xf]
    %v34 = vld [vmem:[%s0 + $0x24] sm:$0xf]
    %v35 = vld [vmem:[%s0 + $0x28] sm:$0xf]
    %v36 = vld [vmem:[%s0 + $0x2c] sm:$0xf]
    %v37 = vld [vmem:[%s0 + $0x30] sm:$0xf]
    %v38 = vld [vmem:[%s0 + $0x34] sm:$0xf]
    %v39 = vld [vmem:[%s0 + $0x38] sm:$0xf]
    %v40 = vld [vmem:[%s0 + $0x3c] sm:$0xf]
    %v41 = vld [vmem:[%s0 + $0x40] sm:$0xf]
    %v42 = vld [vmem:[%s0 + $0x44] sm:$0xf]
    %v43 = vunpack.c.l.bf16 %v25
    %v44 = vunpack.c.l.bf16 %v26
    %v45 = vunpack.c.l.bf16 %v27
    %v46 = vunpack.c.l.bf16 %v28
    %v47 = vunpack.c.l.bf16 %v29
    %v48 = vunpack.c.l.bf16 %v30
    %v49 = vunpack.c.l.bf16 %v31
    %v50 = vunpack.c.l.bf16 %v32
    %v51 = vunpack.c.l.bf16 %v33
    %v52 = vunpack.c.l.bf16 %v34
    %v53 = vunpack.c.l.bf16 %v35
    %v54 = vunpack.c.l.bf16 %v36
    %v55 = vunpack.c.l.bf16 %v37
    %v56 = vunpack.c.l.bf16 %v38
    %v57 = vunpack.c.l.bf16 %v39
    %v58 = vunpack.c.l.bf16 %v40
    %v59 = vunpack.c.l.bf16 %v41
    %v60 = vunpack.c.l.bf16 %v42
    %vm61 = vcmask 261120
    %v62 = vsel %vm61, %v43, 0.0
    %63 = vadd.xlane.f32.xlu0 %v62
    %v64 = vpop.xlane.xlu0 %63
    %v65 = vsel %vm61, %v44, 0.0
    %66 = vadd.xlane.f32.xlu0 %v65
    %v67 = vpop.xlane.xlu0 %66
    %v68 = vsel %vm61, %v45, 0.0
    %69 = vadd.xlane.f32.xlu0 %v68
    %v70 = vpop.xlane.xlu0 %69
    %v71 = vsel %vm61, %v46, 0.0
    %72 = vadd.xlane.f32.xlu0 %v71
    %v73 = vpop.xlane.xlu0 %72
    %v74 = vsel %vm61, %v47, 0.0
    %75 = vadd.xlane.f32.xlu0 %v74
    %v76 = vpop.xlane.xlu0 %75
    %v77 = vsel %vm61, %v48, 0.0
    %78 = vadd.xlane.f32.xlu0 %v77
    %v79 = vpop.xlane.xlu0 %78
    %v80 = vsel %vm61, %v49, 0.0
    %81 = vadd.xlane.f32.xlu0 %v80
    %v82 = vpop.xlane.xlu0 %81
    %v83 = vsel %vm61, %v50, 0.0
    %84 = vadd.xlane.f32.xlu0 %v83
    %v85 = vpop.xlane.xlu0 %84
    %v86 = vsel %vm61, %v51, 0.0
    %87 = vadd.xlane.f32.xlu0 %v86
    %v88 = vpop.xlane.xlu0 %87
    %v89 = vsel %vm61, %v52, 0.0
    %90 = vadd.xlane.f32.xlu0 %v89
    %v91 = vpop.xlane.xlu0 %90
    %v92 = vsel %vm61, %v53, 0.0
    %93 = vadd.xlane.f32.xlu0 %v92
    %v94 = vpop.xlane.xlu0 %93
    %v95 = vsel %vm61, %v54, 0.0
    %96 = vadd.xlane.f32.xlu0 %v95
    %v97 = vpop.xlane.xlu0 %96
    %v98 = vsel %vm61, %v55, 0.0
    %99 = vadd.xlane.f32.xlu0 %v98
    %v100 = vpop.xlane.xlu0 %99
    %v101 = vsel %vm61, %v56, 0.0
    %102 = vadd.xlane.f32.xlu0 %v101
    %v103 = vpop.xlane.xlu0 %102
    %v104 = vsel %vm61, %v57, 0.0
    %105 = vadd.xlane.f32.xlu0 %v104
    %v106 = vpop.xlane.xlu0 %105
    %v107 = vsel %vm61, %v58, 0.0
    %108 = vadd.xlane.f32.xlu0 %v107
    %v109 = vpop.xlane.xlu0 %108
    %v110 = vsel %vm61, %v59, 0.0
    %111 = vadd.xlane.f32.xlu0 %v110
    %v112 = vpop.xlane.xlu0 %111
    %v113 = vsel %vm61, %v60, 0.0
    %114 = vadd.xlane.f32.xlu0 %v113
    %v115 = vpop.xlane.xlu0 %114
    %v116 = vrcp.pop 32.0
    %v117 = vmul.f32 %v64, %v116
    %v118 = vmul.f32 %v67, %v116
    %v119 = vmul.f32 %v70, %v116
    %v120 = vmul.f32 %v73, %v116
    %v121 = vmul.f32 %v76, %v116
    %v122 = vmul.f32 %v79, %v116
    %v123 = vmul.f32 %v82, %v116
    %v124 = vmul.f32 %v85, %v116
    %v125 = vmul.f32 %v88, %v116
    %v126 = vmul.f32 %v91, %v116
    %v127 = vmul.f32 %v94, %v116
    %v128 = vmul.f32 %v97, %v116
    %v129 = vmul.f32 %v100, %v116
    %v130 = vmul.f32 %v103, %v116
    %v131 = vmul.f32 %v106, %v116
    %v132 = vmul.f32 %v109, %v116
    %v133 = vmul.f32 %v112, %v116
    %v134 = vmul.f32 %v115, %v116
    %v135 = vsub.f32 %v43, %v117
    %v136 = vsub.f32 %v44, %v118
    %v137 = vsub.f32 %v45, %v119
    %v138 = vsub.f32 %v46, %v120
    %v139 = vsub.f32 %v47, %v121
    %v140 = vsub.f32 %v48, %v122
    %v141 = vsub.f32 %v49, %v123
    %v142 = vsub.f32 %v50, %v124
    %v143 = vsub.f32 %v51, %v125
    %v144 = vsub.f32 %v52, %v126
    %v145 = vsub.f32 %v53, %v127
    %v146 = vsub.f32 %v54, %v128
    %v147 = vsub.f32 %v55, %v129
    %v148 = vsub.f32 %v56, %v130
    %v149 = vsub.f32 %v57, %v131
    %v150 = vsub.f32 %v58, %v132
    %v151 = vsub.f32 %v59, %v133
    %v152 = vsub.f32 %v60, %v134
    %v153 = vmul.f32 %v135, %v135
    %v154 = vmul.f32 %v136, %v136
    %v155 = vmul.f32 %v137, %v137
    %v156 = vmul.f32 %v138, %v138
    %v157 = vmul.f32 %v139, %v139
    %v158 = vmul.f32 %v140, %v140
    %v159 = vmul.f32 %v141, %v141
    %v160 = vmul.f32 %v142, %v142
    %v161 = vmul.f32 %v143, %v143
    %v162 = vmul.f32 %v144, %v144
    %v163 = vmul.f32 %v145, %v145
    %v164 = vmul.f32 %v146, %v146
    %v165 = vmul.f32 %v147, %v147
    %v166 = vmul.f32 %v148, %v148
    %v167 = vmul.f32 %v149, %v149
    %v168 = vmul.f32 %v150, %v150
    %v169 = vmul.f32 %v151, %v151
    %v170 = vmul.f32 %v152, %v152
    %v171 = vsel %vm61, %v153, 0.0
    %172 = vadd.xlane.f32.xlu0 %v171
    %v173 = vpop.xlane.xlu0 %172
    %v174 = vsel %vm61, %v154, 0.0
    %175 = vadd.xlane.f32.xlu0 %v174
    %v176 = vpop.xlane.xlu0 %175
    %v177 = vsel %vm61, %v155, 0.0
    %178 = vadd.xlane.f32.xlu0 %v177
    %v179 = vpop.xlane.xlu0 %178
    %v180 = vsel %vm61, %v156, 0.0
    %181 = vadd.xlane.f32.xlu0 %v180
    %v182 = vpop.xlane.xlu0 %181
    %v183 = vsel %vm61, %v157, 0.0
    %184 = vadd.xlane.f32.xlu0 %v183
    %v185 = vpop.xlane.xlu0 %184
    %v186 = vsel %vm61, %v158, 0.0
    %187 = vadd.xlane.f32.xlu0 %v186
    %v188 = vpop.xlane.xlu0 %187
    %v189 = vsel %vm61, %v159, 0.0
    %190 = vadd.xlane.f32.xlu0 %v189
    %v191 = vpop.xlane.xlu0 %190
    %v192 = vsel %vm61, %v160, 0.0
    %193 = vadd.xlane.f32.xlu0 %v192
    %v194 = vpop.xlane.xlu0 %193
    %v195 = vsel %vm61, %v161, 0.0
    %196 = vadd.xlane.f32.xlu0 %v195
    %v197 = vpop.xlane.xlu0 %196
    %v198 = vsel %vm61, %v162, 0.0
    %199 = vadd.xlane.f32.xlu0 %v198
    %v200 = vpop.xlane.xlu0 %199
    %v201 = vsel %vm61, %v163, 0.0
    %202 = vadd.xlane.f32.xlu0 %v201
    %v203 = vpop.xlane.xlu0 %202
    %v204 = vsel %vm61, %v164, 0.0
    %205 = vadd.xlane.f32.xlu0 %v204
    %v206 = vpop.xlane.xlu0 %205
    %v207 = vsel %vm61, %v165, 0.0
    %208 = vadd.xlane.f32.xlu0 %v207
    %v209 = vpop.xlane.xlu0 %208
    %v210 = vsel %vm61, %v166, 0.0
    %211 = vadd.xlane.f32.xlu0 %v210
    %v212 = vpop.xlane.xlu0 %211
    %v213 = vsel %vm61, %v167, 0.0
    %214 = vadd.xlane.f32.xlu0 %v213
    %v215 = vpop.xlane.xlu0 %214
    %v216 = vsel %vm61, %v168, 0.0
    %217 = vadd.xlane.f32.xlu0 %v216
    %v218 = vpop.xlane.xlu0 %217
    %v219 = vsel %vm61, %v169, 0.0
    %220 = vadd.xlane.f32.xlu0 %v219
    %v221 = vpop.xlane.xlu0 %220
    %v222 = vsel %vm61, %v170, 0.0
    %223 = vadd.xlane.f32.xlu0 %v222
    %v224 = vpop.xlane.xlu0 %223
    %v225 = vmul.f32 %v173, %v116
    %v226 = vmul.f32 %v176, %v116
    %v227 = vmul.f32 %v179, %v116
    %v228 = vmul.f32 %v182, %v116
    %v229 = vmul.f32 %v185, %v116
    %v230 = vmul.f32 %v188, %v116
    %v231 = vmul.f32 %v191, %v116
    %v232 = vmul.f32 %v194, %v116
    %v233 = vmul.f32 %v197, %v116
    %v234 = vmul.f32 %v200, %v116
    %v235 = vmul.f32 %v203, %v116
    %v236 = vmul.f32 %v206, %v116
    %v237 = vmul.f32 %v209, %v116
    %v238 = vmul.f32 %v212, %v116
    %v239 = vmul.f32 %v215, %v116
    %v240 = vmul.f32 %v218, %v116
    %v241 = vmul.f32 %v221, %v116
    %v242 = vmul.f32 %v224, %v116
    %v243 = vadd.f32 %v225, 1e-05
    %v244 = vadd.f32 %v226, 1e-05
    %v245 = vadd.f32 %v227, 1e-05
    %v246 = vadd.f32 %v228, 1e-05
    %v247 = vadd.f32 %v229, 1e-05
    %v248 = vadd.f32 %v230, 1e-05
    %v249 = vadd.f32 %v231, 1e-05
    %v250 = vadd.f32 %v232, 1e-05
    %v251 = vadd.f32 %v233, 1e-05
    %v252 = vadd.f32 %v234, 1e-05
    %v253 = vadd.f32 %v235, 1e-05
    %v254 = vadd.f32 %v236, 1e-05
    %v255 = vadd.f32 %v237, 1e-05
    %v256 = vadd.f32 %v238, 1e-05
    %v257 = vadd.f32 %v239, 1e-05
    %v258 = vadd.f32 %v240, 1e-05
    %v259 = vadd.f32 %v241, 1e-05
    %v260 = vadd.f32 %v242, 1e-05
    %v261 = vrsqrt.pop %v243
    %v262 = vrsqrt.pop %v244
    %v263 = vrsqrt.pop %v245
    %v264 = vrsqrt.pop %v246
    %v265 = vrsqrt.pop %v247
    %v266 = vrsqrt.pop %v248
    %v267 = vrsqrt.pop %v249
    %v268 = vrsqrt.pop %v250
    %v269 = vrsqrt.pop %v251
    %v270 = vrsqrt.pop %v252
    %v271 = vrsqrt.pop %v253
    %v272 = vrsqrt.pop %v254
    %v273 = vrsqrt.pop %v255
    %v274 = vrsqrt.pop %v256
    %v275 = vrsqrt.pop %v257
    %v276 = vrsqrt.pop %v258
    %v277 = vrsqrt.pop %v259
    %v278 = vrsqrt.pop %v260
    %v279 = vmul.f32 %v135, %v261
    %v280 = vmul.f32 %v136, %v262
    %v281 = vmul.f32 %v137, %v263
    %v282 = vmul.f32 %v138, %v264
    %v283 = vmul.f32 %v139, %v265
    %v284 = vmul.f32 %v140, %v266
    %v285 = vmul.f32 %v141, %v267
    %v286 = vmul.f32 %v142, %v268
    %v287 = vmul.f32 %v143, %v269
    %v288 = vmul.f32 %v144, %v270
    %v289 = vmul.f32 %v145, %v271
    %v290 = vmul.f32 %v146, %v272
    %v291 = vmul.f32 %v147, %v273
    %v292 = vmul.f32 %v148, %v274
    %v293 = vmul.f32 %v149, %v275
    %v294 = vmul.f32 %v150, %v276
    %v295 = vmul.f32 %v151, %v277
    %v296 = vmul.f32 %v152, %v278
    %v297 = vld [vmem:[%s1] sm:$0x1]
    %v299 = vlaneseq
    %v300 = vshrl.u32 %v299, 7
    %v301 = vsub.s32 0, %v300
    %v302 = vrot.slane %v297, %v301
    %v304 = vmul.f32 %v279, %v302
    %v305 = vmul.f32 %v280, %v302
    %v306 = vmul.f32 %v281, %v302
    %v307 = vmul.f32 %v282, %v302
    %v308 = vmul.f32 %v283, %v302
    %v309 = vmul.f32 %v284, %v302
    %v310 = vmul.f32 %v285, %v302
    %v311 = vmul.f32 %v286, %v302
    %v312 = vmul.f32 %v287, %v302
    %v313 = vmul.f32 %v288, %v302
    %v314 = vmul.f32 %v289, %v302
    %v315 = vmul.f32 %v290, %v302
    %v316 = vmul.f32 %v291, %v302
    %v317 = vmul.f32 %v292, %v302
    %v318 = vmul.f32 %v293, %v302
    %v319 = vmul.f32 %v294, %v302
    %v320 = vmul.f32 %v295, %v302
    %v321 = vmul.f32 %v296, %v302
    %v322 = vld [vmem:[%s2] sm:$0x1]
    %v324 = vlaneseq
    %v325 = vshrl.u32 %v324, 7
    %v326 = vsub.s32 0, %v325
    %v327 = vrot.slane %v322, %v326
    %v329 = vadd.f32 %v304, %v327
    %v330 = vadd.f32 %v305, %v327
    %v331 = vadd.f32 %v306, %v327
    %v332 = vadd.f32 %v307, %v327
    %v333 = vadd.f32 %v308, %v327
    %v334 = vadd.f32 %v309, %v327
    %v335 = vadd.f32 %v310, %v327
    %v336 = vadd.f32 %v311, %v327
    %v337 = vadd.f32 %v312, %v327
    %v338 = vadd.f32 %v313, %v327
    %v339 = vadd.f32 %v314, %v327
    %v340 = vadd.f32 %v315, %v327
    %v341 = vadd.f32 %v316, %v327
    %v342 = vadd.f32 %v317, %v327
    %v343 = vadd.f32 %v318, %v327
    %v344 = vadd.f32 %v319, %v327
    %v345 = vadd.f32 %v320, %v327
    %v346 = vadd.f32 %v321, %v327
    %v347 = vpack.c.bf16 %v330, %v329
    %v348 = vpack.c.bf16 %v332, %v331
    %v349 = vpack.c.bf16 %v334, %v333
    %v350 = vpack.c.bf16 %v336, %v335
    %v351 = vpack.c.bf16 %v338, %v337
    %v352 = vpack.c.bf16 %v340, %v339
    %v353 = vpack.c.bf16 %v342, %v341
    %v354 = vpack.c.bf16 %v344, %v343
    %v355 = vpack.c.bf16 %v346, %v345
    %356 = vst.msk [vmem:[#allocation2] sm:$0xff] %vm61, %v347
    %357 = vst.msk [vmem:[#allocation2 + $0x8] sm:$0xff] %vm61, %v348
    %358 = vst.msk [vmem:[#allocation2 + $0x10] sm:$0xff] %vm61, %v349
    %359 = vst.msk [vmem:[#allocation2 + $0x18] sm:$0xff] %vm61, %v350
    %360 = vst.msk [vmem:[#allocation2 + $0x20] sm:$0xff] %vm61, %v351
    %361 = vst.msk [vmem:[#allocation2 + $0x28] sm:$0xff] %vm61, %v352
    %362 = vst.msk [vmem:[#allocation2 + $0x30] sm:$0xff] %vm61, %v353
    %363 = vst.msk [vmem:[#allocation2 + $0x38] sm:$0xff] %vm61, %v354
    %364 = vst.msk [vmem:[#allocation2 + $0x40] sm:$0xff] %vm61, %v355
  $region25: #{_lambda_.26} parent=0 // pred_fallthru
    _
  %v365 = vld [vmem:[#allocation2] sm:$0xff]
  %v366 = vld [vmem:[#allocation2 + $0x8] sm:$0xff]
  %v367 = vld [vmem:[#allocation2 + $0x10] sm:$0xff]
  %v368 = vld [vmem:[#allocation2 + $0x18] sm:$0xff]
  %v369 = vld [vmem:[#allocation2 + $0x20] sm:$0xff]
  %v370 = vld [vmem:[#allocation2 + $0x28] sm:$0xff]
  %v371 = vld [vmem:[#allocation2 + $0x30] sm:$0xff]
  %v372 = vld [vmem:[#allocation2 + $0x38] sm:$0xff]
  %v373 = vld [vmem:[#allocation2 + $0x40] sm:$0xff]
  %v374 = vld [vmem:[%s3] sm:$0xf]
  %v375 = vld [vmem:[%s3 + $0x4] sm:$0xf]
  %v376 = vld [vmem:[%s3 + $0x8] sm:$0xf]
  %v377 = vld [vmem:[%s3 + $0xc] sm:$0xf]
  %v378 = vld [vmem:[%s4] sm:$0x1]
  %v380 = vlaneseq
  %v381 = vshrl.u32 %v380, 7
  %v382 = vsub.s32 0, %v381
  %v383 = vrot.slane %v378, %v382
  %v389 = vunpack.c.l.b16 %v374
  %v390 = vunpack.c.l.b16 %v375
  %v391 = vunpack.c.l.b16 %v376
  %v392 = vunpack.c.l.b16 %v377
  %v393 = vpack.c.b16 %v390, %v389
  %v394 = vpack.c.b16 %v392, %v391
  %vm397 = vcmask 261120
  %v399 = vsel %vm397, %v365, 0
  %v402 = vsel %vm397, %v366, 0
  %v405 = vsel %vm397, %v367, 0
  %v408 = vsel %vm397, %v368, 0
  %v411 = vsel %vm397, %v369, 0
  %v414 = vsel %vm397, %v370, 0
  %v417 = vsel %vm397, %v371, 0
  %v420 = vsel %vm397, %v372, 0
  %v423 = vsel %vm397, %v373, 0
  %425 = vmatprep.subr.bf16.mxu0 0
  %426 = vmatpush1.bf16.msra.mxu0 %v393
  %427 = vmatprep.subr.bf16.mxu0 0
  %428 = vmatpush1.bf16.msra.mxu0 %v394
  %429 = vmatprep.subr.bf16.mxu0 0
  %430 = vmatpush1.bf16.msra.mxu0 0
  %431 = vmatprep.subr.bf16.mxu0 0
  %432 = vmatpush1.bf16.msra.mxu0 0
  %433 = vmatprep.subr.bf16.mxu0 0
  %434 = vmatpush1.bf16.msra.mxu0 0
  %435 = vmatprep.subr.bf16.mxu0 0
  %436 = vmatpush1.bf16.msra.mxu0 0
  %437 = vmatprep.subr.bf16.mxu0 0
  %438 = vmatpush1.bf16.msra.mxu0 0
  %439 = vmatprep.subr.bf16.mxu0 0
  %440 = vmatpush1.bf16.msra.mxu0 0
  %441 = vmatprep.subr.bf16.mxu0 0
  %442 = vmatpush1.bf16.msra.mxu0 0
  %443 = vmatprep.subr.bf16.mxu0 0
  %444 = vmatpush1.bf16.msra.mxu0 0
  %445 = vmatprep.subr.bf16.mxu0 0
  %446 = vmatpush1.bf16.msra.mxu0 0
  %447 = vmatprep.subr.bf16.mxu0 0
  %448 = vmatpush1.bf16.msra.mxu0 0
  %449 = vmatprep.subr.bf16.mxu0 0
  %450 = vmatpush1.bf16.msra.mxu0 0
  %451 = vmatprep.subr.bf16.mxu0 0
  %452 = vmatpush1.bf16.msra.mxu0 0
  %453 = vmatprep.subr.bf16.mxu0 0
  %454 = vmatpush1.bf16.msra.mxu0 0
  %455 = vmatprep.subr.bf16.mxu0 0
  %456 = vmatpush1.bf16.msra.mxu0 0
  %457 = vmatprep.mubr.bf16.mxu0 0
  %458 = vmatmul.mubr.bf16.gmra.mrb[0].mxu0 %v399
  %v459 = vpop.f32.mrb[0].mxu0
  %v460 = vadd.f32 %v383, %v459
  %v461 = vpop.f32.mrb[0].mxu0
  %v462 = vpop.f32.mrb[0].mxu0
  %v463 = vadd.f32 %v383, %v462
  %v464 = vpop.f32.mrb[0].mxu0
  %465 = vmatprep.mubr.bf16.mxu0 0
  %466 = vmatmul.mubr.bf16.gmra.mrb[0].mxu0 %v402
  %v467 = vpop.f32.mrb[0].mxu0
  %v468 = vadd.f32 %v383, %v467
  %v469 = vpop.f32.mrb[0].mxu0
  %v470 = vpop.f32.mrb[0].mxu0
  %v471 = vadd.f32 %v383, %v470
  %v472 = vpop.f32.mrb[0].mxu0
  %473 = vmatprep.mubr.bf16.mxu0 0
  %474 = vmatmul.mubr.bf16.gmra.mrb[0].mxu0 %v405
  %v475 = vpop.f32.mrb[0].mxu0
  %v476 = vadd.f32 %v383, %v475
  %v477 = vpop.f32.mrb[0].mxu0
  %v478 = vpop.f32.mrb[0].mxu0
  %v479 = vadd.f32 %v383, %v478
  %v480 = vpop.f32.mrb[0].mxu0
  %481 = vmatprep.mubr.bf16.mxu0 0
  %482 = vmatmul.mubr.bf16.gmra.mrb[0].mxu0 %v408
  %v483 = vpop.f32.mrb[0].mxu0
  %v484 = vadd.f32 %v383, %v483
  %v485 = vpop.f32.mrb[0].mxu0
  %v486 = vpop.f32.mrb[0].mxu0
  %v487 = vadd.f32 %v383, %v486
  %v488 = vpop.f32.mrb[0].mxu0
  %489 = vmatprep.mubr.bf16.mxu0 0
  %490 = vmatmul.mubr.bf16.gmra.mrb[0].mxu0 %v411
  %v491 = vpop.f32.mrb[0].mxu0
  %v492 = vadd.f32 %v383, %v491
  %v493 = vpop.f32.mrb[0].mxu0
  %v494 = vpop.f32.mrb[0].mxu0
  %v495 = vadd.f32 %v383, %v494
  %v496 = vpop.f32.mrb[0].mxu0
  %497 = vmatprep.mubr.bf16.mxu0 0
  %498 = vmatmul.mubr.bf16.gmra.mrb[0].mxu0 %v414
  %v499 = vpop.f32.mrb[0].mxu0
  %v500 = vadd.f32 %v383, %v499
  %v501 = vpop.f32.mrb[0].mxu0
  %v502 = vpop.f32.mrb[0].mxu0
  %v503 = vadd.f32 %v383, %v502
  %v504 = vpop.f32.mrb[0].mxu0
  %505 = vmatprep.mubr.bf16.mxu0 0
  %506 = vmatmul.mubr.bf16.gmra.mrb[0].mxu0 %v417
  %v507 = vpop.f32.mrb[0].mxu0
  %v508 = vadd.f32 %v383, %v507
  %v509 = vpop.f32.mrb[0].mxu0
  %v510 = vpop.f32.mrb[0].mxu0
  %v511 = vadd.f32 %v383, %v510
  %v512 = vpop.f32.mrb[0].mxu0
  %513 = vmatprep.mubr.bf16.mxu0 0
  %514 = vmatmul.mubr.bf16.gmra.mrb[0].mxu0 %v420
  %v515 = vpop.f32.mrb[0].mxu0
  %v516 = vadd.f32 %v383, %v515
  %v517 = vpop.f32.mrb[0].mxu0
  %v518 = vpop.f32.mrb[0].mxu0
  %v519 = vadd.f32 %v383, %v518
  %v520 = vpop.f32.mrb[0].mxu0
  %521 = vmatprep.mubr.bf16.mxu0 0
  %522 = vmatmul.mubr.bf16.gmra.mrb[0].mxu0 %v423
  %v523 = vpop.f32.mrb[0].mxu0
  %v524 = vadd.f32 %v383, %v523
  %v525 = vpop.f32.mrb[0].mxu0
  %v526 = vpop.f32.mrb[0].mxu0
  %v527 = vadd.f32 %v383, %v526
  %v528 = vpop.f32.mrb[0].mxu0
  %529 = vdwg.mxu0
  %v530 = vmul.f32 %v460, 1.702
  %v531 = vmul.f32 %v463, 1.702
  %v532 = vmul.f32 %v468, 1.702
  %v533 = vmul.f32 %v471, 1.702
  %v534 = vmul.f32 %v476, 1.702
  %v535 = vmul.f32 %v479, 1.702
  %v536 = vmul.f32 %v484, 1.702
  %v537 = vmul.f32 %v487, 1.702
  %v538 = vmul.f32 %v492, 1.702
  %v539 = vmul.f32 %v495, 1.702
  %v540 = vmul.f32 %v500, 1.702
  %v541 = vmul.f32 %v503, 1.702
  %v542 = vmul.f32 %v508, 1.702
  %v543 = vmul.f32 %v511, 1.702
  %v544 = vmul.f32 %v516, 1.702
  %v545 = vmul.f32 %v519, 1.702
  %v546 = vmul.f32 %v524, 1.702
  %v547 = vmul.f32 %v527, 1.702
  %v548 = vxor.u32 %v530, 2147483648
  %v549 = vxor.u32 %v531, 2147483648
  %v550 = vxor.u32 %v532, 2147483648
  %v551 = vxor.u32 %v533, 2147483648
  %v552 = vxor.u32 %v534, 2147483648
  %v553 = vxor.u32 %v535, 2147483648
  %v554 = vxor.u32 %v536, 2147483648
  %v555 = vxor.u32 %v537, 2147483648
  %v556 = vxor.u32 %v538, 2147483648
  %v557 = vxor.u32 %v539, 2147483648
  %v558 = vxor.u32 %v540, 2147483648
  %v559 = vxor.u32 %v541, 2147483648
  %v560 = vxor.u32 %v542, 2147483648
  %v561 = vxor.u32 %v543, 2147483648
  %v562 = vxor.u32 %v544, 2147483648
  %v563 = vxor.u32 %v545, 2147483648
  %v564 = vxor.u32 %v546, 2147483648
  %v565 = vxor.u32 %v547, 2147483648
  %v566 = vmul.f32 %v548, 1.442695
  %v567 = vpow.pop %v566
  %v568 = vmul.f32 %v549, 1.442695
  %v569 = vpow.pop %v568
  %v570 = vmul.f32 %v550, 1.442695
  %v571 = vpow.pop %v570
  %v572 = vmul.f32 %v551, 1.442695
  %v573 = vpow.pop %v572
  %v574 = vmul.f32 %v552, 1.442695
  %v575 = vpow.pop %v574
  %v576 = vmul.f32 %v553, 1.442695
  %v577 = vpow.pop %v576
  %v578 = vmul.f32 %v554, 1.442695
  %v579 = vpow.pop %v578
  %v580 = vmul.f32 %v555, 1.442695
  %v581 = vpow.pop %v580
  %v582 = vmul.f32 %v556, 1.442695
  %v583 = vpow.pop %v582
  %v584 = vmul.f32 %v557, 1.442695
  %v585 = vpow.pop %v584
  %v586 = vmul.f32 %v558, 1.442695
  %v587 = vpow.pop %v586
  %v588 = vmul.f32 %v559, 1.442695
  %v589 = vpow.pop %v588
  %v590 = vmul.f32 %v560, 1.442695
  %v591 = vpow.pop %v590
  %v592 = vmul.f32 %v561, 1.442695
  %v593 = vpow.pop %v592
  %v594 = vmul.f32 %v562, 1.442695
  %v595 = vpow.pop %v594
  %v596 = vmul.f32 %v563, 1.442695
  %v597 = vpow.pop %v596
  %v598 = vmul.f32 %v564, 1.442695
  %v599 = vpow.pop %v598
  %v600 = vmul.f32 %v565, 1.442695
  %v601 = vpow.pop %v600
  %v602 = vadd.f32 %v567, 1.0
  %v603 = vadd.f32 %v569, 1.0
  %v604 = vadd.f32 %v571, 1.0
  %v605 = vadd.f32 %v573, 1.0
  %v606 = vadd.f32 %v575, 1.0
  %v607 = vadd.f32 %v577, 1.0
  %v608 = vadd.f32 %v579, 1.0
  %v609 = vadd.f32 %v581, 1.0
  %v610 = vadd.f32 %v583, 1.0
  %v611 = vadd.f32 %v585, 1.0
  %v612 = vadd.f32 %v587, 1.0
  %v613 = vadd.f32 %v589, 1.0
  %v614 = vadd.f32 %v591, 1.0
  %v615 = vadd.f32 %v593, 1.0
  %v616 = vadd.f32 %v595, 1.0
  %v617 = vadd.f32 %v597, 1.0
  %v618 = vadd.f32 %v599, 1.0
  %v619 = vadd.f32 %v601, 1.0
  %v620 = vrcp.pop %v602
  %v621 = vmul.f32 1.0, %v620
  %v622 = vrcp.pop %v603
  %v623 = vmul.f32 1.0, %v622
  %v624 = vrcp.pop %v604
  %v625 = vmul.f32 1.0, %v624
  %v626 = vrcp.pop %v605
  %v627 = vmul.f32 1.0, %v626
  %v628 = vrcp.pop %v606
  %v629 = vmul.f32 1.0, %v628
  %v630 = vrcp.pop %v607
  %v631 = vmul.f32 1.0, %v630
  %v632 = vrcp.pop %v608
  %v633 = vmul.f32 1.0, %v632
  %v634 = vrcp.pop %v609
  %v635 = vmul.f32 1.0, %v634
  %v636 = vrcp.pop %v610
  %v637 = vmul.f32 1.0, %v636
  %v638 = vrcp.pop %v611
  %v639 = vmul.f32 1.0, %v638
  %v640 = vrcp.pop %v612
  %v641 = vmul.f32 1.0, %v640
  %v642 = vrcp.pop %v613
  %v643 = vmul.f32 1.0, %v642
  %v644 = vrcp.pop %v614
  %v645 = vmul.f32 1.0, %v644
  %v646 = vrcp.pop %v615
  %v647 = vmul.f32 1.0, %v646
  %v648 = vrcp.pop %v616
  %v649 = vmul.f32 1.0, %v648
  %v650 = vrcp.pop %v617
  %v651 = vmul.f32 1.0, %v650
  %v652 = vrcp.pop %v618
  %v653 = vmul.f32 1.0, %v652
  %v654 = vrcp.pop %v619
  %v655 = vmul.f32 1.0, %v654
  %v656 = vmul.f32 %v460, %v621
  %v657 = vmul.f32 %v463, %v623
  %v658 = vmul.f32 %v468, %v625
  %v659 = vmul.f32 %v471, %v627
  %v660 = vmul.f32 %v476, %v629
  %v661 = vmul.f32 %v479, %v631
  %v662 = vmul.f32 %v484, %v633
  %v663 = vmul.f32 %v487, %v635
  %v664 = vmul.f32 %v492, %v637
  %v665 = vmul.f32 %v495, %v639
  %v666 = vmul.f32 %v500, %v641
  %v667 = vmul.f32 %v503, %v643
  %v668 = vmul.f32 %v508, %v645
  %v669 = vmul.f32 %v511, %v647
  %v670 = vmul.f32 %v516, %v649
  %v671 = vmul.f32 %v519, %v651
  %v672 = vmul.f32 %v524, %v653
  %v673 = vmul.f32 %v527, %v655
  %v674 = vpack.c.bf16 %v657, %v656
  %v675 = vpack.c.bf16 %v659, %v658
  %v676 = vpack.c.bf16 %v661, %v660
  %v677 = vpack.c.bf16 %v663, %v662
  %v678 = vpack.c.bf16 %v665, %v664
  %v679 = vpack.c.bf16 %v667, %v666
  %v680 = vpack.c.bf16 %v669, %v668
  %v681 = vpack.c.bf16 %v671, %v670
  %v682 = vpack.c.bf16 %v673, %v672
  %v692 = vunpack.c.l.b16 %v674
  %v693 = vunpack.c.h.b16 %v674
  %v694 = vunpack.c.l.b16 %v675
  %v695 = vunpack.c.h.b16 %v675
  %v696 = vunpack.c.l.b16 %v676
  %v697 = vunpack.c.h.b16 %v676
  %v698 = vunpack.c.l.b16 %v677
  %v699 = vunpack.c.h.b16 %v677
  %v700 = vunpack.c.l.b16 %v678
  %v701 = vunpack.c.h.b16 %v678
  %v702 = vunpack.c.l.b16 %v679
  %v703 = vunpack.c.h.b16 %v679
  %v704 = vunpack.c.l.b16 %v680
  %v705 = vunpack.c.h.b16 %v680
  %v706 = vunpack.c.l.b16 %v681
  %v707 = vunpack.c.h.b16 %v681
  %v708 = vunpack.c.l.b16 %v682
  %v709 = vunpack.c.h.b16 %v682
  %v710 = vpack.c.b16 %v692, %v692
  %v711 = vpack.c.b16 %v693, %v693
  %v712 = vpack.c.b16 %v694, %v694
  %v713 = vpack.c.b16 %v695, %v695
  %v714 = vpack.c.b16 %v696, %v696
  %v715 = vpack.c.b16 %v697, %v697
  %v716 = vpack.c.b16 %v698, %v698
  %v717 = vpack.c.b16 %v699, %v699
  %v718 = vpack.c.b16 %v700, %v700
  %v719 = vpack.c.b16 %v701, %v701
  %v720 = vpack.c.b16 %v702, %v702
  %v721 = vpack.c.b16 %v703, %v703
  %v722 = vpack.c.b16 %v704, %v704
  %v723 = vpack.c.b16 %v705, %v705
  %v724 = vpack.c.b16 %v706, %v706
  %v725 = vpack.c.b16 %v707, %v707
  %v726 = vpack.c.b16 %v708, %v708
  %v727 = vpack.c.b16 %v709, %v709
  %746 = vst [vmem:[%s5] sm:$0xf] %v710
  %747 = vst [vmem:[%s5 + $0x4] sm:$0xf] %v711
  %748 = vst [vmem:[%s5 + $0x8] sm:$0xf] %v712
  %749 = vst [vmem:[%s5 + $0xc] sm:$0xf] %v713
  %750 = vst [vmem:[%s5 + $0x10] sm:$0xf] %v714
  %751 = vst [vmem:[%s5 + $0x14] sm:$0xf] %v715
  %752 = vst [vmem:[%s5 + $0x18] sm:$0xf] %v716
  %753 = vst [vmem:[%s5 + $0x1c] sm:$0xf] %v717
  %754 = vst [vmem:[%s5 + $0x20] sm:$0xf] %v718
  %755 = vst [vmem:[%s5 + $0x24] sm:$0xf] %v719
  %756 = vst [vmem:[%s5 + $0x28] sm:$0xf] %v720
  %757 = vst [vmem:[%s5 + $0x2c] sm:$0xf] %v721
  %758 = vst [vmem:[%s5 + $0x30] sm:$0xf] %v722
  %759 = vst [vmem:[%s5 + $0x34] sm:$0xf] %v723
  %760 = vst [vmem:[%s5 + $0x38] sm:$0xf] %v724
  %761 = vst [vmem:[%s5 + $0x3c] sm:$0xf] %v725
  %762 = vst [vmem:[%s5 + $0x40] sm:$0xf] %v726
  %763 = vst [vmem:[%s5 + $0x44] sm:$0xf] %v727
  // Predicated region
  $region26: #{_lambda_.26} parent=0 // pred_check
    _
  $region27: #{_lambda_.26} parent=0 // pred_check_branch
    %765 = sbr.rel (0) target = $region29
  $region28: #{_lambda_.26} parent=0 // pred_region
    _
  $region29: #{_lambda_.26} parent=0 // pred_fallthru
    _
  // Predicated region
  $region30: #{_lambda_.26} parent=0 // pred_check
    _
  $region31: #{_lambda_.26} parent=0 // pred_check_branch
    %767 = sbr.rel (0) target = $region33
  $region32: #{_lambda_.26} parent=0 // pred_region
    _
  $region33: #{_lambda_.26} parent=0 // pred_fallthru
    _

// kernel: _lambda_.27
$region0: #{_lambda_.27}
  #allocation0 [shape = 'u32[]', space=smem, size = 0x4, offset = 0x4, fixed_abs, tag = 'smem constant byte address 0x4 - core index']
  #allocation1 [shape = 'u32[144,128]{1,0:T(1,128)}', space=vmem, size = 0x12000, scoped, tag = 'internal scratch']
  #allocation2 [shape = 'f32[144,32]{1,0:T(8,128)}', space=vmem, size = 0x12000, scoped, tag = 'scratch operand']
  %s0 = inlined_call_operand.vmem [shape: bf16[144,128], index: 0, kind: input, shape index: {}]
  %s1 = inlined_call_operand.vmem [shape: bf16[128,32], index: 1, kind: input, shape index: {}]
  %s2 = inlined_call_operand.vmem [shape: f32[1,32], index: 2, kind: input, shape index: {}]
  %s3 = inlined_call_operand.vmem [shape: bf16[144,32], index: 3, kind: input, shape index: {}]
  %s4 = inlined_call_operand.vmem [shape: bf16[144,32], index: 4, kind: output, shape index: {}]
  %s5 = sld [smem:[#allocation0]]
  $region34: #{_lambda_.27} parent=0
    _
  %s7 = ssub.s32 1, %s5
  %s8 = scalar_select 0, %s7, %s5
  // Predicated region
  $region2: #{_lambda_.27} parent=0 // pred_check
    _
  $region3: #{_lambda_.27} parent=0 // pred_check_branch
    %10 = sbr.rel (0) target = $region5
  $region4: #{_lambda_.27} parent=0 // pred_region
    _
  $region5: #{_lambda_.27} parent=0 // pred_fallthru
    _
  // Predicated region
  $region6: #{_lambda_.27} parent=0 // pred_check
    _
  $region7: #{_lambda_.27} parent=0 // pred_check_branch
    %12 = sbr.rel (0) target = $region9
  $region8: #{_lambda_.27} parent=0 // pred_region
    _
  $region9: #{_lambda_.27} parent=0 // pred_fallthru
    _
  // Predicated region
  $region10: #{_lambda_.27} parent=0 // pred_check
    _
  $region11: #{_lambda_.27} parent=0 // pred_check_branch
    %14 = sbr.rel (0) target = $region13
  $region12: #{_lambda_.27} parent=0 // pred_region
    _
  $region13: #{_lambda_.27} parent=0 // pred_fallthru
    _
  // Predicated region
  $region14: #{_lambda_.27} parent=0 // pred_check
    _
  $region15: #{_lambda_.27} parent=0 // pred_check_branch
    %16 = sbr.rel (0) target = $region17
  $region16: #{_lambda_.27} parent=0 // pred_region
    _
  $region17: #{_lambda_.27} parent=0 // pred_fallthru
    _
  %p18 = scmp.eq.s32.totalorder 0, 0
  // Predicated region
  $region18: #{_lambda_.27} parent=0 // pred_check
    %p19 = pneg %p18
  $region19: #{_lambda_.27} parent=0 // pred_check_branch
    %21 = sbr.rel (%p19) target = $region21
  $region20: #{_lambda_.27} parent=0 // pred_region
    %vm22 = vcmask 261120
    %23 = vst.msk [vmem:[#allocation2] sm:$0xff] %vm22, 0.0
    %24 = vst.msk [vmem:[#allocation2 + $0x8] sm:$0xff] %vm22, 0.0
    %25 = vst.msk [vmem:[#allocation2 + $0x10] sm:$0xff] %vm22, 0.0
    %26 = vst.msk [vmem:[#allocation2 + $0x18] sm:$0xff] %vm22, 0.0
    %27 = vst.msk [vmem:[#allocation2 + $0x20] sm:$0xff] %vm22, 0.0
    %28 = vst.msk [vmem:[#allocation2 + $0x28] sm:$0xff] %vm22, 0.0
    %29 = vst.msk [vmem:[#allocation2 + $0x30] sm:$0xff] %vm22, 0.0
    %30 = vst.msk [vmem:[#allocation2 + $0x38] sm:$0xff] %vm22, 0.0
    %31 = vst.msk [vmem:[#allocation2 + $0x40] sm:$0xff] %vm22, 0.0
    %32 = vst.msk [vmem:[#allocation2 + $0x48] sm:$0xff] %vm22, 0.0
    %33 = vst.msk [vmem:[#allocation2 + $0x50] sm:$0xff] %vm22, 0.0
    %34 = vst.msk [vmem:[#allocation2 + $0x58] sm:$0xff] %vm22, 0.0
    %35 = vst.msk [vmem:[#allocation2 + $0x60] sm:$0xff] %vm22, 0.0
    %36 = vst.msk [vmem:[#allocation2 + $0x68] sm:$0xff] %vm22, 0.0
    %37 = vst.msk [vmem:[#allocation2 + $0x70] sm:$0xff] %vm22, 0.0
    %38 = vst.msk [vmem:[#allocation2 + $0x78] sm:$0xff] %vm22, 0.0
    %39 = vst.msk [vmem:[#allocation2 + $0x80] sm:$0xff] %vm22, 0.0
    %40 = vst.msk [vmem:[#allocation2 + $0x88] sm:$0xff] %vm22, 0.0
  $region21: #{_lambda_.27} parent=0 // pred_fallthru
    _
  %v41 = vld [vmem:[#allocation2] sm:$0xff]
  %v42 = vld [vmem:[#allocation2 + $0x8] sm:$0xff]
  %v43 = vld [vmem:[#allocation2 + $0x10] sm:$0xff]
  %v44 = vld [vmem:[#allocation2 + $0x18] sm:$0xff]
  %v45 = vld [vmem:[#allocation2 + $0x20] sm:$0xff]
  %v46 = vld [vmem:[#allocation2 + $0x28] sm:$0xff]
  %v47 = vld [vmem:[#allocation2 + $0x30] sm:$0xff]
  %v48 = vld [vmem:[#allocation2 + $0x38] sm:$0xff]
  %v49 = vld [vmem:[#allocation2 + $0x40] sm:$0xff]
  %v50 = vld [vmem:[#allocation2 + $0x48] sm:$0xff]
  %v51 = vld [vmem:[#allocation2 + $0x50] sm:$0xff]
  %v52 = vld [vmem:[#allocation2 + $0x58] sm:$0xff]
  %v53 = vld [vmem:[#allocation2 + $0x60] sm:$0xff]
  %v54 = vld [vmem:[#allocation2 + $0x68] sm:$0xff]
  %v55 = vld [vmem:[#allocation2 + $0x70] sm:$0xff]
  %v56 = vld [vmem:[#allocation2 + $0x78] sm:$0xff]
  %v57 = vld [vmem:[#allocation2 + $0x80] sm:$0xff]
  %v58 = vld [vmem:[#allocation2 + $0x88] sm:$0xff]
  %v59 = vld [vmem:[%s0] sm:$0xf]
  %v60 = vld [vmem:[%s0 + $0x4] sm:$0xf]
  %v61 = vld [vmem:[%s0 + $0x8] sm:$0xf]
  %v62 = vld [vmem:[%s0 + $0xc] sm:$0xf]
  %v63 = vld [vmem:[%s0 + $0x10] sm:$0xf]
  %v64 = vld [vmem:[%s0 + $0x14] sm:$0xf]
  %v65 = vld [vmem:[%s0 + $0x18] sm:$0xf]
  %v66 = vld [vmem:[%s0 + $0x1c] sm:$0xf]
  %v67 = vld [vmem:[%s0 + $0x20] sm:$0xf]
  %v68 = vld [vmem:[%s0 + $0x24] sm:$0xf]
  %v69 = vld [vmem:[%s0 + $0x28] sm:$0xf]
  %v70 = vld [vmem:[%s0 + $0x2c] sm:$0xf]
  %v71 = vld [vmem:[%s0 + $0x30] sm:$0xf]
  %v72 = vld [vmem:[%s0 + $0x34] sm:$0xf]
  %v73 = vld [vmem:[%s0 + $0x38] sm:$0xf]
  %v74 = vld [vmem:[%s0 + $0x3c] sm:$0xf]
  %v75 = vld [vmem:[%s0 + $0x40] sm:$0xf]
  %v76 = vld [vmem:[%s0 + $0x44] sm:$0xf]
  %v77 = vld [vmem:[%s1] sm:$0xf]
  %v78 = vld [vmem:[%s1 + $0x4] sm:$0xf]
  %v79 = vld [vmem:[%s1 + $0x8] sm:$0xf]
  %v80 = vld [vmem:[%s1 + $0xc] sm:$0xf]
  %v81 = vld [vmem:[%s1 + $0x10] sm:$0xf]
  %v82 = vld [vmem:[%s1 + $0x14] sm:$0xf]
  %v83 = vld [vmem:[%s1 + $0x18] sm:$0xf]
  %v84 = vld [vmem:[%s1 + $0x1c] sm:$0xf]
  %v85 = vld [vmem:[%s1 + $0x20] sm:$0xf]
  %v86 = vld [vmem:[%s1 + $0x24] sm:$0xf]
  %v87 = vld [vmem:[%s1 + $0x28] sm:$0xf]
  %v88 = vld [vmem:[%s1 + $0x2c] sm:$0xf]
  %v89 = vld [vmem:[%s1 + $0x30] sm:$0xf]
  %v90 = vld [vmem:[%s1 + $0x34] sm:$0xf]
  %v91 = vld [vmem:[%s1 + $0x38] sm:$0xf]
  %v92 = vld [vmem:[%s1 + $0x3c] sm:$0xf]
  %v111 = vunpack.c.l.b16 %v59
  %v112 = vunpack.c.l.b16 %v60
  %v113 = vunpack.c.l.b16 %v61
  %v114 = vunpack.c.l.b16 %v62
  %v115 = vunpack.c.l.b16 %v63
  %v116 = vunpack.c.l.b16 %v64
  %v117 = vunpack.c.l.b16 %v65
  %v118 = vunpack.c.l.b16 %v66
  %v119 = vunpack.c.l.b16 %v67
  %v120 = vunpack.c.l.b16 %v68
  %v121 = vunpack.c.l.b16 %v69
  %v122 = vunpack.c.l.b16 %v70
  %v123 = vunpack.c.l.b16 %v71
  %v124 = vunpack.c.l.b16 %v72
  %v125 = vunpack.c.l.b16 %v73
  %v126 = vunpack.c.l.b16 %v74
  %v127 = vunpack.c.l.b16 %v75
  %v128 = vunpack.c.l.b16 %v76
  %v129 = vpack.c.b16 %v112, %v111
  %v130 = vpack.c.b16 %v114, %v113
  %v131 = vpack.c.b16 %v116, %v115
  %v132 = vpack.c.b16 %v118, %v117
  %v133 = vpack.c.b16 %v120, %v119
  %v134 = vpack.c.b16 %v122, %v121
  %v135 = vpack.c.b16 %v124, %v123
  %v136 = vpack.c.b16 %v126, %v125
  %v137 = vpack.c.b16 %v128, %v127
  %v163 = vunpack.c.l.b16 %v77
  %v164 = vunpack.c.l.b16 %v78
  %v165 = vunpack.c.l.b16 %v79
  %v166 = vunpack.c.l.b16 %v80
  %v167 = vunpack.c.l.b16 %v81
  %v168 = vunpack.c.l.b16 %v82
  %v169 = vunpack.c.l.b16 %v83
  %v170 = vunpack.c.l.b16 %v84
  %v171 = vunpack.c.l.b16 %v85
  %v172 = vunpack.c.l.b16 %v86
  %v173 = vunpack.c.l.b16 %v87
  %v174 = vunpack.c.l.b16 %v88
  %v175 = vunpack.c.l.b16 %v89
  %v176 = vunpack.c.l.b16 %v90
  %v177 = vunpack.c.l.b16 %v91
  %v178 = vunpack.c.l.b16 %v92
  %v179 = vpack.c.b16 %v164, %v163
  %v180 = vpack.c.b16 %v166, %v165
  %v181 = vpack.c.b16 %v168, %v167
  %v182 = vpack.c.b16 %v170, %v169
  %v183 = vpack.c.b16 %v172, %v171
  %v184 = vpack.c.b16 %v174, %v173
  %v185 = vpack.c.b16 %v176, %v175
  %v186 = vpack.c.b16 %v178, %v177
  %195 = vmatprep.subr.bf16.mxu0 0
  %196 = vmatpush1.bf16.msra.mxu0 %v179
  %197 = vmatprep.subr.bf16.mxu0 0
  %198 = vmatpush1.bf16.msra.mxu0 %v180
  %199 = vmatprep.subr.bf16.mxu0 0
  %200 = vmatpush1.bf16.msra.mxu0 %v181
  %201 = vmatprep.subr.bf16.mxu0 0
  %202 = vmatpush1.bf16.msra.mxu0 %v182
  %203 = vmatprep.subr.bf16.mxu0 0
  %204 = vmatpush1.bf16.msra.mxu0 %v183
  %205 = vmatprep.subr.bf16.mxu0 0
  %206 = vmatpush1.bf16.msra.mxu0 %v184
  %207 = vmatprep.subr.bf16.mxu0 0
  %208 = vmatpush1.bf16.msra.mxu0 %v185
  %209 = vmatprep.subr.bf16.mxu0 0
  %210 = vmatpush1.bf16.msra.mxu0 %v186
  %211 = vmatprep.subr.bf16.mxu0 0
  %212 = vmatpush1.bf16.msra.mxu0 0
  %213 = vmatprep.subr.bf16.mxu0 0
  %214 = vmatpush1.bf16.msra.mxu0 0
  %215 = vmatprep.subr.bf16.mxu0 0
  %216 = vmatpush1.bf16.msra.mxu0 0
  %217 = vmatprep.subr.bf16.mxu0 0
  %218 = vmatpush1.bf16.msra.mxu0 0
  %219 = vmatprep.subr.bf16.mxu0 0
  %220 = vmatpush1.bf16.msra.mxu0 0
  %221 = vmatprep.subr.bf16.mxu0 0
  %222 = vmatpush1.bf16.msra.mxu0 0
  %223 = vmatprep.subr.bf16.mxu0 0
  %224 = vmatpush1.bf16.msra.mxu0 0
  %225 = vmatprep.subr.bf16.mxu0 0
  %226 = vmatpush1.bf16.msra.mxu0 0
  %227 = vmatprep.mubr.bf16.mxu0 0
  %228 = vmatmul.mubr.bf16.gmra.mrb[0].mxu0 %v129
  %v229 = vpop.f32.mrb[0].mxu0
  %v230 = vadd.f32 0.0, %v229
  %v231 = vpop.f32.mrb[0].mxu0
  %v232 = vpop.f32.mrb[0].mxu0
  %v233 = vadd.f32 0.0, %v232
  %v234 = vpop.f32.mrb[0].mxu0
  %235 = vmatprep.mubr.bf16.mxu0 0
  %236 = vmatmul.mubr.bf16.gmra.mrb[0].mxu0 %v130
  %v237 = vpop.f32.mrb[0].mxu0
  %v238 = vadd.f32 0.0, %v237
  %v239 = vpop.f32.mrb[0].mxu0
  %v240 = vpop.f32.mrb[0].mxu0
  %v241 = vadd.f32 0.0, %v240
  %v242 = vpop.f32.mrb[0].mxu0
  %243 = vmatprep.mubr.bf16.mxu0 0
  %244 = vmatmul.mubr.bf16.gmra.mrb[0].mxu0 %v131
  %v245 = vpop.f32.mrb[0].mxu0
  %v246 = vadd.f32 0.0, %v245
  %v247 = vpop.f32.mrb[0].mxu0
  %v248 = vpop.f32.mrb[0].mxu0
  %v249 = vadd.f32 0.0, %v248
  %v250 = vpop.f32.mrb[0].mxu0
  %251 = vmatprep.mubr.bf16.mxu0 0
  %252 = vmatmul.mubr.bf16.gmra.mrb[0].mxu0 %v132
  %v253 = vpop.f32.mrb[0].mxu0
  %v254 = vadd.f32 0.0, %v253
  %v255 = vpop.f32.mrb[0].mxu0
  %v256 = vpop.f32.mrb[0].mxu0
  %v257 = vadd.f32 0.0, %v256
  %v258 = vpop.f32.mrb[0].mxu0
  %259 = vmatprep.mubr.bf16.mxu0 0
  %260 = vmatmul.mubr.bf16.gmra.mrb[0].mxu0 %v133
  %v261 = vpop.f32.mrb[0].mxu0
  %v262 = vadd.f32 0.0, %v261
  %v263 = vpop.f32.mrb[0].mxu0
  %v264 = vpop.f32.mrb[0].mxu0
  %v265 = vadd.f32 0.0, %v264
  %v266 = vpop.f32.mrb[0].mxu0
  %267 = vmatprep.mubr.bf16.mxu0 0
  %268 = vmatmul.mubr.bf16.gmra.mrb[0].mxu0 %v134
  %v269 = vpop.f32.mrb[0].mxu0
  %v270 = vadd.f32 0.0, %v269
  %v271 = vpop.f32.mrb[0].mxu0
  %v272 = vpop.f32.mrb[0].mxu0
  %v273 = vadd.f32 0.0, %v272
  %v274 = vpop.f32.mrb[0].mxu0
  %275 = vmatprep.mubr.bf16.mxu0 0
  %276 = vmatmul.mubr.bf16.gmra.mrb[0].mxu0 %v135
  %v277 = vpop.f32.mrb[0].mxu0
  %v278 = vadd.f32 0.0, %v277
  %v279 = vpop.f32.mrb[0].mxu0
  %v280 = vpop.f32.mrb[0].mxu0
  %v281 = vadd.f32 0.0, %v280
  %v282 = vpop.f32.mrb[0].mxu0
  %283 = vmatprep.mubr.bf16.mxu0 0
  %284 = vmatmul.mubr.bf16.gmra.mrb[0].mxu0 %v136
  %v285 = vpop.f32.mrb[0].mxu0
  %v286 = vadd.f32 0.0, %v285
  %v287 = vpop.f32.mrb[0].mxu0
  %v288 = vpop.f32.mrb[0].mxu0
  %v289 = vadd.f32 0.0, %v288
  %v290 = vpop.f32.mrb[0].mxu0
  %291 = vmatprep.mubr.bf16.mxu0 0
  %292 = vmatmul.mubr.bf16.gmra.mrb[0].mxu0 %v137
  %v293 = vpop.f32.mrb[0].mxu0
  %v294 = vadd.f32 0.0, %v293
  %v295 = vpop.f32.mrb[0].mxu0
  %v296 = vpop.f32.mrb[0].mxu0
  %v297 = vadd.f32 0.0, %v296
  %v298 = vpop.f32.mrb[0].mxu0
  %299 = vdwg.mxu0
  %v300 = vadd.f32 %v41, %v230
  %v301 = vadd.f32 %v42, %v233
  %v302 = vadd.f32 %v43, %v238
  %v303 = vadd.f32 %v44, %v241
  %v304 = vadd.f32 %v45, %v246
  %v305 = vadd.f32 %v46, %v249
  %v306 = vadd.f32 %v47, %v254
  %v307 = vadd.f32 %v48, %v257
  %v308 = vadd.f32 %v49, %v262
  %v309 = vadd.f32 %v50, %v265
  %v310 = vadd.f32 %v51, %v270
  %v311 = vadd.f32 %v52, %v273
  %v312 = vadd.f32 %v53, %v278
  %v313 = vadd.f32 %v54, %v281
  %v314 = vadd.f32 %v55, %v286
  %v315 = vadd.f32 %v56, %v289
  %v316 = vadd.f32 %v57, %v294
  %v317 = vadd.f32 %v58, %v297
  %vm318 = vcmask 261120
  %319 = vst.msk [vmem:[#allocation2] sm:$0xff] %vm318, %v300
  %320 = vst.msk [vmem:[#allocation2 + $0x8] sm:$0xff] %vm318, %v301
  %321 = vst.msk [vmem:[#allocation2 + $0x10] sm:$0xff] %vm318, %v302
  %322 = vst.msk [vmem:[#allocation2 + $0x18] sm:$0xff] %vm318, %v303
  %323 = vst.msk [vmem:[#allocation2 + $0x20] sm:$0xff] %vm318, %v304
  %324 = vst.msk [vmem:[#allocation2 + $0x28] sm:$0xff] %vm318, %v305
  %325 = vst.msk [vmem:[#allocation2 + $0x30] sm:$0xff] %vm318, %v306
  %326 = vst.msk [vmem:[#allocation2 + $0x38] sm:$0xff] %vm318, %v307
  %327 = vst.msk [vmem:[#allocation2 + $0x40] sm:$0xff] %vm318, %v308
  %328 = vst.msk [vmem:[#allocation2 + $0x48] sm:$0xff] %vm318, %v309
  %329 = vst.msk [vmem:[#allocation2 + $0x50] sm:$0xff] %vm318, %v310
  %330 = vst.msk [vmem:[#allocation2 + $0x58] sm:$0xff] %vm318, %v311
  %331 = vst.msk [vmem:[#allocation2 + $0x60] sm:$0xff] %vm318, %v312
  %332 = vst.msk [vmem:[#allocation2 + $0x68] sm:$0xff] %vm318, %v313
  %333 = vst.msk [vmem:[#allocation2 + $0x70] sm:$0xff] %vm318, %v314
  %334 = vst.msk [vmem:[#allocation2 + $0x78] sm:$0xff] %vm318, %v315
  %335 = vst.msk [vmem:[#allocation2 + $0x80] sm:$0xff] %vm318, %v316
  %336 = vst.msk [vmem:[#allocation2 + $0x88] sm:$0xff] %vm318, %v317
  // Predicated region
  $region22: #{_lambda_.27} parent=0 // pred_check
    %p337 = pneg %p18
  $region23: #{_lambda_.27} parent=0 // pred_check_branch
    %339 = sbr.rel (%p337) target = $region25
  $region24: #{_lambda_.27} parent=0 // pred_region
    %v340 = vld [vmem:[#allocation2] sm:$0xff]
    %v341 = vld [vmem:[#allocation2 + $0x8] sm:$0xff]
    %v342 = vld [vmem:[#allocation2 + $0x10] sm:$0xff]
    %v343 = vld [vmem:[#allocation2 + $0x18] sm:$0xff]
    %v344 = vld [vmem:[#allocation2 + $0x20] sm:$0xff]
    %v345 = vld [vmem:[#allocation2 + $0x28] sm:$0xff]
    %v346 = vld [vmem:[#allocation2 + $0x30] sm:$0xff]
    %v347 = vld [vmem:[#allocation2 + $0x38] sm:$0xff]
    %v348 = vld [vmem:[#allocation2 + $0x40] sm:$0xff]
    %v349 = vld [vmem:[#allocation2 + $0x48] sm:$0xff]
    %v350 = vld [vmem:[#allocation2 + $0x50] sm:$0xff]
    %v351 = vld [vmem:[#allocation2 + $0x58] sm:$0xff]
    %v352 = vld [vmem:[#allocation2 + $0x60] sm:$0xff]
    %v353 = vld [vmem:[#allocation2 + $0x68] sm:$0xff]
    %v354 = vld [vmem:[#allocation2 + $0x70] sm:$0xff]
    %v355 = vld [vmem:[#allocation2 + $0x78] sm:$0xff]
    %v356 = vld [vmem:[#allocation2 + $0x80] sm:$0xff]
    %v357 = vld [vmem:[#allocation2 + $0x88] sm:$0xff]
    %v358 = vld [vmem:[%s2] sm:$0x1]
    %v360 = vlaneseq
    %v361 = vshrl.u32 %v360, 7
    %v362 = vsub.s32 0, %v361
    %v363 = vrot.slane %v358, %v362
    %v365 = vadd.f32 %v340, %v363
    %v366 = vadd.f32 %v341, %v363
    %v367 = vadd.f32 %v342, %v363
    %v368 = vadd.f32 %v343, %v363
    %v369 = vadd.f32 %v344, %v363
    %v370 = vadd.f32 %v345, %v363
    %v371 = vadd.f32 %v346, %v363
    %v372 = vadd.f32 %v347, %v363
    %v373 = vadd.f32 %v348, %v363
    %v374 = vadd.f32 %v349, %v363
    %v375 = vadd.f32 %v350, %v363
    %v376 = vadd.f32 %v351, %v363
    %v377 = vadd.f32 %v352, %v363
    %v378 = vadd.f32 %v353, %v363
    %v379 = vadd.f32 %v354, %v363
    %v380 = vadd.f32 %v355, %v363
    %v381 = vadd.f32 %v356, %v363
    %v382 = vadd.f32 %v357, %v363
    %v383 = vld [vmem:[%s3] sm:$0xf]
    %v384 = vld [vmem:[%s3 + $0x4] sm:$0xf]
    %v385 = vld [vmem:[%s3 + $0x8] sm:$0xf]
    %v386 = vld [vmem:[%s3 + $0xc] sm:$0xf]
    %v387 = vld [vmem:[%s3 + $0x10] sm:$0xf]
    %v388 = vld [vmem:[%s3 + $0x14] sm:$0xf]
    %v389 = vld [vmem:[%s3 + $0x18] sm:$0xf]
    %v390 = vld [vmem:[%s3 + $0x1c] sm:$0xf]
    %v391 = vld [vmem:[%s3 + $0x20] sm:$0xf]
    %v392 = vld [vmem:[%s3 + $0x24] sm:$0xf]
    %v393 = vld [vmem:[%s3 + $0x28] sm:$0xf]
    %v394 = vld [vmem:[%s3 + $0x2c] sm:$0xf]
    %v395 = vld [vmem:[%s3 + $0x30] sm:$0xf]
    %v396 = vld [vmem:[%s3 + $0x34] sm:$0xf]
    %v397 = vld [vmem:[%s3 + $0x38] sm:$0xf]
    %v398 = vld [vmem:[%s3 + $0x3c] sm:$0xf]
    %v399 = vld [vmem:[%s3 + $0x40] sm:$0xf]
    %v400 = vld [vmem:[%s3 + $0x44] sm:$0xf]
    %v401 = vunpack.c.l.bf16 %v383
    %v402 = vunpack.c.l.bf16 %v384
    %v403 = vunpack.c.l.bf16 %v385
    %v404 = vunpack.c.l.bf16 %v386
    %v405 = vunpack.c.l.bf16 %v387
    %v406 = vunpack.c.l.bf16 %v388
    %v407 = vunpack.c.l.bf16 %v389
    %v408 = vunpack.c.l.bf16 %v390
    %v409 = vunpack.c.l.bf16 %v391
    %v410 = vunpack.c.l.bf16 %v392
    %v411 = vunpack.c.l.bf16 %v393
    %v412 = vunpack.c.l.bf16 %v394
    %v413 = vunpack.c.l.bf16 %v395
    %v414 = vunpack.c.l.bf16 %v396
    %v415 = vunpack.c.l.bf16 %v397
    %v416 = vunpack.c.l.bf16 %v398
    %v417 = vunpack.c.l.bf16 %v399
    %v418 = vunpack.c.l.bf16 %v400
    %v419 = vadd.f32 %v365, %v401
    %v420 = vadd.f32 %v366, %v402
    %v421 = vadd.f32 %v367, %v403
    %v422 = vadd.f32 %v368, %v404
    %v423 = vadd.f32 %v369, %v405
    %v424 = vadd.f32 %v370, %v406
    %v425 = vadd.f32 %v371, %v407
    %v426 = vadd.f32 %v372, %v408
    %v427 = vadd.f32 %v373, %v409
    %v428 = vadd.f32 %v374, %v410
    %v429 = vadd.f32 %v375, %v411
    %v430 = vadd.f32 %v376, %v412
    %v431 = vadd.f32 %v377, %v413
    %v432 = vadd.f32 %v378, %v414
    %v433 = vadd.f32 %v379, %v415
    %v434 = vadd.f32 %v380, %v416
    %v435 = vadd.f32 %v381, %v417
    %v436 = vadd.f32 %v382, %v418
    %v437 = vpack.c.bf16 %v420, %v419
    %v438 = vpack.c.bf16 %v422, %v421
    %v439 = vpack.c.bf16 %v424, %v423
    %v440 = vpack.c.bf16 %v426, %v425
    %v441 = vpack.c.bf16 %v428, %v427
    %v442 = vpack.c.bf16 %v430, %v429
    %v443 = vpack.c.bf16 %v432, %v431
    %v444 = vpack.c.bf16 %v434, %v433
    %v445 = vpack.c.bf16 %v436, %v435
    %v455 = vunpack.c.l.b16 %v437
    %v456 = vunpack.c.h.b16 %v437
    %v457 = vunpack.c.l.b16 %v438
    %v458 = vunpack.c.h.b16 %v438
    %v459 = vunpack.c.l.b16 %v439
    %v460 = vunpack.c.h.b16 %v439
    %v461 = vunpack.c.l.b16 %v440
    %v462 = vunpack.c.h.b16 %v440
    %v463 = vunpack.c.l.b16 %v441
    %v464 = vunpack.c.h.b16 %v441
    %v465 = vunpack.c.l.b16 %v442
    %v466 = vunpack.c.h.b16 %v442
    %v467 = vunpack.c.l.b16 %v443
    %v468 = vunpack.c.h.b16 %v443
    %v469 = vunpack.c.l.b16 %v444
    %v470 = vunpack.c.h.b16 %v444
    %v471 = vunpack.c.l.b16 %v445
    %v472 = vunpack.c.h.b16 %v445
    %v473 = vpack.c.b16 %v455, %v455
    %v474 = vpack.c.b16 %v456, %v456
    %v475 = vpack.c.b16 %v457, %v457
    %v476 = vpack.c.b16 %v458, %v458
    %v477 = vpack.c.b16 %v459, %v459
    %v478 = vpack.c.b16 %v460, %v460
    %v479 = vpack.c.b16 %v461, %v461
    %v480 = vpack.c.b16 %v462, %v462
    %v481 = vpack.c.b16 %v463, %v463
    %v482 = vpack.c.b16 %v464, %v464
    %v483 = vpack.c.b16 %v465, %v465
    %v484 = vpack.c.b16 %v466, %v466
    %v485 = vpack.c.b16 %v467, %v467
    %v486 = vpack.c.b16 %v468, %v468
    %v487 = vpack.c.b16 %v469, %v469
    %v488 = vpack.c.b16 %v470, %v470
    %v489 = vpack.c.b16 %v471, %v471
    %v490 = vpack.c.b16 %v472, %v472
    %vm509 = vcmask 257024
    %510 = vst.msk [vmem:[%s4] sm:$0xf] %vm509, %v473
    %511 = vst.msk [vmem:[%s4 + $0x4] sm:$0xf] %vm509, %v474
    %512 = vst.msk [vmem:[%s4 + $0x8] sm:$0xf] %vm509, %v475
    %513 = vst.msk [vmem:[%s4 + $0xc] sm:$0xf] %vm509, %v476
    %514 = vst.msk [vmem:[%s4 + $0x10] sm:$0xf] %vm509, %v477
    %515 = vst.msk [vmem:[%s4 + $0x14] sm:$0xf] %vm509, %v478
    %516 = vst.msk [vmem:[%s4 + $0x18] sm:$0xf] %vm509, %v479
    %517 = vst.msk [vmem:[%s4 + $0x1c] sm:$0xf] %vm509, %v480
    %518 = vst.msk [vmem:[%s4 + $0x20] sm:$0xf] %vm509, %v481
    %519 = vst.msk [vmem:[%s4 + $0x24] sm:$0xf] %vm509, %v482
    %520 = vst.msk [vmem:[%s4 + $0x28] sm:$0xf] %vm509, %v483
    %521 = vst.msk [vmem:[%s4 + $0x2c] sm:$0xf] %vm509, %v484
    %522 = vst.msk [vmem:[%s4 + $0x30] sm:$0xf] %vm509, %v485
    %523 = vst.msk [vmem:[%s4 + $0x34] sm:$0xf] %vm509, %v486
    %524 = vst.msk [vmem:[%s4 + $0x38] sm:$0xf] %vm509, %v487
    %525 = vst.msk [vmem:[%s4 + $0x3c] sm:$0xf] %vm509, %v488
    %526 = vst.msk [vmem:[%s4 + $0x40] sm:$0xf] %vm509, %v489
    %527 = vst.msk [vmem:[%s4 + $0x44] sm:$0xf] %vm509, %v490
  $region25: #{_lambda_.27} parent=0 // pred_fallthru
    _
  // Predicated region
  $region26: #{_lambda_.27} parent=0 // pred_check
    _
  $region27: #{_lambda_.27} parent=0 // pred_check_branch
    %529 = sbr.rel (0) target = $region29
  $region28: #{_lambda_.27} parent=0 // pred_region
    _
  $region29: #{_lambda_.27} parent=0 // pred_fallthru
    _
  // Predicated region
  $region30: #{_lambda_.27} parent=0 // pred_check
    _
  $region31: #{_lambda_.27} parent=0 // pred_check_branch
    %531 = sbr.rel (0) target = $region33
  $region32: #{_lambda_.27} parent=0 // pred_region
    _
  $region33: #{_lambda_.27} parent=0 // pred_fallthru
    _

// kernel: _lambda_.28
$region0: #{_lambda_.28}
  #allocation0 [shape = 'u32[]', space=smem, size = 0x4, offset = 0x4, fixed_abs, tag = 'smem constant byte address 0x4 - core index']
  #allocation1 [shape = 'u32[144,128]{1,0:T(1,128)}', space=vmem, size = 0x12000, scoped, tag = 'internal scratch']
  #allocation2 [shape = 'bf16[9,32]{1,0:T(8,128)(2,1)}', space=vmem, size = 0x1000, scoped, tag = 'scratch operand']
  %s0 = inlined_call_operand.vmem [shape: bf16[9,32], index: 0, kind: input, shape index: {}]
  %s1 = inlined_call_operand.vmem [shape: f32[1,32], index: 1, kind: input, shape index: {}]
  %s2 = inlined_call_operand.vmem [shape: f32[1,32], index: 2, kind: input, shape index: {}]
  %s3 = inlined_call_operand.vmem [shape: bf16[32,16], index: 3, kind: input, shape index: {}]
  %s4 = inlined_call_operand.vmem [shape: f32[9,16], index: 4, kind: output, shape index: {}]
  %s5 = sld [smem:[#allocation0]]
  $region30: #{_lambda_.28} parent=0
    _
  %s7 = ssub.s32 1, %s5
  %s8 = scalar_select 0, %s7, %s5
  // Predicated region
  $region2: #{_lambda_.28} parent=0 // pred_check
    _
  $region3: #{_lambda_.28} parent=0 // pred_check_branch
    %10 = sbr.rel (0) target = $region5
  $region4: #{_lambda_.28} parent=0 // pred_region
    _
  $region5: #{_lambda_.28} parent=0 // pred_fallthru
    _
  // Predicated region
  $region6: #{_lambda_.28} parent=0 // pred_check
    _
  $region7: #{_lambda_.28} parent=0 // pred_check_branch
    %12 = sbr.rel (0) target = $region9
  $region8: #{_lambda_.28} parent=0 // pred_region
    _
  $region9: #{_lambda_.28} parent=0 // pred_fallthru
    _
  // Predicated region
  $region10: #{_lambda_.28} parent=0 // pred_check
    _
  $region11: #{_lambda_.28} parent=0 // pred_check_branch
    %14 = sbr.rel (0) target = $region13
  $region12: #{_lambda_.28} parent=0 // pred_region
    _
  $region13: #{_lambda_.28} parent=0 // pred_fallthru
    _
  // Predicated region
  $region14: #{_lambda_.28} parent=0 // pred_check
    _
  $region15: #{_lambda_.28} parent=0 // pred_check_branch
    %16 = sbr.rel (0) target = $region17
  $region16: #{_lambda_.28} parent=0 // pred_region
    _
  $region17: #{_lambda_.28} parent=0 // pred_fallthru
    _
  %p18 = scmp.eq.s32.totalorder 0, 0
  // Predicated region
  $region18: #{_lambda_.28} parent=0 // pred_check
    %p19 = pneg %p18
  $region19: #{_lambda_.28} parent=0 // pred_check_branch
    %21 = sbr.rel (%p19) target = $region21
  $region20: #{_lambda_.28} parent=0 // pred_region
    %v22 = vld [vmem:[%s0] sm:$0xf]
    %v23 = vld [vmem:[%s0 + $0x4] sm:$0x1]
    %v24 = vunpack.c.l.bf16 %v22
    %v25 = vunpack.c.l.bf16 %v23
    %vm26 = vcmask 261120
    %v27 = vsel %vm26, %v24, 0.0
    %28 = vadd.xlane.f32.xlu0 %v27
    %v29 = vpop.xlane.xlu0 %28
    %vm30 = vcmask 253952
    %v31 = vsel %vm30, %v25, 0.0
    %32 = vadd.xlane.f32.xlu0 %v31
    %v33 = vpop.xlane.xlu0 %32
    %v34 = vrcp.pop 32.0
    %v35 = vmul.f32 %v29, %v34
    %v36 = vmul.f32 %v33, %v34
    %v37 = vsub.f32 %v24, %v35
    %v38 = vsub.f32 %v25, %v36
    %v39 = vmul.f32 %v37, %v37
    %v40 = vmul.f32 %v38, %v38
    %v41 = vsel %vm26, %v39, 0.0
    %42 = vadd.xlane.f32.xlu0 %v41
    %v43 = vpop.xlane.xlu0 %42
    %v44 = vsel %vm30, %v40, 0.0
    %45 = vadd.xlane.f32.xlu0 %v44
    %v46 = vpop.xlane.xlu0 %45
    %v47 = vmul.f32 %v43, %v34
    %v48 = vmul.f32 %v46, %v34
    %v49 = vadd.f32 %v47, 1e-05
    %v50 = vadd.f32 %v48, 1e-05
    %v51 = vrsqrt.pop %v49
    %v52 = vrsqrt.pop %v50
    %v53 = vmul.f32 %v37, %v51
    %v54 = vmul.f32 %v38, %v52
    %v55 = vld [vmem:[%s1] sm:$0x1]
    %v57 = vlaneseq
    %v58 = vshrl.u32 %v57, 7
    %v59 = vsub.s32 0, %v58
    %v60 = vrot.slane %v55, %v59
    %v62 = vmul.f32 %v53, %v60
    %v63 = vmul.f32 %v54, %v60
    %v64 = vld [vmem:[%s2] sm:$0x1]
    %v66 = vlaneseq
    %v67 = vshrl.u32 %v66, 7
    %v68 = vsub.s32 0, %v67
    %v69 = vrot.slane %v64, %v68
    %v71 = vadd.f32 %v62, %v69
    %v72 = vadd.f32 %v63, %v69
    %v73 = vpack.c.bf16 %v72, %v71
    %v75 = vunpack.c.l.b16 %v73
    %v76 = vunpack.c.h.b16 %v73
    %v77 = vpack.c.b16 %v75, %v75
    %v78 = vpack.c.b16 %v76, %v76
    %vm81 = vcmask 257024
    %82 = vst.msk [vmem:[#allocation2] sm:$0xf] %vm81, %v77
    %vm83 = vcmask 253952
    %vm84 = vsmask.f32 256
    %vm85 = vmand %vm83, %vm84
    %v86 = vld [vmem:[#allocation2 + $0x4] sm:$0x1]
    %v87 = vsel %vm85, %v78, %v86
    %88 = vst [vmem:[#allocation2 + $0x4] sm:$0x1] %v87
  $region21: #{_lambda_.28} parent=0 // pred_fallthru
    _
  %v89 = vld [vmem:[#allocation2] sm:$0xf]
  %v90 = vld [vmem:[#allocation2 + $0x4] sm:$0x1]
  %v91 = vld [vmem:[%s3] sm:$0xf]
  %v92 = vld [vmem:[%s3 + $0x4] sm:$0xf]
  %v93 = vld [vmem:[%s3 + $0x8] sm:$0xf]
  %v94 = vld [vmem:[%s3 + $0xc] sm:$0xf]
  %v97 = vunpack.c.l.b16 %v89
  %v98 = vunpack.c.l.b16 %v90
  %v99 = vpack.c.b16 %v98, %v97
  %v104 = vunpack.c.l.b16 %v91
  %v105 = vunpack.c.l.b16 %v92
  %v106 = vunpack.c.l.b16 %v93
  %v107 = vunpack.c.l.b16 %v94
  %v108 = vpack.c.b16 %v105, %v104
  %v109 = vpack.c.b16 %v107, %v106
  %vm112 = vcmask 261120
  %v114 = vsel %vm112, %v99, 0
  %116 = vmatprep.subr.bf16.mxu0 0
  %117 = vmatpush1.bf16.msra.mxu0 %v108
  %118 = vmatprep.subr.bf16.mxu0 0
  %119 = vmatpush1.bf16.msra.mxu0 %v109
  %120 = vmatprep.subr.bf16.mxu0 0
  %121 = vmatpush1.bf16.msra.mxu0 0
  %122 = vmatprep.subr.bf16.mxu0 0
  %123 = vmatpush1.bf16.msra.mxu0 0
  %124 = vmatprep.subr.bf16.mxu0 0
  %125 = vmatpush1.bf16.msra.mxu0 0
  %126 = vmatprep.subr.bf16.mxu0 0
  %127 = vmatpush1.bf16.msra.mxu0 0
  %128 = vmatprep.subr.bf16.mxu0 0
  %129 = vmatpush1.bf16.msra.mxu0 0
  %130 = vmatprep.subr.bf16.mxu0 0
  %131 = vmatpush1.bf16.msra.mxu0 0
  %132 = vmatprep.subr.bf16.mxu0 0
  %133 = vmatpush1.bf16.msra.mxu0 0
  %134 = vmatprep.subr.bf16.mxu0 0
  %135 = vmatpush1.bf16.msra.mxu0 0
  %136 = vmatprep.subr.bf16.mxu0 0
  %137 = vmatpush1.bf16.msra.mxu0 0
  %138 = vmatprep.subr.bf16.mxu0 0
  %139 = vmatpush1.bf16.msra.mxu0 0
  %140 = vmatprep.subr.bf16.mxu0 0
  %141 = vmatpush1.bf16.msra.mxu0 0
  %142 = vmatprep.subr.bf16.mxu0 0
  %143 = vmatpush1.bf16.msra.mxu0 0
  %144 = vmatprep.subr.bf16.mxu0 0
  %145 = vmatpush1.bf16.msra.mxu0 0
  %146 = vmatprep.subr.bf16.mxu0 0
  %147 = vmatpush1.bf16.msra.mxu0 0
  %148 = vmatprep.mubr.bf16.mxu0 0
  %149 = vmatmul.mubr.bf16.gmra.mrb[0].mxu0 %v114
  %v150 = vpop.f32.mrb[0].mxu0
  %v151 = vadd.f32 0.0, %v150
  %v152 = vpop.f32.mrb[0].mxu0
  %v153 = vpop.f32.mrb[0].mxu0
  %v154 = vadd.f32 0.0, %v153
  %v155 = vpop.f32.mrb[0].mxu0
  %156 = vdwg.mxu0
  %vm157 = vcmask 130048
  %158 = vst.msk [vmem:[%s4] sm:$0xff] %vm157, %v151
  %vm159 = vcmask 122880
  %160 = vst.msk [vmem:[%s4 + $0x8] sm:$0x1] %vm159, %v154
  // Predicated region
  $region22: #{_lambda_.28} parent=0 // pred_check
    _
  $region23: #{_lambda_.28} parent=0 // pred_check_branch
    %162 = sbr.rel (0) target = $region25
  $region24: #{_lambda_.28} parent=0 // pred_region
    _
  $region25: #{_lambda_.28} parent=0 // pred_fallthru
    _
  // Predicated region
  $region26: #{_lambda_.28} parent=0 // pred_check
    _
  $region27: #{_lambda_.28} parent=0 // pred_check_branch
    %164 = sbr.rel (0) target = $region29
  $region28: #{_lambda_.28} parent=0 // pred_region
    _
  $region29: #{_lambda_.28} parent=0 // pred_fallthru
    _

// kernel: _lambda_.15
$region0: #{_lambda_.15}
  #allocation0 [shape = 'u32[]', space=smem, size = 0x4, offset = 0x4, fixed_abs, tag = 'smem constant byte address 0x4 - core index']
  #allocation1 [shape = 'u32[144,128]{1,0:T(1,128)}', space=vmem, size = 0x12000, scoped, tag = 'internal scratch']
  #allocation2 [shape = 'f32[8,32]{1,0:T(8,128)}', space=vmem, size = 0x1000, scoped, tag = 'scratch operand']
  %s0 = inlined_call_operand.vmem [shape: bf16[8,192], index: 0, kind: input, shape index: {}]
  %s1 = inlined_call_operand.vmem [shape: bf16[192,32], index: 1, kind: input, shape index: {}]
  %s2 = inlined_call_operand.vmem [shape: bf16[8,32], index: 2, kind: output, shape index: {}]
  %s3 = sld [smem:[#allocation0]]
  $region26: #{_lambda_.15} parent=0
    _
  %s5 = ssub.s32 1, %s3
  %s6 = scalar_select 0, %s5, %s3
  // Predicated region
  $region2: #{_lambda_.15} parent=0 // pred_check
    _
  $region3: #{_lambda_.15} parent=0 // pred_check_branch
    %8 = sbr.rel (0) target = $region5
  $region4: #{_lambda_.15} parent=0 // pred_region
    _
  $region5: #{_lambda_.15} parent=0 // pred_fallthru
    _
  // Predicated region
  $region6: #{_lambda_.15} parent=0 // pred_check
    _
  $region7: #{_lambda_.15} parent=0 // pred_check_branch
    %10 = sbr.rel (0) target = $region9
  $region8: #{_lambda_.15} parent=0 // pred_region
    _
  $region9: #{_lambda_.15} parent=0 // pred_fallthru
    _
  %p12 = scmp.eq.s32.totalorder 0, 0
  // Predicated region
  $region10: #{_lambda_.15} parent=0 // pred_check
    %p13 = pneg %p12
  $region11: #{_lambda_.15} parent=0 // pred_check_branch
    %15 = sbr.rel (%p13) target = $region13
  $region12: #{_lambda_.15} parent=0 // pred_region
    %vm16 = vcmask 261120
    %17 = vst.msk [vmem:[#allocation2] sm:$0xff] %vm16, 0.0
  $region13: #{_lambda_.15} parent=0 // pred_fallthru
    _
  %v18 = vld [vmem:[#allocation2] sm:$0xff]
  %v19 = vld [vmem:[%s0] sm:$0xff]
  %v20 = vld [vmem:[%s1] sm:$0xf]
  %v21 = vld [vmem:[%s1 + $0x4] sm:$0xf]
  %v22 = vld [vmem:[%s1 + $0x8] sm:$0xf]
  %v23 = vld [vmem:[%s1 + $0xc] sm:$0xf]
  %v24 = vld [vmem:[%s1 + $0x10] sm:$0xf]
  %v25 = vld [vmem:[%s1 + $0x14] sm:$0xf]
  %v26 = vld [vmem:[%s1 + $0x18] sm:$0xf]
  %v27 = vld [vmem:[%s1 + $0x1c] sm:$0xf]
  %v28 = vld [vmem:[%s1 + $0x20] sm:$0xf]
  %v29 = vld [vmem:[%s1 + $0x24] sm:$0xf]
  %v30 = vld [vmem:[%s1 + $0x28] sm:$0xf]
  %v31 = vld [vmem:[%s1 + $0x2c] sm:$0xf]
  %v32 = vld [vmem:[%s1 + $0x30] sm:$0xf]
  %v33 = vld [vmem:[%s1 + $0x34] sm:$0xf]
  %v34 = vld [vmem:[%s1 + $0x38] sm:$0xf]
  %v35 = vld [vmem:[%s1 + $0x3c] sm:$0xf]
  %v36 = vld [vmem:[%s1 + $0x40] sm:$0xf]
  %v37 = vld [vmem:[%s1 + $0x44] sm:$0xf]
  %v38 = vld [vmem:[%s1 + $0x48] sm:$0xf]
  %v39 = vld [vmem:[%s1 + $0x4c] sm:$0xf]
  %v40 = vld [vmem:[%s1 + $0x50] sm:$0xf]
  %v41 = vld [vmem:[%s1 + $0x54] sm:$0xf]
  %v42 = vld [vmem:[%s1 + $0x58] sm:$0xf]
  %v43 = vld [vmem:[%s1 + $0x5c] sm:$0xf]
  %v45 = vunpack.c.l.b16 %v19
  %v46 = vunpack.c.h.b16 %v19
  %v47 = vpack.c.b16 %v45, %v45
  %v48 = vpack.c.b16 %v46, %v46
  %v74 = vunpack.c.l.b16 %v20
  %v75 = vunpack.c.l.b16 %v21
  %v76 = vunpack.c.l.b16 %v22
  %v77 = vunpack.c.l.b16 %v23
  %v78 = vunpack.c.l.b16 %v24
  %v79 = vunpack.c.l.b16 %v25
  %v80 = vunpack.c.l.b16 %v26
  %v81 = vunpack.c.l.b16 %v27
  %v82 = vunpack.c.l.b16 %v28
  %v83 = vunpack.c.l.b16 %v29
  %v84 = vunpack.c.l.b16 %v30
  %v85 = vunpack.c.l.b16 %v31
  %v86 = vunpack.c.l.b16 %v32
  %v87 = vunpack.c.l.b16 %v33
  %v88 = vunpack.c.l.b16 %v34
  %v89 = vunpack.c.l.b16 %v35
  %v90 = vunpack.c.l.b16 %v36
  %v91 = vunpack.c.l.b16 %v37
  %v92 = vunpack.c.l.b16 %v38
  %v93 = vunpack.c.l.b16 %v39
  %v94 = vunpack.c.l.b16 %v40
  %v95 = vunpack.c.l.b16 %v41
  %v96 = vunpack.c.l.b16 %v42
  %v97 = vunpack.c.l.b16 %v43
  %v98 = vpack.c.b16 %v75, %v74
  %v99 = vpack.c.b16 %v77, %v76
  %v100 = vpack.c.b16 %v79, %v78
  %v101 = vpack.c.b16 %v81, %v80
  %v102 = vpack.c.b16 %v83, %v82
  %v103 = vpack.c.b16 %v85, %v84
  %v104 = vpack.c.b16 %v87, %v86
  %v105 = vpack.c.b16 %v89, %v88
  %v106 = vpack.c.b16 %v91, %v90
  %v107 = vpack.c.b16 %v93, %v92
  %v108 = vpack.c.b16 %v95, %v94
  %v109 = vpack.c.b16 %v97, %v96
  %vm122 = vcmask 523264
  %v124 = vsel %vm122, %v48, 0
  %126 = vmatprep.subr.bf16.mxu0 0
  %127 = vmatpush1.bf16.msra.mxu0 %v98
  %128 = vmatprep.subr.bf16.mxu0 0
  %129 = vmatpush1.bf16.msra.mxu0 %v99
  %130 = vmatprep.subr.bf16.mxu0 0
  %131 = vmatpush1.bf16.msra.mxu0 %v100
  %132 = vmatprep.subr.bf16.mxu0 0
  %133 = vmatpush1.bf16.msra.mxu0 %v101
  %134 = vmatprep.subr.bf16.mxu0 0
  %135 = vmatpush1.bf16.msra.mxu0 %v102
  %136 = vmatprep.subr.bf16.mxu0 0
  %137 = vmatpush1.bf16.msra.mxu0 %v103
  %138 = vmatprep.subr.bf16.mxu0 0
  %139 = vmatpush1.bf16.msra.mxu0 %v104
  %140 = vmatprep.subr.bf16.mxu0 0
  %141 = vmatpush1.bf16.msra.mxu0 %v105
  %142 = vmatprep.subr.bf16.mxu0 0
  %143 = vmatpush1.bf16.msra.mxu0 %v106
  %144 = vmatprep.subr.bf16.mxu0 0
  %145 = vmatpush1.bf16.msra.mxu0 %v107
  %146 = vmatprep.subr.bf16.mxu0 0
  %147 = vmatpush1.bf16.msra.mxu0 %v108
  %148 = vmatprep.subr.bf16.mxu0 0
  %149 = vmatpush1.bf16.msra.mxu0 %v109
  %150 = vmatprep.subr.bf16.mxu0 0
  %151 = vmatpush1.bf16.msra.mxu0 0
  %152 = vmatprep.subr.bf16.mxu0 0
  %153 = vmatpush1.bf16.msra.mxu0 0
  %154 = vmatprep.subr.bf16.mxu0 0
  %155 = vmatpush1.bf16.msra.mxu0 0
  %156 = vmatprep.subr.bf16.mxu0 0
  %157 = vmatpush1.bf16.msra.mxu0 0
  %158 = vmatprep.mubr.bf16.mxu0 %v124
  %159 = vmatmul.mubr.bf16.gmra.mrb[0].mxu0 %v47
  %v160 = vpop.f32.mrb[0].mxu0
  %v161 = vadd.f32 0.0, %v160
  %v162 = vpop.f32.mrb[0].mxu0
  %v163 = vpop.f32.mrb[0].mxu0
  %v164 = vpop.f32.mrb[0].mxu0
  %165 = vdwg.mxu0
  %v166 = vadd.f32 %v18, %v161
  %vm167 = vcmask 261120
  %168 = vst.msk [vmem:[#allocation2] sm:$0xff] %vm167, %v166
  // Predicated region
  $region14: #{_lambda_.15} parent=0 // pred_check
    %p169 = pneg %p12
  $region15: #{_lambda_.15} parent=0 // pred_check_branch
    %171 = sbr.rel (%p169) target = $region17
  $region16: #{_lambda_.15} parent=0 // pred_region
    %v172 = vld [vmem:[#allocation2] sm:$0xff]
    %v173 = vpack.c.bf16 %v172, %v172
    %vm174 = vcmask 257024
    %175 = vst.msk [vmem:[%s2] sm:$0xf] %vm174, %v173
  $region17: #{_lambda_.15} parent=0 // pred_fallthru
    _
  // Predicated region
  $region18: #{_lambda_.15} parent=0 // pred_check
    _
  $region19: #{_lambda_.15} parent=0 // pred_check_branch
    %177 = sbr.rel (0) target = $region21
  $region20: #{_lambda_.15} parent=0 // pred_region
    _
  $region21: #{_lambda_.15} parent=0 // pred_fallthru
    _
  // Predicated region
  $region22: #{_lambda_.15} parent=0 // pred_check
    _
  $region23: #{_lambda_.15} parent=0 // pred_check_branch
    %179 = sbr.rel (0) target = $region25
  $region24: #{_lambda_.15} parent=0 // pred_region
    _
  $region25: #{_lambda_.15} parent=0 // pred_fallthru
    _

// kernel: _lambda_.16
$region0: #{_lambda_.16}
  #allocation0 [shape = 'u32[]', space=smem, size = 0x4, offset = 0x4, fixed_abs, tag = 'smem constant byte address 0x4 - core index']
  #allocation1 [shape = 'u32[144,128]{1,0:T(1,128)}', space=vmem, size = 0x12000, scoped, tag = 'internal scratch']
  %s0 = inlined_call_operand.vmem [shape: bf16[2,5,32], index: 0, kind: input, shape index: {}]
  %s1 = inlined_call_operand.vmem [shape: f32[5,32], index: 1, kind: input, shape index: {}]
  %s2 = inlined_call_operand.vmem [shape: f32[1,32], index: 2, kind: input, shape index: {}]
  %s3 = inlined_call_operand.vmem [shape: f32[1,32], index: 3, kind: input, shape index: {}]
  %s4 = inlined_call_operand.vmem [shape: bf16[2,5,32], index: 4, kind: output, shape index: {}]
  %s5 = sld [smem:[#allocation0]]
  $region49: #{_lambda_.16} parent=0
    _
  %s7 = ssub.s32 1, %s5
  %s8 = scalar_select 0, %s7, %s5
  loop: start=0, step=1, limit=4
  $region2: #{_lambda_.16} parent=0 // loop_pre_header
    _
  $region3: #{_lambda_.16} parent=0 // loop_header
    %s10 = sphi 0, %s14
    %p11 = scmp.ge.s32.totalorder %s10, 4
    %s20 = sphi 0, %s22
    %s23 = sphi 0, %s20
    %s24 = sphi 0, %s23
    %s40 = sphi 0, %s24
    %s44 = sphi 0, %s44
    %s46 = sphi 0, %s44
    %s47 = sphi 0, %s46
    %s61 = sphi 0, %s47
    %s65 = sphi 0, %s65
    %s67 = sphi 0, %s65
    %s68 = sphi 0, %s67
    %s82 = sphi 0, %s68
    %s86 = sphi 0, %s86
    %s88 = sphi 0, %s86
    %s89 = sphi 0, %s88
    %s103 = sphi 0, %s89
    %s109 = sphi 0, %s111
    %s112 = sphi 0, %s109
    %s113 = sphi 0, %s112
    %s129 = sphi 0, %s113
  $region4: #{_lambda_.16} parent=0 // loop_header_branch
    %13 = sbr.rel (%p11) target = $region8
  $region5: #{_lambda_.16} parent=0 // loop_body
    %s15 = ssub.s32 %s10, 1
    %s16 = ssub.s32 %s10, 2
    %s17 = sadd.s32 %s10, 1
    %s18 = ssub.s32 %s10, %s17
    %p19 = scmp.eq.s32.totalorder %s18, 0
    %s21 = sadd.s32 %s20, 1
    %s22 = scalar_select %p19, %s20, %s21
    %p25 = pneg %p19
    %p26 = scmp.eq.s32.totalorder %s10, 1
    %p27 = por %p25, %p26
    %p28 = scmp.ne.s32.totalorder %s20, %s23
    %p29 = scmp.eq.s32.totalorder %s10, 0
    %p30 = por %p28, %p29
    %p31 = scmp.ne.s32.totalorder %s20, %s23
    %p32 = scmp.eq.s32.totalorder %s15, 1
    %p33 = por %p31, %p32
    %p34 = scmp.ne.s32.totalorder %s23, %s24
    %p35 = scmp.eq.s32.totalorder %s15, 0
    %p36 = por %p34, %p35
    %p37 = scmp.ne.s32.totalorder %s23, %s24
    %p38 = scmp.eq.s32.totalorder %s16, 1
    %p39 = por %p37, %p38
    %p41 = scmp.ne.s32.totalorder %s24, %s40
    %p42 = scmp.eq.s32.totalorder %s16, 0
    %p43 = por %p41, %p42
    %s45 = sadd.s32 %s44, 1
    %p48 = scmp.eq.s32.totalorder %s10, 1
    %p49 = scmp.ne.s32.totalorder %s44, %s46
    %p50 = scmp.eq.s32.totalorder %s10, 0
    %p51 = por %p49, %p50
    %p52 = scmp.ne.s32.totalorder %s44, %s46
    %p53 = scmp.eq.s32.totalorder %s15, 1
    %p54 = por %p52, %p53
    %p55 = scmp.ne.s32.totalorder %s46, %s47
    %p56 = scmp.eq.s32.totalorder %s15, 0
    %p57 = por %p55, %p56
    %p58 = scmp.ne.s32.totalorder %s46, %s47
    %p59 = scmp.eq.s32.totalorder %s16, 1
    %p60 = por %p58, %p59
    %p62 = scmp.ne.s32.totalorder %s47, %s61
    %p63 = scmp.eq.s32.totalorder %s16, 0
    %p64 = por %p62, %p63
    %s66 = sadd.s32 %s65, 1
    %p69 = scmp.eq.s32.totalorder %s10, 1
    %p70 = scmp.ne.s32.totalorder %s65, %s67
    %p71 = scmp.eq.s32.totalorder %s10, 0
    %p72 = por %p70, %p71
    %p73 = scmp.ne.s32.totalorder %s65, %s67
    %p74 = scmp.eq.s32.totalorder %s15, 1
    %p75 = por %p73, %p74
    %p76 = scmp.ne.s32.totalorder %s67, %s68
    %p77 = scmp.eq.s32.totalorder %s15, 0
    %p78 = por %p76, %p77
    %p79 = scmp.ne.s32.totalorder %s67, %s68
    %p80 = scmp.eq.s32.totalorder %s16, 1
    %p81 = por %p79, %p80
    %p83 = scmp.ne.s32.totalorder %s68, %s82
    %p84 = scmp.eq.s32.totalorder %s16, 0
    %p85 = por %p83, %p84
    %s87 = sadd.s32 %s86, 1
    %p90 = scmp.eq.s32.totalorder %s10, 1
    %p91 = scmp.ne.s32.totalorder %s86, %s88
    %p92 = scmp.eq.s32.totalorder %s10, 0
    %p93 = por %p91, %p92
    %p94 = scmp.ne.s32.totalorder %s86, %s88
    %p95 = scmp.eq.s32.totalorder %s15, 1
    %p96 = por %p94, %p95
    %p97 = scmp.ne.s32.totalorder %s88, %s89
    %p98 = scmp.eq.s32.totalorder %s15, 0
    %p99 = por %p97, %p98
    %p100 = scmp.ne.s32.totalorder %s88, %s89
    %p101 = scmp.eq.s32.totalorder %s16, 1
    %p102 = por %p100, %p101
    %p104 = scmp.ne.s32.totalorder %s89, %s103
    %p105 = scmp.eq.s32.totalorder %s16, 0
    %p106 = por %p104, %p105
    %s107 = ssub.s32 %s10, %s17
    %p108 = scmp.eq.s32.totalorder %s107, 0
    %s110 = sadd.s32 %s109, 1
    %s111 = scalar_select %p108, %s109, %s110
    %p114 = pneg %p108
    %p115 = scmp.eq.s32.totalorder %s10, 1
    %p116 = por %p114, %p115
    %p117 = scmp.ne.s32.totalorder %s109, %s112
    %p118 = scmp.eq.s32.totalorder %s10, 0
    %p119 = por %p117, %p118
    %p120 = scmp.ne.s32.totalorder %s109, %s112
    %p121 = scmp.eq.s32.totalorder %s15, 1
    %p122 = por %p120, %p121
    %p123 = scmp.ne.s32.totalorder %s112, %s113
    %p124 = scmp.eq.s32.totalorder %s15, 0
    %p125 = por %p123, %p124
    %p126 = scmp.ne.s32.totalorder %s112, %s113
    %p127 = scmp.eq.s32.totalorder %s16, 1
    %p128 = por %p126, %p127
    %p130 = scmp.ne.s32.totalorder %s113, %s129
    %p131 = scmp.eq.s32.totalorder %s16, 0
    %p132 = por %p130, %p131
    %p133 = scmp.le.s32.totalorder 1, %s10
    %p134 = scmp.lt.s32.totalorder %s10, 3
    %p135 = pnand %p133, %p134
    %p136 = pneg %p135
    // Predicated region
    $region9: #{_lambda_.16} parent=5 // pred_check
      _
    $region10: #{_lambda_.16} parent=5 // pred_check_branch
      %138 = sbr.rel (%p135) target = $region12
    $region11: #{_lambda_.16} parent=5 // pred_region
      %s139 = ssub.s32 %s10, 1
      // Predicated region
      $region13: #{_lambda_.16} parent=11 // pred_check
        %p140 = pneg %p57
      $region14: #{_lambda_.16} parent=11 // pred_check_branch
        %142 = sbr.rel (%p140) target = $region16
      $region15: #{_lambda_.16} parent=11 // pred_region
        _
      $region16: #{_lambda_.16} parent=11 // pred_fallthru
        _
      // Predicated region
      $region17: #{_lambda_.16} parent=11 // pred_check
        %p143 = pneg %p78
      $region18: #{_lambda_.16} parent=11 // pred_check_branch
        %145 = sbr.rel (%p143) target = $region20
      $region19: #{_lambda_.16} parent=11 // pred_region
        _
      $region20: #{_lambda_.16} parent=11 // pred_fallthru
        _
      // Predicated region
      $region21: #{_lambda_.16} parent=11 // pred_check
        %p146 = pneg %p99
      $region22: #{_lambda_.16} parent=11 // pred_check_branch
        %148 = sbr.rel (%p146) target = $region24
      $region23: #{_lambda_.16} parent=11 // pred_region
        _
      $region24: #{_lambda_.16} parent=11 // pred_fallthru
        _
    $region12: #{_lambda_.16} parent=5 // pred_fallthru
      _
    %p149 = scmp.lt.s32.totalorder %s10, 2
    // Predicated region
    $region25: #{_lambda_.16} parent=5 // pred_check
      %p150 = pneg %p149
    $region26: #{_lambda_.16} parent=5 // pred_check_branch
      %152 = sbr.rel (%p150) target = $region28
    $region27: #{_lambda_.16} parent=5 // pred_region
      // Predicated region
      $region29: #{_lambda_.16} parent=27 // pred_check
        %p153 = pneg %p30
      $region30: #{_lambda_.16} parent=27 // pred_check_branch
        %155 = sbr.rel (%p153) target = $region32
      $region31: #{_lambda_.16} parent=27 // pred_region
        %p156 = scmp.lt.s32.totalorder %s10, 1
        %s157 = scalar_select %p156, %s10, 1
        %s158 = smul.addr %s157, 4
        %s159 = scalar_lea.vmem %s0, %s158
      $region32: #{_lambda_.16} parent=27 // pred_fallthru
        _
    $region28: #{_lambda_.16} parent=5 // pred_fallthru
      _
    %p160 = scmp.le.s32.totalorder 1, %s10
    %p161 = scmp.lt.s32.totalorder %s10, 3
    %p162 = pnand %p160, %p161
    %p163 = pneg %p162
    // Predicated region
    $region33: #{_lambda_.16} parent=5 // pred_check
      _
    $region34: #{_lambda_.16} parent=5 // pred_check_branch
      %165 = sbr.rel (%p162) target = $region36
    $region35: #{_lambda_.16} parent=5 // pred_region
      %s166 = ssub.s32 %s10, 1
      %p167 = scmp.lt.s32.totalorder %s15, 1
      %s168 = scalar_select %p167, %s15, 1
      %s169 = smul.addr %s168, 4
      %s170 = scalar_lea.vmem %s0, %s169
      %p171 = pneg %p36
      %p172 = pneg %p33
      %p173 = pneg %p57
      %p174 = pneg %p54
      %p175 = pneg %p78
      %p176 = pneg %p75
      %p177 = pneg %p99
      %p178 = pneg %p96
      %p179 = pneg %p125
      %p180 = pneg %p122
      %p181 = scmp.lt.s32.totalorder %s15, 1
      %s182 = scalar_select %p181, %s15, 1
      %s183 = smul.addr %s182, 4
      %s184 = scalar_lea.vmem %s4, %s183
      %p185 = scmp.lt.s32.totalorder %s15, 1
      %s186 = scalar_select %p185, %s15, 1
      %s187 = smul.addr %s186, 4
      %s188 = scalar_lea.vmem %s0, %s187
      %p189 = scmp.lt.s32.totalorder %s15, 1
      %s190 = scalar_select %p189, %s15, 1
      %s191 = smul.addr %s190, 4
      %s192 = scalar_lea.vmem %s4, %s191
      %v193 = vld [vmem:[%s188] sm:$0x7]
      %v194 = vunpack.c.l.bf16 %v193
      %v195 = vld [vmem:[%s1] sm:$0x1f]
      %v196 = vadd.f32 %v194, %v195
      %vm197 = vcmask 258048
      %v198 = vsel %vm197, %v196, 0.0
      %199 = vadd.xlane.f32.xlu0 %v198
      %v200 = vpop.xlane.xlu0 %199
      %v201 = vrcp.pop 32.0
      %v202 = vmul.f32 %v200, %v201
      %v203 = vsub.f32 %v196, %v202
      %v204 = vmul.f32 %v203, %v203
      %v205 = vsel %vm197, %v204, 0.0
      %206 = vadd.xlane.f32.xlu0 %v205
      %v207 = vpop.xlane.xlu0 %206
      %v208 = vmul.f32 %v207, %v201
      %v209 = vadd.f32 %v208, 1e-05
      %v210 = vrsqrt.pop %v209
      %v211 = vmul.f32 %v203, %v210
      %v212 = vld [vmem:[%s2] sm:$0x1]
      %v214 = vlaneseq
      %v215 = vshrl.u32 %v214, 7
      %v216 = vsub.s32 0, %v215
      %v217 = vrot.slane %v212, %v216
      %v219 = vmul.f32 %v211, %v217
      %v220 = vld [vmem:[%s3] sm:$0x1]
      %v222 = vlaneseq
      %v223 = vshrl.u32 %v222, 7
      %v224 = vsub.s32 0, %v223
      %v225 = vrot.slane %v220, %v224
      %v227 = vadd.f32 %v219, %v225
      %v228 = vpack.c.bf16 %v227, %v227
      %vm229 = vcmask 256000
      %vm230 = vsmask.f32 2304
      %vm231 = vmand %vm229, %vm230
      %v232 = vld [vmem:[%s192] sm:$0x7]
      %v233 = vsel %vm231, %v228, %v232
      %234 = vst [vmem:[%s192] sm:$0x7] %v233
      %p235 = scmp.lt.s32.totalorder %s15, 1
      %s236 = scalar_select %p235, %s15, 1
      %s237 = smul.addr %s236, 4
      %s238 = scalar_lea.vmem %s4, %s237
      // Predicated region
      $region37: #{_lambda_.16} parent=35 // pred_check
        %p239 = pneg %p122
      $region38: #{_lambda_.16} parent=35 // pred_check_branch
        %241 = sbr.rel (%p239) target = $region40
      $region39: #{_lambda_.16} parent=35 // pred_region
        _
      $region40: #{_lambda_.16} parent=35 // pred_fallthru
        _
    $region36: #{_lambda_.16} parent=5 // pred_fallthru
      _
    %p242 = scmp.le.s32.totalorder 2, %s10
    // Predicated region
    $region41: #{_lambda_.16} parent=5 // pred_check
      %p243 = pneg %p242
    $region42: #{_lambda_.16} parent=5 // pred_check_branch
      %245 = sbr.rel (%p243) target = $region44
    $region43: #{_lambda_.16} parent=5 // pred_region
      %s246 = ssub.s32 %s10, 2
      // Predicated region
      $region45: #{_lambda_.16} parent=43 // pred_check
        %p247 = pneg %p128
      $region46: #{_lambda_.16} parent=43 // pred_check_branch
        %249 = sbr.rel (%p247) target = $region48
      $region47: #{_lambda_.16} parent=43 // pred_region
        %p250 = scmp.lt.s32.totalorder %s16, 1
        %s251 = scalar_select %p250, %s16, 1
        %s252 = smul.addr %s251, 4
        %s253 = scalar_lea.vmem %s4, %s252
      $region48: #{_lambda_.16} parent=43 // pred_fallthru
        _
    $region44: #{_lambda_.16} parent=5 // pred_fallthru
      _
  $region6: #{_lambda_.16} parent=0 // loop_footer
    %s14 = sadd.s32 1, %s10
  $region7: #{_lambda_.16} parent=0 // loop_footer_branch
    %9 = sbr.rel target = $region3
  $region8: #{_lambda_.16} parent=0 // loop_exit
    _

// kernel: _lambda_.17
$region0: #{_lambda_.17}
  #allocation0 [shape = 'u32[]', space=smem, size = 0x4, offset = 0x4, fixed_abs, tag = 'smem constant byte address 0x4 - core index']
  #allocation1 [shape = 'u32[144,128]{1,0:T(1,128)}', space=vmem, size = 0x12000, scoped, tag = 'internal scratch']
  #allocation2 [shape = 'bf16[10,32]{1,0:T(8,128)(2,1)}', space=vmem, size = 0x1000, scoped, tag = 'scratch operand']
  %s0 = inlined_call_operand.vmem [shape: bf16[10,32], index: 0, kind: input, shape index: {}]
  %s1 = inlined_call_operand.vmem [shape: f32[1,32], index: 1, kind: input, shape index: {}]
  %s2 = inlined_call_operand.vmem [shape: f32[1,32], index: 2, kind: input, shape index: {}]
  %s3 = inlined_call_operand.vmem [shape: bf16[32,96], index: 3, kind: input, shape index: {}]
  %s4 = inlined_call_operand.vmem [shape: f32[1,96], index: 4, kind: input, shape index: {}]
  %s5 = inlined_call_operand.vmem [shape: bf16[10,96], index: 5, kind: output, shape index: {}]
  %s6 = sld [smem:[#allocation0]]
  $region34: #{_lambda_.17} parent=0
    _
  %s8 = ssub.s32 1, %s6
  %s9 = scalar_select 0, %s8, %s6
  // Predicated region
  $region2: #{_lambda_.17} parent=0 // pred_check
    _
  $region3: #{_lambda_.17} parent=0 // pred_check_branch
    %11 = sbr.rel (0) target = $region5
  $region4: #{_lambda_.17} parent=0 // pred_region
    _
  $region5: #{_lambda_.17} parent=0 // pred_fallthru
    _
  // Predicated region
  $region6: #{_lambda_.17} parent=0 // pred_check
    _
  $region7: #{_lambda_.17} parent=0 // pred_check_branch
    %13 = sbr.rel (0) target = $region9
  $region8: #{_lambda_.17} parent=0 // pred_region
    _
  $region9: #{_lambda_.17} parent=0 // pred_fallthru
    _
  // Predicated region
  $region10: #{_lambda_.17} parent=0 // pred_check
    _
  $region11: #{_lambda_.17} parent=0 // pred_check_branch
    %15 = sbr.rel (0) target = $region13
  $region12: #{_lambda_.17} parent=0 // pred_region
    _
  $region13: #{_lambda_.17} parent=0 // pred_fallthru
    _
  // Predicated region
  $region14: #{_lambda_.17} parent=0 // pred_check
    _
  $region15: #{_lambda_.17} parent=0 // pred_check_branch
    %17 = sbr.rel (0) target = $region17
  $region16: #{_lambda_.17} parent=0 // pred_region
    _
  $region17: #{_lambda_.17} parent=0 // pred_fallthru
    _
  // Predicated region
  $region18: #{_lambda_.17} parent=0 // pred_check
    _
  $region19: #{_lambda_.17} parent=0 // pred_check_branch
    %19 = sbr.rel (0) target = $region21
  $region20: #{_lambda_.17} parent=0 // pred_region
    _
  $region21: #{_lambda_.17} parent=0 // pred_fallthru
    _
  %p21 = scmp.eq.s32.totalorder 0, 0
  // Predicated region
  $region22: #{_lambda_.17} parent=0 // pred_check
    %p22 = pneg %p21
  $region23: #{_lambda_.17} parent=0 // pred_check_branch
    %24 = sbr.rel (%p22) target = $region25
  $region24: #{_lambda_.17} parent=0 // pred_region
    %v25 = vld [vmem:[%s0] sm:$0xf]
    %v26 = vld [vmem:[%s0 + $0x4] sm:$0x1]
    %v27 = vunpack.c.l.bf16 %v25
    %v28 = vunpack.c.l.bf16 %v26
    %vm29 = vcmask 261120
    %v30 = vsel %vm29, %v27, 0.0
    %31 = vadd.xlane.f32.xlu0 %v30
    %v32 = vpop.xlane.xlu0 %31
    %vm33 = vcmask 254976
    %v34 = vsel %vm33, %v28, 0.0
    %35 = vadd.xlane.f32.xlu0 %v34
    %v36 = vpop.xlane.xlu0 %35
    %v37 = vrcp.pop 32.0
    %v38 = vmul.f32 %v32, %v37
    %v39 = vmul.f32 %v36, %v37
    %v40 = vsub.f32 %v27, %v38
    %v41 = vsub.f32 %v28, %v39
    %v42 = vmul.f32 %v40, %v40
    %v43 = vmul.f32 %v41, %v41
    %v44 = vsel %vm29, %v42, 0.0
    %45 = vadd.xlane.f32.xlu0 %v44
    %v46 = vpop.xlane.xlu0 %45
    %v47 = vsel %vm33, %v43, 0.0
    %48 = vadd.xlane.f32.xlu0 %v47
    %v49 = vpop.xlane.xlu0 %48
    %v50 = vmul.f32 %v46, %v37
    %v51 = vmul.f32 %v49, %v37
    %v52 = vadd.f32 %v50, 1e-05
    %v53 = vadd.f32 %v51, 1e-05
    %v54 = vrsqrt.pop %v52
    %v55 = vrsqrt.pop %v53
    %v56 = vmul.f32 %v40, %v54
    %v57 = vmul.f32 %v41, %v55
    %v58 = vld [vmem:[%s1] sm:$0x1]
    %v60 = vlaneseq
    %v61 = vshrl.u32 %v60, 7
    %v62 = vsub.s32 0, %v61
    %v63 = vrot.slane %v58, %v62
    %v65 = vmul.f32 %v56, %v63
    %v66 = vmul.f32 %v57, %v63
    %v67 = vld [vmem:[%s2] sm:$0x1]
    %v69 = vlaneseq
    %v70 = vshrl.u32 %v69, 7
    %v71 = vsub.s32 0, %v70
    %v72 = vrot.slane %v67, %v71
    %v74 = vadd.f32 %v65, %v72
    %v75 = vadd.f32 %v66, %v72
    %v76 = vpack.c.bf16 %v75, %v74
    %v78 = vunpack.c.l.b16 %v76
    %v79 = vunpack.c.h.b16 %v76
    %v80 = vpack.c.b16 %v78, %v78
    %v81 = vpack.c.b16 %v79, %v79
    %vm84 = vcmask 257024
    %85 = vst.msk [vmem:[#allocation2] sm:$0xf] %vm84, %v80
    %vm86 = vcmask 253952
    %87 = vst.msk [vmem:[#allocation2 + $0x4] sm:$0x1] %vm86, %v81
  $region25: #{_lambda_.17} parent=0 // pred_fallthru
    _
  %v88 = vld [vmem:[#allocation2] sm:$0xf]
  %v89 = vld [vmem:[#allocation2 + $0x4] sm:$0x1]
  %v90 = vld [vmem:[%s3] sm:$0xf]
  %v91 = vld [vmem:[%s3 + $0x4] sm:$0xf]
  %v92 = vld [vmem:[%s3 + $0x8] sm:$0xf]
  %v93 = vld [vmem:[%s3 + $0xc] sm:$0xf]
  %v94 = vld [vmem:[%s4] sm:$0x1]
  %v96 = vlaneseq
  %v97 = vshrl.u32 %v96, 7
  %v98 = vsub.s32 0, %v97
  %v99 = vrot.slane %v94, %v98
  %v103 = vunpack.c.l.b16 %v88
  %v104 = vunpack.c.l.b16 %v89
  %v105 = vpack.c.b16 %v104, %v103
  %v110 = vunpack.c.l.b16 %v90
  %v111 = vunpack.c.l.b16 %v91
  %v112 = vunpack.c.l.b16 %v92
  %v113 = vunpack.c.l.b16 %v93
  %v114 = vpack.c.b16 %v111, %v110
  %v115 = vpack.c.b16 %v113, %v112
  %vm118 = vcmask 261120
  %v120 = vsel %vm118, %v105, 0
  %122 = vmatprep.subr.bf16.mxu0 0
  %123 = vmatpush1.bf16.msra.mxu0 %v114
  %124 = vmatprep.subr.bf16.mxu0 0
  %125 = vmatpush1.bf16.msra.mxu0 %v115
  %126 = vmatprep.subr.bf16.mxu0 0
  %127 = vmatpush1.bf16.msra.mxu0 0
  %128 = vmatprep.subr.bf16.mxu0 0
  %129 = vmatpush1.bf16.msra.mxu0 0
  %130 = vmatprep.subr.bf16.mxu0 0
  %131 = vmatpush1.bf16.msra.mxu0 0
  %132 = vmatprep.subr.bf16.mxu0 0
  %133 = vmatpush1.bf16.msra.mxu0 0
  %134 = vmatprep.subr.bf16.mxu0 0
  %135 = vmatpush1.bf16.msra.mxu0 0
  %136 = vmatprep.subr.bf16.mxu0 0
  %137 = vmatpush1.bf16.msra.mxu0 0
  %138 = vmatprep.subr.bf16.mxu0 0
  %139 = vmatpush1.bf16.msra.mxu0 0
  %140 = vmatprep.subr.bf16.mxu0 0
  %141 = vmatpush1.bf16.msra.mxu0 0
  %142 = vmatprep.subr.bf16.mxu0 0
  %143 = vmatpush1.bf16.msra.mxu0 0
  %144 = vmatprep.subr.bf16.mxu0 0
  %145 = vmatpush1.bf16.msra.mxu0 0
  %146 = vmatprep.subr.bf16.mxu0 0
  %147 = vmatpush1.bf16.msra.mxu0 0
  %148 = vmatprep.subr.bf16.mxu0 0
  %149 = vmatpush1.bf16.msra.mxu0 0
  %150 = vmatprep.subr.bf16.mxu0 0
  %151 = vmatpush1.bf16.msra.mxu0 0
  %152 = vmatprep.subr.bf16.mxu0 0
  %153 = vmatpush1.bf16.msra.mxu0 0
  %154 = vmatprep.mubr.bf16.mxu0 0
  %155 = vmatmul.mubr.bf16.gmra.mrb[0].mxu0 %v120
  %v156 = vpop.f32.mrb[0].mxu0
  %v157 = vadd.f32 %v99, %v156
  %v158 = vpop.f32.mrb[0].mxu0
  %v159 = vpop.f32.mrb[0].mxu0
  %v160 = vadd.f32 %v99, %v159
  %v161 = vpop.f32.mrb[0].mxu0
  %162 = vdwg.mxu0
  %v163 = vpack.c.bf16 %v160, %v157
  %v165 = vunpack.c.l.b16 %v163
  %v166 = vunpack.c.h.b16 %v163
  %v167 = vpack.c.b16 %v165, %v165
  %v168 = vpack.c.b16 %v166, %v166
  %vm171 = vcmask 781312
  %172 = vst.msk [vmem:[%s5] sm:$0xf] %vm171, %v167
  %vm173 = vcmask 778240
  %174 = vst.msk [vmem:[%s5 + $0x4] sm:$0x1] %vm173, %v168
  // Predicated region
  $region26: #{_lambda_.17} parent=0 // pred_check
    _
  $region27: #{_lambda_.17} parent=0 // pred_check_branch
    %176 = sbr.rel (0) target = $region29
  $region28: #{_lambda_.17} parent=0 // pred_region
    _
  $region29: #{_lambda_.17} parent=0 // pred_fallthru
    _
  // Predicated region
  $region30: #{_lambda_.17} parent=0 // pred_check
    _
  $region31: #{_lambda_.17} parent=0 // pred_check_branch
    %178 = sbr.rel (0) target = $region33
  $region32: #{_lambda_.17} parent=0 // pred_region
    _
  $region33: #{_lambda_.17} parent=0 // pred_fallthru
    _

// kernel: _lambda_.18
$region0: #{_lambda_.18}
  #allocation0 [shape = 'u32[]', space=smem, size = 0x4, offset = 0x4, fixed_abs, tag = 'smem constant byte address 0x4 - core index']
  #allocation1 [shape = 'u32[144,128]{1,0:T(1,128)}', space=vmem, size = 0x12000, scoped, tag = 'internal scratch']
  #allocation2 [shape = 'f32[5,1]{1,0:T(8,128)}', space=vmem, size = 0x1000, scoped, tag = 'scratch operand']
  #allocation3 [shape = 'f32[5,1]{1,0:T(8,128)}', space=vmem, size = 0x1000, scoped, tag = 'scratch operand']
  #allocation4 [shape = 'f32[5,16]{1,0:T(8,128)}', space=vmem, size = 0x1000, scoped, tag = 'scratch operand']
  %s0 = inlined_call_operand.vmem [shape: bf16[4,5,16], index: 0, kind: input, shape index: {}]
  %s1 = inlined_call_operand.vmem [shape: bf16[4,5,16], index: 1, kind: input, shape index: {}]
  %s2 = inlined_call_operand.vmem [shape: bf16[4,5,16], index: 2, kind: input, shape index: {}]
  %s3 = inlined_call_operand.vmem [shape: bf16[4,5,16], index: 3, kind: output, shape index: {}]
  %s4 = sld [smem:[#allocation0]]
  $region53: #{_lambda_.18} parent=0
    _
  %s6 = ssub.s32 1, %s4
  %s7 = scalar_select 0, %s6, %s4
  loop: start=0, step=1, limit=6
  $region2: #{_lambda_.18} parent=0 // loop_pre_header
    _
  $region3: #{_lambda_.18} parent=0 // loop_header
    %s9 = sphi 0, %s13
    %p10 = scmp.ge.s32.totalorder %s9, 6
    %s16 = sphi 0, %s28
    %s17 = sphi 0, %s24
    %s18 = sphi 0, %s16
    %s19 = sphi 0, %s17
    %s20 = sphi 0, %s18
    %s21 = sphi 0, %s19
    %s31 = sphi 0, %s33
    %s34 = sphi 0, %s31
    %s35 = sphi 0, %s34
    %s51 = sphi 0, %s35
    %s59 = sphi 0, %s61
    %s62 = sphi 0, %s59
    %s63 = sphi 0, %s62
    %s79 = sphi 0, %s63
    %s87 = sphi 0, %s89
    %s90 = sphi 0, %s87
    %s91 = sphi 0, %s90
    %s107 = sphi 0, %s91
    %s113 = sphi 0, %s115
    %s116 = sphi 0, %s113
    %s117 = sphi 0, %s116
    %s133 = sphi 0, %s117
  $region4: #{_lambda_.18} parent=0 // loop_header_branch
    %12 = sbr.rel (%p10) target = $region8
  $region5: #{_lambda_.18} parent=0 // loop_body
    %s14 = ssub.s32 %s9, 1
    %s15 = ssub.s32 %s9, 2
    %s22 = sadd.s32 1, %s17
    %p23 = scmp.ge.s32.totalorder %s22, 1
    %s24 = scalar_select %p23, 0, %s22
    %s25 = sadd.s32 1, %s16
    %s26 = scalar_select %p23, %s25, %s16
    %p27 = scmp.ge.s32.totalorder %s26, 4
    %s28 = scalar_select %p27, 0, %s26
    %s29 = ssub.s32 %s16, %s28
    %p30 = scmp.eq.s32.totalorder %s29, 0
    %s32 = sadd.s32 %s31, 1
    %s33 = scalar_select %p30, %s31, %s32
    %p36 = pneg %p30
    %p37 = scmp.eq.s32.totalorder %s9, 3
    %p38 = por %p36, %p37
    %p39 = scmp.ne.s32.totalorder %s31, %s34
    %p40 = scmp.eq.s32.totalorder %s9, 0
    %p41 = por %p39, %p40
    %p42 = scmp.ne.s32.totalorder %s31, %s34
    %p43 = scmp.eq.s32.totalorder %s14, 3
    %p44 = por %p42, %p43
    %p45 = scmp.ne.s32.totalorder %s34, %s35
    %p46 = scmp.eq.s32.totalorder %s14, 0
    %p47 = por %p45, %p46
    %p48 = scmp.ne.s32.totalorder %s34, %s35
    %p49 = scmp.eq.s32.totalorder %s15, 3
    %p50 = por %p48, %p49
    %p52 = scmp.ne.s32.totalorder %s35, %s51
    %p53 = scmp.eq.s32.totalorder %s15, 0
    %p54 = por %p52, %p53
    %s55 = ssub.s32 %s16, %s28
    %s56 = ssub.s32 %s17, %s24
    %s57 = sor.u32 %s55, %s56
    %p58 = scmp.eq.s32.totalorder %s57, 0
    %s60 = sadd.s32 %s59, 1
    %s61 = scalar_select %p58, %s59, %s60
    %p64 = pneg %p58
    %p65 = scmp.eq.s32.totalorder %s9, 3
    %p66 = por %p64, %p65
    %p67 = scmp.ne.s32.totalorder %s59, %s62
    %p68 = scmp.eq.s32.totalorder %s9, 0
    %p69 = por %p67, %p68
    %p70 = scmp.ne.s32.totalorder %s59, %s62
    %p71 = scmp.eq.s32.totalorder %s14, 3
    %p72 = por %p70, %p71
    %p73 = scmp.ne.s32.totalorder %s62, %s63
    %p74 = scmp.eq.s32.totalorder %s14, 0
    %p75 = por %p73, %p74
    %p76 = scmp.ne.s32.totalorder %s62, %s63
    %p77 = scmp.eq.s32.totalorder %s15, 3
    %p78 = por %p76, %p77
    %p80 = scmp.ne.s32.totalorder %s63, %s79
    %p81 = scmp.eq.s32.totalorder %s15, 0
    %p82 = por %p80, %p81
    %s83 = ssub.s32 %s16, %s28
    %s84 = ssub.s32 %s17, %s24
    %s85 = sor.u32 %s83, %s84
    %p86 = scmp.eq.s32.totalorder %s85, 0
    %s88 = sadd.s32 %s87, 1
    %s89 = scalar_select %p86, %s87, %s88
    %p92 = pneg %p86
    %p93 = scmp.eq.s32.totalorder %s9, 3
    %p94 = por %p92, %p93
    %p95 = scmp.ne.s32.totalorder %s87, %s90
    %p96 = scmp.eq.s32.totalorder %s9, 0
    %p97 = por %p95, %p96
    %p98 = scmp.ne.s32.totalorder %s87, %s90
    %p99 = scmp.eq.s32.totalorder %s14, 3
    %p100 = por %p98, %p99
    %p101 = scmp.ne.s32.totalorder %s90, %s91
    %p102 = scmp.eq.s32.totalorder %s14, 0
    %p103 = por %p101, %p102
    %p104 = scmp.ne.s32.totalorder %s90, %s91
    %p105 = scmp.eq.s32.totalorder %s15, 3
    %p106 = por %p104, %p105
    %p108 = scmp.ne.s32.totalorder %s91, %s107
    %p109 = scmp.eq.s32.totalorder %s15, 0
    %p110 = por %p108, %p109
    %s111 = ssub.s32 %s16, %s28
    %p112 = scmp.eq.s32.totalorder %s111, 0
    %s114 = sadd.s32 %s113, 1
    %s115 = scalar_select %p112, %s113, %s114
    %p118 = pneg %p112
    %p119 = scmp.eq.s32.totalorder %s9, 3
    %p120 = por %p118, %p119
    %p121 = scmp.ne.s32.totalorder %s113, %s116
    %p122 = scmp.eq.s32.totalorder %s9, 0
    %p123 = por %p121, %p122
    %p124 = scmp.ne.s32.totalorder %s113, %s116
    %p125 = scmp.eq.s32.totalorder %s14, 3
    %p126 = por %p124, %p125
    %p127 = scmp.ne.s32.totalorder %s116, %s117
    %p128 = scmp.eq.s32.totalorder %s14, 0
    %p129 = por %p127, %p128
    %p130 = scmp.ne.s32.totalorder %s116, %s117
    %p131 = scmp.eq.s32.totalorder %s15, 3
    %p132 = por %p130, %p131
    %p134 = scmp.ne.s32.totalorder %s117, %s133
    %p135 = scmp.eq.s32.totalorder %s15, 0
    %p136 = por %p134, %p135
    %p137 = scmp.le.s32.totalorder 1, %s9
    %p138 = scmp.lt.s32.totalorder %s9, 5
    %p139 = pnand %p137, %p138
    %p140 = pneg %p139
    // Predicated region
    $region9: #{_lambda_.18} parent=5 // pred_check
      _
    $region10: #{_lambda_.18} parent=5 // pred_check_branch
      %142 = sbr.rel (%p139) target = $region12
    $region11: #{_lambda_.18} parent=5 // pred_region
      %s143 = ssub.s32 %s9, 1
    $region12: #{_lambda_.18} parent=5 // pred_fallthru
      _
    %p144 = scmp.lt.s32.totalorder %s9, 4
    // Predicated region
    $region13: #{_lambda_.18} parent=5 // pred_check
      %p145 = pneg %p144
    $region14: #{_lambda_.18} parent=5 // pred_check_branch
      %147 = sbr.rel (%p145) target = $region16
    $region15: #{_lambda_.18} parent=5 // pred_region
      // Predicated region
      $region17: #{_lambda_.18} parent=15 // pred_check
        %p148 = pneg %p41
      $region18: #{_lambda_.18} parent=15 // pred_check_branch
        %150 = sbr.rel (%p148) target = $region20
      $region19: #{_lambda_.18} parent=15 // pred_region
        %p151 = scmp.lt.s32.totalorder %s16, 3
        %s152 = scalar_select %p151, %s16, 3
        %s153 = smul.addr %s152, 4
        %s154 = scalar_lea.vmem %s0, %s153
      $region20: #{_lambda_.18} parent=15 // pred_fallthru
        _
      // Predicated region
      $region21: #{_lambda_.18} parent=15 // pred_check
        %p155 = pneg %p69
      $region22: #{_lambda_.18} parent=15 // pred_check_branch
        %157 = sbr.rel (%p155) target = $region24
      $region23: #{_lambda_.18} parent=15 // pred_region
        %p158 = scmp.lt.s32.totalorder %s16, 3
        %s159 = scalar_select %p158, %s16, 3
        %p160 = scmp.lt.s32.totalorder %s17, 0
        %s161 = scalar_select %p160, %s17, 0
        %s162 = sadd.s32 %s161, %s159
        %s163 = smul.addr %s162, 4
        %s164 = scalar_lea.vmem %s1, %s163
      $region24: #{_lambda_.18} parent=15 // pred_fallthru
        _
      // Predicated region
      $region25: #{_lambda_.18} parent=15 // pred_check
        %p165 = pneg %p97
      $region26: #{_lambda_.18} parent=15 // pred_check_branch
        %167 = sbr.rel (%p165) target = $region28
      $region27: #{_lambda_.18} parent=15 // pred_region
        %p168 = scmp.lt.s32.totalorder %s16, 3
        %s169 = scalar_select %p168, %s16, 3
        %p170 = scmp.lt.s32.totalorder %s17, 0
        %s171 = scalar_select %p170, %s17, 0
        %s172 = sadd.s32 %s171, %s169
        %s173 = smul.addr %s172, 4
        %s174 = scalar_lea.vmem %s2, %s173
      $region28: #{_lambda_.18} parent=15 // pred_fallthru
        _
    $region16: #{_lambda_.18} parent=5 // pred_fallthru
      _
    %p175 = scmp.le.s32.totalorder 1, %s9
    %p176 = scmp.lt.s32.totalorder %s9, 5
    %p177 = pnand %p175, %p176
    %p178 = pneg %p177
    // Predicated region
    $region29: #{_lambda_.18} parent=5 // pred_check
      _
    $region30: #{_lambda_.18} parent=5 // pred_check_branch
      %180 = sbr.rel (%p177) target = $region32
    $region31: #{_lambda_.18} parent=5 // pred_region
      %s181 = ssub.s32 %s9, 1
      %p182 = scmp.lt.s32.totalorder %s18, 3
      %s183 = scalar_select %p182, %s18, 3
      %s184 = smul.addr %s183, 4
      %s185 = scalar_lea.vmem %s0, %s184
      %p186 = pneg %p47
      %p187 = pneg %p44
      %p188 = scmp.lt.s32.totalorder %s18, 3
      %s189 = scalar_select %p188, %s18, 3
      %p190 = scmp.lt.s32.totalorder %s19, 0
      %s191 = scalar_select %p190, %s19, 0
      %s192 = sadd.s32 %s191, %s189
      %s193 = smul.addr %s192, 4
      %s194 = scalar_lea.vmem %s1, %s193
      %p195 = pneg %p75
      %p196 = pneg %p72
      %p197 = scmp.lt.s32.totalorder %s18, 3
      %s198 = scalar_select %p197, %s18, 3
      %p199 = scmp.lt.s32.totalorder %s19, 0
      %s200 = scalar_select %p199, %s19, 0
      %s201 = sadd.s32 %s200, %s198
      %s202 = smul.addr %s201, 4
      %s203 = scalar_lea.vmem %s2, %s202
      %p204 = pneg %p103
      %p205 = pneg %p100
      %p206 = pneg %p129
      %p207 = pneg %p126
      %p208 = scmp.lt.s32.totalorder %s18, 3
      %s209 = scalar_select %p208, %s18, 3
      %s210 = smul.addr %s209, 4
      %s211 = scalar_lea.vmem %s3, %s210
      %p212 = scmp.lt.s32.totalorder %s18, 3
      %s213 = scalar_select %p212, %s18, 3
      %s214 = smul.addr %s213, 4
      %s215 = scalar_lea.vmem %s0, %s214
      %p216 = scmp.lt.s32.totalorder %s18, 3
      %s217 = scalar_select %p216, %s18, 3
      %p218 = scmp.lt.s32.totalorder %s19, 0
      %s219 = scalar_select %p218, %s19, 0
      %s220 = sadd.s32 %s219, %s217
      %s221 = smul.addr %s220, 4
      %s222 = scalar_lea.vmem %s1, %s221
      %p223 = scmp.lt.s32.totalorder %s18, 3
      %s224 = scalar_select %p223, %s18, 3
      %p225 = scmp.lt.s32.totalorder %s19, 0
      %s226 = scalar_select %p225, %s19, 0
      %s227 = sadd.s32 %s226, %s224
      %s228 = smul.addr %s227, 4
      %s229 = scalar_lea.vmem %s2, %s228
      %p230 = scmp.lt.s32.totalorder %s18, 3
      %s231 = scalar_select %p230, %s18, 3
      %s232 = smul.addr %s231, 4
      %s233 = scalar_lea.vmem %s3, %s232
      %p235 = scmp.eq.s32.totalorder %s19, 0
      // Predicated region
      $region33: #{_lambda_.18} parent=31 // pred_check
        %p236 = pneg %p235
      $region34: #{_lambda_.18} parent=31 // pred_check_branch
        %238 = sbr.rel (%p236) target = $region36
      $region35: #{_lambda_.18} parent=31 // pred_region
        %vm239 = vcmask 4096
        %240 = vst.msk [vmem:[#allocation2] sm:$0x1f] %vm239, -1e+30
        %241 = vst.msk [vmem:[#allocation3] sm:$0x1f] %vm239, 0.0
        %vm242 = vcmask 126976
        %243 = vst.msk [vmem:[#allocation4] sm:$0x1f] %vm242, 0.0
      $region36: #{_lambda_.18} parent=31 // pred_fallthru
        _
      %v244 = vld [vmem:[%s215] sm:$0x7]
      %v245 = vunpack.c.l.bf16 %v244
      %v246 = vmul.f32 %v245, 0.25
      %v247 = vpack.c.bf16 %v246, %v246
      %v248 = vld [vmem:[%s222] sm:$0x7]
      %vm249 = vcmask 130048
      %v251 = vsel %vm249, %v247, 0
      %v254 = vsel %vm249, %v248, 0
      %256 = vmatprep.subr.bf16.mxu0 0
      %257 = vmatpush1.bf16.xpose.msra.mxu0 %v254
      %258 = vmatprep.subr.bf16.mxu0 0
      %259 = vmatpush1.bf16.xpose.msra.mxu0 0
      %260 = vmatprep.subr.bf16.mxu0 0
      %261 = vmatpush1.bf16.xpose.msra.mxu0 0
      %262 = vmatprep.subr.bf16.mxu0 0
      %263 = vmatpush1.bf16.xpose.msra.mxu0 0
      %264 = vmatprep.subr.bf16.mxu0 0
      %265 = vmatpush1.bf16.xpose.msra.mxu0 0
      %266 = vmatprep.subr.bf16.mxu0 0
      %267 = vmatpush1.bf16.xpose.msra.mxu0 0
      %268 = vmatprep.subr.bf16.mxu0 0
      %269 = vmatpush1.bf16.xpose.msra.mxu0 0
      %270 = vmatprep.subr.bf16.mxu0 0
      %271 = vmatpush1.bf16.xpose.msra.mxu0 0
      %272 = vmatprep.subr.bf16.mxu0 0
      %273 = vmatpush1.bf16.xpose.msra.mxu0 0
      %274 = vmatprep.subr.bf16.mxu0 0
      %275 = vmatpush1.bf16.xpose.msra.mxu0 0
      %276 = vmatprep.subr.bf16.mxu0 0
      %277 = vmatpush1.bf16.xpose.msra.mxu0 0
      %278 = vmatprep.subr.bf16.mxu0 0
      %279 = vmatpush1.bf16.xpose.msra.mxu0 0
      %280 = vmatprep.subr.bf16.mxu0 0
      %281 = vmatpush1.bf16.xpose.msra.mxu0 0
      %282 = vmatprep.subr.bf16.mxu0 0
      %283 = vmatpush1.bf16.xpose.msra.mxu0 0
      %284 = vmatprep.subr.bf16.mxu0 0
      %285 = vmatpush1.bf16.xpose.msra.mxu0 0
      %286 = vmatprep.subr.bf16.mxu0 0
      %287 = vmatpush1.bf16.xpose.msra.mxu0 0
      %288 = vmatprep.mubr.bf16.mxu0 0
      %289 = vmatmul.mubr.bf16.gmra.mrb[0].mxu0 %v251
      %v290 = vpop.f32.mrb[0].mxu0
      %v291 = vadd.f32 0.0, %v290
      %v292 = vpop.f32.mrb[0].mxu0
      %v293 = vpop.f32.mrb[0].mxu0
      %v294 = vpop.f32.mrb[0].mxu0
      %295 = vdwg.mxu0
      %v296 = vld [vmem:[#allocation2] sm:$0x1f]
      %vm297 = vcmask 36864
      %v298 = vsel %vm297, %v291, -inf
      %299 = vmax.xlane.f32.xlu0 %v298
      %v300 = vpop.xlane.xlu0 %299
      %v301 = vmax.f32 %v296, %v300
      %v302 = vsub.f32 %v296, %v301
      %v303 = vmul.f32 %v302, 1.442695
      %v304 = vpow.pop %v303
      %306 = vset.pattern.permute.xlu0 0
      %307 = vperm.xlu0 %306, %v301
      %v308 = vpop.permute.xlu0 %307
      %v310 = vsub.f32 %v291, %v308
      %v311 = vmul.f32 %v310, 1.442695
      %v312 = vpow.pop %v311
      %v313 = vld [vmem:[#allocation3] sm:$0x1f]
      %v314 = vmul.f32 %v304, %v313
      %v315 = vsel %vm297, %v312, 0.0
      %316 = vadd.xlane.f32.xlu0 %v315
      %v317 = vpop.xlane.xlu0 %316
      %v318 = vadd.f32 %v314, %v317
      %vm319 = vcmask 4096
      %320 = vst.msk [vmem:[#allocation3] sm:$0x1f] %vm319, %v318
      %v321 = vld [vmem:[#allocation4] sm:$0x1f]
      %323 = vset.pattern.permute.xlu0 0
      %324 = vperm.xlu0 %323, %v304
      %v325 = vpop.permute.xlu0 %324
      %v327 = vmul.f32 %v325, %v321
      %v328 = vpack.c.bf16 %v312, %v312
      %v329 = vld [vmem:[%s229] sm:$0x7]
      %vm330 = vcmask 39936
      %v332 = vsel %vm330, %v328, 0
      %vm334 = vcmask 1041408
      %vm335 = vcmask 1042432
      %v336 = vsel %vm334, 4294967295, 65535
      %v337 = vsel %vm335, %v336, 0
      %v339 = vand.u32 %v329, %v337
      %341 = vmatprep.subr.bf16.mxu0 0
      %342 = vmatpush1.bf16.msra.mxu0 %v339
      %343 = vmatprep.subr.bf16.mxu0 0
      %344 = vmatpush1.bf16.msra.mxu0 0
      %345 = vmatprep.subr.bf16.mxu0 0
      %346 = vmatpush1.bf16.msra.mxu0 0
      %347 = vmatprep.subr.bf16.mxu0 0
      %348 = vmatpush1.bf16.msra.mxu0 0
      %349 = vmatprep.subr.bf16.mxu0 0
      %350 = vmatpush1.bf16.msra.mxu0 0
      %351 = vmatprep.subr.bf16.mxu0 0
      %352 = vmatpush1.bf16.msra.mxu0 0
      %353 = vmatprep.subr.bf16.mxu0 0
      %354 = vmatpush1.bf16.msra.mxu0 0
      %355 = vmatprep.subr.bf16.mxu0 0
      %356 = vmatpush1.bf16.msra.mxu0 0
      %357 = vmatprep.subr.bf16.mxu0 0
      %358 = vmatpush1.bf16.msra.mxu0 0
      %359 = vmatprep.subr.bf16.mxu0 0
      %360 = vmatpush1.bf16.msra.mxu0 0
      %361 = vmatprep.subr.bf16.mxu0 0
      %362 = vmatpush1.bf16.msra.mxu0 0
      %363 = vmatprep.subr.bf16.mxu0 0
      %364 = vmatpush1.bf16.msra.mxu0 0
      %365 = vmatprep.subr.bf16.mxu0 0
      %366 = vmatpush1.bf16.msra.mxu0 0
      %367 = vmatprep.subr.bf16.mxu0 0
      %368 = vmatpush1.bf16.msra.mxu0 0
      %369 = vmatprep.subr.bf16.mxu0 0
      %370 = vmatpush1.bf16.msra.mxu0 0
      %371 = vmatprep.subr.bf16.mxu0 0
      %372 = vmatpush1.bf16.msra.mxu0 0
      %373 = vmatprep.mubr.bf16.mxu0 0
      %374 = vmatmul.mubr.bf16.gmra.mrb[0].mxu0 %v332
      %v375 = vpop.f32.mrb[0].mxu0
      %v376 = vadd.f32 0.0, %v375
      %v377 = vpop.f32.mrb[0].mxu0
      %v378 = vpop.f32.mrb[0].mxu0
      %v379 = vpop.f32.mrb[0].mxu0
      %380 = vdwg.mxu0
      %v381 = vadd.f32 %v327, %v376
      %vm382 = vcmask 126976
      %383 = vst.msk [vmem:[#allocation4] sm:$0x1f] %vm382, %v381
      %384 = vst.msk [vmem:[#allocation2] sm:$0x1f] %vm319, %v301
      // Predicated region
      $region37: #{_lambda_.18} parent=31 // pred_check
        %p385 = pneg %p235
      $region38: #{_lambda_.18} parent=31 // pred_check_branch
        %387 = sbr.rel (%p385) target = $region40
      $region39: #{_lambda_.18} parent=31 // pred_region
        %v388 = vld [vmem:[#allocation4] sm:$0x1f]
        %v389 = vld [vmem:[#allocation3] sm:$0x1f]
        %v390 = vrcp.pop %v389
        %392 = vset.pattern.permute.xlu0 0
        %393 = vperm.xlu0 %392, %v390
        %v394 = vpop.permute.xlu0 %393
        %v396 = vmul.f32 %v388, %v394
        %v397 = vpack.c.bf16 %v396, %v396
        %vm398 = vcmask 124928
        %vm399 = vsmask.f32 2304
        %vm400 = vmand %vm398, %vm399
        %v401 = vld [vmem:[%s233] sm:$0x7]
        %v402 = vsel %vm400, %v397, %v401
        %403 = vst [vmem:[%s233] sm:$0x7] %v402
      $region40: #{_lambda_.18} parent=31 // pred_fallthru
        _
      %p404 = scmp.lt.s32.totalorder %s18, 3
      %s405 = scalar_select %p404, %s18, 3
      %s406 = smul.addr %s405, 4
      %s407 = scalar_lea.vmem %s3, %s406
      // Predicated region
      $region41: #{_lambda_.18} parent=31 // pred_check
        %p408 = pneg %p126
      $region42: #{_lambda_.18} parent=31 // pred_check_branch
        %410 = sbr.rel (%p408) target = $region44
      $region43: #{_lambda_.18} parent=31 // pred_region
        _
      $region44: #{_lambda_.18} parent=31 // pred_fallthru
        _
    $region32: #{_lambda_.18} parent=5 // pred_fallthru
      _
    %p411 = scmp.le.s32.totalorder 2, %s9
    // Predicated region
    $region45: #{_lambda_.18} parent=5 // pred_check
      %p412 = pneg %p411
    $region46: #{_lambda_.18} parent=5 // pred_check_branch
      %414 = sbr.rel (%p412) target = $region48
    $region47: #{_lambda_.18} parent=5 // pred_region
      %s415 = ssub.s32 %s9, 2
      // Predicated region
      $region49: #{_lambda_.18} parent=47 // pred_check
        %p416 = pneg %p132
      $region50: #{_lambda_.18} parent=47 // pred_check_branch
        %418 = sbr.rel (%p416) target = $region52
      $region51: #{_lambda_.18} parent=47 // pred_region
        %p419 = scmp.lt.s32.totalorder %s20, 3
        %s420 = scalar_select %p419, %s20, 3
        %s421 = smul.addr %s420, 4
        %s422 = scalar_lea.vmem %s3, %s421
      $region52: #{_lambda_.18} parent=47 // pred_fallthru
        _
    $region48: #{_lambda_.18} parent=5 // pred_fallthru
      _
  $region6: #{_lambda_.18} parent=0 // loop_footer
    %s13 = sadd.s32 1, %s9
  $region7: #{_lambda_.18} parent=0 // loop_footer_branch
    %8 = sbr.rel target = $region3
  $region8: #{_lambda_.18} parent=0 // loop_exit
    _

// kernel: _lambda_.19
$region0: #{_lambda_.19}
  #allocation0 [shape = 'u32[]', space=smem, size = 0x4, offset = 0x4, fixed_abs, tag = 'smem constant byte address 0x4 - core index']
  #allocation1 [shape = 'u32[144,128]{1,0:T(1,128)}', space=vmem, size = 0x12000, scoped, tag = 'internal scratch']
  #allocation2 [shape = 'f32[10,32]{1,0:T(8,128)}', space=vmem, size = 0x2000, scoped, tag = 'scratch operand']
  %s0 = inlined_call_operand.vmem [shape: bf16[10,32], index: 0, kind: input, shape index: {}]
  %s1 = inlined_call_operand.vmem [shape: bf16[32,32], index: 1, kind: input, shape index: {}]
  %s2 = inlined_call_operand.vmem [shape: f32[1,32], index: 2, kind: input, shape index: {}]
  %s3 = inlined_call_operand.vmem [shape: bf16[10,32], index: 3, kind: input, shape index: {}]
  %s4 = inlined_call_operand.vmem [shape: bf16[10,32], index: 4, kind: output, shape index: {}]
  %s5 = sld [smem:[#allocation0]]
  $region34: #{_lambda_.19} parent=0
    _
  %s7 = ssub.s32 1, %s5
  %s8 = scalar_select 0, %s7, %s5
  // Predicated region
  $region2: #{_lambda_.19} parent=0 // pred_check
    _
  $region3: #{_lambda_.19} parent=0 // pred_check_branch
    %10 = sbr.rel (0) target = $region5
  $region4: #{_lambda_.19} parent=0 // pred_region
    _
  $region5: #{_lambda_.19} parent=0 // pred_fallthru
    _
  // Predicated region
  $region6: #{_lambda_.19} parent=0 // pred_check
    _
  $region7: #{_lambda_.19} parent=0 // pred_check_branch
    %12 = sbr.rel (0) target = $region9
  $region8: #{_lambda_.19} parent=0 // pred_region
    _
  $region9: #{_lambda_.19} parent=0 // pred_fallthru
    _
  // Predicated region
  $region10: #{_lambda_.19} parent=0 // pred_check
    _
  $region11: #{_lambda_.19} parent=0 // pred_check_branch
    %14 = sbr.rel (0) target = $region13
  $region12: #{_lambda_.19} parent=0 // pred_region
    _
  $region13: #{_lambda_.19} parent=0 // pred_fallthru
    _
  // Predicated region
  $region14: #{_lambda_.19} parent=0 // pred_check
    _
  $region15: #{_lambda_.19} parent=0 // pred_check_branch
    %16 = sbr.rel (0) target = $region17
  $region16: #{_lambda_.19} parent=0 // pred_region
    _
  $region17: #{_lambda_.19} parent=0 // pred_fallthru
    _
  %p18 = scmp.eq.s32.totalorder 0, 0
  // Predicated region
  $region18: #{_lambda_.19} parent=0 // pred_check
    %p19 = pneg %p18
  $region19: #{_lambda_.19} parent=0 // pred_check_branch
    %21 = sbr.rel (%p19) target = $region21
  $region20: #{_lambda_.19} parent=0 // pred_region
    %vm22 = vcmask 261120
    %23 = vst.msk [vmem:[#allocation2] sm:$0xff] %vm22, 0.0
    %vm24 = vcmask 254976
    %25 = vst.msk [vmem:[#allocation2 + $0x8] sm:$0x3] %vm24, 0.0
  $region21: #{_lambda_.19} parent=0 // pred_fallthru
    _
  %v26 = vld [vmem:[#allocation2] sm:$0xff]
  %v27 = vld [vmem:[#allocation2 + $0x8] sm:$0x3]
  %v28 = vld [vmem:[%s0] sm:$0xf]
  %v29 = vld [vmem:[%s0 + $0x4] sm:$0x1]
  %v30 = vld [vmem:[%s1] sm:$0xf]
  %v31 = vld [vmem:[%s1 + $0x4] sm:$0xf]
  %v32 = vld [vmem:[%s1 + $0x8] sm:$0xf]
  %v33 = vld [vmem:[%s1 + $0xc] sm:$0xf]
  %v36 = vunpack.c.l.b16 %v28
  %v37 = vunpack.c.l.b16 %v29
  %v38 = vpack.c.b16 %v37, %v36
  %v43 = vunpack.c.l.b16 %v30
  %v44 = vunpack.c.l.b16 %v31
  %v45 = vunpack.c.l.b16 %v32
  %v46 = vunpack.c.l.b16 %v33
  %v47 = vpack.c.b16 %v44, %v43
  %v48 = vpack.c.b16 %v46, %v45
  %vm51 = vcmask 261120
  %v53 = vsel %vm51, %v38, 0
  %55 = vmatprep.subr.bf16.mxu0 0
  %56 = vmatpush1.bf16.msra.mxu0 %v47
  %57 = vmatprep.subr.bf16.mxu0 0
  %58 = vmatpush1.bf16.msra.mxu0 %v48
  %59 = vmatprep.subr.bf16.mxu0 0
  %60 = vmatpush1.bf16.msra.mxu0 0
  %61 = vmatprep.subr.bf16.mxu0 0
  %62 = vmatpush1.bf16.msra.mxu0 0
  %63 = vmatprep.subr.bf16.mxu0 0
  %64 = vmatpush1.bf16.msra.mxu0 0
  %65 = vmatprep.subr.bf16.mxu0 0
  %66 = vmatpush1.bf16.msra.mxu0 0
  %67 = vmatprep.subr.bf16.mxu0 0
  %68 = vmatpush1.bf16.msra.mxu0 0
  %69 = vmatprep.subr.bf16.mxu0 0
  %70 = vmatpush1.bf16.msra.mxu0 0
  %71 = vmatprep.subr.bf16.mxu0 0
  %72 = vmatpush1.bf16.msra.mxu0 0
  %73 = vmatprep.subr.bf16.mxu0 0
  %74 = vmatpush1.bf16.msra.mxu0 0
  %75 = vmatprep.subr.bf16.mxu0 0
  %76 = vmatpush1.bf16.msra.mxu0 0
  %77 = vmatprep.subr.bf16.mxu0 0
  %78 = vmatpush1.bf16.msra.mxu0 0
  %79 = vmatprep.subr.bf16.mxu0 0
  %80 = vmatpush1.bf16.msra.mxu0 0
  %81 = vmatprep.subr.bf16.mxu0 0
  %82 = vmatpush1.bf16.msra.mxu0 0
  %83 = vmatprep.subr.bf16.mxu0 0
  %84 = vmatpush1.bf16.msra.mxu0 0
  %85 = vmatprep.subr.bf16.mxu0 0
  %86 = vmatpush1.bf16.msra.mxu0 0
  %87 = vmatprep.mubr.bf16.mxu0 0
  %88 = vmatmul.mubr.bf16.gmra.mrb[0].mxu0 %v53
  %v89 = vpop.f32.mrb[0].mxu0
  %v90 = vadd.f32 0.0, %v89
  %v91 = vpop.f32.mrb[0].mxu0
  %v92 = vpop.f32.mrb[0].mxu0
  %v93 = vadd.f32 0.0, %v92
  %v94 = vpop.f32.mrb[0].mxu0
  %95 = vdwg.mxu0
  %v96 = vadd.f32 %v26, %v90
  %v97 = vadd.f32 %v27, %v93
  %98 = vst.msk [vmem:[#allocation2] sm:$0xff] %vm51, %v96
  %vm99 = vcmask 254976
  %100 = vst.msk [vmem:[#allocation2 + $0x8] sm:$0x3] %vm99, %v97
  // Predicated region
  $region22: #{_lambda_.19} parent=0 // pred_check
    %p101 = pneg %p18
  $region23: #{_lambda_.19} parent=0 // pred_check_branch
    %103 = sbr.rel (%p101) target = $region25
  $region24: #{_lambda_.19} parent=0 // pred_region
    %v104 = vld [vmem:[#allocation2] sm:$0xff]
    %v105 = vld [vmem:[#allocation2 + $0x8] sm:$0x3]
    %v106 = vld [vmem:[%s2] sm:$0x1]
    %v108 = vlaneseq
    %v109 = vshrl.u32 %v108, 7
    %v110 = vsub.s32 0, %v109
    %v111 = vrot.slane %v106, %v110
    %v113 = vadd.f32 %v104, %v111
    %v114 = vadd.f32 %v105, %v111
    %v115 = vld [vmem:[%s3] sm:$0xf]
    %v116 = vld [vmem:[%s3 + $0x4] sm:$0x1]
    %v117 = vunpack.c.l.bf16 %v115
    %v118 = vunpack.c.l.bf16 %v116
    %v119 = vadd.f32 %v113, %v117
    %v120 = vadd.f32 %v114, %v118
    %v121 = vpack.c.bf16 %v120, %v119
    %v123 = vunpack.c.l.b16 %v121
    %v124 = vunpack.c.h.b16 %v121
    %v125 = vpack.c.b16 %v123, %v123
    %v126 = vpack.c.b16 %v124, %v124
    %vm129 = vcmask 257024
    %130 = vst.msk [vmem:[%s4] sm:$0xf] %vm129, %v125
    %vm131 = vcmask 253952
    %132 = vst.msk [vmem:[%s4 + $0x4] sm:$0x1] %vm131, %v126
  $region25: #{_lambda_.19} parent=0 // pred_fallthru
    _
  // Predicated region
  $region26: #{_lambda_.19} parent=0 // pred_check
    _
  $region27: #{_lambda_.19} parent=0 // pred_check_branch
    %134 = sbr.rel (0) target = $region29
  $region28: #{_lambda_.19} parent=0 // pred_region
    _
  $region29: #{_lambda_.19} parent=0 // pred_fallthru
    _
  // Predicated region
  $region30: #{_lambda_.19} parent=0 // pred_check
    _
  $region31: #{_lambda_.19} parent=0 // pred_check_branch
    %136 = sbr.rel (0) target = $region33
  $region32: #{_lambda_.19} parent=0 // pred_region
    _
  $region33: #{_lambda_.19} parent=0 // pred_fallthru
    _

// kernel: _lambda_.20
$region0: #{_lambda_.20}
  #allocation0 [shape = 'u32[]', space=smem, size = 0x4, offset = 0x4, fixed_abs, tag = 'smem constant byte address 0x4 - core index']
  #allocation1 [shape = 'u32[144,128]{1,0:T(1,128)}', space=vmem, size = 0x12000, scoped, tag = 'internal scratch']
  #allocation2 [shape = 'bf16[10,32]{1,0:T(8,128)(2,1)}', space=vmem, size = 0x1000, scoped, tag = 'scratch operand']
  %s0 = inlined_call_operand.vmem [shape: bf16[10,32], index: 0, kind: input, shape index: {}]
  %s1 = inlined_call_operand.vmem [shape: f32[1,32], index: 1, kind: input, shape index: {}]
  %s2 = inlined_call_operand.vmem [shape: f32[1,32], index: 2, kind: input, shape index: {}]
  %s3 = inlined_call_operand.vmem [shape: bf16[32,128], index: 3, kind: input, shape index: {}]
  %s4 = inlined_call_operand.vmem [shape: f32[1,128], index: 4, kind: input, shape index: {}]
  %s5 = inlined_call_operand.vmem [shape: bf16[10,128], index: 5, kind: output, shape index: {}]
  %s6 = sld [smem:[#allocation0]]
  $region34: #{_lambda_.20} parent=0
    _
  %s8 = ssub.s32 1, %s6
  %s9 = scalar_select 0, %s8, %s6
  // Predicated region
  $region2: #{_lambda_.20} parent=0 // pred_check
    _
  $region3: #{_lambda_.20} parent=0 // pred_check_branch
    %11 = sbr.rel (0) target = $region5
  $region4: #{_lambda_.20} parent=0 // pred_region
    _
  $region5: #{_lambda_.20} parent=0 // pred_fallthru
    _
  // Predicated region
  $region6: #{_lambda_.20} parent=0 // pred_check
    _
  $region7: #{_lambda_.20} parent=0 // pred_check_branch
    %13 = sbr.rel (0) target = $region9
  $region8: #{_lambda_.20} parent=0 // pred_region
    _
  $region9: #{_lambda_.20} parent=0 // pred_fallthru
    _
  // Predicated region
  $region10: #{_lambda_.20} parent=0 // pred_check
    _
  $region11: #{_lambda_.20} parent=0 // pred_check_branch
    %15 = sbr.rel (0) target = $region13
  $region12: #{_lambda_.20} parent=0 // pred_region
    _
  $region13: #{_lambda_.20} parent=0 // pred_fallthru
    _
  // Predicated region
  $region14: #{_lambda_.20} parent=0 // pred_check
    _
  $region15: #{_lambda_.20} parent=0 // pred_check_branch
    %17 = sbr.rel (0) target = $region17
  $region16: #{_lambda_.20} parent=0 // pred_region
    _
  $region17: #{_lambda_.20} parent=0 // pred_fallthru
    _
  // Predicated region
  $region18: #{_lambda_.20} parent=0 // pred_check
    _
  $region19: #{_lambda_.20} parent=0 // pred_check_branch
    %19 = sbr.rel (0) target = $region21
  $region20: #{_lambda_.20} parent=0 // pred_region
    _
  $region21: #{_lambda_.20} parent=0 // pred_fallthru
    _
  %p21 = scmp.eq.s32.totalorder 0, 0
  // Predicated region
  $region22: #{_lambda_.20} parent=0 // pred_check
    %p22 = pneg %p21
  $region23: #{_lambda_.20} parent=0 // pred_check_branch
    %24 = sbr.rel (%p22) target = $region25
  $region24: #{_lambda_.20} parent=0 // pred_region
    %v25 = vld [vmem:[%s0] sm:$0xf]
    %v26 = vld [vmem:[%s0 + $0x4] sm:$0x1]
    %v27 = vunpack.c.l.bf16 %v25
    %v28 = vunpack.c.l.bf16 %v26
    %vm29 = vcmask 261120
    %v30 = vsel %vm29, %v27, 0.0
    %31 = vadd.xlane.f32.xlu0 %v30
    %v32 = vpop.xlane.xlu0 %31
    %vm33 = vcmask 254976
    %v34 = vsel %vm33, %v28, 0.0
    %35 = vadd.xlane.f32.xlu0 %v34
    %v36 = vpop.xlane.xlu0 %35
    %v37 = vrcp.pop 32.0
    %v38 = vmul.f32 %v32, %v37
    %v39 = vmul.f32 %v36, %v37
    %v40 = vsub.f32 %v27, %v38
    %v41 = vsub.f32 %v28, %v39
    %v42 = vmul.f32 %v40, %v40
    %v43 = vmul.f32 %v41, %v41
    %v44 = vsel %vm29, %v42, 0.0
    %45 = vadd.xlane.f32.xlu0 %v44
    %v46 = vpop.xlane.xlu0 %45
    %v47 = vsel %vm33, %v43, 0.0
    %48 = vadd.xlane.f32.xlu0 %v47
    %v49 = vpop.xlane.xlu0 %48
    %v50 = vmul.f32 %v46, %v37
    %v51 = vmul.f32 %v49, %v37
    %v52 = vadd.f32 %v50, 1e-05
    %v53 = vadd.f32 %v51, 1e-05
    %v54 = vrsqrt.pop %v52
    %v55 = vrsqrt.pop %v53
    %v56 = vmul.f32 %v40, %v54
    %v57 = vmul.f32 %v41, %v55
    %v58 = vld [vmem:[%s1] sm:$0x1]
    %v60 = vlaneseq
    %v61 = vshrl.u32 %v60, 7
    %v62 = vsub.s32 0, %v61
    %v63 = vrot.slane %v58, %v62
    %v65 = vmul.f32 %v56, %v63
    %v66 = vmul.f32 %v57, %v63
    %v67 = vld [vmem:[%s2] sm:$0x1]
    %v69 = vlaneseq
    %v70 = vshrl.u32 %v69, 7
    %v71 = vsub.s32 0, %v70
    %v72 = vrot.slane %v67, %v71
    %v74 = vadd.f32 %v65, %v72
    %v75 = vadd.f32 %v66, %v72
    %v76 = vpack.c.bf16 %v75, %v74
    %v78 = vunpack.c.l.b16 %v76
    %v79 = vunpack.c.h.b16 %v76
    %v80 = vpack.c.b16 %v78, %v78
    %v81 = vpack.c.b16 %v79, %v79
    %vm84 = vcmask 257024
    %85 = vst.msk [vmem:[#allocation2] sm:$0xf] %vm84, %v80
    %vm86 = vcmask 253952
    %87 = vst.msk [vmem:[#allocation2 + $0x4] sm:$0x1] %vm86, %v81
  $region25: #{_lambda_.20} parent=0 // pred_fallthru
    _
  %v88 = vld [vmem:[#allocation2] sm:$0xf]
  %v89 = vld [vmem:[#allocation2 + $0x4] sm:$0x1]
  %v90 = vld [vmem:[%s3] sm:$0xf]
  %v91 = vld [vmem:[%s3 + $0x4] sm:$0xf]
  %v92 = vld [vmem:[%s3 + $0x8] sm:$0xf]
  %v93 = vld [vmem:[%s3 + $0xc] sm:$0xf]
  %v94 = vld [vmem:[%s4] sm:$0x1]
  %v96 = vlaneseq
  %v97 = vshrl.u32 %v96, 7
  %v98 = vsub.s32 0, %v97
  %v99 = vrot.slane %v94, %v98
  %v103 = vunpack.c.l.b16 %v88
  %v104 = vunpack.c.l.b16 %v89
  %v105 = vpack.c.b16 %v104, %v103
  %v110 = vunpack.c.l.b16 %v90
  %v111 = vunpack.c.l.b16 %v91
  %v112 = vunpack.c.l.b16 %v92
  %v113 = vunpack.c.l.b16 %v93
  %v114 = vpack.c.b16 %v111, %v110
  %v115 = vpack.c.b16 %v113, %v112
  %vm118 = vcmask 261120
  %v120 = vsel %vm118, %v105, 0
  %122 = vmatprep.subr.bf16.mxu0 0
  %123 = vmatpush1.bf16.msra.mxu0 %v114
  %124 = vmatprep.subr.bf16.mxu0 0
  %125 = vmatpush1.bf16.msra.mxu0 %v115
  %126 = vmatprep.subr.bf16.mxu0 0
  %127 = vmatpush1.bf16.msra.mxu0 0
  %128 = vmatprep.subr.bf16.mxu0 0
  %129 = vmatpush1.bf16.msra.mxu0 0
  %130 = vmatprep.subr.bf16.mxu0 0
  %131 = vmatpush1.bf16.msra.mxu0 0
  %132 = vmatprep.subr.bf16.mxu0 0
  %133 = vmatpush1.bf16.msra.mxu0 0
  %134 = vmatprep.subr.bf16.mxu0 0
  %135 = vmatpush1.bf16.msra.mxu0 0
  %136 = vmatprep.subr.bf16.mxu0 0
  %137 = vmatpush1.bf16.msra.mxu0 0
  %138 = vmatprep.subr.bf16.mxu0 0
  %139 = vmatpush1.bf16.msra.mxu0 0
  %140 = vmatprep.subr.bf16.mxu0 0
  %141 = vmatpush1.bf16.msra.mxu0 0
  %142 = vmatprep.subr.bf16.mxu0 0
  %143 = vmatpush1.bf16.msra.mxu0 0
  %144 = vmatprep.subr.bf16.mxu0 0
  %145 = vmatpush1.bf16.msra.mxu0 0
  %146 = vmatprep.subr.bf16.mxu0 0
  %147 = vmatpush1.bf16.msra.mxu0 0
  %148 = vmatprep.subr.bf16.mxu0 0
  %149 = vmatpush1.bf16.msra.mxu0 0
  %150 = vmatprep.subr.bf16.mxu0 0
  %151 = vmatpush1.bf16.msra.mxu0 0
  %152 = vmatprep.subr.bf16.mxu0 0
  %153 = vmatpush1.bf16.msra.mxu0 0
  %154 = vmatprep.mubr.bf16.mxu0 0
  %155 = vmatmul.mubr.bf16.gmra.mrb[0].mxu0 %v120
  %v156 = vpop.f32.mrb[0].mxu0
  %v157 = vadd.f32 %v99, %v156
  %v158 = vpop.f32.mrb[0].mxu0
  %v159 = vpop.f32.mrb[0].mxu0
  %v160 = vadd.f32 %v99, %v159
  %v161 = vpop.f32.mrb[0].mxu0
  %162 = vdwg.mxu0
  %v163 = vmul.f32 %v157, 1.702
  %v164 = vmul.f32 %v160, 1.702
  %v165 = vxor.u32 %v163, 2147483648
  %v166 = vxor.u32 %v164, 2147483648
  %v167 = vmul.f32 %v165, 1.442695
  %v168 = vpow.pop %v167
  %v169 = vmul.f32 %v166, 1.442695
  %v170 = vpow.pop %v169
  %v171 = vadd.f32 %v168, 1.0
  %v172 = vadd.f32 %v170, 1.0
  %v173 = vrcp.pop %v171
  %v174 = vmul.f32 1.0, %v173
  %v175 = vrcp.pop %v172
  %v176 = vmul.f32 1.0, %v175
  %v177 = vmul.f32 %v157, %v174
  %v178 = vmul.f32 %v160, %v176
  %v179 = vpack.c.bf16 %v178, %v177
  %v181 = vunpack.c.l.b16 %v179
  %v182 = vunpack.c.h.b16 %v179
  %v183 = vpack.c.b16 %v181, %v181
  %v184 = vpack.c.b16 %v182, %v182
  %187 = vst [vmem:[%s5] sm:$0xf] %v183
  %188 = vst [vmem:[%s5 + $0x4] sm:$0x1] %v184
  // Predicated region
  $region26: #{_lambda_.20} parent=0 // pred_check
    _
  $region27: #{_lambda_.20} parent=0 // pred_check_branch
    %190 = sbr.rel (0) target = $region29
  $region28: #{_lambda_.20} parent=0 // pred_region
    _
  $region29: #{_lambda_.20} parent=0 // pred_fallthru
    _
  // Predicated region
  $region30: #{_lambda_.20} parent=0 // pred_check
    _
  $region31: #{_lambda_.20} parent=0 // pred_check_branch
    %192 = sbr.rel (0) target = $region33
  $region32: #{_lambda_.20} parent=0 // pred_region
    _
  $region33: #{_lambda_.20} parent=0 // pred_fallthru
    _

// kernel: _lambda_.21
$region0: #{_lambda_.21}
  #allocation0 [shape = 'u32[]', space=smem, size = 0x4, offset = 0x4, fixed_abs, tag = 'smem constant byte address 0x4 - core index']
  #allocation1 [shape = 'u32[144,128]{1,0:T(1,128)}', space=vmem, size = 0x12000, scoped, tag = 'internal scratch']
  #allocation2 [shape = 'f32[10,32]{1,0:T(8,128)}', space=vmem, size = 0x2000, scoped, tag = 'scratch operand']
  %s0 = inlined_call_operand.vmem [shape: bf16[10,128], index: 0, kind: input, shape index: {}]
  %s1 = inlined_call_operand.vmem [shape: bf16[128,32], index: 1, kind: input, shape index: {}]
  %s2 = inlined_call_operand.vmem [shape: f32[1,32], index: 2, kind: input, shape index: {}]
  %s3 = inlined_call_operand.vmem [shape: bf16[10,32], index: 3, kind: input, shape index: {}]
  %s4 = inlined_call_operand.vmem [shape: bf16[10,32], index: 4, kind: output, shape index: {}]
  %s5 = sld [smem:[#allocation0]]
  $region34: #{_lambda_.21} parent=0
    _
  %s7 = ssub.s32 1, %s5
  %s8 = scalar_select 0, %s7, %s5
  // Predicated region
  $region2: #{_lambda_.21} parent=0 // pred_check
    _
  $region3: #{_lambda_.21} parent=0 // pred_check_branch
    %10 = sbr.rel (0) target = $region5
  $region4: #{_lambda_.21} parent=0 // pred_region
    _
  $region5: #{_lambda_.21} parent=0 // pred_fallthru
    _
  // Predicated region
  $region6: #{_lambda_.21} parent=0 // pred_check
    _
  $region7: #{_lambda_.21} parent=0 // pred_check_branch
    %12 = sbr.rel (0) target = $region9
  $region8: #{_lambda_.21} parent=0 // pred_region
    _
  $region9: #{_lambda_.21} parent=0 // pred_fallthru
    _
  // Predicated region
  $region10: #{_lambda_.21} parent=0 // pred_check
    _
  $region11: #{_lambda_.21} parent=0 // pred_check_branch
    %14 = sbr.rel (0) target = $region13
  $region12: #{_lambda_.21} parent=0 // pred_region
    _
  $region13: #{_lambda_.21} parent=0 // pred_fallthru
    _
  // Predicated region
  $region14: #{_lambda_.21} parent=0 // pred_check
    _
  $region15: #{_lambda_.21} parent=0 // pred_check_branch
    %16 = sbr.rel (0) target = $region17
  $region16: #{_lambda_.21} parent=0 // pred_region
    _
  $region17: #{_lambda_.21} parent=0 // pred_fallthru
    _
  %p18 = scmp.eq.s32.totalorder 0, 0
  // Predicated region
  $region18: #{_lambda_.21} parent=0 // pred_check
    %p19 = pneg %p18
  $region19: #{_lambda_.21} parent=0 // pred_check_branch
    %21 = sbr.rel (%p19) target = $region21
  $region20: #{_lambda_.21} parent=0 // pred_region
    %vm22 = vcmask 261120
    %23 = vst.msk [vmem:[#allocation2] sm:$0xff] %vm22, 0.0
    %vm24 = vcmask 254976
    %25 = vst.msk [vmem:[#allocation2 + $0x8] sm:$0x3] %vm24, 0.0
  $region21: #{_lambda_.21} parent=0 // pred_fallthru
    _
  %v26 = vld [vmem:[#allocation2] sm:$0xff]
  %v27 = vld [vmem:[#allocation2 + $0x8] sm:$0x3]
  %v28 = vld [vmem:[%s0] sm:$0xf]
  %v29 = vld [vmem:[%s0 + $0x4] sm:$0x1]
  %v30 = vld [vmem:[%s1] sm:$0xf]
  %v31 = vld [vmem:[%s1 + $0x4] sm:$0xf]
  %v32 = vld [vmem:[%s1 + $0x8] sm:$0xf]
  %v33 = vld [vmem:[%s1 + $0xc] sm:$0xf]
  %v34 = vld [vmem:[%s1 + $0x10] sm:$0xf]
  %v35 = vld [vmem:[%s1 + $0x14] sm:$0xf]
  %v36 = vld [vmem:[%s1 + $0x18] sm:$0xf]
  %v37 = vld [vmem:[%s1 + $0x1c] sm:$0xf]
  %v38 = vld [vmem:[%s1 + $0x20] sm:$0xf]
  %v39 = vld [vmem:[%s1 + $0x24] sm:$0xf]
  %v40 = vld [vmem:[%s1 + $0x28] sm:$0xf]
  %v41 = vld [vmem:[%s1 + $0x2c] sm:$0xf]
  %v42 = vld [vmem:[%s1 + $0x30] sm:$0xf]
  %v43 = vld [vmem:[%s1 + $0x34] sm:$0xf]
  %v44 = vld [vmem:[%s1 + $0x38] sm:$0xf]
  %v45 = vld [vmem:[%s1 + $0x3c] sm:$0xf]
  %v48 = vunpack.c.l.b16 %v28
  %v49 = vunpack.c.l.b16 %v29
  %v50 = vpack.c.b16 %v49, %v48
  %v68 = vunpack.c.l.b16 %v30
  %v69 = vunpack.c.l.b16 %v31
  %v70 = vunpack.c.l.b16 %v32
  %v71 = vunpack.c.l.b16 %v33
  %v72 = vunpack.c.l.b16 %v34
  %v73 = vunpack.c.l.b16 %v35
  %v74 = vunpack.c.l.b16 %v36
  %v75 = vunpack.c.l.b16 %v37
  %v76 = vunpack.c.l.b16 %v38
  %v77 = vunpack.c.l.b16 %v39
  %v78 = vunpack.c.l.b16 %v40
  %v79 = vunpack.c.l.b16 %v41
  %v80 = vunpack.c.l.b16 %v42
  %v81 = vunpack.c.l.b16 %v43
  %v82 = vunpack.c.l.b16 %v44
  %v83 = vunpack.c.l.b16 %v45
  %v84 = vpack.c.b16 %v69, %v68
  %v85 = vpack.c.b16 %v71, %v70
  %v86 = vpack.c.b16 %v73, %v72
  %v87 = vpack.c.b16 %v75, %v74
  %v88 = vpack.c.b16 %v77, %v76
  %v89 = vpack.c.b16 %v79, %v78
  %v90 = vpack.c.b16 %v81, %v80
  %v91 = vpack.c.b16 %v83, %v82
  %100 = vmatprep.subr.bf16.mxu0 0
  %101 = vmatpush1.bf16.msra.mxu0 %v84
  %102 = vmatprep.subr.bf16.mxu0 0
  %103 = vmatpush1.bf16.msra.mxu0 %v85
  %104 = vmatprep.subr.bf16.mxu0 0
  %105 = vmatpush1.bf16.msra.mxu0 %v86
  %106 = vmatprep.subr.bf16.mxu0 0
  %107 = vmatpush1.bf16.msra.mxu0 %v87
  %108 = vmatprep.subr.bf16.mxu0 0
  %109 = vmatpush1.bf16.msra.mxu0 %v88
  %110 = vmatprep.subr.bf16.mxu0 0
  %111 = vmatpush1.bf16.msra.mxu0 %v89
  %112 = vmatprep.subr.bf16.mxu0 0
  %113 = vmatpush1.bf16.msra.mxu0 %v90
  %114 = vmatprep.subr.bf16.mxu0 0
  %115 = vmatpush1.bf16.msra.mxu0 %v91
  %116 = vmatprep.subr.bf16.mxu0 0
  %117 = vmatpush1.bf16.msra.mxu0 0
  %118 = vmatprep.subr.bf16.mxu0 0
  %119 = vmatpush1.bf16.msra.mxu0 0
  %120 = vmatprep.subr.bf16.mxu0 0
  %121 = vmatpush1.bf16.msra.mxu0 0
  %122 = vmatprep.subr.bf16.mxu0 0
  %123 = vmatpush1.bf16.msra.mxu0 0
  %124 = vmatprep.subr.bf16.mxu0 0
  %125 = vmatpush1.bf16.msra.mxu0 0
  %126 = vmatprep.subr.bf16.mxu0 0
  %127 = vmatpush1.bf16.msra.mxu0 0
  %128 = vmatprep.subr.bf16.mxu0 0
  %129 = vmatpush1.bf16.msra.mxu0 0
  %130 = vmatprep.subr.bf16.mxu0 0
  %131 = vmatpush1.bf16.msra.mxu0 0
  %132 = vmatprep.mubr.bf16.mxu0 0
  %133 = vmatmul.mubr.bf16.gmra.mrb[0].mxu0 %v50
  %v134 = vpop.f32.mrb[0].mxu0
  %v135 = vadd.f32 0.0, %v134
  %v136 = vpop.f32.mrb[0].mxu0
  %v137 = vpop.f32.mrb[0].mxu0
  %v138 = vadd.f32 0.0, %v137
  %v139 = vpop.f32.mrb[0].mxu0
  %140 = vdwg.mxu0
  %v141 = vadd.f32 %v26, %v135
  %v142 = vadd.f32 %v27, %v138
  %vm143 = vcmask 261120
  %144 = vst.msk [vmem:[#allocation2] sm:$0xff] %vm143, %v141
  %vm145 = vcmask 254976
  %146 = vst.msk [vmem:[#allocation2 + $0x8] sm:$0x3] %vm145, %v142
  // Predicated region
  $region22: #{_lambda_.21} parent=0 // pred_check
    %p147 = pneg %p18
  $region23: #{_lambda_.21} parent=0 // pred_check_branch
    %149 = sbr.rel (%p147) target = $region25
  $region24: #{_lambda_.21} parent=0 // pred_region
    %v150 = vld [vmem:[#allocation2] sm:$0xff]
    %v151 = vld [vmem:[#allocation2 + $0x8] sm:$0x3]
    %v152 = vld [vmem:[%s2] sm:$0x1]
    %v154 = vlaneseq
    %v155 = vshrl.u32 %v154, 7
    %v156 = vsub.s32 0, %v155
    %v157 = vrot.slane %v152, %v156
    %v159 = vadd.f32 %v150, %v157
    %v160 = vadd.f32 %v151, %v157
    %v161 = vld [vmem:[%s3] sm:$0xf]
    %v162 = vld [vmem:[%s3 + $0x4] sm:$0x1]
    %v163 = vunpack.c.l.bf16 %v161
    %v164 = vunpack.c.l.bf16 %v162
    %v165 = vadd.f32 %v159, %v163
    %v166 = vadd.f32 %v160, %v164
    %v167 = vpack.c.bf16 %v166, %v165
    %v169 = vunpack.c.l.b16 %v167
    %v170 = vunpack.c.h.b16 %v167
    %v171 = vpack.c.b16 %v169, %v169
    %v172 = vpack.c.b16 %v170, %v170
    %vm175 = vcmask 257024
    %176 = vst.msk [vmem:[%s4] sm:$0xf] %vm175, %v171
    %vm177 = vcmask 253952
    %178 = vst.msk [vmem:[%s4 + $0x4] sm:$0x1] %vm177, %v172
  $region25: #{_lambda_.21} parent=0 // pred_fallthru
    _
  // Predicated region
  $region26: #{_lambda_.21} parent=0 // pred_check
    _
  $region27: #{_lambda_.21} parent=0 // pred_check_branch
    %180 = sbr.rel (0) target = $region29
  $region28: #{_lambda_.21} parent=0 // pred_region
    _
  $region29: #{_lambda_.21} parent=0 // pred_fallthru
    _
  // Predicated region
  $region30: #{_lambda_.21} parent=0 // pred_check
    _
  $region31: #{_lambda_.21} parent=0 // pred_check_branch
    %182 = sbr.rel (0) target = $region33
  $region32: #{_lambda_.21} parent=0 // pred_region
    _
  $region33: #{_lambda_.21} parent=0 // pred_fallthru
    _

// kernel: _lambda_.29
$region0: #{_lambda_.29}
  #allocation0 [shape = 'u32[]', space=smem, size = 0x4, offset = 0x4, fixed_abs, tag = 'smem constant byte address 0x4 - core index']
  #allocation1 [shape = 'u32[144,128]{1,0:T(1,128)}', space=vmem, size = 0x12000, scoped, tag = 'internal scratch']
  #allocation2 [shape = 'f32[1]{0:T(128)S(6)}', space=smem, size = 0x200, scoped, tag = 'scoped memory for _lambda_.29']
  %s0 = inlined_call_operand.vmem [shape: f32[2,16], index: 0, kind: input, shape index: {}]
  %s1 = inlined_call_operand.vmem [shape: f32[9,16], index: 1, kind: input, shape index: {}]
  %s2 = inlined_call_operand.<no memory space> [shape: f32[1], index: 2, kind: input, shape index: {}]
  %s3 = inlined_call_operand.hbm [shape: f32[2,9], index: 3, kind: output, shape index: {}]
  %s4 = sld [smem:[#allocation0]]
  $region22: #{_lambda_.29} parent=0
    _
  %s6 = ssub.s32 1, %s4
  %s7 = scalar_select 0, %s6, %s4
  %8 = sst [smem:[#allocation2]] %s2
  $region1: #{_lambda_.29} parent=0
    #allocation3 [shape = 'u8[1024]{0}', space=vmem, size = 0x400, scoped, tag = 'output window, operand 0, single buffered']
    #allocation4 [shape = 's32[1]{0}', space=sflag, size = 0x4, scoped, tag = 'scoped memory for _lambda_.29']
    %9 = vsyncpa [#allocation4], 0
    // Predicated region
    $region2: #{_lambda_.29} parent=1 // pred_check
      _
    $region3: #{_lambda_.29} parent=1 // pred_check_branch
      %11 = sbr.rel (0) target = $region5
    $region4: #{_lambda_.29} parent=1 // pred_region
      _
    $region5: #{_lambda_.29} parent=1 // pred_fallthru
      _
    // Predicated region
    $region6: #{_lambda_.29} parent=1 // pred_check
      _
    $region7: #{_lambda_.29} parent=1 // pred_check_branch
      %13 = sbr.rel (0) target = $region9
    $region8: #{_lambda_.29} parent=1 // pred_region
      _
    $region9: #{_lambda_.29} parent=1 // pred_fallthru
      _
    // Predicated region
    $region10: #{_lambda_.29} parent=1 // pred_check
      _
    $region11: #{_lambda_.29} parent=1 // pred_check_branch
      %15 = sbr.rel (0) target = $region13
    $region12: #{_lambda_.29} parent=1 // pred_region
      _
    $region13: #{_lambda_.29} parent=1 // pred_fallthru
      _
    %v16 = vld [vmem:[%s0] sm:$0x3]
    %v17 = vld [vmem:[%s1] sm:$0xff]
    %v18 = vld [vmem:[%s1 + $0x8] sm:$0x1]
    %v19 = vmul.f32 %v16, %v16
    %vm20 = vcmask 123904
    %v21 = vsel %vm20, %v19, 0.0
    %22 = vadd.xlane.f32.xlu0 %v21
    %v23 = vpop.xlane.xlu0 %22
    %v24 = vadd.f32 %v23, 1e-12
    %v25 = vrsqrt.pop %v24
    %v26 = vmul.f32 %v16, %v25
    %v27 = vmul.f32 %v17, %v17
    %v28 = vmul.f32 %v18, %v18
    %vm29 = vcmask 130048
    %v30 = vsel %vm29, %v27, 0.0
    %31 = vadd.xlane.f32.xlu0 %v30
    %v32 = vpop.xlane.xlu0 %31
    %vm33 = vcmask 122880
    %v34 = vsel %vm33, %v28, 0.0
    %35 = vadd.xlane.f32.xlu0 %v34
    %v36 = vpop.xlane.xlu0 %35
    %v37 = vadd.f32 %v32, 1e-12
    %v38 = vadd.f32 %v36, 1e-12
    %v39 = vrsqrt.pop %v37
    %v40 = vrsqrt.pop %v38
    %v41 = vmul.f32 %v17, %v39
    %v42 = vmul.f32 %v18, %v40
    %s43 = sld [smem:[#allocation2]]
    %v44 = vstv %s43
    %v45 = vmul.f32 %v44, 1.442695
    %v46 = vpow.pop %v45
    %s47 = vtos %v46
    %v49 = vsel %vm29, %v26, 0
    %v52 = vsel %vm29, %v41, 0
    %v55 = vsel %vm29, %v42, 0
    %57 = vmatprep.subr.mxu0 0.0
    %58 = vmatpush1.xpose.msra.mxu0 %v52
    %59 = vmatprep.subr.mxu0 0.0
    %60 = vmatpush1.xpose.msra.mxu0 %v55
    %61 = vmatprep.subr.mxu0 0.0
    %62 = vmatpush1.xpose.msra.mxu0 0.0
    %63 = vmatprep.subr.mxu0 0.0
    %64 = vmatpush1.xpose.msra.mxu0 0.0
    %65 = vmatprep.subr.mxu0 0.0
    %66 = vmatpush1.xpose.msra.mxu0 0.0
    %67 = vmatprep.subr.mxu0 0.0
    %68 = vmatpush1.xpose.msra.mxu0 0.0
    %69 = vmatprep.subr.mxu0 0.0
    %70 = vmatpush1.xpose.msra.mxu0 0.0
    %71 = vmatprep.subr.mxu0 0.0
    %72 = vmatpush1.xpose.msra.mxu0 0.0
    %73 = vmatprep.subr.mxu0 0.0
    %74 = vmatpush1.xpose.msra.mxu0 0.0
    %75 = vmatprep.subr.mxu0 0.0
    %76 = vmatpush1.xpose.msra.mxu0 0.0
    %77 = vmatprep.subr.mxu0 0.0
    %78 = vmatpush1.xpose.msra.mxu0 0.0
    %79 = vmatprep.subr.mxu0 0.0
    %80 = vmatpush1.xpose.msra.mxu0 0.0
    %81 = vmatprep.subr.mxu0 0.0
    %82 = vmatpush1.xpose.msra.mxu0 0.0
    %83 = vmatprep.subr.mxu0 0.0
    %84 = vmatpush1.xpose.msra.mxu0 0.0
    %85 = vmatprep.subr.mxu0 0.0
    %86 = vmatpush1.xpose.msra.mxu0 0.0
    %87 = vmatprep.subr.mxu0 0.0
    %88 = vmatpush1.xpose.msra.mxu0 0.0
    %89 = vmatprep.subr.mxu0 0.0
    %90 = vmatpush1.xpose.msra.mxu0 0.0
    %91 = vmatprep.subr.mxu0 0.0
    %92 = vmatpush1.xpose.msra.mxu0 0.0
    %93 = vmatprep.subr.mxu0 0.0
    %94 = vmatpush1.xpose.msra.mxu0 0.0
    %95 = vmatprep.subr.mxu0 0.0
    %96 = vmatpush1.xpose.msra.mxu0 0.0
    %97 = vmatprep.subr.mxu0 0.0
    %98 = vmatpush1.xpose.msra.mxu0 0.0
    %99 = vmatprep.subr.mxu0 0.0
    %100 = vmatpush1.xpose.msra.mxu0 0.0
    %101 = vmatprep.subr.mxu0 0.0
    %102 = vmatpush1.xpose.msra.mxu0 0.0
    %103 = vmatprep.subr.mxu0 0.0
    %104 = vmatpush1.xpose.msra.mxu0 0.0
    %105 = vmatprep.subr.mxu0 0.0
    %106 = vmatpush1.xpose.msra.mxu0 0.0
    %107 = vmatprep.subr.mxu0 0.0
    %108 = vmatpush1.xpose.msra.mxu0 0.0
    %109 = vmatprep.subr.mxu0 0.0
    %110 = vmatpush1.xpose.msra.mxu0 0.0
    %111 = vmatprep.subr.mxu0 0.0
    %112 = vmatpush1.xpose.msra.mxu0 0.0
    %113 = vmatprep.subr.mxu0 0.0
    %114 = vmatpush1.xpose.msra.mxu0 0.0
    %115 = vmatprep.subr.mxu0 0.0
    %116 = vmatpush1.xpose.msra.mxu0 0.0
    %117 = vmatprep.subr.mxu0 0.0
    %118 = vmatpush1.xpose.msra.mxu0 0.0
    %119 = vmatprep.subr.mxu0 0.0
    %120 = vmatpush1.xpose.msra.mxu0 0.0
    %121 = vmatprep.mubr.f32.mxu0 0.0
    %122 = vmatmul.mubr.f32.gmra.mrb[0].mxu0 %v49
    %v123 = vpop.f32.mrb[0].mxu0
    %v124 = vadd.f32 0.0, %v123
    %v125 = vpop.f32.mrb[0].mxu0
    %126 = vdwg.mxu0
    %v127 = vstv %s47
    %v128 = vmul.f32 %v127, %v124
    %vm129 = vcmask 66560
    %130 = vst.msk [vmem:[#allocation3] sm:$0x3] %vm129, %v128
    // Predicated region
    $region14: #{_lambda_.29} parent=1 // pred_check
      _
    $region15: #{_lambda_.29} parent=1 // pred_check_branch
      %132 = sbr.rel (0) target = $region17
    $region16: #{_lambda_.29} parent=1 // pred_region
      %s134 = ssub.s32 32, 32
      %135 = vsyncadd [#allocation4], %s134
      %s137 = sshll.u32 [#allocation3], 4
      %s138 = int_to_ptr.vmem [resolvable:$true] %s137
      %140 = dma.vmem_to_hbm [thread:$0]  %s138, 32, %s3, [#allocation4]
    $region17: #{_lambda_.29} parent=1 // pred_fallthru
      _
    // Predicated region
    $region18: #{_lambda_.29} parent=1 // pred_check
      _
    $region19: #{_lambda_.29} parent=1 // pred_check_branch
      %142 = sbr.rel (0) target = $region21
    $region20: #{_lambda_.29} parent=1 // pred_region
      %143 = dma.done [#allocation4], 32
    $region21: #{_lambda_.29} parent=1 // pred_fallthru
      _
    %144 = vsyncpa [#allocation4], 1

// kernel: _lambda_.22
$region0: #{_lambda_.22}
  #allocation0 [shape = 'u32[]', space=smem, size = 0x4, offset = 0x4, fixed_abs, tag = 'smem constant byte address 0x4 - core index']
  #allocation1 [shape = 'u32[144,128]{1,0:T(1,128)}', space=vmem, size = 0x12000, scoped, tag = 'internal scratch']
  #allocation2 [shape = 'bf16[2,32]{1,0:T(2,128)(2,1)}', space=vmem, size = 0x200, scoped, tag = 'scratch operand']
  %s0 = inlined_call_operand.vmem [shape: bf16[2,32], index: 0, kind: input, shape index: {}]
  %s1 = inlined_call_operand.vmem [shape: f32[1,32], index: 1, kind: input, shape index: {}]
  %s2 = inlined_call_operand.vmem [shape: f32[1,32], index: 2, kind: input, shape index: {}]
  %s3 = inlined_call_operand.vmem [shape: bf16[32,16], index: 3, kind: input, shape index: {}]
  %s4 = inlined_call_operand.vmem [shape: f32[2,16], index: 4, kind: output, shape index: {}]
  %s5 = sld [smem:[#allocation0]]
  $region30: #{_lambda_.22} parent=0
    _
  %s7 = ssub.s32 1, %s5
  %s8 = scalar_select 0, %s7, %s5
  // Predicated region
  $region2: #{_lambda_.22} parent=0 // pred_check
    _
  $region3: #{_lambda_.22} parent=0 // pred_check_branch
    %10 = sbr.rel (0) target = $region5
  $region4: #{_lambda_.22} parent=0 // pred_region
    _
  $region5: #{_lambda_.22} parent=0 // pred_fallthru
    _
  // Predicated region
  $region6: #{_lambda_.22} parent=0 // pred_check
    _
  $region7: #{_lambda_.22} parent=0 // pred_check_branch
    %12 = sbr.rel (0) target = $region9
  $region8: #{_lambda_.22} parent=0 // pred_region
    _
  $region9: #{_lambda_.22} parent=0 // pred_fallthru
    _
  // Predicated region
  $region10: #{_lambda_.22} parent=0 // pred_check
    _
  $region11: #{_lambda_.22} parent=0 // pred_check_branch
    %14 = sbr.rel (0) target = $region13
  $region12: #{_lambda_.22} parent=0 // pred_region
    _
  $region13: #{_lambda_.22} parent=0 // pred_fallthru
    _
  // Predicated region
  $region14: #{_lambda_.22} parent=0 // pred_check
    _
  $region15: #{_lambda_.22} parent=0 // pred_check_branch
    %16 = sbr.rel (0) target = $region17
  $region16: #{_lambda_.22} parent=0 // pred_region
    _
  $region17: #{_lambda_.22} parent=0 // pred_fallthru
    _
  %p18 = scmp.eq.s32.totalorder 0, 0
  // Predicated region
  $region18: #{_lambda_.22} parent=0 // pred_check
    %p19 = pneg %p18
  $region19: #{_lambda_.22} parent=0 // pred_check_branch
    %21 = sbr.rel (%p19) target = $region21
  $region20: #{_lambda_.22} parent=0 // pred_region
    %v22 = vld [vmem:[%s0] sm:$0x1]
    %v23 = vunpack.c.l.bf16 %v22
    %vm24 = vcmask 254976
    %v25 = vsel %vm24, %v23, 0.0
    %26 = vadd.xlane.f32.xlu0 %v25
    %v27 = vpop.xlane.xlu0 %26
    %v28 = vrcp.pop 32.0
    %v29 = vmul.f32 %v27, %v28
    %v30 = vsub.f32 %v23, %v29
    %v31 = vmul.f32 %v30, %v30
    %v32 = vsel %vm24, %v31, 0.0
    %33 = vadd.xlane.f32.xlu0 %v32
    %v34 = vpop.xlane.xlu0 %33
    %v35 = vmul.f32 %v34, %v28
    %v36 = vadd.f32 %v35, 1e-05
    %v37 = vrsqrt.pop %v36
    %v38 = vmul.f32 %v30, %v37
    %v39 = vld [vmem:[%s1] sm:$0x1]
    %v41 = vlaneseq
    %v42 = vshrl.u32 %v41, 7
    %v43 = vsub.s32 0, %v42
    %v44 = vrot.slane %v39, %v43
    %v46 = vmul.f32 %v38, %v44
    %v47 = vld [vmem:[%s2] sm:$0x1]
    %v49 = vlaneseq
    %v50 = vshrl.u32 %v49, 7
    %v51 = vsub.s32 0, %v50
    %v52 = vrot.slane %v47, %v51
    %v54 = vadd.f32 %v46, %v52
    %v55 = vpack.c.bf16 %v54, %v54
    %vm56 = vcmask 253952
    %57 = vst.msk [vmem:[#allocation2] sm:$0x1] %vm56, %v55
  $region21: #{_lambda_.22} parent=0 // pred_fallthru
    _
  %v58 = vld [vmem:[#allocation2] sm:$0x1]
  %v59 = vld [vmem:[%s3] sm:$0xf]
  %v60 = vld [vmem:[%s3 + $0x4] sm:$0xf]
  %v61 = vld [vmem:[%s3 + $0x8] sm:$0xf]
  %v62 = vld [vmem:[%s3 + $0xc] sm:$0xf]
  %v67 = vunpack.c.l.b16 %v59
  %v68 = vunpack.c.l.b16 %v60
  %v69 = vunpack.c.l.b16 %v61
  %v70 = vunpack.c.l.b16 %v62
  %v71 = vpack.c.b16 %v68, %v67
  %v72 = vpack.c.b16 %v70, %v69
  %vm75 = vcmask 261120
  %v77 = vsel %vm75, %v58, 0
  %79 = vmatprep.subr.bf16.mxu0 0
  %80 = vmatpush1.bf16.msra.mxu0 %v71
  %81 = vmatprep.subr.bf16.mxu0 0
  %82 = vmatpush1.bf16.msra.mxu0 %v72
  %83 = vmatprep.subr.bf16.mxu0 0
  %84 = vmatpush1.bf16.msra.mxu0 0
  %85 = vmatprep.subr.bf16.mxu0 0
  %86 = vmatpush1.bf16.msra.mxu0 0
  %87 = vmatprep.subr.bf16.mxu0 0
  %88 = vmatpush1.bf16.msra.mxu0 0
  %89 = vmatprep.subr.bf16.mxu0 0
  %90 = vmatpush1.bf16.msra.mxu0 0
  %91 = vmatprep.subr.bf16.mxu0 0
  %92 = vmatpush1.bf16.msra.mxu0 0
  %93 = vmatprep.subr.bf16.mxu0 0
  %94 = vmatpush1.bf16.msra.mxu0 0
  %95 = vmatprep.subr.bf16.mxu0 0
  %96 = vmatpush1.bf16.msra.mxu0 0
  %97 = vmatprep.subr.bf16.mxu0 0
  %98 = vmatpush1.bf16.msra.mxu0 0
  %99 = vmatprep.subr.bf16.mxu0 0
  %100 = vmatpush1.bf16.msra.mxu0 0
  %101 = vmatprep.subr.bf16.mxu0 0
  %102 = vmatpush1.bf16.msra.mxu0 0
  %103 = vmatprep.subr.bf16.mxu0 0
  %104 = vmatpush1.bf16.msra.mxu0 0
  %105 = vmatprep.subr.bf16.mxu0 0
  %106 = vmatpush1.bf16.msra.mxu0 0
  %107 = vmatprep.subr.bf16.mxu0 0
  %108 = vmatpush1.bf16.msra.mxu0 0
  %109 = vmatprep.subr.bf16.mxu0 0
  %110 = vmatpush1.bf16.msra.mxu0 0
  %111 = vmatprep.mubr.bf16.mxu0 0
  %112 = vmatmul.mubr.bf16.gmra.mrb[0].mxu0 %v77
  %v113 = vpop.f32.mrb[0].mxu0
  %v114 = vadd.f32 0.0, %v113
  %v115 = vpop.f32.mrb[0].mxu0
  %v116 = vpop.f32.mrb[0].mxu0
  %v117 = vpop.f32.mrb[0].mxu0
  %118 = vdwg.mxu0
  %vm119 = vcmask 123904
  %120 = vst.msk [vmem:[%s4] sm:$0x3] %vm119, %v114
  // Predicated region
  $region22: #{_lambda_.22} parent=0 // pred_check
    _
  $region23: #{_lambda_.22} parent=0 // pred_check_branch
    %122 = sbr.rel (0) target = $region25
  $region24: #{_lambda_.22} parent=0 // pred_region
    _
  $region25: #{_lambda_.22} parent=0 // pred_fallthru
    _
  // Predicated region
  $region26: #{_lambda_.22} parent=0 // pred_check
    _
  $region27: #{_lambda_.22} parent=0 // pred_check_branch
    %124 = sbr.rel (0) target = $region29
  $region28: #{_lambda_.22} parent=0 // pred_region
    _
  $region29: #{_lambda_.22} parent=0 // pred_fallthru
    _

</llo_original>
